<compile_context>
chip_gen: v7x
topology: tpu7x:2x2x1
jax: 0.10.0
libtpu: 0.0.40
codegen_flags: <defaults>
</compile_context>

<pallas_src>
import jax
import jax.numpy as jnp
from jax.experimental import pallas as pl
from jax.experimental.pallas import tpu as pltpu


# ----------------------------- glue (plain JAX) -----------------------------

def _fold_bn(gamma, beta, mean, var, eps=1e-5):
    """Fold BatchNorm (eval mode) into per-channel scale/bias."""
    s = gamma / jnp.sqrt(var + eps)
    return s, beta - mean * s


def _weight_to_matmul(w):
    """(Cout, Cin, 3, 3) -> (9*Cin, Cout), tap-major ((ky*3+kx)*Cin + cin)."""
    cout = w.shape[0]
    return jnp.transpose(w, (2, 3, 1, 0)).reshape(-1, cout)


# ------------------------------ fused kernel --------------------------------

def _make_basic_block_kernel(H, W, C, Cout):
    Wp = W + 2          # width incl. zero padding
    Mo = H * Wp         # output rows per image in the width-padded flat layout

    def kernel(xp_ref, w1_ref, b1_ref, w2_ref, b2_ref, mask_ref,
               o_ref, mid_ref):
        # ---- stage 1: conv1 (bn1 scale folded into w1) + bias + ReLU -------
        acc = jnp.zeros((Mo, Cout), jnp.float32)
        for k in range(9):
            ky, kx = divmod(k, 3)
            off = ky * Wp + kx
            tap = xp_ref[off:off + Mo, :].astype(jnp.bfloat16)   # bf16 -> MXU
            acc = acc + jnp.dot(tap, w1_ref[k * C:(k + 1) * C, :],
                                preferred_element_type=jnp.float32)
        mid = jnp.maximum(acc + b1_ref[...], 0.0)

        # Zero the 2 wrap-around columns (w in {W, W+1}) so they act as
        # conv2's zero padding, then drop stage-1 output into the padded VMEM
        # scratch (interior starts at flat offset Wp+1); borders stay zero.
        mid = mid * mask_ref[...]
        mid_ref[...] = jnp.zeros_like(mid_ref)
        mid_ref[Wp + 1:Wp + 1 + Mo, :] = mid.astype(mid_ref.dtype)

        # ---- stage 2: conv2 (bn2 folded) + bias + identity + ReLU ----------
        acc2 = jnp.zeros((Mo, Cout), jnp.float32)
        for k in range(9):
            ky, kx = divmod(k, 3)
            off = ky * Wp + kx
            tap = mid_ref[off:off + Mo, :]                        # bf16
            acc2 = acc2 + jnp.dot(tap, w2_ref[k * Cout:(k + 1) * Cout, :],
                                  preferred_element_type=jnp.float32)
        identity = xp_ref[Wp + 1:Wp + 1 + Mo, :]                  # exact f32
        o_ref[...] = jnp.maximum(acc2 + b2_ref[...] + identity, 0.0)

    return kernel


# ------------------------------ BasicBlock fwd ------------------------------

def basic_block_forward(x_nchw, params):
    """BasicBlock.forward: relu(bn2(conv2(relu(bn1(conv1(x))))) + x)."""
    w1, w2 = params["conv1_w"], params["conv2_w"]
    s1, b1 = _fold_bn(*params["bn1"])
    s2, b2 = _fold_bn(*params["bn2"])

    N, C, H, W = x_nchw.shape
    Cout = w1.shape[0]
    if Cout != C:
        raise NotImplementedError("only the stride=1 / downsample=None path")

    Wp = W + 2
    Mo = H * Wp
    Lp = -(-((H + 2) * Wp + 2) // 8) * 8   # flat padded rows, sublane-aligned

    # NHWC, zero-pad H and W by 1, flatten per image, pad tail rows so the
    # (ky=2, kx=2) tap slice stays in-bounds.
    x_nhwc = jnp.transpose(x_nchw, (0, 2, 3, 1)).astype(jnp.float32)
    xp = jnp.pad(x_nhwc, ((0, 0), (1, 1), (1, 1), (0, 0)))
    xp = xp.reshape(N, (H + 2) * Wp, C)
    xp = jnp.pad(xp, ((0, 0), (0, Lp - (H + 2) * Wp), (0, 0)))

    # Fold BN scale into the matmul weights (one-time O(9*C*Cout)); bf16 MXU.
    w1m = (_weight_to_matmul(w1) * s1[None, :]).astype(jnp.bfloat16)
    w2m = (_weight_to_matmul(w2) * s2[None, :]).astype(jnp.bfloat16)
    b1 = b1.reshape(1, Cout).astype(jnp.float32)
    b2 = b2.reshape(1, Cout).astype(jnp.float32)

    # 1.0 on valid output columns (w < W), 0.0 on the 2 wrap-around columns.
    mask = (jnp.arange(Mo, dtype=jnp.int32) % Wp < W)
    mask = mask.astype(jnp.float32).reshape(Mo, 1)

    kernel = _make_basic_block_kernel(H, W, C, Cout)

    out = pl.pallas_call(
        kernel,
        out_shape=jax.ShapeDtypeStruct((N, Mo, Cout), jnp.float32),
        grid_spec=pltpu.PrefetchScalarGridSpec(
            num_scalar_prefetch=0,
            grid=(N,),                                   # one image per step
            in_specs=[
                pl.BlockSpec((None, Lp, C), lambda n: (n, 0, 0)),   # padded x
                pl.BlockSpec((9 * C, Cout), lambda n: (0, 0)),      # w1 * s1
                pl.BlockSpec((1, Cout), lambda n: (0, 0)),          # b1
                pl.BlockSpec((9 * Cout, Cout), lambda n: (0, 0)),   # w2 * s2
                pl.BlockSpec((1, Cout), lambda n: (0, 0)),          # b2
                pl.BlockSpec((Mo, 1), lambda n: (0, 0)),            # col mask
            ],
            out_specs=pl.BlockSpec((None, Mo, Cout), lambda n: (n, 0, 0)),
            scratch_shapes=[pltpu.VMEM((Lp, Cout), jnp.bfloat16)],  # padded mid
        ),
        compiler_params=pltpu.CompilerParams(
            dimension_semantics=("parallel",)),
    )(xp, w1m, b1, w2m, b2, mask)

    # Strip the 2 width-padding columns, back to NCHW.
    out = out.reshape(N, H, Wp, Cout)[:, :, :W, :]
    return jnp.transpose(out, (0, 3, 1, 2))


# ----------------------------- pure-JAX reference ---------------------------

def _reference(x, params):
    def conv(x, w):
        return jax.lax.conv_general_dilated(
            x, w, window_strides=(1, 1), padding=((1, 1), (1, 1)),
            dimension_numbers=("NCHW", "OIHW", "NCHW"),
            precision=jax.lax.Precision.HIGHEST)

    def bn(x, p):
        g, b, m, v = p
        s = g / jnp.sqrt(v + 1e-5)
        return x * s[None, :, None, None] + (b - m * s)[None, :, None, None]

    out = jnp.maximum(bn(conv(x, params["conv1_w"]), params["bn1"]), 0.0)
    out = bn(conv(out, params["conv2_w"]), params["bn2"]) + x
    return jnp.maximum(out, 0.0)


# ----------------------------------- main ------------------------------------

if __name__ == "__main__":
    key = jax.random.PRNGKey(0)
    N, C, H, W = 2, 32, 16, 16
    Cout = C                                    # stride=1, downsample=None case
    k0, k1, k2 = jax.random.split(key, 3)

    x = jax.random.normal(k0, (N, C, H, W), jnp.float32)
    conv1_w = 0.05 * jax.random.normal(k1, (Cout, C, 3, 3), jnp.float32)
    conv2_w = 0.05 * jax.random.normal(k2, (Cout, Cout, 3, 3), jnp.float32)

    def bn_params(c, off):
        i = jnp.arange(c, dtype=jnp.float32) / c
        return (1.0 + 0.5 * i,             # gamma (weight)
                0.2 * i - 0.1 * off,       # beta  (bias)
                0.1 * i * off,             # running_mean
                1.0 + 0.3 * i)             # running_var

    params = {
        "conv1_w": conv1_w,
        "conv2_w": conv2_w,
        "bn1": bn_params(Cout, 1.0),
        "bn2": bn_params(Cout, 2.0),
    }

    out = jax.jit(basic_block_forward)(x, params)
    out = jax.block_until_ready(out)

    ref = _reference(x, params)
    assert out.shape == (N, Cout, H, W), out.shape
    max_err = float(jnp.max(jnp.abs(out - ref)))
    # bf16 MXU operands with f32 accumulation vs. an f32 HIGHEST-precision
    # reference: tolerance sized for bf16 rounding of the conv operands.
    assert jnp.allclose(out, ref, atol=5e-2, rtol=5e-2), max_err

    print("KERNEL_OK")
</pallas_src>

<mosaic_0001>
module attributes {stable_mosaic.version = 11 : i64} {
  func.func @kernel(%arg0: i32, %arg1: memref<1x328x32xf32, #tpu.memory_space<vmem>>, %arg2: memref<288x32xbf16, #tpu.memory_space<vmem>>, %arg3: memref<1x32xf32, #tpu.memory_space<vmem>>, %arg4: memref<288x32xbf16, #tpu.memory_space<vmem>>, %arg5: memref<1x32xf32, #tpu.memory_space<vmem>>, %arg6: memref<288x1xf32, #tpu.memory_space<vmem>>, %arg7: memref<1x288x32xf32, #tpu.memory_space<vmem>>, %arg8: memref<328x32xbf16, #tpu.memory_space<vmem>>) attributes {dimension_semantics = [#tpu.dimension_semantics<parallel>], iteration_bounds = array<i64: 2>, scalar_prefetch = 0 : i64, scratch_operands = 1 : i64, tpu.core_type = #tpu.core_type<tc>, window_params = [{transform_indices = @transform_0, window_bounds = array<i64: 1, 328, 32>}, {pipeline_mode = #tpu.pipeline_mode<synchronous>, transform_indices = @transform_1, window_bounds = array<i64: 288, 32>}, {pipeline_mode = #tpu.pipeline_mode<synchronous>, transform_indices = @transform_2, window_bounds = array<i64: 1, 32>}, {pipeline_mode = #tpu.pipeline_mode<synchronous>, transform_indices = @transform_3, window_bounds = array<i64: 288, 32>}, {pipeline_mode = #tpu.pipeline_mode<synchronous>, transform_indices = @transform_4, window_bounds = array<i64: 1, 32>}, {pipeline_mode = #tpu.pipeline_mode<synchronous>, transform_indices = @transform_5, window_bounds = array<i64: 288, 1>}, {transform_indices = @transform_6, window_bounds = array<i64: 1, 288, 32>}]} {
    %cst = arith.constant 0.000000e+00 : f32
    %0 = vector.broadcast %cst : f32 to vector<288x32xf32>
    %c0 = arith.constant 0 : index
    %c0_0 = arith.constant 0 : index
    %c0_1 = arith.constant 0 : index
    %1 = vector.load %arg1[%c0, %c0_0, %c0_1] : memref<1x328x32xf32, #tpu.memory_space<vmem>>, vector<1x288x32xf32>
    %2 = vector.shape_cast %1 : vector<1x288x32xf32> to vector<288x32xf32>
    %3 = arith.truncf %2 : vector<288x32xf32> to vector<288x32xbf16>
    %c0_2 = arith.constant 0 : index
    %c0_3 = arith.constant 0 : index
    %4 = vector.load %arg2[%c0_2, %c0_3] : memref<288x32xbf16, #tpu.memory_space<vmem>>, vector<32x32xbf16>
    %cst_4 = arith.constant dense<0.000000e+00> : vector<288x32xf32>
    %5 = tpu.matmul %3, %4, %cst_4 {dimension_numbers = #tpu.dot_dimension_numbers<[1], [0], [0], [1], [0, 0, 1, 1], [], []>} : vector<288x32xbf16>, vector<32x32xbf16>, vector<288x32xf32> -> vector<288x32xf32>
    %6 = arith.addf %0, %5 : vector<288x32xf32>
    %c0_5 = arith.constant 0 : index
    %c1 = arith.constant 1 : index
    %c0_6 = arith.constant 0 : index
    %7 = vector.load %arg1[%c0_5, %c1, %c0_6] : memref<1x328x32xf32, #tpu.memory_space<vmem>>, vector<1x288x32xf32>
    %8 = vector.shape_cast %7 : vector<1x288x32xf32> to vector<288x32xf32>
    %9 = arith.truncf %8 : vector<288x32xf32> to vector<288x32xbf16>
    %c32 = arith.constant 32 : index
    %c0_7 = arith.constant 0 : index
    %10 = vector.load %arg2[%c32, %c0_7] : memref<288x32xbf16, #tpu.memory_space<vmem>>, vector<32x32xbf16>
    %cst_8 = arith.constant dense<0.000000e+00> : vector<288x32xf32>
    %11 = tpu.matmul %9, %10, %cst_8 {dimension_numbers = #tpu.dot_dimension_numbers<[1], [0], [0], [1], [0, 0, 1, 1], [], []>} : vector<288x32xbf16>, vector<32x32xbf16>, vector<288x32xf32> -> vector<288x32xf32>
    %12 = arith.addf %6, %11 : vector<288x32xf32>
    %c0_9 = arith.constant 0 : index
    %c2 = arith.constant 2 : index
    %c0_10 = arith.constant 0 : index
    %13 = vector.load %arg1[%c0_9, %c2, %c0_10] : memref<1x328x32xf32, #tpu.memory_space<vmem>>, vector<1x288x32xf32>
    %14 = vector.shape_cast %13 : vector<1x288x32xf32> to vector<288x32xf32>
    %15 = arith.truncf %14 : vector<288x32xf32> to vector<288x32xbf16>
    %c64 = arith.constant 64 : index
    %c0_11 = arith.constant 0 : index
    %16 = vector.load %arg2[%c64, %c0_11] : memref<288x32xbf16, #tpu.memory_space<vmem>>, vector<32x32xbf16>
    %cst_12 = arith.constant dense<0.000000e+00> : vector<288x32xf32>
    %17 = tpu.matmul %15, %16, %cst_12 {dimension_numbers = #tpu.dot_dimension_numbers<[1], [0], [0], [1], [0, 0, 1, 1], [], []>} : vector<288x32xbf16>, vector<32x32xbf16>, vector<288x32xf32> -> vector<288x32xf32>
    %18 = arith.addf %12, %17 : vector<288x32xf32>
    %c0_13 = arith.constant 0 : index
    %c18 = arith.constant 18 : index
    %c0_14 = arith.constant 0 : index
    %19 = vector.load %arg1[%c0_13, %c18, %c0_14] : memref<1x328x32xf32, #tpu.memory_space<vmem>>, vector<1x288x32xf32>
    %20 = vector.shape_cast %19 : vector<1x288x32xf32> to vector<288x32xf32>
    %21 = arith.truncf %20 : vector<288x32xf32> to vector<288x32xbf16>
    %c96 = arith.constant 96 : index
    %c0_15 = arith.constant 0 : index
    %22 = vector.load %arg2[%c96, %c0_15] : memref<288x32xbf16, #tpu.memory_space<vmem>>, vector<32x32xbf16>
    %cst_16 = arith.constant dense<0.000000e+00> : vector<288x32xf32>
    %23 = tpu.matmul %21, %22, %cst_16 {dimension_numbers = #tpu.dot_dimension_numbers<[1], [0], [0], [1], [0, 0, 1, 1], [], []>} : vector<288x32xbf16>, vector<32x32xbf16>, vector<288x32xf32> -> vector<288x32xf32>
    %24 = arith.addf %18, %23 : vector<288x32xf32>
    %c0_17 = arith.constant 0 : index
    %c19 = arith.constant 19 : index
    %c0_18 = arith.constant 0 : index
    %25 = vector.load %arg1[%c0_17, %c19, %c0_18] : memref<1x328x32xf32, #tpu.memory_space<vmem>>, vector<1x288x32xf32>
    %26 = vector.shape_cast %25 : vector<1x288x32xf32> to vector<288x32xf32>
    %27 = arith.truncf %26 : vector<288x32xf32> to vector<288x32xbf16>
    %c128 = arith.constant 128 : index
    %c0_19 = arith.constant 0 : index
    %28 = vector.load %arg2[%c128, %c0_19] : memref<288x32xbf16, #tpu.memory_space<vmem>>, vector<32x32xbf16>
    %cst_20 = arith.constant dense<0.000000e+00> : vector<288x32xf32>
    %29 = tpu.matmul %27, %28, %cst_20 {dimension_numbers = #tpu.dot_dimension_numbers<[1], [0], [0], [1], [0, 0, 1, 1], [], []>} : vector<288x32xbf16>, vector<32x32xbf16>, vector<288x32xf32> -> vector<288x32xf32>
    %30 = arith.addf %24, %29 : vector<288x32xf32>
    %c0_21 = arith.constant 0 : index
    %c20 = arith.constant 20 : index
    %c0_22 = arith.constant 0 : index
    %31 = vector.load %arg1[%c0_21, %c20, %c0_22] : memref<1x328x32xf32, #tpu.memory_space<vmem>>, vector<1x288x32xf32>
    %32 = vector.shape_cast %31 : vector<1x288x32xf32> to vector<288x32xf32>
    %33 = arith.truncf %32 : vector<288x32xf32> to vector<288x32xbf16>
    %c160 = arith.constant 160 : index
    %c0_23 = arith.constant 0 : index
    %34 = vector.load %arg2[%c160, %c0_23] : memref<288x32xbf16, #tpu.memory_space<vmem>>, vector<32x32xbf16>
    %cst_24 = arith.constant dense<0.000000e+00> : vector<288x32xf32>
    %35 = tpu.matmul %33, %34, %cst_24 {dimension_numbers = #tpu.dot_dimension_numbers<[1], [0], [0], [1], [0, 0, 1, 1], [], []>} : vector<288x32xbf16>, vector<32x32xbf16>, vector<288x32xf32> -> vector<288x32xf32>
    %36 = arith.addf %30, %35 : vector<288x32xf32>
    %c0_25 = arith.constant 0 : index
    %c36 = arith.constant 36 : index
    %c0_26 = arith.constant 0 : index
    %37 = vector.load %arg1[%c0_25, %c36, %c0_26] : memref<1x328x32xf32, #tpu.memory_space<vmem>>, vector<1x288x32xf32>
    %38 = vector.shape_cast %37 : vector<1x288x32xf32> to vector<288x32xf32>
    %39 = arith.truncf %38 : vector<288x32xf32> to vector<288x32xbf16>
    %c192 = arith.constant 192 : index
    %c0_27 = arith.constant 0 : index
    %40 = vector.load %arg2[%c192, %c0_27] : memref<288x32xbf16, #tpu.memory_space<vmem>>, vector<32x32xbf16>
    %cst_28 = arith.constant dense<0.000000e+00> : vector<288x32xf32>
    %41 = tpu.matmul %39, %40, %cst_28 {dimension_numbers = #tpu.dot_dimension_numbers<[1], [0], [0], [1], [0, 0, 1, 1], [], []>} : vector<288x32xbf16>, vector<32x32xbf16>, vector<288x32xf32> -> vector<288x32xf32>
    %42 = arith.addf %36, %41 : vector<288x32xf32>
    %c0_29 = arith.constant 0 : index
    %c37 = arith.constant 37 : index
    %c0_30 = arith.constant 0 : index
    %43 = vector.load %arg1[%c0_29, %c37, %c0_30] : memref<1x328x32xf32, #tpu.memory_space<vmem>>, vector<1x288x32xf32>
    %44 = vector.shape_cast %43 : vector<1x288x32xf32> to vector<288x32xf32>
    %45 = arith.truncf %44 : vector<288x32xf32> to vector<288x32xbf16>
    %c224 = arith.constant 224 : index
    %c0_31 = arith.constant 0 : index
    %46 = vector.load %arg2[%c224, %c0_31] : memref<288x32xbf16, #tpu.memory_space<vmem>>, vector<32x32xbf16>
    %cst_32 = arith.constant dense<0.000000e+00> : vector<288x32xf32>
    %47 = tpu.matmul %45, %46, %cst_32 {dimension_numbers = #tpu.dot_dimension_numbers<[1], [0], [0], [1], [0, 0, 1, 1], [], []>} : vector<288x32xbf16>, vector<32x32xbf16>, vector<288x32xf32> -> vector<288x32xf32>
    %48 = arith.addf %42, %47 : vector<288x32xf32>
    %c0_33 = arith.constant 0 : index
    %c38 = arith.constant 38 : index
    %c0_34 = arith.constant 0 : index
    %49 = vector.load %arg1[%c0_33, %c38, %c0_34] : memref<1x328x32xf32, #tpu.memory_space<vmem>>, vector<1x288x32xf32>
    %50 = vector.shape_cast %49 : vector<1x288x32xf32> to vector<288x32xf32>
    %51 = arith.truncf %50 : vector<288x32xf32> to vector<288x32xbf16>
    %c256 = arith.constant 256 : index
    %c0_35 = arith.constant 0 : index
    %52 = vector.load %arg2[%c256, %c0_35] : memref<288x32xbf16, #tpu.memory_space<vmem>>, vector<32x32xbf16>
    %cst_36 = arith.constant dense<0.000000e+00> : vector<288x32xf32>
    %53 = tpu.matmul %51, %52, %cst_36 {dimension_numbers = #tpu.dot_dimension_numbers<[1], [0], [0], [1], [0, 0, 1, 1], [], []>} : vector<288x32xbf16>, vector<32x32xbf16>, vector<288x32xf32> -> vector<288x32xf32>
    %54 = arith.addf %48, %53 : vector<288x32xf32>
    %c0_37 = arith.constant 0 : index
    %c0_38 = arith.constant 0 : index
    %55 = vector.load %arg3[%c0_37, %c0_38] : memref<1x32xf32, #tpu.memory_space<vmem>>, vector<1x32xf32>
    %56 = vector.broadcast %55 : vector<1x32xf32> to vector<288x32xf32>
    %57 = arith.addf %54, %56 : vector<288x32xf32>
    %cst_39 = arith.constant 0.000000e+00 : f32
    %58 = vector.broadcast %cst_39 : f32 to vector<288x32xf32>
    %59 = arith.maximumf %57, %58 : vector<288x32xf32>
    %c0_40 = arith.constant 0 : index
    %c0_41 = arith.constant 0 : index
    %60 = vector.load %arg6[%c0_40, %c0_41] : memref<288x1xf32, #tpu.memory_space<vmem>>, vector<288x1xf32>
    %61 = vector.broadcast %60 : vector<288x1xf32> to vector<288x32xf32>
    %62 = arith.mulf %59, %61 : vector<288x32xf32>
    %cst_42 = arith.constant 0.000000e+00 : bf16
    %63 = vector.broadcast %cst_42 : bf16 to vector<328x32xbf16>
    %c0_43 = arith.constant 0 : index
    %c0_44 = arith.constant 0 : index
    %64 = vector.load %arg8[%c0_43, %c0_44] : memref<328x32xbf16, #tpu.memory_space<vmem>>, vector<328x32xbf16>
    tpu.vector_store %arg8[%c0_43, %c0_44], %63 {strides = array<i32>} : memref<328x32xbf16, #tpu.memory_space<vmem>>, vector<328x32xbf16>,
    %65 = arith.truncf %62 : vector<288x32xf32> to vector<288x32xbf16>
    %c19_45 = arith.constant 19 : index
    %c0_46 = arith.constant 0 : index
    %66 = vector.load %arg8[%c19_45, %c0_46] : memref<328x32xbf16, #tpu.memory_space<vmem>>, vector<288x32xbf16>
    tpu.vector_store %arg8[%c19_45, %c0_46], %65 {strides = array<i32>} : memref<328x32xbf16, #tpu.memory_space<vmem>>, vector<288x32xbf16>,
    %cst_47 = arith.constant 0.000000e+00 : f32
    %67 = vector.broadcast %cst_47 : f32 to vector<288x32xf32>
    %c0_48 = arith.constant 0 : index
    %c0_49 = arith.constant 0 : index
    %68 = vector.load %arg8[%c0_48, %c0_49] : memref<328x32xbf16, #tpu.memory_space<vmem>>, vector<288x32xbf16>
    %c0_50 = arith.constant 0 : index
    %c0_51 = arith.constant 0 : index
    %69 = vector.load %arg4[%c0_50, %c0_51] : memref<288x32xbf16, #tpu.memory_space<vmem>>, vector<32x32xbf16>
    %cst_52 = arith.constant dense<0.000000e+00> : vector<288x32xf32>
    %70 = tpu.matmul %68, %69, %cst_52 {dimension_numbers = #tpu.dot_dimension_numbers<[1], [0], [0], [1], [0, 0, 1, 1], [], []>} : vector<288x32xbf16>, vector<32x32xbf16>, vector<288x32xf32> -> vector<288x32xf32>
    %71 = arith.addf %67, %70 : vector<288x32xf32>
    %c1_53 = arith.constant 1 : index
    %c0_54 = arith.constant 0 : index
    %72 = vector.load %arg8[%c1_53, %c0_54] : memref<328x32xbf16, #tpu.memory_space<vmem>>, vector<288x32xbf16>
    %c32_55 = arith.constant 32 : index
    %c0_56 = arith.constant 0 : index
    %73 = vector.load %arg4[%c32_55, %c0_56] : memref<288x32xbf16, #tpu.memory_space<vmem>>, vector<32x32xbf16>
    %cst_57 = arith.constant dense<0.000000e+00> : vector<288x32xf32>
    %74 = tpu.matmul %72, %73, %cst_57 {dimension_numbers = #tpu.dot_dimension_numbers<[1], [0], [0], [1], [0, 0, 1, 1], [], []>} : vector<288x32xbf16>, vector<32x32xbf16>, vector<288x32xf32> -> vector<288x32xf32>
    %75 = arith.addf %71, %74 : vector<288x32xf32>
    %c2_58 = arith.constant 2 : index
    %c0_59 = arith.constant 0 : index
    %76 = vector.load %arg8[%c2_58, %c0_59] : memref<328x32xbf16, #tpu.memory_space<vmem>>, vector<288x32xbf16>
    %c64_60 = arith.constant 64 : index
    %c0_61 = arith.constant 0 : index
    %77 = vector.load %arg4[%c64_60, %c0_61] : memref<288x32xbf16, #tpu.memory_space<vmem>>, vector<32x32xbf16>
    %cst_62 = arith.constant dense<0.000000e+00> : vector<288x32xf32>
    %78 = tpu.matmul %76, %77, %cst_62 {dimension_numbers = #tpu.dot_dimension_numbers<[1], [0], [0], [1], [0, 0, 1, 1], [], []>} : vector<288x32xbf16>, vector<32x32xbf16>, vector<288x32xf32> -> vector<288x32xf32>
    %79 = arith.addf %75, %78 : vector<288x32xf32>
    %c18_63 = arith.constant 18 : index
    %c0_64 = arith.constant 0 : index
    %80 = vector.load %arg8[%c18_63, %c0_64] : memref<328x32xbf16, #tpu.memory_space<vmem>>, vector<288x32xbf16>
    %c96_65 = arith.constant 96 : index
    %c0_66 = arith.constant 0 : index
    %81 = vector.load %arg4[%c96_65, %c0_66] : memref<288x32xbf16, #tpu.memory_space<vmem>>, vector<32x32xbf16>
    %cst_67 = arith.constant dense<0.000000e+00> : vector<288x32xf32>
    %82 = tpu.matmul %80, %81, %cst_67 {dimension_numbers = #tpu.dot_dimension_numbers<[1], [0], [0], [1], [0, 0, 1, 1], [], []>} : vector<288x32xbf16>, vector<32x32xbf16>, vector<288x32xf32> -> vector<288x32xf32>
    %83 = arith.addf %79, %82 : vector<288x32xf32>
    %c19_68 = arith.constant 19 : index
    %c0_69 = arith.constant 0 : index
    %84 = vector.load %arg8[%c19_68, %c0_69] : memref<328x32xbf16, #tpu.memory_space<vmem>>, vector<288x32xbf16>
    %c128_70 = arith.constant 128 : index
    %c0_71 = arith.constant 0 : index
    %85 = vector.load %arg4[%c128_70, %c0_71] : memref<288x32xbf16, #tpu.memory_space<vmem>>, vector<32x32xbf16>
    %cst_72 = arith.constant dense<0.000000e+00> : vector<288x32xf32>
    %86 = tpu.matmul %84, %85, %cst_72 {dimension_numbers = #tpu.dot_dimension_numbers<[1], [0], [0], [1], [0, 0, 1, 1], [], []>} : vector<288x32xbf16>, vector<32x32xbf16>, vector<288x32xf32> -> vector<288x32xf32>
    %87 = arith.addf %83, %86 : vector<288x32xf32>
    %c20_73 = arith.constant 20 : index
    %c0_74 = arith.constant 0 : index
    %88 = vector.load %arg8[%c20_73, %c0_74] : memref<328x32xbf16, #tpu.memory_space<vmem>>, vector<288x32xbf16>
    %c160_75 = arith.constant 160 : index
    %c0_76 = arith.constant 0 : index
    %89 = vector.load %arg4[%c160_75, %c0_76] : memref<288x32xbf16, #tpu.memory_space<vmem>>, vector<32x32xbf16>
    %cst_77 = arith.constant dense<0.000000e+00> : vector<288x32xf32>
    %90 = tpu.matmul %88, %89, %cst_77 {dimension_numbers = #tpu.dot_dimension_numbers<[1], [0], [0], [1], [0, 0, 1, 1], [], []>} : vector<288x32xbf16>, vector<32x32xbf16>, vector<288x32xf32> -> vector<288x32xf32>
    %91 = arith.addf %87, %90 : vector<288x32xf32>
    %c36_78 = arith.constant 36 : index
    %c0_79 = arith.constant 0 : index
    %92 = vector.load %arg8[%c36_78, %c0_79] : memref<328x32xbf16, #tpu.memory_space<vmem>>, vector<288x32xbf16>
    %c192_80 = arith.constant 192 : index
    %c0_81 = arith.constant 0 : index
    %93 = vector.load %arg4[%c192_80, %c0_81] : memref<288x32xbf16, #tpu.memory_space<vmem>>, vector<32x32xbf16>
    %cst_82 = arith.constant dense<0.000000e+00> : vector<288x32xf32>
    %94 = tpu.matmul %92, %93, %cst_82 {dimension_numbers = #tpu.dot_dimension_numbers<[1], [0], [0], [1], [0, 0, 1, 1], [], []>} : vector<288x32xbf16>, vector<32x32xbf16>, vector<288x32xf32> -> vector<288x32xf32>
    %95 = arith.addf %91, %94 : vector<288x32xf32>
    %c37_83 = arith.constant 37 : index
    %c0_84 = arith.constant 0 : index
    %96 = vector.load %arg8[%c37_83, %c0_84] : memref<328x32xbf16, #tpu.memory_space<vmem>>, vector<288x32xbf16>
    %c224_85 = arith.constant 224 : index
    %c0_86 = arith.constant 0 : index
    %97 = vector.load %arg4[%c224_85, %c0_86] : memref<288x32xbf16, #tpu.memory_space<vmem>>, vector<32x32xbf16>
    %cst_87 = arith.constant dense<0.000000e+00> : vector<288x32xf32>
    %98 = tpu.matmul %96, %97, %cst_87 {dimension_numbers = #tpu.dot_dimension_numbers<[1], [0], [0], [1], [0, 0, 1, 1], [], []>} : vector<288x32xbf16>, vector<32x32xbf16>, vector<288x32xf32> -> vector<288x32xf32>
    %99 = arith.addf %95, %98 : vector<288x32xf32>
    %c38_88 = arith.constant 38 : index
    %c0_89 = arith.constant 0 : index
    %100 = vector.load %arg8[%c38_88, %c0_89] : memref<328x32xbf16, #tpu.memory_space<vmem>>, vector<288x32xbf16>
    %c256_90 = arith.constant 256 : index
    %c0_91 = arith.constant 0 : index
    %101 = vector.load %arg4[%c256_90, %c0_91] : memref<288x32xbf16, #tpu.memory_space<vmem>>, vector<32x32xbf16>
    %cst_92 = arith.constant dense<0.000000e+00> : vector<288x32xf32>
    %102 = tpu.matmul %100, %101, %cst_92 {dimension_numbers = #tpu.dot_dimension_numbers<[1], [0], [0], [1], [0, 0, 1, 1], [], []>} : vector<288x32xbf16>, vector<32x32xbf16>, vector<288x32xf32> -> vector<288x32xf32>
    %103 = arith.addf %99, %102 : vector<288x32xf32>
    %c0_93 = arith.constant 0 : index
    %c19_94 = arith.constant 19 : index
    %c0_95 = arith.constant 0 : index
    %104 = vector.load %arg1[%c0_93, %c19_94, %c0_95] : memref<1x328x32xf32, #tpu.memory_space<vmem>>, vector<1x288x32xf32>
    %105 = vector.shape_cast %104 : vector<1x288x32xf32> to vector<288x32xf32>
    %c0_96 = arith.constant 0 : index
    %c0_97 = arith.constant 0 : index
    %106 = vector.load %arg5[%c0_96, %c0_97] : memref<1x32xf32, #tpu.memory_space<vmem>>, vector<1x32xf32>
    %107 = vector.broadcast %106 : vector<1x32xf32> to vector<288x32xf32>
    %108 = arith.addf %103, %107 : vector<288x32xf32>
    %109 = arith.addf %108, %105 : vector<288x32xf32>
    %cst_98 = arith.constant 0.000000e+00 : f32
    %110 = vector.broadcast %cst_98 : f32 to vector<288x32xf32>
    %111 = arith.maximumf %109, %110 : vector<288x32xf32>
    %c0_99 = arith.constant 0 : index
    %c0_100 = arith.constant 0 : index
    %c0_101 = arith.constant 0 : index
    %112 = vector.load %arg7[%c0_99, %c0_100, %c0_101] : memref<1x288x32xf32, #tpu.memory_space<vmem>>, vector<1x288x32xf32>
    %113 = vector.shape_cast %112 : vector<1x288x32xf32> to vector<288x32xf32>
    %114 = vector.shape_cast %111 : vector<288x32xf32> to vector<1x288x32xf32>
    tpu.vector_store %arg7[%c0_99, %c0_100, %c0_101], %114 {strides = array<i32>} : memref<1x288x32xf32, #tpu.memory_space<vmem>>, vector<1x288x32xf32>,
    return
  }
  func.func @transform_0(%arg0: i32) -> (i32, i32, i32) {
    %c0_i32 = arith.constant 0 : i32
    %c0_i32_0 = arith.constant 0 : i32
    %c0_i32_1 = arith.constant 0 : i32
    return %arg0, %c0_i32, %c0_i32_0 : i32, i32, i32
  }
  func.func @transform_1(%arg0: i32) -> (i32, i32) {
    %c0_i32 = arith.constant 0 : i32
    %c0_i32_0 = arith.constant 0 : i32
    %c0_i32_1 = arith.constant 0 : i32
    return %c0_i32, %c0_i32_0 : i32, i32
  }
  func.func @transform_2(%arg0: i32) -> (i32, i32) {
    %c0_i32 = arith.constant 0 : i32
    %c0_i32_0 = arith.constant 0 : i32
    %c0_i32_1 = arith.constant 0 : i32
    return %c0_i32, %c0_i32_0 : i32, i32
  }
  func.func @transform_3(%arg0: i32) -> (i32, i32) {
    %c0_i32 = arith.constant 0 : i32
    %c0_i32_0 = arith.constant 0 : i32
    %c0_i32_1 = arith.constant 0 : i32
    return %c0_i32, %c0_i32_0 : i32, i32
  }
  func.func @transform_4(%arg0: i32) -> (i32, i32) {
    %c0_i32 = arith.constant 0 : i32
    %c0_i32_0 = arith.constant 0 : i32
    %c0_i32_1 = arith.constant 0 : i32
    return %c0_i32, %c0_i32_0 : i32, i32
  }
  func.func @transform_5(%arg0: i32) -> (i32, i32) {
    %c0_i32 = arith.constant 0 : i32
    %c0_i32_0 = arith.constant 0 : i32
    %c0_i32_1 = arith.constant 0 : i32
    return %c0_i32, %c0_i32_0 : i32, i32
  }
  func.func @transform_6(%arg0: i32) -> (i32, i32, i32) {
    %c0_i32 = arith.constant 0 : i32
    %c0_i32_0 = arith.constant 0 : i32
    %c0_i32_1 = arith.constant 0 : i32
    return %arg0, %c0_i32, %c0_i32_0 : i32, i32, i32
  }
}

</mosaic_0001>

<llo_original>
// kernel: basic_block_forward.1
$region0: #{basic_block_forward.1}
  #allocation0 [shape = 'u32[]', space=smem, size = 0x4, offset = 0x4, fixed_abs, tag = 'smem constant byte address 0x4 - core index']
  #allocation1 [shape = 'u32[144,128]{1,0:T(1,128)}', space=vmem, size = 0x12000, scoped, tag = 'internal scratch']
  #allocation2 [shape = 'bf16[328,32]{1,0:T(8,128)(2,1)}', space=vmem, size = 0x14800, scoped, tag = 'scratch operand']
  %s0 = inlined_call_operand.vmem [shape: f32[2,328,32], index: 0, kind: input, shape index: {}]
  %s1 = inlined_call_operand.vmem [shape: bf16[288,32], index: 1, kind: input, shape index: {}]
  %s2 = inlined_call_operand.vmem [shape: f32[1,32], index: 2, kind: input, shape index: {}]
  %s3 = inlined_call_operand.vmem [shape: bf16[288,32], index: 3, kind: input, shape index: {}]
  %s4 = inlined_call_operand.vmem [shape: f32[1,32], index: 4, kind: input, shape index: {}]
  %s5 = inlined_call_operand.vmem [shape: f32[288,1], index: 5, kind: input, shape index: {}]
  %s6 = inlined_call_operand.vmem [shape: f32[2,288,32], index: 6, kind: output, shape index: {}]
  %s7 = sld [smem:[#allocation0]]
  $region57: #{basic_block_forward.1} parent=0
    _
  %s9 = ssub.s32 1, %s7
  %s10 = scalar_select 0, %s9, %s7
  loop: start=0, step=1, limit=4
  $region2: #{basic_block_forward.1} parent=0 // loop_pre_header
    _
  $region3: #{basic_block_forward.1} parent=0 // loop_header
    %s12 = sphi 0, %s16
    %p13 = scmp.ge.s32.totalorder %s12, 4
    %s22 = sphi 0, %s24
    %s25 = sphi 0, %s22
    %s26 = sphi 0, %s25
    %s42 = sphi 0, %s26
    %s46 = sphi 0, %s46
    %s48 = sphi 0, %s46
    %s49 = sphi 0, %s48
    %s63 = sphi 0, %s49
    %s67 = sphi 0, %s67
    %s69 = sphi 0, %s67
    %s70 = sphi 0, %s69
    %s84 = sphi 0, %s70
    %s88 = sphi 0, %s88
    %s90 = sphi 0, %s88
    %s91 = sphi 0, %s90
    %s105 = sphi 0, %s91
    %s109 = sphi 0, %s109
    %s111 = sphi 0, %s109
    %s112 = sphi 0, %s111
    %s126 = sphi 0, %s112
    %s130 = sphi 0, %s130
    %s132 = sphi 0, %s130
    %s133 = sphi 0, %s132
    %s147 = sphi 0, %s133
    %s153 = sphi 0, %s155
    %s156 = sphi 0, %s153
    %s157 = sphi 0, %s156
    %s173 = sphi 0, %s157
  $region4: #{basic_block_forward.1} parent=0 // loop_header_branch
    %15 = sbr.rel (%p13) target = $region8
  $region5: #{basic_block_forward.1} parent=0 // loop_body
    %s17 = ssub.s32 %s12, 1
    %s18 = ssub.s32 %s12, 2
    %s19 = sadd.s32 %s12, 1
    %s20 = ssub.s32 %s12, %s19
    %p21 = scmp.eq.s32.totalorder %s20, 0
    %s23 = sadd.s32 %s22, 1
    %s24 = scalar_select %p21, %s22, %s23
    %p27 = pneg %p21
    %p28 = scmp.eq.s32.totalorder %s12, 1
    %p29 = por %p27, %p28
    %p30 = scmp.ne.s32.totalorder %s22, %s25
    %p31 = scmp.eq.s32.totalorder %s12, 0
    %p32 = por %p30, %p31
    %p33 = scmp.ne.s32.totalorder %s22, %s25
    %p34 = scmp.eq.s32.totalorder %s17, 1
    %p35 = por %p33, %p34
    %p36 = scmp.ne.s32.totalorder %s25, %s26
    %p37 = scmp.eq.s32.totalorder %s17, 0
    %p38 = por %p36, %p37
    %p39 = scmp.ne.s32.totalorder %s25, %s26
    %p40 = scmp.eq.s32.totalorder %s18, 1
    %p41 = por %p39, %p40
    %p43 = scmp.ne.s32.totalorder %s26, %s42
    %p44 = scmp.eq.s32.totalorder %s18, 0
    %p45 = por %p43, %p44
    %s47 = sadd.s32 %s46, 1
    %p50 = scmp.eq.s32.totalorder %s12, 1
    %p51 = scmp.ne.s32.totalorder %s46, %s48
    %p52 = scmp.eq.s32.totalorder %s12, 0
    %p53 = por %p51, %p52
    %p54 = scmp.ne.s32.totalorder %s46, %s48
    %p55 = scmp.eq.s32.totalorder %s17, 1
    %p56 = por %p54, %p55
    %p57 = scmp.ne.s32.totalorder %s48, %s49
    %p58 = scmp.eq.s32.totalorder %s17, 0
    %p59 = por %p57, %p58
    %p60 = scmp.ne.s32.totalorder %s48, %s49
    %p61 = scmp.eq.s32.totalorder %s18, 1
    %p62 = por %p60, %p61
    %p64 = scmp.ne.s32.totalorder %s49, %s63
    %p65 = scmp.eq.s32.totalorder %s18, 0
    %p66 = por %p64, %p65
    %s68 = sadd.s32 %s67, 1
    %p71 = scmp.eq.s32.totalorder %s12, 1
    %p72 = scmp.ne.s32.totalorder %s67, %s69
    %p73 = scmp.eq.s32.totalorder %s12, 0
    %p74 = por %p72, %p73
    %p75 = scmp.ne.s32.totalorder %s67, %s69
    %p76 = scmp.eq.s32.totalorder %s17, 1
    %p77 = por %p75, %p76
    %p78 = scmp.ne.s32.totalorder %s69, %s70
    %p79 = scmp.eq.s32.totalorder %s17, 0
    %p80 = por %p78, %p79
    %p81 = scmp.ne.s32.totalorder %s69, %s70
    %p82 = scmp.eq.s32.totalorder %s18, 1
    %p83 = por %p81, %p82
    %p85 = scmp.ne.s32.totalorder %s70, %s84
    %p86 = scmp.eq.s32.totalorder %s18, 0
    %p87 = por %p85, %p86
    %s89 = sadd.s32 %s88, 1
    %p92 = scmp.eq.s32.totalorder %s12, 1
    %p93 = scmp.ne.s32.totalorder %s88, %s90
    %p94 = scmp.eq.s32.totalorder %s12, 0
    %p95 = por %p93, %p94
    %p96 = scmp.ne.s32.totalorder %s88, %s90
    %p97 = scmp.eq.s32.totalorder %s17, 1
    %p98 = por %p96, %p97
    %p99 = scmp.ne.s32.totalorder %s90, %s91
    %p100 = scmp.eq.s32.totalorder %s17, 0
    %p101 = por %p99, %p100
    %p102 = scmp.ne.s32.totalorder %s90, %s91
    %p103 = scmp.eq.s32.totalorder %s18, 1
    %p104 = por %p102, %p103
    %p106 = scmp.ne.s32.totalorder %s91, %s105
    %p107 = scmp.eq.s32.totalorder %s18, 0
    %p108 = por %p106, %p107
    %s110 = sadd.s32 %s109, 1
    %p113 = scmp.eq.s32.totalorder %s12, 1
    %p114 = scmp.ne.s32.totalorder %s109, %s111
    %p115 = scmp.eq.s32.totalorder %s12, 0
    %p116 = por %p114, %p115
    %p117 = scmp.ne.s32.totalorder %s109, %s111
    %p118 = scmp.eq.s32.totalorder %s17, 1
    %p119 = por %p117, %p118
    %p120 = scmp.ne.s32.totalorder %s111, %s112
    %p121 = scmp.eq.s32.totalorder %s17, 0
    %p122 = por %p120, %p121
    %p123 = scmp.ne.s32.totalorder %s111, %s112
    %p124 = scmp.eq.s32.totalorder %s18, 1
    %p125 = por %p123, %p124
    %p127 = scmp.ne.s32.totalorder %s112, %s126
    %p128 = scmp.eq.s32.totalorder %s18, 0
    %p129 = por %p127, %p128
    %s131 = sadd.s32 %s130, 1
    %p134 = scmp.eq.s32.totalorder %s12, 1
    %p135 = scmp.ne.s32.totalorder %s130, %s132
    %p136 = scmp.eq.s32.totalorder %s12, 0
    %p137 = por %p135, %p136
    %p138 = scmp.ne.s32.totalorder %s130, %s132
    %p139 = scmp.eq.s32.totalorder %s17, 1
    %p140 = por %p138, %p139
    %p141 = scmp.ne.s32.totalorder %s132, %s133
    %p142 = scmp.eq.s32.totalorder %s17, 0
    %p143 = por %p141, %p142
    %p144 = scmp.ne.s32.totalorder %s132, %s133
    %p145 = scmp.eq.s32.totalorder %s18, 1
    %p146 = por %p144, %p145
    %p148 = scmp.ne.s32.totalorder %s133, %s147
    %p149 = scmp.eq.s32.totalorder %s18, 0
    %p150 = por %p148, %p149
    %s151 = ssub.s32 %s12, %s19
    %p152 = scmp.eq.s32.totalorder %s151, 0
    %s154 = sadd.s32 %s153, 1
    %s155 = scalar_select %p152, %s153, %s154
    %p158 = pneg %p152
    %p159 = scmp.eq.s32.totalorder %s12, 1
    %p160 = por %p158, %p159
    %p161 = scmp.ne.s32.totalorder %s153, %s156
    %p162 = scmp.eq.s32.totalorder %s12, 0
    %p163 = por %p161, %p162
    %p164 = scmp.ne.s32.totalorder %s153, %s156
    %p165 = scmp.eq.s32.totalorder %s17, 1
    %p166 = por %p164, %p165
    %p167 = scmp.ne.s32.totalorder %s156, %s157
    %p168 = scmp.eq.s32.totalorder %s17, 0
    %p169 = por %p167, %p168
    %p170 = scmp.ne.s32.totalorder %s156, %s157
    %p171 = scmp.eq.s32.totalorder %s18, 1
    %p172 = por %p170, %p171
    %p174 = scmp.ne.s32.totalorder %s157, %s173
    %p175 = scmp.eq.s32.totalorder %s18, 0
    %p176 = por %p174, %p175
    %p177 = scmp.le.s32.totalorder 1, %s12
    %p178 = scmp.lt.s32.totalorder %s12, 3
    %p179 = pnand %p177, %p178
    %p180 = pneg %p179
    // Predicated region
    $region9: #{basic_block_forward.1} parent=5 // pred_check
      _
    $region10: #{basic_block_forward.1} parent=5 // pred_check_branch
      %182 = sbr.rel (%p179) target = $region12
    $region11: #{basic_block_forward.1} parent=5 // pred_region
      %s183 = ssub.s32 %s12, 1
      // Predicated region
      $region13: #{basic_block_forward.1} parent=11 // pred_check
        %p184 = pneg %p59
      $region14: #{basic_block_forward.1} parent=11 // pred_check_branch
        %186 = sbr.rel (%p184) target = $region16
      $region15: #{basic_block_forward.1} parent=11 // pred_region
        _
      $region16: #{basic_block_forward.1} parent=11 // pred_fallthru
        _
      // Predicated region
      $region17: #{basic_block_forward.1} parent=11 // pred_check
        %p187 = pneg %p80
      $region18: #{basic_block_forward.1} parent=11 // pred_check_branch
        %189 = sbr.rel (%p187) target = $region20
      $region19: #{basic_block_forward.1} parent=11 // pred_region
        _
      $region20: #{basic_block_forward.1} parent=11 // pred_fallthru
        _
      // Predicated region
      $region21: #{basic_block_forward.1} parent=11 // pred_check
        %p190 = pneg %p101
      $region22: #{basic_block_forward.1} parent=11 // pred_check_branch
        %192 = sbr.rel (%p190) target = $region24
      $region23: #{basic_block_forward.1} parent=11 // pred_region
        _
      $region24: #{basic_block_forward.1} parent=11 // pred_fallthru
        _
      // Predicated region
      $region25: #{basic_block_forward.1} parent=11 // pred_check
        %p193 = pneg %p122
      $region26: #{basic_block_forward.1} parent=11 // pred_check_branch
        %195 = sbr.rel (%p193) target = $region28
      $region27: #{basic_block_forward.1} parent=11 // pred_region
        _
      $region28: #{basic_block_forward.1} parent=11 // pred_fallthru
        _
      // Predicated region
      $region29: #{basic_block_forward.1} parent=11 // pred_check
        %p196 = pneg %p143
      $region30: #{basic_block_forward.1} parent=11 // pred_check_branch
        %198 = sbr.rel (%p196) target = $region32
      $region31: #{basic_block_forward.1} parent=11 // pred_region
        _
      $region32: #{basic_block_forward.1} parent=11 // pred_fallthru
        _
    $region12: #{basic_block_forward.1} parent=5 // pred_fallthru
      _
    %p199 = scmp.lt.s32.totalorder %s12, 2
    // Predicated region
    $region33: #{basic_block_forward.1} parent=5 // pred_check
      %p200 = pneg %p199
    $region34: #{basic_block_forward.1} parent=5 // pred_check_branch
      %202 = sbr.rel (%p200) target = $region36
    $region35: #{basic_block_forward.1} parent=5 // pred_region
      // Predicated region
      $region37: #{basic_block_forward.1} parent=35 // pred_check
        %p203 = pneg %p32
      $region38: #{basic_block_forward.1} parent=35 // pred_check_branch
        %205 = sbr.rel (%p203) target = $region40
      $region39: #{basic_block_forward.1} parent=35 // pred_region
        %p206 = scmp.lt.s32.totalorder %s12, 1
        %s207 = scalar_select %p206, %s12, 1
        %s208 = smul.addr %s207, 41
        %s209 = smul.addr %s208, 8
        %s210 = scalar_lea.vmem %s0, %s209
      $region40: #{basic_block_forward.1} parent=35 // pred_fallthru
        _
    $region36: #{basic_block_forward.1} parent=5 // pred_fallthru
      _
    %p211 = scmp.le.s32.totalorder 1, %s12
    %p212 = scmp.lt.s32.totalorder %s12, 3
    %p213 = pnand %p211, %p212
    %p214 = pneg %p213
    // Predicated region
    $region41: #{basic_block_forward.1} parent=5 // pred_check
      _
    $region42: #{basic_block_forward.1} parent=5 // pred_check_branch
      %216 = sbr.rel (%p213) target = $region44
    $region43: #{basic_block_forward.1} parent=5 // pred_region
      %s217 = ssub.s32 %s12, 1
      %p218 = scmp.lt.s32.totalorder %s17, 1
      %s219 = scalar_select %p218, %s17, 1
      %s220 = smul.addr %s219, 41
      %s221 = smul.addr %s220, 8
      %s222 = scalar_lea.vmem %s0, %s221
      %p223 = pneg %p38
      %p224 = pneg %p35
      %p225 = pneg %p59
      %p226 = pneg %p56
      %p227 = pneg %p80
      %p228 = pneg %p77
      %p229 = pneg %p101
      %p230 = pneg %p98
      %p231 = pneg %p122
      %p232 = pneg %p119
      %p233 = pneg %p143
      %p234 = pneg %p140
      %p235 = pneg %p169
      %p236 = pneg %p166
      %p237 = scmp.lt.s32.totalorder %s17, 1
      %s238 = scalar_select %p237, %s17, 1
      %s239 = smul.addr %s238, 36
      %s240 = smul.addr %s239, 8
      %s241 = scalar_lea.vmem %s6, %s240
      %p242 = scmp.lt.s32.totalorder %s17, 1
      %s243 = scalar_select %p242, %s17, 1
      %s244 = smul.addr %s243, 41
      %s245 = smul.addr %s244, 8
      %s246 = scalar_lea.vmem %s0, %s245
      %p247 = scmp.lt.s32.totalorder %s17, 1
      %s248 = scalar_select %p247, %s17, 1
      %s249 = smul.addr %s248, 36
      %s250 = smul.addr %s249, 8
      %s251 = scalar_lea.vmem %s6, %s250
      %v253 = vld [vmem:[%s246] sm:$0xff]
      %v254 = vld [vmem:[%s246 + $0x8] sm:$0xff]
      %v255 = vld [vmem:[%s246 + $0x10] sm:$0xff]
      %v256 = vld [vmem:[%s246 + $0x18] sm:$0xff]
      %v257 = vld [vmem:[%s246 + $0x20] sm:$0xff]
      %v258 = vld [vmem:[%s246 + $0x28] sm:$0xff]
      %v259 = vld [vmem:[%s246 + $0x30] sm:$0xff]
      %v260 = vld [vmem:[%s246 + $0x38] sm:$0xff]
      %v261 = vld [vmem:[%s246 + $0x40] sm:$0xff]
      %v262 = vld [vmem:[%s246 + $0x48] sm:$0xff]
      %v263 = vld [vmem:[%s246 + $0x50] sm:$0xff]
      %v264 = vld [vmem:[%s246 + $0x58] sm:$0xff]
      %v265 = vld [vmem:[%s246 + $0x60] sm:$0xff]
      %v266 = vld [vmem:[%s246 + $0x68] sm:$0xff]
      %v267 = vld [vmem:[%s246 + $0x70] sm:$0xff]
      %v268 = vld [vmem:[%s246 + $0x78] sm:$0xff]
      %v269 = vld [vmem:[%s246 + $0x80] sm:$0xff]
      %v270 = vld [vmem:[%s246 + $0x88] sm:$0xff]
      %v271 = vld [vmem:[%s246 + $0x90] sm:$0xff]
      %v272 = vld [vmem:[%s246 + $0x98] sm:$0xff]
      %v273 = vld [vmem:[%s246 + $0xa0] sm:$0xff]
      %v274 = vld [vmem:[%s246 + $0xa8] sm:$0xff]
      %v275 = vld [vmem:[%s246 + $0xb0] sm:$0xff]
      %v276 = vld [vmem:[%s246 + $0xb8] sm:$0xff]
      %v277 = vld [vmem:[%s246 + $0xc0] sm:$0xff]
      %v278 = vld [vmem:[%s246 + $0xc8] sm:$0xff]
      %v279 = vld [vmem:[%s246 + $0xd0] sm:$0xff]
      %v280 = vld [vmem:[%s246 + $0xd8] sm:$0xff]
      %v281 = vld [vmem:[%s246 + $0xe0] sm:$0xff]
      %v282 = vld [vmem:[%s246 + $0xe8] sm:$0xff]
      %v283 = vld [vmem:[%s246 + $0xf0] sm:$0xff]
      %v284 = vld [vmem:[%s246 + $0xf8] sm:$0xff]
      %v285 = vld [vmem:[%s246 + $0x100] sm:$0xff]
      %v286 = vld [vmem:[%s246 + $0x108] sm:$0xff]
      %v287 = vld [vmem:[%s246 + $0x110] sm:$0xff]
      %v288 = vld [vmem:[%s246 + $0x118] sm:$0xff]
      %v289 = vpack.c.bf16 %v254, %v253
      %v290 = vpack.c.bf16 %v256, %v255
      %v291 = vpack.c.bf16 %v258, %v257
      %v292 = vpack.c.bf16 %v260, %v259
      %v293 = vpack.c.bf16 %v262, %v261
      %v294 = vpack.c.bf16 %v264, %v263
      %v295 = vpack.c.bf16 %v266, %v265
      %v296 = vpack.c.bf16 %v268, %v267
      %v297 = vpack.c.bf16 %v270, %v269
      %v298 = vpack.c.bf16 %v272, %v271
      %v299 = vpack.c.bf16 %v274, %v273
      %v300 = vpack.c.bf16 %v276, %v275
      %v301 = vpack.c.bf16 %v278, %v277
      %v302 = vpack.c.bf16 %v280, %v279
      %v303 = vpack.c.bf16 %v282, %v281
      %v304 = vpack.c.bf16 %v284, %v283
      %v305 = vpack.c.bf16 %v286, %v285
      %v306 = vpack.c.bf16 %v288, %v287
      %v307 = vld [vmem:[%s1] sm:$0xf]
      %v308 = vld [vmem:[%s1 + $0x4] sm:$0xf]
      %v309 = vld [vmem:[%s1 + $0x8] sm:$0xf]
      %v310 = vld [vmem:[%s1 + $0xc] sm:$0xf]
      %v311 = vld [vmem:[%s246 + $0x1] sm:$0xff]
      %v312 = vld [vmem:[%s246 + $0x9] sm:$0xff]
      %v313 = vld [vmem:[%s246 + $0x11] sm:$0xff]
      %v314 = vld [vmem:[%s246 + $0x19] sm:$0xff]
      %v315 = vld [vmem:[%s246 + $0x21] sm:$0xff]
      %v316 = vld [vmem:[%s246 + $0x29] sm:$0xff]
      %v317 = vld [vmem:[%s246 + $0x31] sm:$0xff]
      %v318 = vld [vmem:[%s246 + $0x39] sm:$0xff]
      %v319 = vld [vmem:[%s246 + $0x41] sm:$0xff]
      %v320 = vld [vmem:[%s246 + $0x49] sm:$0xff]
      %v321 = vld [vmem:[%s246 + $0x51] sm:$0xff]
      %v322 = vld [vmem:[%s246 + $0x59] sm:$0xff]
      %v323 = vld [vmem:[%s246 + $0x61] sm:$0xff]
      %v324 = vld [vmem:[%s246 + $0x69] sm:$0xff]
      %v325 = vld [vmem:[%s246 + $0x71] sm:$0xff]
      %v326 = vld [vmem:[%s246 + $0x79] sm:$0xff]
      %v327 = vld [vmem:[%s246 + $0x81] sm:$0xff]
      %v328 = vld [vmem:[%s246 + $0x89] sm:$0xff]
      %v329 = vld [vmem:[%s246 + $0x91] sm:$0xff]
      %v330 = vld [vmem:[%s246 + $0x99] sm:$0xff]
      %v331 = vld [vmem:[%s246 + $0xa1] sm:$0xff]
      %v332 = vld [vmem:[%s246 + $0xa9] sm:$0xff]
      %v333 = vld [vmem:[%s246 + $0xb1] sm:$0xff]
      %v334 = vld [vmem:[%s246 + $0xb9] sm:$0xff]
      %v335 = vld [vmem:[%s246 + $0xc1] sm:$0xff]
      %v336 = vld [vmem:[%s246 + $0xc9] sm:$0xff]
      %v337 = vld [vmem:[%s246 + $0xd1] sm:$0xff]
      %v338 = vld [vmem:[%s246 + $0xd9] sm:$0xff]
      %v339 = vld [vmem:[%s246 + $0xe1] sm:$0xff]
      %v340 = vld [vmem:[%s246 + $0xe9] sm:$0xff]
      %v341 = vld [vmem:[%s246 + $0xf1] sm:$0xff]
      %v342 = vld [vmem:[%s246 + $0xf9] sm:$0xff]
      %v343 = vld [vmem:[%s246 + $0x101] sm:$0xff]
      %v344 = vld [vmem:[%s246 + $0x109] sm:$0xff]
      %v345 = vld [vmem:[%s246 + $0x111] sm:$0xff]
      %v346 = vld [vmem:[%s246 + $0x119] sm:$0xff]
      %v347 = vpack.c.bf16 %v312, %v311
      %v348 = vpack.c.bf16 %v314, %v313
      %v349 = vpack.c.bf16 %v316, %v315
      %v350 = vpack.c.bf16 %v318, %v317
      %v351 = vpack.c.bf16 %v320, %v319
      %v352 = vpack.c.bf16 %v322, %v321
      %v353 = vpack.c.bf16 %v324, %v323
      %v354 = vpack.c.bf16 %v326, %v325
      %v355 = vpack.c.bf16 %v328, %v327
      %v356 = vpack.c.bf16 %v330, %v329
      %v357 = vpack.c.bf16 %v332, %v331
      %v358 = vpack.c.bf16 %v334, %v333
      %v359 = vpack.c.bf16 %v336, %v335
      %v360 = vpack.c.bf16 %v338, %v337
      %v361 = vpack.c.bf16 %v340, %v339
      %v362 = vpack.c.bf16 %v342, %v341
      %v363 = vpack.c.bf16 %v344, %v343
      %v364 = vpack.c.bf16 %v346, %v345
      %v365 = vld [vmem:[%s1 + $0x10] sm:$0xf]
      %v366 = vld [vmem:[%s1 + $0x14] sm:$0xf]
      %v367 = vld [vmem:[%s1 + $0x18] sm:$0xf]
      %v368 = vld [vmem:[%s1 + $0x1c] sm:$0xf]
      %v373 = vunpack.c.l.b16 %v365
      %v374 = vunpack.c.l.b16 %v366
      %v375 = vunpack.c.l.b16 %v367
      %v376 = vunpack.c.l.b16 %v368
      %v377 = vpack.c.b16 %v374, %v373
      %v378 = vpack.c.b16 %v376, %v375
      %vm381 = vcmask 261120
      %v383 = vsel %vm381, %v347, 0
      %v386 = vsel %vm381, %v348, 0
      %v389 = vsel %vm381, %v349, 0
      %v392 = vsel %vm381, %v350, 0
      %v395 = vsel %vm381, %v351, 0
      %v398 = vsel %vm381, %v352, 0
      %v401 = vsel %vm381, %v353, 0
      %v404 = vsel %vm381, %v354, 0
      %v407 = vsel %vm381, %v355, 0
      %v410 = vsel %vm381, %v356, 0
      %v413 = vsel %vm381, %v357, 0
      %v416 = vsel %vm381, %v358, 0
      %v419 = vsel %vm381, %v359, 0
      %v422 = vsel %vm381, %v360, 0
      %v425 = vsel %vm381, %v361, 0
      %v428 = vsel %vm381, %v362, 0
      %v431 = vsel %vm381, %v363, 0
      %v434 = vsel %vm381, %v364, 0
      %436 = vmatprep.subr.bf16.mxu0 0
      %437 = vmatpush1.bf16.msra.mxu0 %v377
      %438 = vmatprep.subr.bf16.mxu0 0
      %439 = vmatpush1.bf16.msra.mxu0 %v378
      %440 = vmatprep.subr.bf16.mxu0 0
      %441 = vmatpush1.bf16.msra.mxu0 0
      %442 = vmatprep.subr.bf16.mxu0 0
      %443 = vmatpush1.bf16.msra.mxu0 0
      %444 = vmatprep.subr.bf16.mxu0 0
      %445 = vmatpush1.bf16.msra.mxu0 0
      %446 = vmatprep.subr.bf16.mxu0 0
      %447 = vmatpush1.bf16.msra.mxu0 0
      %448 = vmatprep.subr.bf16.mxu0 0
      %449 = vmatpush1.bf16.msra.mxu0 0
      %450 = vmatprep.subr.bf16.mxu0 0
      %451 = vmatpush1.bf16.msra.mxu0 0
      %452 = vmatprep.subr.bf16.mxu0 0
      %453 = vmatpush1.bf16.msra.mxu0 0
      %454 = vmatprep.subr.bf16.mxu0 0
      %455 = vmatpush1.bf16.msra.mxu0 0
      %456 = vmatprep.subr.bf16.mxu0 0
      %457 = vmatpush1.bf16.msra.mxu0 0
      %458 = vmatprep.subr.bf16.mxu0 0
      %459 = vmatpush1.bf16.msra.mxu0 0
      %460 = vmatprep.subr.bf16.mxu0 0
      %461 = vmatpush1.bf16.msra.mxu0 0
      %462 = vmatprep.subr.bf16.mxu0 0
      %463 = vmatpush1.bf16.msra.mxu0 0
      %464 = vmatprep.subr.bf16.mxu0 0
      %465 = vmatpush1.bf16.msra.mxu0 0
      %466 = vmatprep.subr.bf16.mxu0 0
      %467 = vmatpush1.bf16.msra.mxu0 0
      %468 = vmatprep.mubr.bf16.mxu0 0
      %469 = vmatmul.mubr.bf16.gmra.mrb[0].mxu0 %v383
      %v470 = vpop.f32.mrb[0].mxu0
      %v471 = vadd.f32 0.0, %v470
      %v472 = vpop.f32.mrb[0].mxu0
      %v473 = vpop.f32.mrb[0].mxu0
      %v474 = vadd.f32 0.0, %v473
      %v475 = vpop.f32.mrb[0].mxu0
      %476 = vmatprep.mubr.bf16.mxu0 0
      %477 = vmatmul.mubr.bf16.gmra.mrb[0].mxu0 %v386
      %v478 = vpop.f32.mrb[0].mxu0
      %v479 = vadd.f32 0.0, %v478
      %v480 = vpop.f32.mrb[0].mxu0
      %v481 = vpop.f32.mrb[0].mxu0
      %v482 = vadd.f32 0.0, %v481
      %v483 = vpop.f32.mrb[0].mxu0
      %484 = vmatprep.mubr.bf16.mxu0 0
      %485 = vmatmul.mubr.bf16.gmra.mrb[0].mxu0 %v389
      %v486 = vpop.f32.mrb[0].mxu0
      %v487 = vadd.f32 0.0, %v486
      %v488 = vpop.f32.mrb[0].mxu0
      %v489 = vpop.f32.mrb[0].mxu0
      %v490 = vadd.f32 0.0, %v489
      %v491 = vpop.f32.mrb[0].mxu0
      %492 = vmatprep.mubr.bf16.mxu0 0
      %493 = vmatmul.mubr.bf16.gmra.mrb[0].mxu0 %v392
      %v494 = vpop.f32.mrb[0].mxu0
      %v495 = vadd.f32 0.0, %v494
      %v496 = vpop.f32.mrb[0].mxu0
      %v497 = vpop.f32.mrb[0].mxu0
      %v498 = vadd.f32 0.0, %v497
      %v499 = vpop.f32.mrb[0].mxu0
      %500 = vmatprep.mubr.bf16.mxu0 0
      %501 = vmatmul.mubr.bf16.gmra.mrb[0].mxu0 %v395
      %v502 = vpop.f32.mrb[0].mxu0
      %v503 = vadd.f32 0.0, %v502
      %v504 = vpop.f32.mrb[0].mxu0
      %v505 = vpop.f32.mrb[0].mxu0
      %v506 = vadd.f32 0.0, %v505
      %v507 = vpop.f32.mrb[0].mxu0
      %508 = vmatprep.mubr.bf16.mxu0 0
      %509 = vmatmul.mubr.bf16.gmra.mrb[0].mxu0 %v398
      %v510 = vpop.f32.mrb[0].mxu0
      %v511 = vadd.f32 0.0, %v510
      %v512 = vpop.f32.mrb[0].mxu0
      %v513 = vpop.f32.mrb[0].mxu0
      %v514 = vadd.f32 0.0, %v513
      %v515 = vpop.f32.mrb[0].mxu0
      %516 = vmatprep.mubr.bf16.mxu0 0
      %517 = vmatmul.mubr.bf16.gmra.mrb[0].mxu0 %v401
      %v518 = vpop.f32.mrb[0].mxu0
      %v519 = vadd.f32 0.0, %v518
      %v520 = vpop.f32.mrb[0].mxu0
      %v521 = vpop.f32.mrb[0].mxu0
      %v522 = vadd.f32 0.0, %v521
      %v523 = vpop.f32.mrb[0].mxu0
      %524 = vmatprep.mubr.bf16.mxu0 0
      %525 = vmatmul.mubr.bf16.gmra.mrb[0].mxu0 %v404
      %v526 = vpop.f32.mrb[0].mxu0
      %v527 = vadd.f32 0.0, %v526
      %v528 = vpop.f32.mrb[0].mxu0
      %v529 = vpop.f32.mrb[0].mxu0
      %v530 = vadd.f32 0.0, %v529
      %v531 = vpop.f32.mrb[0].mxu0
      %532 = vmatprep.mubr.bf16.mxu0 0
      %533 = vmatmul.mubr.bf16.gmra.mrb[0].mxu0 %v407
      %v534 = vpop.f32.mrb[0].mxu0
      %v535 = vadd.f32 0.0, %v534
      %v536 = vpop.f32.mrb[0].mxu0
      %v537 = vpop.f32.mrb[0].mxu0
      %v538 = vadd.f32 0.0, %v537
      %v539 = vpop.f32.mrb[0].mxu0
      %540 = vmatprep.mubr.bf16.mxu0 0
      %541 = vmatmul.mubr.bf16.gmra.mrb[0].mxu0 %v410
      %v542 = vpop.f32.mrb[0].mxu0
      %v543 = vadd.f32 0.0, %v542
      %v544 = vpop.f32.mrb[0].mxu0
      %v545 = vpop.f32.mrb[0].mxu0
      %v546 = vadd.f32 0.0, %v545
      %v547 = vpop.f32.mrb[0].mxu0
      %548 = vmatprep.mubr.bf16.mxu0 0
      %549 = vmatmul.mubr.bf16.gmra.mrb[0].mxu0 %v413
      %v550 = vpop.f32.mrb[0].mxu0
      %v551 = vadd.f32 0.0, %v550
      %v552 = vpop.f32.mrb[0].mxu0
      %v553 = vpop.f32.mrb[0].mxu0
      %v554 = vadd.f32 0.0, %v553
      %v555 = vpop.f32.mrb[0].mxu0
      %556 = vmatprep.mubr.bf16.mxu0 0
      %557 = vmatmul.mubr.bf16.gmra.mrb[0].mxu0 %v416
      %v558 = vpop.f32.mrb[0].mxu0
      %v559 = vadd.f32 0.0, %v558
      %v560 = vpop.f32.mrb[0].mxu0
      %v561 = vpop.f32.mrb[0].mxu0
      %v562 = vadd.f32 0.0, %v561
      %v563 = vpop.f32.mrb[0].mxu0
      %564 = vmatprep.mubr.bf16.mxu0 0
      %565 = vmatmul.mubr.bf16.gmra.mrb[0].mxu0 %v419
      %v566 = vpop.f32.mrb[0].mxu0
      %v567 = vadd.f32 0.0, %v566
      %v568 = vpop.f32.mrb[0].mxu0
      %v569 = vpop.f32.mrb[0].mxu0
      %v570 = vadd.f32 0.0, %v569
      %v571 = vpop.f32.mrb[0].mxu0
      %572 = vmatprep.mubr.bf16.mxu0 0
      %573 = vmatmul.mubr.bf16.gmra.mrb[0].mxu0 %v422
      %v574 = vpop.f32.mrb[0].mxu0
      %v575 = vadd.f32 0.0, %v574
      %v576 = vpop.f32.mrb[0].mxu0
      %v577 = vpop.f32.mrb[0].mxu0
      %v578 = vadd.f32 0.0, %v577
      %v579 = vpop.f32.mrb[0].mxu0
      %580 = vmatprep.mubr.bf16.mxu0 0
      %581 = vmatmul.mubr.bf16.gmra.mrb[0].mxu0 %v425
      %v582 = vpop.f32.mrb[0].mxu0
      %v583 = vadd.f32 0.0, %v582
      %v584 = vpop.f32.mrb[0].mxu0
      %v585 = vpop.f32.mrb[0].mxu0
      %v586 = vadd.f32 0.0, %v585
      %v587 = vpop.f32.mrb[0].mxu0
      %588 = vmatprep.mubr.bf16.mxu0 0
      %589 = vmatmul.mubr.bf16.gmra.mrb[0].mxu0 %v428
      %v590 = vpop.f32.mrb[0].mxu0
      %v591 = vadd.f32 0.0, %v590
      %v592 = vpop.f32.mrb[0].mxu0
      %v593 = vpop.f32.mrb[0].mxu0
      %v594 = vadd.f32 0.0, %v593
      %v595 = vpop.f32.mrb[0].mxu0
      %596 = vmatprep.mubr.bf16.mxu0 0
      %597 = vmatmul.mubr.bf16.gmra.mrb[0].mxu0 %v431
      %v598 = vpop.f32.mrb[0].mxu0
      %v599 = vadd.f32 0.0, %v598
      %v600 = vpop.f32.mrb[0].mxu0
      %v601 = vpop.f32.mrb[0].mxu0
      %v602 = vadd.f32 0.0, %v601
      %v603 = vpop.f32.mrb[0].mxu0
      %604 = vmatprep.mubr.bf16.mxu0 0
      %605 = vmatmul.mubr.bf16.gmra.mrb[0].mxu0 %v434
      %v606 = vpop.f32.mrb[0].mxu0
      %v607 = vadd.f32 0.0, %v606
      %v608 = vpop.f32.mrb[0].mxu0
      %v609 = vpop.f32.mrb[0].mxu0
      %v610 = vadd.f32 0.0, %v609
      %v611 = vpop.f32.mrb[0].mxu0
      %612 = vdwg.mxu0
      %v617 = vunpack.c.l.b16 %v307
      %v618 = vunpack.c.l.b16 %v308
      %v619 = vunpack.c.l.b16 %v309
      %v620 = vunpack.c.l.b16 %v310
      %v621 = vpack.c.b16 %v618, %v617
      %v622 = vpack.c.b16 %v620, %v619
      %v626 = vsel %vm381, %v289, 0
      %v629 = vsel %vm381, %v290, 0
      %v632 = vsel %vm381, %v291, 0
      %v635 = vsel %vm381, %v292, 0
      %v638 = vsel %vm381, %v293, 0
      %v641 = vsel %vm381, %v294, 0
      %v644 = vsel %vm381, %v295, 0
      %v647 = vsel %vm381, %v296, 0
      %v650 = vsel %vm381, %v297, 0
      %v653 = vsel %vm381, %v298, 0
      %v656 = vsel %vm381, %v299, 0
      %v659 = vsel %vm381, %v300, 0
      %v662 = vsel %vm381, %v301, 0
      %v665 = vsel %vm381, %v302, 0
      %v668 = vsel %vm381, %v303, 0
      %v671 = vsel %vm381, %v304, 0
      %v674 = vsel %vm381, %v305, 0
      %v677 = vsel %vm381, %v306, 0
      %679 = vmatprep.subr.bf16.mxu0 0
      %680 = vmatpush1.bf16.msra.mxu0 %v621
      %681 = vmatprep.subr.bf16.mxu0 0
      %682 = vmatpush1.bf16.msra.mxu0 %v622
      %683 = vmatprep.subr.bf16.mxu0 0
      %684 = vmatpush1.bf16.msra.mxu0 0
      %685 = vmatprep.subr.bf16.mxu0 0
      %686 = vmatpush1.bf16.msra.mxu0 0
      %687 = vmatprep.subr.bf16.mxu0 0
      %688 = vmatpush1.bf16.msra.mxu0 0
      %689 = vmatprep.subr.bf16.mxu0 0
      %690 = vmatpush1.bf16.msra.mxu0 0
      %691 = vmatprep.subr.bf16.mxu0 0
      %692 = vmatpush1.bf16.msra.mxu0 0
      %693 = vmatprep.subr.bf16.mxu0 0
      %694 = vmatpush1.bf16.msra.mxu0 0
      %695 = vmatprep.subr.bf16.mxu0 0
      %696 = vmatpush1.bf16.msra.mxu0 0
      %697 = vmatprep.subr.bf16.mxu0 0
      %698 = vmatpush1.bf16.msra.mxu0 0
      %699 = vmatprep.subr.bf16.mxu0 0
      %700 = vmatpush1.bf16.msra.mxu0 0
      %701 = vmatprep.subr.bf16.mxu0 0
      %702 = vmatpush1.bf16.msra.mxu0 0
      %703 = vmatprep.subr.bf16.mxu0 0
      %704 = vmatpush1.bf16.msra.mxu0 0
      %705 = vmatprep.subr.bf16.mxu0 0
      %706 = vmatpush1.bf16.msra.mxu0 0
      %707 = vmatprep.subr.bf16.mxu0 0
      %708 = vmatpush1.bf16.msra.mxu0 0
      %709 = vmatprep.subr.bf16.mxu0 0
      %710 = vmatpush1.bf16.msra.mxu0 0
      %711 = vmatprep.mubr.bf16.mxu0 0
      %712 = vmatmul.mubr.bf16.gmra.mrb[0].mxu0 %v626
      %v713 = vpop.f32.mrb[0].mxu0
      %v714 = vadd.f32 %v471, %v713
      %v715 = vpop.f32.mrb[0].mxu0
      %v716 = vpop.f32.mrb[0].mxu0
      %v717 = vadd.f32 %v474, %v716
      %v718 = vpop.f32.mrb[0].mxu0
      %719 = vmatprep.mubr.bf16.mxu0 0
      %720 = vmatmul.mubr.bf16.gmra.mrb[0].mxu0 %v629
      %v721 = vpop.f32.mrb[0].mxu0
      %v722 = vadd.f32 %v479, %v721
      %v723 = vpop.f32.mrb[0].mxu0
      %v724 = vpop.f32.mrb[0].mxu0
      %v725 = vadd.f32 %v482, %v724
      %v726 = vpop.f32.mrb[0].mxu0
      %727 = vmatprep.mubr.bf16.mxu0 0
      %728 = vmatmul.mubr.bf16.gmra.mrb[0].mxu0 %v632
      %v729 = vpop.f32.mrb[0].mxu0
      %v730 = vadd.f32 %v487, %v729
      %v731 = vpop.f32.mrb[0].mxu0
      %v732 = vpop.f32.mrb[0].mxu0
      %v733 = vadd.f32 %v490, %v732
      %v734 = vpop.f32.mrb[0].mxu0
      %735 = vmatprep.mubr.bf16.mxu0 0
      %736 = vmatmul.mubr.bf16.gmra.mrb[0].mxu0 %v635
      %v737 = vpop.f32.mrb[0].mxu0
      %v738 = vadd.f32 %v495, %v737
      %v739 = vpop.f32.mrb[0].mxu0
      %v740 = vpop.f32.mrb[0].mxu0
      %v741 = vadd.f32 %v498, %v740
      %v742 = vpop.f32.mrb[0].mxu0
      %743 = vmatprep.mubr.bf16.mxu0 0
      %744 = vmatmul.mubr.bf16.gmra.mrb[0].mxu0 %v638
      %v745 = vpop.f32.mrb[0].mxu0
      %v746 = vadd.f32 %v503, %v745
      %v747 = vpop.f32.mrb[0].mxu0
      %v748 = vpop.f32.mrb[0].mxu0
      %v749 = vadd.f32 %v506, %v748
      %v750 = vpop.f32.mrb[0].mxu0
      %751 = vmatprep.mubr.bf16.mxu0 0
      %752 = vmatmul.mubr.bf16.gmra.mrb[0].mxu0 %v641
      %v753 = vpop.f32.mrb[0].mxu0
      %v754 = vadd.f32 %v511, %v753
      %v755 = vpop.f32.mrb[0].mxu0
      %v756 = vpop.f32.mrb[0].mxu0
      %v757 = vadd.f32 %v514, %v756
      %v758 = vpop.f32.mrb[0].mxu0
      %759 = vmatprep.mubr.bf16.mxu0 0
      %760 = vmatmul.mubr.bf16.gmra.mrb[0].mxu0 %v644
      %v761 = vpop.f32.mrb[0].mxu0
      %v762 = vadd.f32 %v519, %v761
      %v763 = vpop.f32.mrb[0].mxu0
      %v764 = vpop.f32.mrb[0].mxu0
      %v765 = vadd.f32 %v522, %v764
      %v766 = vpop.f32.mrb[0].mxu0
      %767 = vmatprep.mubr.bf16.mxu0 0
      %768 = vmatmul.mubr.bf16.gmra.mrb[0].mxu0 %v647
      %v769 = vpop.f32.mrb[0].mxu0
      %v770 = vadd.f32 %v527, %v769
      %v771 = vpop.f32.mrb[0].mxu0
      %v772 = vpop.f32.mrb[0].mxu0
      %v773 = vadd.f32 %v530, %v772
      %v774 = vpop.f32.mrb[0].mxu0
      %775 = vmatprep.mubr.bf16.mxu0 0
      %776 = vmatmul.mubr.bf16.gmra.mrb[0].mxu0 %v650
      %v777 = vpop.f32.mrb[0].mxu0
      %v778 = vadd.f32 %v535, %v777
      %v779 = vpop.f32.mrb[0].mxu0
      %v780 = vpop.f32.mrb[0].mxu0
      %v781 = vadd.f32 %v538, %v780
      %v782 = vpop.f32.mrb[0].mxu0
      %783 = vmatprep.mubr.bf16.mxu0 0
      %784 = vmatmul.mubr.bf16.gmra.mrb[0].mxu0 %v653
      %v785 = vpop.f32.mrb[0].mxu0
      %v786 = vadd.f32 %v543, %v785
      %v787 = vpop.f32.mrb[0].mxu0
      %v788 = vpop.f32.mrb[0].mxu0
      %v789 = vadd.f32 %v546, %v788
      %v790 = vpop.f32.mrb[0].mxu0
      %791 = vmatprep.mubr.bf16.mxu0 0
      %792 = vmatmul.mubr.bf16.gmra.mrb[0].mxu0 %v656
      %v793 = vpop.f32.mrb[0].mxu0
      %v794 = vadd.f32 %v551, %v793
      %v795 = vpop.f32.mrb[0].mxu0
      %v796 = vpop.f32.mrb[0].mxu0
      %v797 = vadd.f32 %v554, %v796
      %v798 = vpop.f32.mrb[0].mxu0
      %799 = vmatprep.mubr.bf16.mxu0 0
      %800 = vmatmul.mubr.bf16.gmra.mrb[0].mxu0 %v659
      %v801 = vpop.f32.mrb[0].mxu0
      %v802 = vadd.f32 %v559, %v801
      %v803 = vpop.f32.mrb[0].mxu0
      %v804 = vpop.f32.mrb[0].mxu0
      %v805 = vadd.f32 %v562, %v804
      %v806 = vpop.f32.mrb[0].mxu0
      %807 = vmatprep.mubr.bf16.mxu0 0
      %808 = vmatmul.mubr.bf16.gmra.mrb[0].mxu0 %v662
      %v809 = vpop.f32.mrb[0].mxu0
      %v810 = vadd.f32 %v567, %v809
      %v811 = vpop.f32.mrb[0].mxu0
      %v812 = vpop.f32.mrb[0].mxu0
      %v813 = vadd.f32 %v570, %v812
      %v814 = vpop.f32.mrb[0].mxu0
      %815 = vmatprep.mubr.bf16.mxu0 0
      %816 = vmatmul.mubr.bf16.gmra.mrb[0].mxu0 %v665
      %v817 = vpop.f32.mrb[0].mxu0
      %v818 = vadd.f32 %v575, %v817
      %v819 = vpop.f32.mrb[0].mxu0
      %v820 = vpop.f32.mrb[0].mxu0
      %v821 = vadd.f32 %v578, %v820
      %v822 = vpop.f32.mrb[0].mxu0
      %823 = vmatprep.mubr.bf16.mxu0 0
      %824 = vmatmul.mubr.bf16.gmra.mrb[0].mxu0 %v668
      %v825 = vpop.f32.mrb[0].mxu0
      %v826 = vadd.f32 %v583, %v825
      %v827 = vpop.f32.mrb[0].mxu0
      %v828 = vpop.f32.mrb[0].mxu0
      %v829 = vadd.f32 %v586, %v828
      %v830 = vpop.f32.mrb[0].mxu0
      %831 = vmatprep.mubr.bf16.mxu0 0
      %832 = vmatmul.mubr.bf16.gmra.mrb[0].mxu0 %v671
      %v833 = vpop.f32.mrb[0].mxu0
      %v834 = vadd.f32 %v591, %v833
      %v835 = vpop.f32.mrb[0].mxu0
      %v836 = vpop.f32.mrb[0].mxu0
      %v837 = vadd.f32 %v594, %v836
      %v838 = vpop.f32.mrb[0].mxu0
      %839 = vmatprep.mubr.bf16.mxu0 0
      %840 = vmatmul.mubr.bf16.gmra.mrb[0].mxu0 %v674
      %v841 = vpop.f32.mrb[0].mxu0
      %v842 = vadd.f32 %v599, %v841
      %v843 = vpop.f32.mrb[0].mxu0
      %v844 = vpop.f32.mrb[0].mxu0
      %v845 = vadd.f32 %v602, %v844
      %v846 = vpop.f32.mrb[0].mxu0
      %847 = vmatprep.mubr.bf16.mxu0 0
      %848 = vmatmul.mubr.bf16.gmra.mrb[0].mxu0 %v677
      %v849 = vpop.f32.mrb[0].mxu0
      %v850 = vadd.f32 %v607, %v849
      %v851 = vpop.f32.mrb[0].mxu0
      %v852 = vpop.f32.mrb[0].mxu0
      %v853 = vadd.f32 %v610, %v852
      %v854 = vpop.f32.mrb[0].mxu0
      %855 = vdwg.mxu0
      %v856 = vld [vmem:[%s246 + $0x2] sm:$0xff]
      %v857 = vld [vmem:[%s246 + $0xa] sm:$0xff]
      %v858 = vld [vmem:[%s246 + $0x12] sm:$0xff]
      %v859 = vld [vmem:[%s246 + $0x1a] sm:$0xff]
      %v860 = vld [vmem:[%s246 + $0x22] sm:$0xff]
      %v861 = vld [vmem:[%s246 + $0x2a] sm:$0xff]
      %v862 = vld [vmem:[%s246 + $0x32] sm:$0xff]
      %v863 = vld [vmem:[%s246 + $0x3a] sm:$0xff]
      %v864 = vld [vmem:[%s246 + $0x42] sm:$0xff]
      %v865 = vld [vmem:[%s246 + $0x4a] sm:$0xff]
      %v866 = vld [vmem:[%s246 + $0x52] sm:$0xff]
      %v867 = vld [vmem:[%s246 + $0x5a] sm:$0xff]
      %v868 = vld [vmem:[%s246 + $0x62] sm:$0xff]
      %v869 = vld [vmem:[%s246 + $0x6a] sm:$0xff]
      %v870 = vld [vmem:[%s246 + $0x72] sm:$0xff]
      %v871 = vld [vmem:[%s246 + $0x7a] sm:$0xff]
      %v872 = vld [vmem:[%s246 + $0x82] sm:$0xff]
      %v873 = vld [vmem:[%s246 + $0x8a] sm:$0xff]
      %v874 = vld [vmem:[%s246 + $0x92] sm:$0xff]
      %v875 = vld [vmem:[%s246 + $0x9a] sm:$0xff]
      %v876 = vld [vmem:[%s246 + $0xa2] sm:$0xff]
      %v877 = vld [vmem:[%s246 + $0xaa] sm:$0xff]
      %v878 = vld [vmem:[%s246 + $0xb2] sm:$0xff]
      %v879 = vld [vmem:[%s246 + $0xba] sm:$0xff]
      %v880 = vld [vmem:[%s246 + $0xc2] sm:$0xff]
      %v881 = vld [vmem:[%s246 + $0xca] sm:$0xff]
      %v882 = vld [vmem:[%s246 + $0xd2] sm:$0xff]
      %v883 = vld [vmem:[%s246 + $0xda] sm:$0xff]
      %v884 = vld [vmem:[%s246 + $0xe2] sm:$0xff]
      %v885 = vld [vmem:[%s246 + $0xea] sm:$0xff]
      %v886 = vld [vmem:[%s246 + $0xf2] sm:$0xff]
      %v887 = vld [vmem:[%s246 + $0xfa] sm:$0xff]
      %v888 = vld [vmem:[%s246 + $0x102] sm:$0xff]
      %v889 = vld [vmem:[%s246 + $0x10a] sm:$0xff]
      %v890 = vld [vmem:[%s246 + $0x112] sm:$0xff]
      %v891 = vld [vmem:[%s246 + $0x11a] sm:$0xff]
      %v892 = vpack.c.bf16 %v857, %v856
      %v893 = vpack.c.bf16 %v859, %v858
      %v894 = vpack.c.bf16 %v861, %v860
      %v895 = vpack.c.bf16 %v863, %v862
      %v896 = vpack.c.bf16 %v865, %v864
      %v897 = vpack.c.bf16 %v867, %v866
      %v898 = vpack.c.bf16 %v869, %v868
      %v899 = vpack.c.bf16 %v871, %v870
      %v900 = vpack.c.bf16 %v873, %v872
      %v901 = vpack.c.bf16 %v875, %v874
      %v902 = vpack.c.bf16 %v877, %v876
      %v903 = vpack.c.bf16 %v879, %v878
      %v904 = vpack.c.bf16 %v881, %v880
      %v905 = vpack.c.bf16 %v883, %v882
      %v906 = vpack.c.bf16 %v885, %v884
      %v907 = vpack.c.bf16 %v887, %v886
      %v908 = vpack.c.bf16 %v889, %v888
      %v909 = vpack.c.bf16 %v891, %v890
      %v910 = vld [vmem:[%s1 + $0x20] sm:$0xf]
      %v911 = vld [vmem:[%s1 + $0x24] sm:$0xf]
      %v912 = vld [vmem:[%s1 + $0x28] sm:$0xf]
      %v913 = vld [vmem:[%s1 + $0x2c] sm:$0xf]
      %v918 = vunpack.c.l.b16 %v910
      %v919 = vunpack.c.l.b16 %v911
      %v920 = vunpack.c.l.b16 %v912
      %v921 = vunpack.c.l.b16 %v913
      %v922 = vpack.c.b16 %v919, %v918
      %v923 = vpack.c.b16 %v921, %v920
      %v927 = vsel %vm381, %v892, 0
      %v930 = vsel %vm381, %v893, 0
      %v933 = vsel %vm381, %v894, 0
      %v936 = vsel %vm381, %v895, 0
      %v939 = vsel %vm381, %v896, 0
      %v942 = vsel %vm381, %v897, 0
      %v945 = vsel %vm381, %v898, 0
      %v948 = vsel %vm381, %v899, 0
      %v951 = vsel %vm381, %v900, 0
      %v954 = vsel %vm381, %v901, 0
      %v957 = vsel %vm381, %v902, 0
      %v960 = vsel %vm381, %v903, 0
      %v963 = vsel %vm381, %v904, 0
      %v966 = vsel %vm381, %v905, 0
      %v969 = vsel %vm381, %v906, 0
      %v972 = vsel %vm381, %v907, 0
      %v975 = vsel %vm381, %v908, 0
      %v978 = vsel %vm381, %v909, 0
      %980 = vmatprep.subr.bf16.mxu0 0
      %981 = vmatpush1.bf16.msra.mxu0 %v922
      %982 = vmatprep.subr.bf16.mxu0 0
      %983 = vmatpush1.bf16.msra.mxu0 %v923
      %984 = vmatprep.subr.bf16.mxu0 0
      %985 = vmatpush1.bf16.msra.mxu0 0
      %986 = vmatprep.subr.bf16.mxu0 0
      %987 = vmatpush1.bf16.msra.mxu0 0
      %988 = vmatprep.subr.bf16.mxu0 0
      %989 = vmatpush1.bf16.msra.mxu0 0
      %990 = vmatprep.subr.bf16.mxu0 0
      %991 = vmatpush1.bf16.msra.mxu0 0
      %992 = vmatprep.subr.bf16.mxu0 0
      %993 = vmatpush1.bf16.msra.mxu0 0
      %994 = vmatprep.subr.bf16.mxu0 0
      %995 = vmatpush1.bf16.msra.mxu0 0
      %996 = vmatprep.subr.bf16.mxu0 0
      %997 = vmatpush1.bf16.msra.mxu0 0
      %998 = vmatprep.subr.bf16.mxu0 0
      %999 = vmatpush1.bf16.msra.mxu0 0
      %1000 = vmatprep.subr.bf16.mxu0 0
      %1001 = vmatpush1.bf16.msra.mxu0 0
      %1002 = vmatprep.subr.bf16.mxu0 0
      %1003 = vmatpush1.bf16.msra.mxu0 0
      %1004 = vmatprep.subr.bf16.mxu0 0
      %1005 = vmatpush1.bf16.msra.mxu0 0
      %1006 = vmatprep.subr.bf16.mxu0 0
      %1007 = vmatpush1.bf16.msra.mxu0 0
      %1008 = vmatprep.subr.bf16.mxu0 0
      %1009 = vmatpush1.bf16.msra.mxu0 0
      %1010 = vmatprep.subr.bf16.mxu0 0
      %1011 = vmatpush1.bf16.msra.mxu0 0
      %1012 = vmatprep.mubr.bf16.mxu0 0
      %1013 = vmatmul.mubr.bf16.gmra.mrb[0].mxu0 %v927
      %v1014 = vpop.f32.mrb[0].mxu0
      %v1015 = vadd.f32 0.0, %v1014
      %v1016 = vpop.f32.mrb[0].mxu0
      %v1017 = vpop.f32.mrb[0].mxu0
      %v1018 = vadd.f32 0.0, %v1017
      %v1019 = vpop.f32.mrb[0].mxu0
      %1020 = vmatprep.mubr.bf16.mxu0 0
      %1021 = vmatmul.mubr.bf16.gmra.mrb[0].mxu0 %v930
      %v1022 = vpop.f32.mrb[0].mxu0
      %v1023 = vadd.f32 0.0, %v1022
      %v1024 = vpop.f32.mrb[0].mxu0
      %v1025 = vpop.f32.mrb[0].mxu0
      %v1026 = vadd.f32 0.0, %v1025
      %v1027 = vpop.f32.mrb[0].mxu0
      %1028 = vmatprep.mubr.bf16.mxu0 0
      %1029 = vmatmul.mubr.bf16.gmra.mrb[0].mxu0 %v933
      %v1030 = vpop.f32.mrb[0].mxu0
      %v1031 = vadd.f32 0.0, %v1030
      %v1032 = vpop.f32.mrb[0].mxu0
      %v1033 = vpop.f32.mrb[0].mxu0
      %v1034 = vadd.f32 0.0, %v1033
      %v1035 = vpop.f32.mrb[0].mxu0
      %1036 = vmatprep.mubr.bf16.mxu0 0
      %1037 = vmatmul.mubr.bf16.gmra.mrb[0].mxu0 %v936
      %v1038 = vpop.f32.mrb[0].mxu0
      %v1039 = vadd.f32 0.0, %v1038
      %v1040 = vpop.f32.mrb[0].mxu0
      %v1041 = vpop.f32.mrb[0].mxu0
      %v1042 = vadd.f32 0.0, %v1041
      %v1043 = vpop.f32.mrb[0].mxu0
      %1044 = vmatprep.mubr.bf16.mxu0 0
      %1045 = vmatmul.mubr.bf16.gmra.mrb[0].mxu0 %v939
      %v1046 = vpop.f32.mrb[0].mxu0
      %v1047 = vadd.f32 0.0, %v1046
      %v1048 = vpop.f32.mrb[0].mxu0
      %v1049 = vpop.f32.mrb[0].mxu0
      %v1050 = vadd.f32 0.0, %v1049
      %v1051 = vpop.f32.mrb[0].mxu0
      %1052 = vmatprep.mubr.bf16.mxu0 0
      %1053 = vmatmul.mubr.bf16.gmra.mrb[0].mxu0 %v942
      %v1054 = vpop.f32.mrb[0].mxu0
      %v1055 = vadd.f32 0.0, %v1054
      %v1056 = vpop.f32.mrb[0].mxu0
      %v1057 = vpop.f32.mrb[0].mxu0
      %v1058 = vadd.f32 0.0, %v1057
      %v1059 = vpop.f32.mrb[0].mxu0
      %1060 = vmatprep.mubr.bf16.mxu0 0
      %1061 = vmatmul.mubr.bf16.gmra.mrb[0].mxu0 %v945
      %v1062 = vpop.f32.mrb[0].mxu0
      %v1063 = vadd.f32 0.0, %v1062
      %v1064 = vpop.f32.mrb[0].mxu0
      %v1065 = vpop.f32.mrb[0].mxu0
      %v1066 = vadd.f32 0.0, %v1065
      %v1067 = vpop.f32.mrb[0].mxu0
      %1068 = vmatprep.mubr.bf16.mxu0 0
      %1069 = vmatmul.mubr.bf16.gmra.mrb[0].mxu0 %v948
      %v1070 = vpop.f32.mrb[0].mxu0
      %v1071 = vadd.f32 0.0, %v1070
      %v1072 = vpop.f32.mrb[0].mxu0
      %v1073 = vpop.f32.mrb[0].mxu0
      %v1074 = vadd.f32 0.0, %v1073
      %v1075 = vpop.f32.mrb[0].mxu0
      %1076 = vmatprep.mubr.bf16.mxu0 0
      %1077 = vmatmul.mubr.bf16.gmra.mrb[0].mxu0 %v951
      %v1078 = vpop.f32.mrb[0].mxu0
      %v1079 = vadd.f32 0.0, %v1078
      %v1080 = vpop.f32.mrb[0].mxu0
      %v1081 = vpop.f32.mrb[0].mxu0
      %v1082 = vadd.f32 0.0, %v1081
      %v1083 = vpop.f32.mrb[0].mxu0
      %1084 = vmatprep.mubr.bf16.mxu0 0
      %1085 = vmatmul.mubr.bf16.gmra.mrb[0].mxu0 %v954
      %v1086 = vpop.f32.mrb[0].mxu0
      %v1087 = vadd.f32 0.0, %v1086
      %v1088 = vpop.f32.mrb[0].mxu0
      %v1089 = vpop.f32.mrb[0].mxu0
      %v1090 = vadd.f32 0.0, %v1089
      %v1091 = vpop.f32.mrb[0].mxu0
      %1092 = vmatprep.mubr.bf16.mxu0 0
      %1093 = vmatmul.mubr.bf16.gmra.mrb[0].mxu0 %v957
      %v1094 = vpop.f32.mrb[0].mxu0
      %v1095 = vadd.f32 0.0, %v1094
      %v1096 = vpop.f32.mrb[0].mxu0
      %v1097 = vpop.f32.mrb[0].mxu0
      %v1098 = vadd.f32 0.0, %v1097
      %v1099 = vpop.f32.mrb[0].mxu0
      %1100 = vmatprep.mubr.bf16.mxu0 0
      %1101 = vmatmul.mubr.bf16.gmra.mrb[0].mxu0 %v960
      %v1102 = vpop.f32.mrb[0].mxu0
      %v1103 = vadd.f32 0.0, %v1102
      %v1104 = vpop.f32.mrb[0].mxu0
      %v1105 = vpop.f32.mrb[0].mxu0
      %v1106 = vadd.f32 0.0, %v1105
      %v1107 = vpop.f32.mrb[0].mxu0
      %1108 = vmatprep.mubr.bf16.mxu0 0
      %1109 = vmatmul.mubr.bf16.gmra.mrb[0].mxu0 %v963
      %v1110 = vpop.f32.mrb[0].mxu0
      %v1111 = vadd.f32 0.0, %v1110
      %v1112 = vpop.f32.mrb[0].mxu0
      %v1113 = vpop.f32.mrb[0].mxu0
      %v1114 = vadd.f32 0.0, %v1113
      %v1115 = vpop.f32.mrb[0].mxu0
      %1116 = vmatprep.mubr.bf16.mxu0 0
      %1117 = vmatmul.mubr.bf16.gmra.mrb[0].mxu0 %v966
      %v1118 = vpop.f32.mrb[0].mxu0
      %v1119 = vadd.f32 0.0, %v1118
      %v1120 = vpop.f32.mrb[0].mxu0
      %v1121 = vpop.f32.mrb[0].mxu0
      %v1122 = vadd.f32 0.0, %v1121
      %v1123 = vpop.f32.mrb[0].mxu0
      %1124 = vmatprep.mubr.bf16.mxu0 0
      %1125 = vmatmul.mubr.bf16.gmra.mrb[0].mxu0 %v969
      %v1126 = vpop.f32.mrb[0].mxu0
      %v1127 = vadd.f32 0.0, %v1126
      %v1128 = vpop.f32.mrb[0].mxu0
      %v1129 = vpop.f32.mrb[0].mxu0
      %v1130 = vadd.f32 0.0, %v1129
      %v1131 = vpop.f32.mrb[0].mxu0
      %1132 = vmatprep.mubr.bf16.mxu0 0
      %1133 = vmatmul.mubr.bf16.gmra.mrb[0].mxu0 %v972
      %v1134 = vpop.f32.mrb[0].mxu0
      %v1135 = vadd.f32 0.0, %v1134
      %v1136 = vpop.f32.mrb[0].mxu0
      %v1137 = vpop.f32.mrb[0].mxu0
      %v1138 = vadd.f32 0.0, %v1137
      %v1139 = vpop.f32.mrb[0].mxu0
      %1140 = vmatprep.mubr.bf16.mxu0 0
      %1141 = vmatmul.mubr.bf16.gmra.mrb[0].mxu0 %v975
      %v1142 = vpop.f32.mrb[0].mxu0
      %v1143 = vadd.f32 0.0, %v1142
      %v1144 = vpop.f32.mrb[0].mxu0
      %v1145 = vpop.f32.mrb[0].mxu0
      %v1146 = vadd.f32 0.0, %v1145
      %v1147 = vpop.f32.mrb[0].mxu0
      %1148 = vmatprep.mubr.bf16.mxu0 0
      %1149 = vmatmul.mubr.bf16.gmra.mrb[0].mxu0 %v978
      %v1150 = vpop.f32.mrb[0].mxu0
      %v1151 = vadd.f32 0.0, %v1150
      %v1152 = vpop.f32.mrb[0].mxu0
      %v1153 = vpop.f32.mrb[0].mxu0
      %v1154 = vadd.f32 0.0, %v1153
      %v1155 = vpop.f32.mrb[0].mxu0
      %1156 = vdwg.mxu0
      %v1157 = vadd.f32 %v714, %v1015
      %v1158 = vadd.f32 %v717, %v1018
      %v1159 = vadd.f32 %v722, %v1023
      %v1160 = vadd.f32 %v725, %v1026
      %v1161 = vadd.f32 %v730, %v1031
      %v1162 = vadd.f32 %v733, %v1034
      %v1163 = vadd.f32 %v738, %v1039
      %v1164 = vadd.f32 %v741, %v1042
      %v1165 = vadd.f32 %v746, %v1047
      %v1166 = vadd.f32 %v749, %v1050
      %v1167 = vadd.f32 %v754, %v1055
      %v1168 = vadd.f32 %v757, %v1058
      %v1169 = vadd.f32 %v762, %v1063
      %v1170 = vadd.f32 %v765, %v1066
      %v1171 = vadd.f32 %v770, %v1071
      %v1172 = vadd.f32 %v773, %v1074
      %v1173 = vadd.f32 %v778, %v1079
      %v1174 = vadd.f32 %v781, %v1082
      %v1175 = vadd.f32 %v786, %v1087
      %v1176 = vadd.f32 %v789, %v1090
      %v1177 = vadd.f32 %v794, %v1095
      %v1178 = vadd.f32 %v797, %v1098
      %v1179 = vadd.f32 %v802, %v1103
      %v1180 = vadd.f32 %v805, %v1106
      %v1181 = vadd.f32 %v810, %v1111
      %v1182 = vadd.f32 %v813, %v1114
      %v1183 = vadd.f32 %v818, %v1119
      %v1184 = vadd.f32 %v821, %v1122
      %v1185 = vadd.f32 %v826, %v1127
      %v1186 = vadd.f32 %v829, %v1130
      %v1187 = vadd.f32 %v834, %v1135
      %v1188 = vadd.f32 %v837, %v1138
      %v1189 = vadd.f32 %v842, %v1143
      %v1190 = vadd.f32 %v845, %v1146
      %v1191 = vadd.f32 %v850, %v1151
      %v1192 = vadd.f32 %v853, %v1154
      %v1193 = vld [vmem:[%s246 + $0x12] sm:$0xff]
      %v1194 = vld [vmem:[%s246 + $0x1a] sm:$0xff]
      %v1195 = vld [vmem:[%s246 + $0x22] sm:$0xff]
      %v1196 = vld [vmem:[%s246 + $0x2a] sm:$0xff]
      %v1197 = vld [vmem:[%s246 + $0x32] sm:$0xff]
      %v1198 = vld [vmem:[%s246 + $0x3a] sm:$0xff]
      %v1199 = vld [vmem:[%s246 + $0x42] sm:$0xff]
      %v1200 = vld [vmem:[%s246 + $0x4a] sm:$0xff]
      %v1201 = vld [vmem:[%s246 + $0x52] sm:$0xff]
      %v1202 = vld [vmem:[%s246 + $0x5a] sm:$0xff]
      %v1203 = vld [vmem:[%s246 + $0x62] sm:$0xff]
      %v1204 = vld [vmem:[%s246 + $0x6a] sm:$0xff]
      %v1205 = vld [vmem:[%s246 + $0x72] sm:$0xff]
      %v1206 = vld [vmem:[%s246 + $0x7a] sm:$0xff]
      %v1207 = vld [vmem:[%s246 + $0x82] sm:$0xff]
      %v1208 = vld [vmem:[%s246 + $0x8a] sm:$0xff]
      %v1209 = vld [vmem:[%s246 + $0x92] sm:$0xff]
      %v1210 = vld [vmem:[%s246 + $0x9a] sm:$0xff]
      %v1211 = vld [vmem:[%s246 + $0xa2] sm:$0xff]
      %v1212 = vld [vmem:[%s246 + $0xaa] sm:$0xff]
      %v1213 = vld [vmem:[%s246 + $0xb2] sm:$0xff]
      %v1214 = vld [vmem:[%s246 + $0xba] sm:$0xff]
      %v1215 = vld [vmem:[%s246 + $0xc2] sm:$0xff]
      %v1216 = vld [vmem:[%s246 + $0xca] sm:$0xff]
      %v1217 = vld [vmem:[%s246 + $0xd2] sm:$0xff]
      %v1218 = vld [vmem:[%s246 + $0xda] sm:$0xff]
      %v1219 = vld [vmem:[%s246 + $0xe2] sm:$0xff]
      %v1220 = vld [vmem:[%s246 + $0xea] sm:$0xff]
      %v1221 = vld [vmem:[%s246 + $0xf2] sm:$0xff]
      %v1222 = vld [vmem:[%s246 + $0xfa] sm:$0xff]
      %v1223 = vld [vmem:[%s246 + $0x102] sm:$0xff]
      %v1224 = vld [vmem:[%s246 + $0x10a] sm:$0xff]
      %v1225 = vld [vmem:[%s246 + $0x112] sm:$0xff]
      %v1226 = vld [vmem:[%s246 + $0x11a] sm:$0xff]
      %v1227 = vld [vmem:[%s246 + $0x122] sm:$0xff]
      %v1228 = vld [vmem:[%s246 + $0x12a] sm:$0xff]
      %v1229 = vpack.c.bf16 %v1194, %v1193
      %v1230 = vpack.c.bf16 %v1196, %v1195
      %v1231 = vpack.c.bf16 %v1198, %v1197
      %v1232 = vpack.c.bf16 %v1200, %v1199
      %v1233 = vpack.c.bf16 %v1202, %v1201
      %v1234 = vpack.c.bf16 %v1204, %v1203
      %v1235 = vpack.c.bf16 %v1206, %v1205
      %v1236 = vpack.c.bf16 %v1208, %v1207
      %v1237 = vpack.c.bf16 %v1210, %v1209
      %v1238 = vpack.c.bf16 %v1212, %v1211
      %v1239 = vpack.c.bf16 %v1214, %v1213
      %v1240 = vpack.c.bf16 %v1216, %v1215
      %v1241 = vpack.c.bf16 %v1218, %v1217
      %v1242 = vpack.c.bf16 %v1220, %v1219
      %v1243 = vpack.c.bf16 %v1222, %v1221
      %v1244 = vpack.c.bf16 %v1224, %v1223
      %v1245 = vpack.c.bf16 %v1226, %v1225
      %v1246 = vpack.c.bf16 %v1228, %v1227
      %v1247 = vld [vmem:[%s1 + $0x30] sm:$0xf]
      %v1248 = vld [vmem:[%s1 + $0x34] sm:$0xf]
      %v1249 = vld [vmem:[%s1 + $0x38] sm:$0xf]
      %v1250 = vld [vmem:[%s1 + $0x3c] sm:$0xf]
      %v1255 = vunpack.c.l.b16 %v1247
      %v1256 = vunpack.c.l.b16 %v1248
      %v1257 = vunpack.c.l.b16 %v1249
      %v1258 = vunpack.c.l.b16 %v1250
      %v1259 = vpack.c.b16 %v1256, %v1255
      %v1260 = vpack.c.b16 %v1258, %v1257
      %v1264 = vsel %vm381, %v1229, 0
      %v1267 = vsel %vm381, %v1230, 0
      %v1270 = vsel %vm381, %v1231, 0
      %v1273 = vsel %vm381, %v1232, 0
      %v1276 = vsel %vm381, %v1233, 0
      %v1279 = vsel %vm381, %v1234, 0
      %v1282 = vsel %vm381, %v1235, 0
      %v1285 = vsel %vm381, %v1236, 0
      %v1288 = vsel %vm381, %v1237, 0
      %v1291 = vsel %vm381, %v1238, 0
      %v1294 = vsel %vm381, %v1239, 0
      %v1297 = vsel %vm381, %v1240, 0
      %v1300 = vsel %vm381, %v1241, 0
      %v1303 = vsel %vm381, %v1242, 0
      %v1306 = vsel %vm381, %v1243, 0
      %v1309 = vsel %vm381, %v1244, 0
      %v1312 = vsel %vm381, %v1245, 0
      %v1315 = vsel %vm381, %v1246, 0
      %1317 = vmatprep.subr.bf16.mxu0 0
      %1318 = vmatpush1.bf16.msra.mxu0 %v1259
      %1319 = vmatprep.subr.bf16.mxu0 0
      %1320 = vmatpush1.bf16.msra.mxu0 %v1260
      %1321 = vmatprep.subr.bf16.mxu0 0
      %1322 = vmatpush1.bf16.msra.mxu0 0
      %1323 = vmatprep.subr.bf16.mxu0 0
      %1324 = vmatpush1.bf16.msra.mxu0 0
      %1325 = vmatprep.subr.bf16.mxu0 0
      %1326 = vmatpush1.bf16.msra.mxu0 0
      %1327 = vmatprep.subr.bf16.mxu0 0
      %1328 = vmatpush1.bf16.msra.mxu0 0
      %1329 = vmatprep.subr.bf16.mxu0 0
      %1330 = vmatpush1.bf16.msra.mxu0 0
      %1331 = vmatprep.subr.bf16.mxu0 0
      %1332 = vmatpush1.bf16.msra.mxu0 0
      %1333 = vmatprep.subr.bf16.mxu0 0
      %1334 = vmatpush1.bf16.msra.mxu0 0
      %1335 = vmatprep.subr.bf16.mxu0 0
      %1336 = vmatpush1.bf16.msra.mxu0 0
      %1337 = vmatprep.subr.bf16.mxu0 0
      %1338 = vmatpush1.bf16.msra.mxu0 0
      %1339 = vmatprep.subr.bf16.mxu0 0
      %1340 = vmatpush1.bf16.msra.mxu0 0
      %1341 = vmatprep.subr.bf16.mxu0 0
      %1342 = vmatpush1.bf16.msra.mxu0 0
      %1343 = vmatprep.subr.bf16.mxu0 0
      %1344 = vmatpush1.bf16.msra.mxu0 0
      %1345 = vmatprep.subr.bf16.mxu0 0
      %1346 = vmatpush1.bf16.msra.mxu0 0
      %1347 = vmatprep.subr.bf16.mxu0 0
      %1348 = vmatpush1.bf16.msra.mxu0 0
      %1349 = vmatprep.mubr.bf16.mxu0 0
      %1350 = vmatmul.mubr.bf16.gmra.mrb[0].mxu0 %v1264
      %v1351 = vpop.f32.mrb[0].mxu0
      %v1352 = vadd.f32 0.0, %v1351
      %v1353 = vpop.f32.mrb[0].mxu0
      %v1354 = vpop.f32.mrb[0].mxu0
      %v1355 = vadd.f32 0.0, %v1354
      %v1356 = vpop.f32.mrb[0].mxu0
      %1357 = vmatprep.mubr.bf16.mxu0 0
      %1358 = vmatmul.mubr.bf16.gmra.mrb[0].mxu0 %v1267
      %v1359 = vpop.f32.mrb[0].mxu0
      %v1360 = vadd.f32 0.0, %v1359
      %v1361 = vpop.f32.mrb[0].mxu0
      %v1362 = vpop.f32.mrb[0].mxu0
      %v1363 = vadd.f32 0.0, %v1362
      %v1364 = vpop.f32.mrb[0].mxu0
      %1365 = vmatprep.mubr.bf16.mxu0 0
      %1366 = vmatmul.mubr.bf16.gmra.mrb[0].mxu0 %v1270
      %v1367 = vpop.f32.mrb[0].mxu0
      %v1368 = vadd.f32 0.0, %v1367
      %v1369 = vpop.f32.mrb[0].mxu0
      %v1370 = vpop.f32.mrb[0].mxu0
      %v1371 = vadd.f32 0.0, %v1370
      %v1372 = vpop.f32.mrb[0].mxu0
      %1373 = vmatprep.mubr.bf16.mxu0 0
      %1374 = vmatmul.mubr.bf16.gmra.mrb[0].mxu0 %v1273
      %v1375 = vpop.f32.mrb[0].mxu0
      %v1376 = vadd.f32 0.0, %v1375
      %v1377 = vpop.f32.mrb[0].mxu0
      %v1378 = vpop.f32.mrb[0].mxu0
      %v1379 = vadd.f32 0.0, %v1378
      %v1380 = vpop.f32.mrb[0].mxu0
      %1381 = vmatprep.mubr.bf16.mxu0 0
      %1382 = vmatmul.mubr.bf16.gmra.mrb[0].mxu0 %v1276
      %v1383 = vpop.f32.mrb[0].mxu0
      %v1384 = vadd.f32 0.0, %v1383
      %v1385 = vpop.f32.mrb[0].mxu0
      %v1386 = vpop.f32.mrb[0].mxu0
      %v1387 = vadd.f32 0.0, %v1386
      %v1388 = vpop.f32.mrb[0].mxu0
      %1389 = vmatprep.mubr.bf16.mxu0 0
      %1390 = vmatmul.mubr.bf16.gmra.mrb[0].mxu0 %v1279
      %v1391 = vpop.f32.mrb[0].mxu0
      %v1392 = vadd.f32 0.0, %v1391
      %v1393 = vpop.f32.mrb[0].mxu0
      %v1394 = vpop.f32.mrb[0].mxu0
      %v1395 = vadd.f32 0.0, %v1394
      %v1396 = vpop.f32.mrb[0].mxu0
      %1397 = vmatprep.mubr.bf16.mxu0 0
      %1398 = vmatmul.mubr.bf16.gmra.mrb[0].mxu0 %v1282
      %v1399 = vpop.f32.mrb[0].mxu0
      %v1400 = vadd.f32 0.0, %v1399
      %v1401 = vpop.f32.mrb[0].mxu0
      %v1402 = vpop.f32.mrb[0].mxu0
      %v1403 = vadd.f32 0.0, %v1402
      %v1404 = vpop.f32.mrb[0].mxu0
      %1405 = vmatprep.mubr.bf16.mxu0 0
      %1406 = vmatmul.mubr.bf16.gmra.mrb[0].mxu0 %v1285
      %v1407 = vpop.f32.mrb[0].mxu0
      %v1408 = vadd.f32 0.0, %v1407
      %v1409 = vpop.f32.mrb[0].mxu0
      %v1410 = vpop.f32.mrb[0].mxu0
      %v1411 = vadd.f32 0.0, %v1410
      %v1412 = vpop.f32.mrb[0].mxu0
      %1413 = vmatprep.mubr.bf16.mxu0 0
      %1414 = vmatmul.mubr.bf16.gmra.mrb[0].mxu0 %v1288
      %v1415 = vpop.f32.mrb[0].mxu0
      %v1416 = vadd.f32 0.0, %v1415
      %v1417 = vpop.f32.mrb[0].mxu0
      %v1418 = vpop.f32.mrb[0].mxu0
      %v1419 = vadd.f32 0.0, %v1418
      %v1420 = vpop.f32.mrb[0].mxu0
      %1421 = vmatprep.mubr.bf16.mxu0 0
      %1422 = vmatmul.mubr.bf16.gmra.mrb[0].mxu0 %v1291
      %v1423 = vpop.f32.mrb[0].mxu0
      %v1424 = vadd.f32 0.0, %v1423
      %v1425 = vpop.f32.mrb[0].mxu0
      %v1426 = vpop.f32.mrb[0].mxu0
      %v1427 = vadd.f32 0.0, %v1426
      %v1428 = vpop.f32.mrb[0].mxu0
      %1429 = vmatprep.mubr.bf16.mxu0 0
      %1430 = vmatmul.mubr.bf16.gmra.mrb[0].mxu0 %v1294
      %v1431 = vpop.f32.mrb[0].mxu0
      %v1432 = vadd.f32 0.0, %v1431
      %v1433 = vpop.f32.mrb[0].mxu0
      %v1434 = vpop.f32.mrb[0].mxu0
      %v1435 = vadd.f32 0.0, %v1434
      %v1436 = vpop.f32.mrb[0].mxu0
      %1437 = vmatprep.mubr.bf16.mxu0 0
      %1438 = vmatmul.mubr.bf16.gmra.mrb[0].mxu0 %v1297
      %v1439 = vpop.f32.mrb[0].mxu0
      %v1440 = vadd.f32 0.0, %v1439
      %v1441 = vpop.f32.mrb[0].mxu0
      %v1442 = vpop.f32.mrb[0].mxu0
      %v1443 = vadd.f32 0.0, %v1442
      %v1444 = vpop.f32.mrb[0].mxu0
      %1445 = vmatprep.mubr.bf16.mxu0 0
      %1446 = vmatmul.mubr.bf16.gmra.mrb[0].mxu0 %v1300
      %v1447 = vpop.f32.mrb[0].mxu0
      %v1448 = vadd.f32 0.0, %v1447
      %v1449 = vpop.f32.mrb[0].mxu0
      %v1450 = vpop.f32.mrb[0].mxu0
      %v1451 = vadd.f32 0.0, %v1450
      %v1452 = vpop.f32.mrb[0].mxu0
      %1453 = vmatprep.mubr.bf16.mxu0 0
      %1454 = vmatmul.mubr.bf16.gmra.mrb[0].mxu0 %v1303
      %v1455 = vpop.f32.mrb[0].mxu0
      %v1456 = vadd.f32 0.0, %v1455
      %v1457 = vpop.f32.mrb[0].mxu0
      %v1458 = vpop.f32.mrb[0].mxu0
      %v1459 = vadd.f32 0.0, %v1458
      %v1460 = vpop.f32.mrb[0].mxu0
      %1461 = vmatprep.mubr.bf16.mxu0 0
      %1462 = vmatmul.mubr.bf16.gmra.mrb[0].mxu0 %v1306
      %v1463 = vpop.f32.mrb[0].mxu0
      %v1464 = vadd.f32 0.0, %v1463
      %v1465 = vpop.f32.mrb[0].mxu0
      %v1466 = vpop.f32.mrb[0].mxu0
      %v1467 = vadd.f32 0.0, %v1466
      %v1468 = vpop.f32.mrb[0].mxu0
      %1469 = vmatprep.mubr.bf16.mxu0 0
      %1470 = vmatmul.mubr.bf16.gmra.mrb[0].mxu0 %v1309
      %v1471 = vpop.f32.mrb[0].mxu0
      %v1472 = vadd.f32 0.0, %v1471
      %v1473 = vpop.f32.mrb[0].mxu0
      %v1474 = vpop.f32.mrb[0].mxu0
      %v1475 = vadd.f32 0.0, %v1474
      %v1476 = vpop.f32.mrb[0].mxu0
      %1477 = vmatprep.mubr.bf16.mxu0 0
      %1478 = vmatmul.mubr.bf16.gmra.mrb[0].mxu0 %v1312
      %v1479 = vpop.f32.mrb[0].mxu0
      %v1480 = vadd.f32 0.0, %v1479
      %v1481 = vpop.f32.mrb[0].mxu0
      %v1482 = vpop.f32.mrb[0].mxu0
      %v1483 = vadd.f32 0.0, %v1482
      %v1484 = vpop.f32.mrb[0].mxu0
      %1485 = vmatprep.mubr.bf16.mxu0 0
      %1486 = vmatmul.mubr.bf16.gmra.mrb[0].mxu0 %v1315
      %v1487 = vpop.f32.mrb[0].mxu0
      %v1488 = vadd.f32 0.0, %v1487
      %v1489 = vpop.f32.mrb[0].mxu0
      %v1490 = vpop.f32.mrb[0].mxu0
      %v1491 = vadd.f32 0.0, %v1490
      %v1492 = vpop.f32.mrb[0].mxu0
      %1493 = vdwg.mxu0
      %v1494 = vadd.f32 %v1157, %v1352
      %v1495 = vadd.f32 %v1158, %v1355
      %v1496 = vadd.f32 %v1159, %v1360
      %v1497 = vadd.f32 %v1160, %v1363
      %v1498 = vadd.f32 %v1161, %v1368
      %v1499 = vadd.f32 %v1162, %v1371
      %v1500 = vadd.f32 %v1163, %v1376
      %v1501 = vadd.f32 %v1164, %v1379
      %v1502 = vadd.f32 %v1165, %v1384
      %v1503 = vadd.f32 %v1166, %v1387
      %v1504 = vadd.f32 %v1167, %v1392
      %v1505 = vadd.f32 %v1168, %v1395
      %v1506 = vadd.f32 %v1169, %v1400
      %v1507 = vadd.f32 %v1170, %v1403
      %v1508 = vadd.f32 %v1171, %v1408
      %v1509 = vadd.f32 %v1172, %v1411
      %v1510 = vadd.f32 %v1173, %v1416
      %v1511 = vadd.f32 %v1174, %v1419
      %v1512 = vadd.f32 %v1175, %v1424
      %v1513 = vadd.f32 %v1176, %v1427
      %v1514 = vadd.f32 %v1177, %v1432
      %v1515 = vadd.f32 %v1178, %v1435
      %v1516 = vadd.f32 %v1179, %v1440
      %v1517 = vadd.f32 %v1180, %v1443
      %v1518 = vadd.f32 %v1181, %v1448
      %v1519 = vadd.f32 %v1182, %v1451
      %v1520 = vadd.f32 %v1183, %v1456
      %v1521 = vadd.f32 %v1184, %v1459
      %v1522 = vadd.f32 %v1185, %v1464
      %v1523 = vadd.f32 %v1186, %v1467
      %v1524 = vadd.f32 %v1187, %v1472
      %v1525 = vadd.f32 %v1188, %v1475
      %v1526 = vadd.f32 %v1189, %v1480
      %v1527 = vadd.f32 %v1190, %v1483
      %v1528 = vadd.f32 %v1191, %v1488
      %v1529 = vadd.f32 %v1192, %v1491
      %v1530 = vld [vmem:[%s246 + $0x13] sm:$0xff]
      %v1531 = vld [vmem:[%s246 + $0x1b] sm:$0xff]
      %v1532 = vld [vmem:[%s246 + $0x23] sm:$0xff]
      %v1533 = vld [vmem:[%s246 + $0x2b] sm:$0xff]
      %v1534 = vld [vmem:[%s246 + $0x33] sm:$0xff]
      %v1535 = vld [vmem:[%s246 + $0x3b] sm:$0xff]
      %v1536 = vld [vmem:[%s246 + $0x43] sm:$0xff]
      %v1537 = vld [vmem:[%s246 + $0x4b] sm:$0xff]
      %v1538 = vld [vmem:[%s246 + $0x53] sm:$0xff]
      %v1539 = vld [vmem:[%s246 + $0x5b] sm:$0xff]
      %v1540 = vld [vmem:[%s246 + $0x63] sm:$0xff]
      %v1541 = vld [vmem:[%s246 + $0x6b] sm:$0xff]
      %v1542 = vld [vmem:[%s246 + $0x73] sm:$0xff]
      %v1543 = vld [vmem:[%s246 + $0x7b] sm:$0xff]
      %v1544 = vld [vmem:[%s246 + $0x83] sm:$0xff]
      %v1545 = vld [vmem:[%s246 + $0x8b] sm:$0xff]
      %v1546 = vld [vmem:[%s246 + $0x93] sm:$0xff]
      %v1547 = vld [vmem:[%s246 + $0x9b] sm:$0xff]
      %v1548 = vld [vmem:[%s246 + $0xa3] sm:$0xff]
      %v1549 = vld [vmem:[%s246 + $0xab] sm:$0xff]
      %v1550 = vld [vmem:[%s246 + $0xb3] sm:$0xff]
      %v1551 = vld [vmem:[%s246 + $0xbb] sm:$0xff]
      %v1552 = vld [vmem:[%s246 + $0xc3] sm:$0xff]
      %v1553 = vld [vmem:[%s246 + $0xcb] sm:$0xff]
      %v1554 = vld [vmem:[%s246 + $0xd3] sm:$0xff]
      %v1555 = vld [vmem:[%s246 + $0xdb] sm:$0xff]
      %v1556 = vld [vmem:[%s246 + $0xe3] sm:$0xff]
      %v1557 = vld [vmem:[%s246 + $0xeb] sm:$0xff]
      %v1558 = vld [vmem:[%s246 + $0xf3] sm:$0xff]
      %v1559 = vld [vmem:[%s246 + $0xfb] sm:$0xff]
      %v1560 = vld [vmem:[%s246 + $0x103] sm:$0xff]
      %v1561 = vld [vmem:[%s246 + $0x10b] sm:$0xff]
      %v1562 = vld [vmem:[%s246 + $0x113] sm:$0xff]
      %v1563 = vld [vmem:[%s246 + $0x11b] sm:$0xff]
      %v1564 = vld [vmem:[%s246 + $0x123] sm:$0xff]
      %v1565 = vld [vmem:[%s246 + $0x12b] sm:$0xff]
      %v1566 = vpack.c.bf16 %v1531, %v1530
      %v1567 = vpack.c.bf16 %v1533, %v1532
      %v1568 = vpack.c.bf16 %v1535, %v1534
      %v1569 = vpack.c.bf16 %v1537, %v1536
      %v1570 = vpack.c.bf16 %v1539, %v1538
      %v1571 = vpack.c.bf16 %v1541, %v1540
      %v1572 = vpack.c.bf16 %v1543, %v1542
      %v1573 = vpack.c.bf16 %v1545, %v1544
      %v1574 = vpack.c.bf16 %v1547, %v1546
      %v1575 = vpack.c.bf16 %v1549, %v1548
      %v1576 = vpack.c.bf16 %v1551, %v1550
      %v1577 = vpack.c.bf16 %v1553, %v1552
      %v1578 = vpack.c.bf16 %v1555, %v1554
      %v1579 = vpack.c.bf16 %v1557, %v1556
      %v1580 = vpack.c.bf16 %v1559, %v1558
      %v1581 = vpack.c.bf16 %v1561, %v1560
      %v1582 = vpack.c.bf16 %v1563, %v1562
      %v1583 = vpack.c.bf16 %v1565, %v1564
      %v1584 = vld [vmem:[%s1 + $0x40] sm:$0xf]
      %v1585 = vld [vmem:[%s1 + $0x44] sm:$0xf]
      %v1586 = vld [vmem:[%s1 + $0x48] sm:$0xf]
      %v1587 = vld [vmem:[%s1 + $0x4c] sm:$0xf]
      %v1592 = vunpack.c.l.b16 %v1584
      %v1593 = vunpack.c.l.b16 %v1585
      %v1594 = vunpack.c.l.b16 %v1586
      %v1595 = vunpack.c.l.b16 %v1587
      %v1596 = vpack.c.b16 %v1593, %v1592
      %v1597 = vpack.c.b16 %v1595, %v1594
      %v1601 = vsel %vm381, %v1566, 0
      %v1604 = vsel %vm381, %v1567, 0
      %v1607 = vsel %vm381, %v1568, 0
      %v1610 = vsel %vm381, %v1569, 0
      %v1613 = vsel %vm381, %v1570, 0
      %v1616 = vsel %vm381, %v1571, 0
      %v1619 = vsel %vm381, %v1572, 0
      %v1622 = vsel %vm381, %v1573, 0
      %v1625 = vsel %vm381, %v1574, 0
      %v1628 = vsel %vm381, %v1575, 0
      %v1631 = vsel %vm381, %v1576, 0
      %v1634 = vsel %vm381, %v1577, 0
      %v1637 = vsel %vm381, %v1578, 0
      %v1640 = vsel %vm381, %v1579, 0
      %v1643 = vsel %vm381, %v1580, 0
      %v1646 = vsel %vm381, %v1581, 0
      %v1649 = vsel %vm381, %v1582, 0
      %v1652 = vsel %vm381, %v1583, 0
      %1654 = vmatprep.subr.bf16.mxu0 0
      %1655 = vmatpush1.bf16.msra.mxu0 %v1596
      %1656 = vmatprep.subr.bf16.mxu0 0
      %1657 = vmatpush1.bf16.msra.mxu0 %v1597
      %1658 = vmatprep.subr.bf16.mxu0 0
      %1659 = vmatpush1.bf16.msra.mxu0 0
      %1660 = vmatprep.subr.bf16.mxu0 0
      %1661 = vmatpush1.bf16.msra.mxu0 0
      %1662 = vmatprep.subr.bf16.mxu0 0
      %1663 = vmatpush1.bf16.msra.mxu0 0
      %1664 = vmatprep.subr.bf16.mxu0 0
      %1665 = vmatpush1.bf16.msra.mxu0 0
      %1666 = vmatprep.subr.bf16.mxu0 0
      %1667 = vmatpush1.bf16.msra.mxu0 0
      %1668 = vmatprep.subr.bf16.mxu0 0
      %1669 = vmatpush1.bf16.msra.mxu0 0
      %1670 = vmatprep.subr.bf16.mxu0 0
      %1671 = vmatpush1.bf16.msra.mxu0 0
      %1672 = vmatprep.subr.bf16.mxu0 0
      %1673 = vmatpush1.bf16.msra.mxu0 0
      %1674 = vmatprep.subr.bf16.mxu0 0
      %1675 = vmatpush1.bf16.msra.mxu0 0
      %1676 = vmatprep.subr.bf16.mxu0 0
      %1677 = vmatpush1.bf16.msra.mxu0 0
      %1678 = vmatprep.subr.bf16.mxu0 0
      %1679 = vmatpush1.bf16.msra.mxu0 0
      %1680 = vmatprep.subr.bf16.mxu0 0
      %1681 = vmatpush1.bf16.msra.mxu0 0
      %1682 = vmatprep.subr.bf16.mxu0 0
      %1683 = vmatpush1.bf16.msra.mxu0 0
      %1684 = vmatprep.subr.bf16.mxu0 0
      %1685 = vmatpush1.bf16.msra.mxu0 0
      %1686 = vmatprep.mubr.bf16.mxu0 0
      %1687 = vmatmul.mubr.bf16.gmra.mrb[0].mxu0 %v1601
      %v1688 = vpop.f32.mrb[0].mxu0
      %v1689 = vadd.f32 0.0, %v1688
      %v1690 = vpop.f32.mrb[0].mxu0
      %v1691 = vpop.f32.mrb[0].mxu0
      %v1692 = vadd.f32 0.0, %v1691
      %v1693 = vpop.f32.mrb[0].mxu0
      %1694 = vmatprep.mubr.bf16.mxu0 0
      %1695 = vmatmul.mubr.bf16.gmra.mrb[0].mxu0 %v1604
      %v1696 = vpop.f32.mrb[0].mxu0
      %v1697 = vadd.f32 0.0, %v1696
      %v1698 = vpop.f32.mrb[0].mxu0
      %v1699 = vpop.f32.mrb[0].mxu0
      %v1700 = vadd.f32 0.0, %v1699
      %v1701 = vpop.f32.mrb[0].mxu0
      %1702 = vmatprep.mubr.bf16.mxu0 0
      %1703 = vmatmul.mubr.bf16.gmra.mrb[0].mxu0 %v1607
      %v1704 = vpop.f32.mrb[0].mxu0
      %v1705 = vadd.f32 0.0, %v1704
      %v1706 = vpop.f32.mrb[0].mxu0
      %v1707 = vpop.f32.mrb[0].mxu0
      %v1708 = vadd.f32 0.0, %v1707
      %v1709 = vpop.f32.mrb[0].mxu0
      %1710 = vmatprep.mubr.bf16.mxu0 0
      %1711 = vmatmul.mubr.bf16.gmra.mrb[0].mxu0 %v1610
      %v1712 = vpop.f32.mrb[0].mxu0
      %v1713 = vadd.f32 0.0, %v1712
      %v1714 = vpop.f32.mrb[0].mxu0
      %v1715 = vpop.f32.mrb[0].mxu0
      %v1716 = vadd.f32 0.0, %v1715
      %v1717 = vpop.f32.mrb[0].mxu0
      %1718 = vmatprep.mubr.bf16.mxu0 0
      %1719 = vmatmul.mubr.bf16.gmra.mrb[0].mxu0 %v1613
      %v1720 = vpop.f32.mrb[0].mxu0
      %v1721 = vadd.f32 0.0, %v1720
      %v1722 = vpop.f32.mrb[0].mxu0
      %v1723 = vpop.f32.mrb[0].mxu0
      %v1724 = vadd.f32 0.0, %v1723
      %v1725 = vpop.f32.mrb[0].mxu0
      %1726 = vmatprep.mubr.bf16.mxu0 0
      %1727 = vmatmul.mubr.bf16.gmra.mrb[0].mxu0 %v1616
      %v1728 = vpop.f32.mrb[0].mxu0
      %v1729 = vadd.f32 0.0, %v1728
      %v1730 = vpop.f32.mrb[0].mxu0
      %v1731 = vpop.f32.mrb[0].mxu0
      %v1732 = vadd.f32 0.0, %v1731
      %v1733 = vpop.f32.mrb[0].mxu0
      %1734 = vmatprep.mubr.bf16.mxu0 0
      %1735 = vmatmul.mubr.bf16.gmra.mrb[0].mxu0 %v1619
      %v1736 = vpop.f32.mrb[0].mxu0
      %v1737 = vadd.f32 0.0, %v1736
      %v1738 = vpop.f32.mrb[0].mxu0
      %v1739 = vpop.f32.mrb[0].mxu0
      %v1740 = vadd.f32 0.0, %v1739
      %v1741 = vpop.f32.mrb[0].mxu0
      %1742 = vmatprep.mubr.bf16.mxu0 0
      %1743 = vmatmul.mubr.bf16.gmra.mrb[0].mxu0 %v1622
      %v1744 = vpop.f32.mrb[0].mxu0
      %v1745 = vadd.f32 0.0, %v1744
      %v1746 = vpop.f32.mrb[0].mxu0
      %v1747 = vpop.f32.mrb[0].mxu0
      %v1748 = vadd.f32 0.0, %v1747
      %v1749 = vpop.f32.mrb[0].mxu0
      %1750 = vmatprep.mubr.bf16.mxu0 0
      %1751 = vmatmul.mubr.bf16.gmra.mrb[0].mxu0 %v1625
      %v1752 = vpop.f32.mrb[0].mxu0
      %v1753 = vadd.f32 0.0, %v1752
      %v1754 = vpop.f32.mrb[0].mxu0
      %v1755 = vpop.f32.mrb[0].mxu0
      %v1756 = vadd.f32 0.0, %v1755
      %v1757 = vpop.f32.mrb[0].mxu0
      %1758 = vmatprep.mubr.bf16.mxu0 0
      %1759 = vmatmul.mubr.bf16.gmra.mrb[0].mxu0 %v1628
      %v1760 = vpop.f32.mrb[0].mxu0
      %v1761 = vadd.f32 0.0, %v1760
      %v1762 = vpop.f32.mrb[0].mxu0
      %v1763 = vpop.f32.mrb[0].mxu0
      %v1764 = vadd.f32 0.0, %v1763
      %v1765 = vpop.f32.mrb[0].mxu0
      %1766 = vmatprep.mubr.bf16.mxu0 0
      %1767 = vmatmul.mubr.bf16.gmra.mrb[0].mxu0 %v1631
      %v1768 = vpop.f32.mrb[0].mxu0
      %v1769 = vadd.f32 0.0, %v1768
      %v1770 = vpop.f32.mrb[0].mxu0
      %v1771 = vpop.f32.mrb[0].mxu0
      %v1772 = vadd.f32 0.0, %v1771
      %v1773 = vpop.f32.mrb[0].mxu0
      %1774 = vmatprep.mubr.bf16.mxu0 0
      %1775 = vmatmul.mubr.bf16.gmra.mrb[0].mxu0 %v1634
      %v1776 = vpop.f32.mrb[0].mxu0
      %v1777 = vadd.f32 0.0, %v1776
      %v1778 = vpop.f32.mrb[0].mxu0
      %v1779 = vpop.f32.mrb[0].mxu0
      %v1780 = vadd.f32 0.0, %v1779
      %v1781 = vpop.f32.mrb[0].mxu0
      %1782 = vmatprep.mubr.bf16.mxu0 0
      %1783 = vmatmul.mubr.bf16.gmra.mrb[0].mxu0 %v1637
      %v1784 = vpop.f32.mrb[0].mxu0
      %v1785 = vadd.f32 0.0, %v1784
      %v1786 = vpop.f32.mrb[0].mxu0
      %v1787 = vpop.f32.mrb[0].mxu0
      %v1788 = vadd.f32 0.0, %v1787
      %v1789 = vpop.f32.mrb[0].mxu0
      %1790 = vmatprep.mubr.bf16.mxu0 0
      %1791 = vmatmul.mubr.bf16.gmra.mrb[0].mxu0 %v1640
      %v1792 = vpop.f32.mrb[0].mxu0
      %v1793 = vadd.f32 0.0, %v1792
      %v1794 = vpop.f32.mrb[0].mxu0
      %v1795 = vpop.f32.mrb[0].mxu0
      %v1796 = vadd.f32 0.0, %v1795
      %v1797 = vpop.f32.mrb[0].mxu0
      %1798 = vmatprep.mubr.bf16.mxu0 0
      %1799 = vmatmul.mubr.bf16.gmra.mrb[0].mxu0 %v1643
      %v1800 = vpop.f32.mrb[0].mxu0
      %v1801 = vadd.f32 0.0, %v1800
      %v1802 = vpop.f32.mrb[0].mxu0
      %v1803 = vpop.f32.mrb[0].mxu0
      %v1804 = vadd.f32 0.0, %v1803
      %v1805 = vpop.f32.mrb[0].mxu0
      %1806 = vmatprep.mubr.bf16.mxu0 0
      %1807 = vmatmul.mubr.bf16.gmra.mrb[0].mxu0 %v1646
      %v1808 = vpop.f32.mrb[0].mxu0
      %v1809 = vadd.f32 0.0, %v1808
      %v1810 = vpop.f32.mrb[0].mxu0
      %v1811 = vpop.f32.mrb[0].mxu0
      %v1812 = vadd.f32 0.0, %v1811
      %v1813 = vpop.f32.mrb[0].mxu0
      %1814 = vmatprep.mubr.bf16.mxu0 0
      %1815 = vmatmul.mubr.bf16.gmra.mrb[0].mxu0 %v1649
      %v1816 = vpop.f32.mrb[0].mxu0
      %v1817 = vadd.f32 0.0, %v1816
      %v1818 = vpop.f32.mrb[0].mxu0
      %v1819 = vpop.f32.mrb[0].mxu0
      %v1820 = vadd.f32 0.0, %v1819
      %v1821 = vpop.f32.mrb[0].mxu0
      %1822 = vmatprep.mubr.bf16.mxu0 0
      %1823 = vmatmul.mubr.bf16.gmra.mrb[0].mxu0 %v1652
      %v1824 = vpop.f32.mrb[0].mxu0
      %v1825 = vadd.f32 0.0, %v1824
      %v1826 = vpop.f32.mrb[0].mxu0
      %v1827 = vpop.f32.mrb[0].mxu0
      %v1828 = vadd.f32 0.0, %v1827
      %v1829 = vpop.f32.mrb[0].mxu0
      %1830 = vdwg.mxu0
      %v1831 = vadd.f32 %v1494, %v1689
      %v1832 = vadd.f32 %v1495, %v1692
      %v1833 = vadd.f32 %v1496, %v1697
      %v1834 = vadd.f32 %v1497, %v1700
      %v1835 = vadd.f32 %v1498, %v1705
      %v1836 = vadd.f32 %v1499, %v1708
      %v1837 = vadd.f32 %v1500, %v1713
      %v1838 = vadd.f32 %v1501, %v1716
      %v1839 = vadd.f32 %v1502, %v1721
      %v1840 = vadd.f32 %v1503, %v1724
      %v1841 = vadd.f32 %v1504, %v1729
      %v1842 = vadd.f32 %v1505, %v1732
      %v1843 = vadd.f32 %v1506, %v1737
      %v1844 = vadd.f32 %v1507, %v1740
      %v1845 = vadd.f32 %v1508, %v1745
      %v1846 = vadd.f32 %v1509, %v1748
      %v1847 = vadd.f32 %v1510, %v1753
      %v1848 = vadd.f32 %v1511, %v1756
      %v1849 = vadd.f32 %v1512, %v1761
      %v1850 = vadd.f32 %v1513, %v1764
      %v1851 = vadd.f32 %v1514, %v1769
      %v1852 = vadd.f32 %v1515, %v1772
      %v1853 = vadd.f32 %v1516, %v1777
      %v1854 = vadd.f32 %v1517, %v1780
      %v1855 = vadd.f32 %v1518, %v1785
      %v1856 = vadd.f32 %v1519, %v1788
      %v1857 = vadd.f32 %v1520, %v1793
      %v1858 = vadd.f32 %v1521, %v1796
      %v1859 = vadd.f32 %v1522, %v1801
      %v1860 = vadd.f32 %v1523, %v1804
      %v1861 = vadd.f32 %v1524, %v1809
      %v1862 = vadd.f32 %v1525, %v1812
      %v1863 = vadd.f32 %v1526, %v1817
      %v1864 = vadd.f32 %v1527, %v1820
      %v1865 = vadd.f32 %v1528, %v1825
      %v1866 = vadd.f32 %v1529, %v1828
      %v1867 = vld [vmem:[%s246 + $0x14] sm:$0xff]
      %v1868 = vld [vmem:[%s246 + $0x1c] sm:$0xff]
      %v1869 = vld [vmem:[%s246 + $0x24] sm:$0xff]
      %v1870 = vld [vmem:[%s246 + $0x2c] sm:$0xff]
      %v1871 = vld [vmem:[%s246 + $0x34] sm:$0xff]
      %v1872 = vld [vmem:[%s246 + $0x3c] sm:$0xff]
      %v1873 = vld [vmem:[%s246 + $0x44] sm:$0xff]
      %v1874 = vld [vmem:[%s246 + $0x4c] sm:$0xff]
      %v1875 = vld [vmem:[%s246 + $0x54] sm:$0xff]
      %v1876 = vld [vmem:[%s246 + $0x5c] sm:$0xff]
      %v1877 = vld [vmem:[%s246 + $0x64] sm:$0xff]
      %v1878 = vld [vmem:[%s246 + $0x6c] sm:$0xff]
      %v1879 = vld [vmem:[%s246 + $0x74] sm:$0xff]
      %v1880 = vld [vmem:[%s246 + $0x7c] sm:$0xff]
      %v1881 = vld [vmem:[%s246 + $0x84] sm:$0xff]
      %v1882 = vld [vmem:[%s246 + $0x8c] sm:$0xff]
      %v1883 = vld [vmem:[%s246 + $0x94] sm:$0xff]
      %v1884 = vld [vmem:[%s246 + $0x9c] sm:$0xff]
      %v1885 = vld [vmem:[%s246 + $0xa4] sm:$0xff]
      %v1886 = vld [vmem:[%s246 + $0xac] sm:$0xff]
      %v1887 = vld [vmem:[%s246 + $0xb4] sm:$0xff]
      %v1888 = vld [vmem:[%s246 + $0xbc] sm:$0xff]
      %v1889 = vld [vmem:[%s246 + $0xc4] sm:$0xff]
      %v1890 = vld [vmem:[%s246 + $0xcc] sm:$0xff]
      %v1891 = vld [vmem:[%s246 + $0xd4] sm:$0xff]
      %v1892 = vld [vmem:[%s246 + $0xdc] sm:$0xff]
      %v1893 = vld [vmem:[%s246 + $0xe4] sm:$0xff]
      %v1894 = vld [vmem:[%s246 + $0xec] sm:$0xff]
      %v1895 = vld [vmem:[%s246 + $0xf4] sm:$0xff]
      %v1896 = vld [vmem:[%s246 + $0xfc] sm:$0xff]
      %v1897 = vld [vmem:[%s246 + $0x104] sm:$0xff]
      %v1898 = vld [vmem:[%s246 + $0x10c] sm:$0xff]
      %v1899 = vld [vmem:[%s246 + $0x114] sm:$0xff]
      %v1900 = vld [vmem:[%s246 + $0x11c] sm:$0xff]
      %v1901 = vld [vmem:[%s246 + $0x124] sm:$0xff]
      %v1902 = vld [vmem:[%s246 + $0x12c] sm:$0xff]
      %v1903 = vpack.c.bf16 %v1868, %v1867
      %v1904 = vpack.c.bf16 %v1870, %v1869
      %v1905 = vpack.c.bf16 %v1872, %v1871
      %v1906 = vpack.c.bf16 %v1874, %v1873
      %v1907 = vpack.c.bf16 %v1876, %v1875
      %v1908 = vpack.c.bf16 %v1878, %v1877
      %v1909 = vpack.c.bf16 %v1880, %v1879
      %v1910 = vpack.c.bf16 %v1882, %v1881
      %v1911 = vpack.c.bf16 %v1884, %v1883
      %v1912 = vpack.c.bf16 %v1886, %v1885
      %v1913 = vpack.c.bf16 %v1888, %v1887
      %v1914 = vpack.c.bf16 %v1890, %v1889
      %v1915 = vpack.c.bf16 %v1892, %v1891
      %v1916 = vpack.c.bf16 %v1894, %v1893
      %v1917 = vpack.c.bf16 %v1896, %v1895
      %v1918 = vpack.c.bf16 %v1898, %v1897
      %v1919 = vpack.c.bf16 %v1900, %v1899
      %v1920 = vpack.c.bf16 %v1902, %v1901
      %v1921 = vld [vmem:[%s1 + $0x50] sm:$0xf]
      %v1922 = vld [vmem:[%s1 + $0x54] sm:$0xf]
      %v1923 = vld [vmem:[%s1 + $0x58] sm:$0xf]
      %v1924 = vld [vmem:[%s1 + $0x5c] sm:$0xf]
      %v1929 = vunpack.c.l.b16 %v1921
      %v1930 = vunpack.c.l.b16 %v1922
      %v1931 = vunpack.c.l.b16 %v1923
      %v1932 = vunpack.c.l.b16 %v1924
      %v1933 = vpack.c.b16 %v1930, %v1929
      %v1934 = vpack.c.b16 %v1932, %v1931
      %v1938 = vsel %vm381, %v1903, 0
      %v1941 = vsel %vm381, %v1904, 0
      %v1944 = vsel %vm381, %v1905, 0
      %v1947 = vsel %vm381, %v1906, 0
      %v1950 = vsel %vm381, %v1907, 0
      %v1953 = vsel %vm381, %v1908, 0
      %v1956 = vsel %vm381, %v1909, 0
      %v1959 = vsel %vm381, %v1910, 0
      %v1962 = vsel %vm381, %v1911, 0
      %v1965 = vsel %vm381, %v1912, 0
      %v1968 = vsel %vm381, %v1913, 0
      %v1971 = vsel %vm381, %v1914, 0
      %v1974 = vsel %vm381, %v1915, 0
      %v1977 = vsel %vm381, %v1916, 0
      %v1980 = vsel %vm381, %v1917, 0
      %v1983 = vsel %vm381, %v1918, 0
      %v1986 = vsel %vm381, %v1919, 0
      %v1989 = vsel %vm381, %v1920, 0
      %1991 = vmatprep.subr.bf16.mxu0 0
      %1992 = vmatpush1.bf16.msra.mxu0 %v1933
      %1993 = vmatprep.subr.bf16.mxu0 0
      %1994 = vmatpush1.bf16.msra.mxu0 %v1934
      %1995 = vmatprep.subr.bf16.mxu0 0
      %1996 = vmatpush1.bf16.msra.mxu0 0
      %1997 = vmatprep.subr.bf16.mxu0 0
      %1998 = vmatpush1.bf16.msra.mxu0 0
      %1999 = vmatprep.subr.bf16.mxu0 0
      %2000 = vmatpush1.bf16.msra.mxu0 0
      %2001 = vmatprep.subr.bf16.mxu0 0
      %2002 = vmatpush1.bf16.msra.mxu0 0
      %2003 = vmatprep.subr.bf16.mxu0 0
      %2004 = vmatpush1.bf16.msra.mxu0 0
      %2005 = vmatprep.subr.bf16.mxu0 0
      %2006 = vmatpush1.bf16.msra.mxu0 0
      %2007 = vmatprep.subr.bf16.mxu0 0
      %2008 = vmatpush1.bf16.msra.mxu0 0
      %2009 = vmatprep.subr.bf16.mxu0 0
      %2010 = vmatpush1.bf16.msra.mxu0 0
      %2011 = vmatprep.subr.bf16.mxu0 0
      %2012 = vmatpush1.bf16.msra.mxu0 0
      %2013 = vmatprep.subr.bf16.mxu0 0
      %2014 = vmatpush1.bf16.msra.mxu0 0
      %2015 = vmatprep.subr.bf16.mxu0 0
      %2016 = vmatpush1.bf16.msra.mxu0 0
      %2017 = vmatprep.subr.bf16.mxu0 0
      %2018 = vmatpush1.bf16.msra.mxu0 0
      %2019 = vmatprep.subr.bf16.mxu0 0
      %2020 = vmatpush1.bf16.msra.mxu0 0
      %2021 = vmatprep.subr.bf16.mxu0 0
      %2022 = vmatpush1.bf16.msra.mxu0 0
      %2023 = vmatprep.mubr.bf16.mxu0 0
      %2024 = vmatmul.mubr.bf16.gmra.mrb[0].mxu0 %v1938
      %v2025 = vpop.f32.mrb[0].mxu0
      %v2026 = vadd.f32 0.0, %v2025
      %v2027 = vpop.f32.mrb[0].mxu0
      %v2028 = vpop.f32.mrb[0].mxu0
      %v2029 = vadd.f32 0.0, %v2028
      %v2030 = vpop.f32.mrb[0].mxu0
      %2031 = vmatprep.mubr.bf16.mxu0 0
      %2032 = vmatmul.mubr.bf16.gmra.mrb[0].mxu0 %v1941
      %v2033 = vpop.f32.mrb[0].mxu0
      %v2034 = vadd.f32 0.0, %v2033
      %v2035 = vpop.f32.mrb[0].mxu0
      %v2036 = vpop.f32.mrb[0].mxu0
      %v2037 = vadd.f32 0.0, %v2036
      %v2038 = vpop.f32.mrb[0].mxu0
      %2039 = vmatprep.mubr.bf16.mxu0 0
      %2040 = vmatmul.mubr.bf16.gmra.mrb[0].mxu0 %v1944
      %v2041 = vpop.f32.mrb[0].mxu0
      %v2042 = vadd.f32 0.0, %v2041
      %v2043 = vpop.f32.mrb[0].mxu0
      %v2044 = vpop.f32.mrb[0].mxu0
      %v2045 = vadd.f32 0.0, %v2044
      %v2046 = vpop.f32.mrb[0].mxu0
      %2047 = vmatprep.mubr.bf16.mxu0 0
      %2048 = vmatmul.mubr.bf16.gmra.mrb[0].mxu0 %v1947
      %v2049 = vpop.f32.mrb[0].mxu0
      %v2050 = vadd.f32 0.0, %v2049
      %v2051 = vpop.f32.mrb[0].mxu0
      %v2052 = vpop.f32.mrb[0].mxu0
      %v2053 = vadd.f32 0.0, %v2052
      %v2054 = vpop.f32.mrb[0].mxu0
      %2055 = vmatprep.mubr.bf16.mxu0 0
      %2056 = vmatmul.mubr.bf16.gmra.mrb[0].mxu0 %v1950
      %v2057 = vpop.f32.mrb[0].mxu0
      %v2058 = vadd.f32 0.0, %v2057
      %v2059 = vpop.f32.mrb[0].mxu0
      %v2060 = vpop.f32.mrb[0].mxu0
      %v2061 = vadd.f32 0.0, %v2060
      %v2062 = vpop.f32.mrb[0].mxu0
      %2063 = vmatprep.mubr.bf16.mxu0 0
      %2064 = vmatmul.mubr.bf16.gmra.mrb[0].mxu0 %v1953
      %v2065 = vpop.f32.mrb[0].mxu0
      %v2066 = vadd.f32 0.0, %v2065
      %v2067 = vpop.f32.mrb[0].mxu0
      %v2068 = vpop.f32.mrb[0].mxu0
      %v2069 = vadd.f32 0.0, %v2068
      %v2070 = vpop.f32.mrb[0].mxu0
      %2071 = vmatprep.mubr.bf16.mxu0 0
      %2072 = vmatmul.mubr.bf16.gmra.mrb[0].mxu0 %v1956
      %v2073 = vpop.f32.mrb[0].mxu0
      %v2074 = vadd.f32 0.0, %v2073
      %v2075 = vpop.f32.mrb[0].mxu0
      %v2076 = vpop.f32.mrb[0].mxu0
      %v2077 = vadd.f32 0.0, %v2076
      %v2078 = vpop.f32.mrb[0].mxu0
      %2079 = vmatprep.mubr.bf16.mxu0 0
      %2080 = vmatmul.mubr.bf16.gmra.mrb[0].mxu0 %v1959
      %v2081 = vpop.f32.mrb[0].mxu0
      %v2082 = vadd.f32 0.0, %v2081
      %v2083 = vpop.f32.mrb[0].mxu0
      %v2084 = vpop.f32.mrb[0].mxu0
      %v2085 = vadd.f32 0.0, %v2084
      %v2086 = vpop.f32.mrb[0].mxu0
      %2087 = vmatprep.mubr.bf16.mxu0 0
      %2088 = vmatmul.mubr.bf16.gmra.mrb[0].mxu0 %v1962
      %v2089 = vpop.f32.mrb[0].mxu0
      %v2090 = vadd.f32 0.0, %v2089
      %v2091 = vpop.f32.mrb[0].mxu0
      %v2092 = vpop.f32.mrb[0].mxu0
      %v2093 = vadd.f32 0.0, %v2092
      %v2094 = vpop.f32.mrb[0].mxu0
      %2095 = vmatprep.mubr.bf16.mxu0 0
      %2096 = vmatmul.mubr.bf16.gmra.mrb[0].mxu0 %v1965
      %v2097 = vpop.f32.mrb[0].mxu0
      %v2098 = vadd.f32 0.0, %v2097
      %v2099 = vpop.f32.mrb[0].mxu0
      %v2100 = vpop.f32.mrb[0].mxu0
      %v2101 = vadd.f32 0.0, %v2100
      %v2102 = vpop.f32.mrb[0].mxu0
      %2103 = vmatprep.mubr.bf16.mxu0 0
      %2104 = vmatmul.mubr.bf16.gmra.mrb[0].mxu0 %v1968
      %v2105 = vpop.f32.mrb[0].mxu0
      %v2106 = vadd.f32 0.0, %v2105
      %v2107 = vpop.f32.mrb[0].mxu0
      %v2108 = vpop.f32.mrb[0].mxu0
      %v2109 = vadd.f32 0.0, %v2108
      %v2110 = vpop.f32.mrb[0].mxu0
      %2111 = vmatprep.mubr.bf16.mxu0 0
      %2112 = vmatmul.mubr.bf16.gmra.mrb[0].mxu0 %v1971
      %v2113 = vpop.f32.mrb[0].mxu0
      %v2114 = vadd.f32 0.0, %v2113
      %v2115 = vpop.f32.mrb[0].mxu0
      %v2116 = vpop.f32.mrb[0].mxu0
      %v2117 = vadd.f32 0.0, %v2116
      %v2118 = vpop.f32.mrb[0].mxu0
      %2119 = vmatprep.mubr.bf16.mxu0 0
      %2120 = vmatmul.mubr.bf16.gmra.mrb[0].mxu0 %v1974
      %v2121 = vpop.f32.mrb[0].mxu0
      %v2122 = vadd.f32 0.0, %v2121
      %v2123 = vpop.f32.mrb[0].mxu0
      %v2124 = vpop.f32.mrb[0].mxu0
      %v2125 = vadd.f32 0.0, %v2124
      %v2126 = vpop.f32.mrb[0].mxu0
      %2127 = vmatprep.mubr.bf16.mxu0 0
      %2128 = vmatmul.mubr.bf16.gmra.mrb[0].mxu0 %v1977
      %v2129 = vpop.f32.mrb[0].mxu0
      %v2130 = vadd.f32 0.0, %v2129
      %v2131 = vpop.f32.mrb[0].mxu0
      %v2132 = vpop.f32.mrb[0].mxu0
      %v2133 = vadd.f32 0.0, %v2132
      %v2134 = vpop.f32.mrb[0].mxu0
      %2135 = vmatprep.mubr.bf16.mxu0 0
      %2136 = vmatmul.mubr.bf16.gmra.mrb[0].mxu0 %v1980
      %v2137 = vpop.f32.mrb[0].mxu0
      %v2138 = vadd.f32 0.0, %v2137
      %v2139 = vpop.f32.mrb[0].mxu0
      %v2140 = vpop.f32.mrb[0].mxu0
      %v2141 = vadd.f32 0.0, %v2140
      %v2142 = vpop.f32.mrb[0].mxu0
      %2143 = vmatprep.mubr.bf16.mxu0 0
      %2144 = vmatmul.mubr.bf16.gmra.mrb[0].mxu0 %v1983
      %v2145 = vpop.f32.mrb[0].mxu0
      %v2146 = vadd.f32 0.0, %v2145
      %v2147 = vpop.f32.mrb[0].mxu0
      %v2148 = vpop.f32.mrb[0].mxu0
      %v2149 = vadd.f32 0.0, %v2148
      %v2150 = vpop.f32.mrb[0].mxu0
      %2151 = vmatprep.mubr.bf16.mxu0 0
      %2152 = vmatmul.mubr.bf16.gmra.mrb[0].mxu0 %v1986
      %v2153 = vpop.f32.mrb[0].mxu0
      %v2154 = vadd.f32 0.0, %v2153
      %v2155 = vpop.f32.mrb[0].mxu0
      %v2156 = vpop.f32.mrb[0].mxu0
      %v2157 = vadd.f32 0.0, %v2156
      %v2158 = vpop.f32.mrb[0].mxu0
      %2159 = vmatprep.mubr.bf16.mxu0 0
      %2160 = vmatmul.mubr.bf16.gmra.mrb[0].mxu0 %v1989
      %v2161 = vpop.f32.mrb[0].mxu0
      %v2162 = vadd.f32 0.0, %v2161
      %v2163 = vpop.f32.mrb[0].mxu0
      %v2164 = vpop.f32.mrb[0].mxu0
      %v2165 = vadd.f32 0.0, %v2164
      %v2166 = vpop.f32.mrb[0].mxu0
      %2167 = vdwg.mxu0
      %v2168 = vadd.f32 %v1831, %v2026
      %v2169 = vadd.f32 %v1832, %v2029
      %v2170 = vadd.f32 %v1833, %v2034
      %v2171 = vadd.f32 %v1834, %v2037
      %v2172 = vadd.f32 %v1835, %v2042
      %v2173 = vadd.f32 %v1836, %v2045
      %v2174 = vadd.f32 %v1837, %v2050
      %v2175 = vadd.f32 %v1838, %v2053
      %v2176 = vadd.f32 %v1839, %v2058
      %v2177 = vadd.f32 %v1840, %v2061
      %v2178 = vadd.f32 %v1841, %v2066
      %v2179 = vadd.f32 %v1842, %v2069
      %v2180 = vadd.f32 %v1843, %v2074
      %v2181 = vadd.f32 %v1844, %v2077
      %v2182 = vadd.f32 %v1845, %v2082
      %v2183 = vadd.f32 %v1846, %v2085
      %v2184 = vadd.f32 %v1847, %v2090
      %v2185 = vadd.f32 %v1848, %v2093
      %v2186 = vadd.f32 %v1849, %v2098
      %v2187 = vadd.f32 %v1850, %v2101
      %v2188 = vadd.f32 %v1851, %v2106
      %v2189 = vadd.f32 %v1852, %v2109
      %v2190 = vadd.f32 %v1853, %v2114
      %v2191 = vadd.f32 %v1854, %v2117
      %v2192 = vadd.f32 %v1855, %v2122
      %v2193 = vadd.f32 %v1856, %v2125
      %v2194 = vadd.f32 %v1857, %v2130
      %v2195 = vadd.f32 %v1858, %v2133
      %v2196 = vadd.f32 %v1859, %v2138
      %v2197 = vadd.f32 %v1860, %v2141
      %v2198 = vadd.f32 %v1861, %v2146
      %v2199 = vadd.f32 %v1862, %v2149
      %v2200 = vadd.f32 %v1863, %v2154
      %v2201 = vadd.f32 %v1864, %v2157
      %v2202 = vadd.f32 %v1865, %v2162
      %v2203 = vadd.f32 %v1866, %v2165
      %v2204 = vld [vmem:[%s246 + $0x24] sm:$0xff]
      %v2205 = vld [vmem:[%s246 + $0x2c] sm:$0xff]
      %v2206 = vld [vmem:[%s246 + $0x34] sm:$0xff]
      %v2207 = vld [vmem:[%s246 + $0x3c] sm:$0xff]
      %v2208 = vld [vmem:[%s246 + $0x44] sm:$0xff]
      %v2209 = vld [vmem:[%s246 + $0x4c] sm:$0xff]
      %v2210 = vld [vmem:[%s246 + $0x54] sm:$0xff]
      %v2211 = vld [vmem:[%s246 + $0x5c] sm:$0xff]
      %v2212 = vld [vmem:[%s246 + $0x64] sm:$0xff]
      %v2213 = vld [vmem:[%s246 + $0x6c] sm:$0xff]
      %v2214 = vld [vmem:[%s246 + $0x74] sm:$0xff]
      %v2215 = vld [vmem:[%s246 + $0x7c] sm:$0xff]
      %v2216 = vld [vmem:[%s246 + $0x84] sm:$0xff]
      %v2217 = vld [vmem:[%s246 + $0x8c] sm:$0xff]
      %v2218 = vld [vmem:[%s246 + $0x94] sm:$0xff]
      %v2219 = vld [vmem:[%s246 + $0x9c] sm:$0xff]
      %v2220 = vld [vmem:[%s246 + $0xa4] sm:$0xff]
      %v2221 = vld [vmem:[%s246 + $0xac] sm:$0xff]
      %v2222 = vld [vmem:[%s246 + $0xb4] sm:$0xff]
      %v2223 = vld [vmem:[%s246 + $0xbc] sm:$0xff]
      %v2224 = vld [vmem:[%s246 + $0xc4] sm:$0xff]
      %v2225 = vld [vmem:[%s246 + $0xcc] sm:$0xff]
      %v2226 = vld [vmem:[%s246 + $0xd4] sm:$0xff]
      %v2227 = vld [vmem:[%s246 + $0xdc] sm:$0xff]
      %v2228 = vld [vmem:[%s246 + $0xe4] sm:$0xff]
      %v2229 = vld [vmem:[%s246 + $0xec] sm:$0xff]
      %v2230 = vld [vmem:[%s246 + $0xf4] sm:$0xff]
      %v2231 = vld [vmem:[%s246 + $0xfc] sm:$0xff]
      %v2232 = vld [vmem:[%s246 + $0x104] sm:$0xff]
      %v2233 = vld [vmem:[%s246 + $0x10c] sm:$0xff]
      %v2234 = vld [vmem:[%s246 + $0x114] sm:$0xff]
      %v2235 = vld [vmem:[%s246 + $0x11c] sm:$0xff]
      %v2236 = vld [vmem:[%s246 + $0x124] sm:$0xff]
      %v2237 = vld [vmem:[%s246 + $0x12c] sm:$0xff]
      %v2238 = vld [vmem:[%s246 + $0x134] sm:$0xff]
      %v2239 = vld [vmem:[%s246 + $0x13c] sm:$0xff]
      %v2240 = vpack.c.bf16 %v2205, %v2204
      %v2241 = vpack.c.bf16 %v2207, %v2206
      %v2242 = vpack.c.bf16 %v2209, %v2208
      %v2243 = vpack.c.bf16 %v2211, %v2210
      %v2244 = vpack.c.bf16 %v2213, %v2212
      %v2245 = vpack.c.bf16 %v2215, %v2214
      %v2246 = vpack.c.bf16 %v2217, %v2216
      %v2247 = vpack.c.bf16 %v2219, %v2218
      %v2248 = vpack.c.bf16 %v2221, %v2220
      %v2249 = vpack.c.bf16 %v2223, %v2222
      %v2250 = vpack.c.bf16 %v2225, %v2224
      %v2251 = vpack.c.bf16 %v2227, %v2226
      %v2252 = vpack.c.bf16 %v2229, %v2228
      %v2253 = vpack.c.bf16 %v2231, %v2230
      %v2254 = vpack.c.bf16 %v2233, %v2232
      %v2255 = vpack.c.bf16 %v2235, %v2234
      %v2256 = vpack.c.bf16 %v2237, %v2236
      %v2257 = vpack.c.bf16 %v2239, %v2238
      %v2258 = vld [vmem:[%s1 + $0x60] sm:$0xf]
      %v2259 = vld [vmem:[%s1 + $0x64] sm:$0xf]
      %v2260 = vld [vmem:[%s1 + $0x68] sm:$0xf]
      %v2261 = vld [vmem:[%s1 + $0x6c] sm:$0xf]
      %v2266 = vunpack.c.l.b16 %v2258
      %v2267 = vunpack.c.l.b16 %v2259
      %v2268 = vunpack.c.l.b16 %v2260
      %v2269 = vunpack.c.l.b16 %v2261
      %v2270 = vpack.c.b16 %v2267, %v2266
      %v2271 = vpack.c.b16 %v2269, %v2268
      %v2275 = vsel %vm381, %v2240, 0
      %v2278 = vsel %vm381, %v2241, 0
      %v2281 = vsel %vm381, %v2242, 0
      %v2284 = vsel %vm381, %v2243, 0
      %v2287 = vsel %vm381, %v2244, 0
      %v2290 = vsel %vm381, %v2245, 0
      %v2293 = vsel %vm381, %v2246, 0
      %v2296 = vsel %vm381, %v2247, 0
      %v2299 = vsel %vm381, %v2248, 0
      %v2302 = vsel %vm381, %v2249, 0
      %v2305 = vsel %vm381, %v2250, 0
      %v2308 = vsel %vm381, %v2251, 0
      %v2311 = vsel %vm381, %v2252, 0
      %v2314 = vsel %vm381, %v2253, 0
      %v2317 = vsel %vm381, %v2254, 0
      %v2320 = vsel %vm381, %v2255, 0
      %v2323 = vsel %vm381, %v2256, 0
      %v2326 = vsel %vm381, %v2257, 0
      %2328 = vmatprep.subr.bf16.mxu0 0
      %2329 = vmatpush1.bf16.msra.mxu0 %v2270
      %2330 = vmatprep.subr.bf16.mxu0 0
      %2331 = vmatpush1.bf16.msra.mxu0 %v2271
      %2332 = vmatprep.subr.bf16.mxu0 0
      %2333 = vmatpush1.bf16.msra.mxu0 0
      %2334 = vmatprep.subr.bf16.mxu0 0
      %2335 = vmatpush1.bf16.msra.mxu0 0
      %2336 = vmatprep.subr.bf16.mxu0 0
      %2337 = vmatpush1.bf16.msra.mxu0 0
      %2338 = vmatprep.subr.bf16.mxu0 0
      %2339 = vmatpush1.bf16.msra.mxu0 0
      %2340 = vmatprep.subr.bf16.mxu0 0
      %2341 = vmatpush1.bf16.msra.mxu0 0
      %2342 = vmatprep.subr.bf16.mxu0 0
      %2343 = vmatpush1.bf16.msra.mxu0 0
      %2344 = vmatprep.subr.bf16.mxu0 0
      %2345 = vmatpush1.bf16.msra.mxu0 0
      %2346 = vmatprep.subr.bf16.mxu0 0
      %2347 = vmatpush1.bf16.msra.mxu0 0
      %2348 = vmatprep.subr.bf16.mxu0 0
      %2349 = vmatpush1.bf16.msra.mxu0 0
      %2350 = vmatprep.subr.bf16.mxu0 0
      %2351 = vmatpush1.bf16.msra.mxu0 0
      %2352 = vmatprep.subr.bf16.mxu0 0
      %2353 = vmatpush1.bf16.msra.mxu0 0
      %2354 = vmatprep.subr.bf16.mxu0 0
      %2355 = vmatpush1.bf16.msra.mxu0 0
      %2356 = vmatprep.subr.bf16.mxu0 0
      %2357 = vmatpush1.bf16.msra.mxu0 0
      %2358 = vmatprep.subr.bf16.mxu0 0
      %2359 = vmatpush1.bf16.msra.mxu0 0
      %2360 = vmatprep.mubr.bf16.mxu0 0
      %2361 = vmatmul.mubr.bf16.gmra.mrb[0].mxu0 %v2275
      %v2362 = vpop.f32.mrb[0].mxu0
      %v2363 = vadd.f32 0.0, %v2362
      %v2364 = vpop.f32.mrb[0].mxu0
      %v2365 = vpop.f32.mrb[0].mxu0
      %v2366 = vadd.f32 0.0, %v2365
      %v2367 = vpop.f32.mrb[0].mxu0
      %2368 = vmatprep.mubr.bf16.mxu0 0
      %2369 = vmatmul.mubr.bf16.gmra.mrb[0].mxu0 %v2278
      %v2370 = vpop.f32.mrb[0].mxu0
      %v2371 = vadd.f32 0.0, %v2370
      %v2372 = vpop.f32.mrb[0].mxu0
      %v2373 = vpop.f32.mrb[0].mxu0
      %v2374 = vadd.f32 0.0, %v2373
      %v2375 = vpop.f32.mrb[0].mxu0
      %2376 = vmatprep.mubr.bf16.mxu0 0
      %2377 = vmatmul.mubr.bf16.gmra.mrb[0].mxu0 %v2281
      %v2378 = vpop.f32.mrb[0].mxu0
      %v2379 = vadd.f32 0.0, %v2378
      %v2380 = vpop.f32.mrb[0].mxu0
      %v2381 = vpop.f32.mrb[0].mxu0
      %v2382 = vadd.f32 0.0, %v2381
      %v2383 = vpop.f32.mrb[0].mxu0
      %2384 = vmatprep.mubr.bf16.mxu0 0
      %2385 = vmatmul.mubr.bf16.gmra.mrb[0].mxu0 %v2284
      %v2386 = vpop.f32.mrb[0].mxu0
      %v2387 = vadd.f32 0.0, %v2386
      %v2388 = vpop.f32.mrb[0].mxu0
      %v2389 = vpop.f32.mrb[0].mxu0
      %v2390 = vadd.f32 0.0, %v2389
      %v2391 = vpop.f32.mrb[0].mxu0
      %2392 = vmatprep.mubr.bf16.mxu0 0
      %2393 = vmatmul.mubr.bf16.gmra.mrb[0].mxu0 %v2287
      %v2394 = vpop.f32.mrb[0].mxu0
      %v2395 = vadd.f32 0.0, %v2394
      %v2396 = vpop.f32.mrb[0].mxu0
      %v2397 = vpop.f32.mrb[0].mxu0
      %v2398 = vadd.f32 0.0, %v2397
      %v2399 = vpop.f32.mrb[0].mxu0
      %2400 = vmatprep.mubr.bf16.mxu0 0
      %2401 = vmatmul.mubr.bf16.gmra.mrb[0].mxu0 %v2290
      %v2402 = vpop.f32.mrb[0].mxu0
      %v2403 = vadd.f32 0.0, %v2402
      %v2404 = vpop.f32.mrb[0].mxu0
      %v2405 = vpop.f32.mrb[0].mxu0
      %v2406 = vadd.f32 0.0, %v2405
      %v2407 = vpop.f32.mrb[0].mxu0
      %2408 = vmatprep.mubr.bf16.mxu0 0
      %2409 = vmatmul.mubr.bf16.gmra.mrb[0].mxu0 %v2293
      %v2410 = vpop.f32.mrb[0].mxu0
      %v2411 = vadd.f32 0.0, %v2410
      %v2412 = vpop.f32.mrb[0].mxu0
      %v2413 = vpop.f32.mrb[0].mxu0
      %v2414 = vadd.f32 0.0, %v2413
      %v2415 = vpop.f32.mrb[0].mxu0
      %2416 = vmatprep.mubr.bf16.mxu0 0
      %2417 = vmatmul.mubr.bf16.gmra.mrb[0].mxu0 %v2296
      %v2418 = vpop.f32.mrb[0].mxu0
      %v2419 = vadd.f32 0.0, %v2418
      %v2420 = vpop.f32.mrb[0].mxu0
      %v2421 = vpop.f32.mrb[0].mxu0
      %v2422 = vadd.f32 0.0, %v2421
      %v2423 = vpop.f32.mrb[0].mxu0
      %2424 = vmatprep.mubr.bf16.mxu0 0
      %2425 = vmatmul.mubr.bf16.gmra.mrb[0].mxu0 %v2299
      %v2426 = vpop.f32.mrb[0].mxu0
      %v2427 = vadd.f32 0.0, %v2426
      %v2428 = vpop.f32.mrb[0].mxu0
      %v2429 = vpop.f32.mrb[0].mxu0
      %v2430 = vadd.f32 0.0, %v2429
      %v2431 = vpop.f32.mrb[0].mxu0
      %2432 = vmatprep.mubr.bf16.mxu0 0
      %2433 = vmatmul.mubr.bf16.gmra.mrb[0].mxu0 %v2302
      %v2434 = vpop.f32.mrb[0].mxu0
      %v2435 = vadd.f32 0.0, %v2434
      %v2436 = vpop.f32.mrb[0].mxu0
      %v2437 = vpop.f32.mrb[0].mxu0
      %v2438 = vadd.f32 0.0, %v2437
      %v2439 = vpop.f32.mrb[0].mxu0
      %2440 = vmatprep.mubr.bf16.mxu0 0
      %2441 = vmatmul.mubr.bf16.gmra.mrb[0].mxu0 %v2305
      %v2442 = vpop.f32.mrb[0].mxu0
      %v2443 = vadd.f32 0.0, %v2442
      %v2444 = vpop.f32.mrb[0].mxu0
      %v2445 = vpop.f32.mrb[0].mxu0
      %v2446 = vadd.f32 0.0, %v2445
      %v2447 = vpop.f32.mrb[0].mxu0
      %2448 = vmatprep.mubr.bf16.mxu0 0
      %2449 = vmatmul.mubr.bf16.gmra.mrb[0].mxu0 %v2308
      %v2450 = vpop.f32.mrb[0].mxu0
      %v2451 = vadd.f32 0.0, %v2450
      %v2452 = vpop.f32.mrb[0].mxu0
      %v2453 = vpop.f32.mrb[0].mxu0
      %v2454 = vadd.f32 0.0, %v2453
      %v2455 = vpop.f32.mrb[0].mxu0
      %2456 = vmatprep.mubr.bf16.mxu0 0
      %2457 = vmatmul.mubr.bf16.gmra.mrb[0].mxu0 %v2311
      %v2458 = vpop.f32.mrb[0].mxu0
      %v2459 = vadd.f32 0.0, %v2458
      %v2460 = vpop.f32.mrb[0].mxu0
      %v2461 = vpop.f32.mrb[0].mxu0
      %v2462 = vadd.f32 0.0, %v2461
      %v2463 = vpop.f32.mrb[0].mxu0
      %2464 = vmatprep.mubr.bf16.mxu0 0
      %2465 = vmatmul.mubr.bf16.gmra.mrb[0].mxu0 %v2314
      %v2466 = vpop.f32.mrb[0].mxu0
      %v2467 = vadd.f32 0.0, %v2466
      %v2468 = vpop.f32.mrb[0].mxu0
      %v2469 = vpop.f32.mrb[0].mxu0
      %v2470 = vadd.f32 0.0, %v2469
      %v2471 = vpop.f32.mrb[0].mxu0
      %2472 = vmatprep.mubr.bf16.mxu0 0
      %2473 = vmatmul.mubr.bf16.gmra.mrb[0].mxu0 %v2317
      %v2474 = vpop.f32.mrb[0].mxu0
      %v2475 = vadd.f32 0.0, %v2474
      %v2476 = vpop.f32.mrb[0].mxu0
      %v2477 = vpop.f32.mrb[0].mxu0
      %v2478 = vadd.f32 0.0, %v2477
      %v2479 = vpop.f32.mrb[0].mxu0
      %2480 = vmatprep.mubr.bf16.mxu0 0
      %2481 = vmatmul.mubr.bf16.gmra.mrb[0].mxu0 %v2320
      %v2482 = vpop.f32.mrb[0].mxu0
      %v2483 = vadd.f32 0.0, %v2482
      %v2484 = vpop.f32.mrb[0].mxu0
      %v2485 = vpop.f32.mrb[0].mxu0
      %v2486 = vadd.f32 0.0, %v2485
      %v2487 = vpop.f32.mrb[0].mxu0
      %2488 = vmatprep.mubr.bf16.mxu0 0
      %2489 = vmatmul.mubr.bf16.gmra.mrb[0].mxu0 %v2323
      %v2490 = vpop.f32.mrb[0].mxu0
      %v2491 = vadd.f32 0.0, %v2490
      %v2492 = vpop.f32.mrb[0].mxu0
      %v2493 = vpop.f32.mrb[0].mxu0
      %v2494 = vadd.f32 0.0, %v2493
      %v2495 = vpop.f32.mrb[0].mxu0
      %2496 = vmatprep.mubr.bf16.mxu0 0
      %2497 = vmatmul.mubr.bf16.gmra.mrb[0].mxu0 %v2326
      %v2498 = vpop.f32.mrb[0].mxu0
      %v2499 = vadd.f32 0.0, %v2498
      %v2500 = vpop.f32.mrb[0].mxu0
      %v2501 = vpop.f32.mrb[0].mxu0
      %v2502 = vadd.f32 0.0, %v2501
      %v2503 = vpop.f32.mrb[0].mxu0
      %2504 = vdwg.mxu0
      %v2505 = vadd.f32 %v2168, %v2363
      %v2506 = vadd.f32 %v2169, %v2366
      %v2507 = vadd.f32 %v2170, %v2371
      %v2508 = vadd.f32 %v2171, %v2374
      %v2509 = vadd.f32 %v2172, %v2379
      %v2510 = vadd.f32 %v2173, %v2382
      %v2511 = vadd.f32 %v2174, %v2387
      %v2512 = vadd.f32 %v2175, %v2390
      %v2513 = vadd.f32 %v2176, %v2395
      %v2514 = vadd.f32 %v2177, %v2398
      %v2515 = vadd.f32 %v2178, %v2403
      %v2516 = vadd.f32 %v2179, %v2406
      %v2517 = vadd.f32 %v2180, %v2411
      %v2518 = vadd.f32 %v2181, %v2414
      %v2519 = vadd.f32 %v2182, %v2419
      %v2520 = vadd.f32 %v2183, %v2422
      %v2521 = vadd.f32 %v2184, %v2427
      %v2522 = vadd.f32 %v2185, %v2430
      %v2523 = vadd.f32 %v2186, %v2435
      %v2524 = vadd.f32 %v2187, %v2438
      %v2525 = vadd.f32 %v2188, %v2443
      %v2526 = vadd.f32 %v2189, %v2446
      %v2527 = vadd.f32 %v2190, %v2451
      %v2528 = vadd.f32 %v2191, %v2454
      %v2529 = vadd.f32 %v2192, %v2459
      %v2530 = vadd.f32 %v2193, %v2462
      %v2531 = vadd.f32 %v2194, %v2467
      %v2532 = vadd.f32 %v2195, %v2470
      %v2533 = vadd.f32 %v2196, %v2475
      %v2534 = vadd.f32 %v2197, %v2478
      %v2535 = vadd.f32 %v2198, %v2483
      %v2536 = vadd.f32 %v2199, %v2486
      %v2537 = vadd.f32 %v2200, %v2491
      %v2538 = vadd.f32 %v2201, %v2494
      %v2539 = vadd.f32 %v2202, %v2499
      %v2540 = vadd.f32 %v2203, %v2502
      %v2541 = vld [vmem:[%s246 + $0x25] sm:$0xff]
      %v2542 = vld [vmem:[%s246 + $0x2d] sm:$0xff]
      %v2543 = vld [vmem:[%s246 + $0x35] sm:$0xff]
      %v2544 = vld [vmem:[%s246 + $0x3d] sm:$0xff]
      %v2545 = vld [vmem:[%s246 + $0x45] sm:$0xff]
      %v2546 = vld [vmem:[%s246 + $0x4d] sm:$0xff]
      %v2547 = vld [vmem:[%s246 + $0x55] sm:$0xff]
      %v2548 = vld [vmem:[%s246 + $0x5d] sm:$0xff]
      %v2549 = vld [vmem:[%s246 + $0x65] sm:$0xff]
      %v2550 = vld [vmem:[%s246 + $0x6d] sm:$0xff]
      %v2551 = vld [vmem:[%s246 + $0x75] sm:$0xff]
      %v2552 = vld [vmem:[%s246 + $0x7d] sm:$0xff]
      %v2553 = vld [vmem:[%s246 + $0x85] sm:$0xff]
      %v2554 = vld [vmem:[%s246 + $0x8d] sm:$0xff]
      %v2555 = vld [vmem:[%s246 + $0x95] sm:$0xff]
      %v2556 = vld [vmem:[%s246 + $0x9d] sm:$0xff]
      %v2557 = vld [vmem:[%s246 + $0xa5] sm:$0xff]
      %v2558 = vld [vmem:[%s246 + $0xad] sm:$0xff]
      %v2559 = vld [vmem:[%s246 + $0xb5] sm:$0xff]
      %v2560 = vld [vmem:[%s246 + $0xbd] sm:$0xff]
      %v2561 = vld [vmem:[%s246 + $0xc5] sm:$0xff]
      %v2562 = vld [vmem:[%s246 + $0xcd] sm:$0xff]
      %v2563 = vld [vmem:[%s246 + $0xd5] sm:$0xff]
      %v2564 = vld [vmem:[%s246 + $0xdd] sm:$0xff]
      %v2565 = vld [vmem:[%s246 + $0xe5] sm:$0xff]
      %v2566 = vld [vmem:[%s246 + $0xed] sm:$0xff]
      %v2567 = vld [vmem:[%s246 + $0xf5] sm:$0xff]
      %v2568 = vld [vmem:[%s246 + $0xfd] sm:$0xff]
      %v2569 = vld [vmem:[%s246 + $0x105] sm:$0xff]
      %v2570 = vld [vmem:[%s246 + $0x10d] sm:$0xff]
      %v2571 = vld [vmem:[%s246 + $0x115] sm:$0xff]
      %v2572 = vld [vmem:[%s246 + $0x11d] sm:$0xff]
      %v2573 = vld [vmem:[%s246 + $0x125] sm:$0xff]
      %v2574 = vld [vmem:[%s246 + $0x12d] sm:$0xff]
      %v2575 = vld [vmem:[%s246 + $0x135] sm:$0xff]
      %v2576 = vld [vmem:[%s246 + $0x13d] sm:$0xff]
      %v2577 = vpack.c.bf16 %v2542, %v2541
      %v2578 = vpack.c.bf16 %v2544, %v2543
      %v2579 = vpack.c.bf16 %v2546, %v2545
      %v2580 = vpack.c.bf16 %v2548, %v2547
      %v2581 = vpack.c.bf16 %v2550, %v2549
      %v2582 = vpack.c.bf16 %v2552, %v2551
      %v2583 = vpack.c.bf16 %v2554, %v2553
      %v2584 = vpack.c.bf16 %v2556, %v2555
      %v2585 = vpack.c.bf16 %v2558, %v2557
      %v2586 = vpack.c.bf16 %v2560, %v2559
      %v2587 = vpack.c.bf16 %v2562, %v2561
      %v2588 = vpack.c.bf16 %v2564, %v2563
      %v2589 = vpack.c.bf16 %v2566, %v2565
      %v2590 = vpack.c.bf16 %v2568, %v2567
      %v2591 = vpack.c.bf16 %v2570, %v2569
      %v2592 = vpack.c.bf16 %v2572, %v2571
      %v2593 = vpack.c.bf16 %v2574, %v2573
      %v2594 = vpack.c.bf16 %v2576, %v2575
      %v2595 = vld [vmem:[%s1 + $0x70] sm:$0xf]
      %v2596 = vld [vmem:[%s1 + $0x74] sm:$0xf]
      %v2597 = vld [vmem:[%s1 + $0x78] sm:$0xf]
      %v2598 = vld [vmem:[%s1 + $0x7c] sm:$0xf]
      %v2603 = vunpack.c.l.b16 %v2595
      %v2604 = vunpack.c.l.b16 %v2596
      %v2605 = vunpack.c.l.b16 %v2597
      %v2606 = vunpack.c.l.b16 %v2598
      %v2607 = vpack.c.b16 %v2604, %v2603
      %v2608 = vpack.c.b16 %v2606, %v2605
      %v2612 = vsel %vm381, %v2577, 0
      %v2615 = vsel %vm381, %v2578, 0
      %v2618 = vsel %vm381, %v2579, 0
      %v2621 = vsel %vm381, %v2580, 0
      %v2624 = vsel %vm381, %v2581, 0
      %v2627 = vsel %vm381, %v2582, 0
      %v2630 = vsel %vm381, %v2583, 0
      %v2633 = vsel %vm381, %v2584, 0
      %v2636 = vsel %vm381, %v2585, 0
      %v2639 = vsel %vm381, %v2586, 0
      %v2642 = vsel %vm381, %v2587, 0
      %v2645 = vsel %vm381, %v2588, 0
      %v2648 = vsel %vm381, %v2589, 0
      %v2651 = vsel %vm381, %v2590, 0
      %v2654 = vsel %vm381, %v2591, 0
      %v2657 = vsel %vm381, %v2592, 0
      %v2660 = vsel %vm381, %v2593, 0
      %v2663 = vsel %vm381, %v2594, 0
      %2665 = vmatprep.subr.bf16.mxu0 0
      %2666 = vmatpush1.bf16.msra.mxu0 %v2607
      %2667 = vmatprep.subr.bf16.mxu0 0
      %2668 = vmatpush1.bf16.msra.mxu0 %v2608
      %2669 = vmatprep.subr.bf16.mxu0 0
      %2670 = vmatpush1.bf16.msra.mxu0 0
      %2671 = vmatprep.subr.bf16.mxu0 0
      %2672 = vmatpush1.bf16.msra.mxu0 0
      %2673 = vmatprep.subr.bf16.mxu0 0
      %2674 = vmatpush1.bf16.msra.mxu0 0
      %2675 = vmatprep.subr.bf16.mxu0 0
      %2676 = vmatpush1.bf16.msra.mxu0 0
      %2677 = vmatprep.subr.bf16.mxu0 0
      %2678 = vmatpush1.bf16.msra.mxu0 0
      %2679 = vmatprep.subr.bf16.mxu0 0
      %2680 = vmatpush1.bf16.msra.mxu0 0
      %2681 = vmatprep.subr.bf16.mxu0 0
      %2682 = vmatpush1.bf16.msra.mxu0 0
      %2683 = vmatprep.subr.bf16.mxu0 0
      %2684 = vmatpush1.bf16.msra.mxu0 0
      %2685 = vmatprep.subr.bf16.mxu0 0
      %2686 = vmatpush1.bf16.msra.mxu0 0
      %2687 = vmatprep.subr.bf16.mxu0 0
      %2688 = vmatpush1.bf16.msra.mxu0 0
      %2689 = vmatprep.subr.bf16.mxu0 0
      %2690 = vmatpush1.bf16.msra.mxu0 0
      %2691 = vmatprep.subr.bf16.mxu0 0
      %2692 = vmatpush1.bf16.msra.mxu0 0
      %2693 = vmatprep.subr.bf16.mxu0 0
      %2694 = vmatpush1.bf16.msra.mxu0 0
      %2695 = vmatprep.subr.bf16.mxu0 0
      %2696 = vmatpush1.bf16.msra.mxu0 0
      %2697 = vmatprep.mubr.bf16.mxu0 0
      %2698 = vmatmul.mubr.bf16.gmra.mrb[0].mxu0 %v2612
      %v2699 = vpop.f32.mrb[0].mxu0
      %v2700 = vadd.f32 0.0, %v2699
      %v2701 = vpop.f32.mrb[0].mxu0
      %v2702 = vpop.f32.mrb[0].mxu0
      %v2703 = vadd.f32 0.0, %v2702
      %v2704 = vpop.f32.mrb[0].mxu0
      %2705 = vmatprep.mubr.bf16.mxu0 0
      %2706 = vmatmul.mubr.bf16.gmra.mrb[0].mxu0 %v2615
      %v2707 = vpop.f32.mrb[0].mxu0
      %v2708 = vadd.f32 0.0, %v2707
      %v2709 = vpop.f32.mrb[0].mxu0
      %v2710 = vpop.f32.mrb[0].mxu0
      %v2711 = vadd.f32 0.0, %v2710
      %v2712 = vpop.f32.mrb[0].mxu0
      %2713 = vmatprep.mubr.bf16.mxu0 0
      %2714 = vmatmul.mubr.bf16.gmra.mrb[0].mxu0 %v2618
      %v2715 = vpop.f32.mrb[0].mxu0
      %v2716 = vadd.f32 0.0, %v2715
      %v2717 = vpop.f32.mrb[0].mxu0
      %v2718 = vpop.f32.mrb[0].mxu0
      %v2719 = vadd.f32 0.0, %v2718
      %v2720 = vpop.f32.mrb[0].mxu0
      %2721 = vmatprep.mubr.bf16.mxu0 0
      %2722 = vmatmul.mubr.bf16.gmra.mrb[0].mxu0 %v2621
      %v2723 = vpop.f32.mrb[0].mxu0
      %v2724 = vadd.f32 0.0, %v2723
      %v2725 = vpop.f32.mrb[0].mxu0
      %v2726 = vpop.f32.mrb[0].mxu0
      %v2727 = vadd.f32 0.0, %v2726
      %v2728 = vpop.f32.mrb[0].mxu0
      %2729 = vmatprep.mubr.bf16.mxu0 0
      %2730 = vmatmul.mubr.bf16.gmra.mrb[0].mxu0 %v2624
      %v2731 = vpop.f32.mrb[0].mxu0
      %v2732 = vadd.f32 0.0, %v2731
      %v2733 = vpop.f32.mrb[0].mxu0
      %v2734 = vpop.f32.mrb[0].mxu0
      %v2735 = vadd.f32 0.0, %v2734
      %v2736 = vpop.f32.mrb[0].mxu0
      %2737 = vmatprep.mubr.bf16.mxu0 0
      %2738 = vmatmul.mubr.bf16.gmra.mrb[0].mxu0 %v2627
      %v2739 = vpop.f32.mrb[0].mxu0
      %v2740 = vadd.f32 0.0, %v2739
      %v2741 = vpop.f32.mrb[0].mxu0
      %v2742 = vpop.f32.mrb[0].mxu0
      %v2743 = vadd.f32 0.0, %v2742
      %v2744 = vpop.f32.mrb[0].mxu0
      %2745 = vmatprep.mubr.bf16.mxu0 0
      %2746 = vmatmul.mubr.bf16.gmra.mrb[0].mxu0 %v2630
      %v2747 = vpop.f32.mrb[0].mxu0
      %v2748 = vadd.f32 0.0, %v2747
      %v2749 = vpop.f32.mrb[0].mxu0
      %v2750 = vpop.f32.mrb[0].mxu0
      %v2751 = vadd.f32 0.0, %v2750
      %v2752 = vpop.f32.mrb[0].mxu0
      %2753 = vmatprep.mubr.bf16.mxu0 0
      %2754 = vmatmul.mubr.bf16.gmra.mrb[0].mxu0 %v2633
      %v2755 = vpop.f32.mrb[0].mxu0
      %v2756 = vadd.f32 0.0, %v2755
      %v2757 = vpop.f32.mrb[0].mxu0
      %v2758 = vpop.f32.mrb[0].mxu0
      %v2759 = vadd.f32 0.0, %v2758
      %v2760 = vpop.f32.mrb[0].mxu0
      %2761 = vmatprep.mubr.bf16.mxu0 0
      %2762 = vmatmul.mubr.bf16.gmra.mrb[0].mxu0 %v2636
      %v2763 = vpop.f32.mrb[0].mxu0
      %v2764 = vadd.f32 0.0, %v2763
      %v2765 = vpop.f32.mrb[0].mxu0
      %v2766 = vpop.f32.mrb[0].mxu0
      %v2767 = vadd.f32 0.0, %v2766
      %v2768 = vpop.f32.mrb[0].mxu0
      %2769 = vmatprep.mubr.bf16.mxu0 0
      %2770 = vmatmul.mubr.bf16.gmra.mrb[0].mxu0 %v2639
      %v2771 = vpop.f32.mrb[0].mxu0
      %v2772 = vadd.f32 0.0, %v2771
      %v2773 = vpop.f32.mrb[0].mxu0
      %v2774 = vpop.f32.mrb[0].mxu0
      %v2775 = vadd.f32 0.0, %v2774
      %v2776 = vpop.f32.mrb[0].mxu0
      %2777 = vmatprep.mubr.bf16.mxu0 0
      %2778 = vmatmul.mubr.bf16.gmra.mrb[0].mxu0 %v2642
      %v2779 = vpop.f32.mrb[0].mxu0
      %v2780 = vadd.f32 0.0, %v2779
      %v2781 = vpop.f32.mrb[0].mxu0
      %v2782 = vpop.f32.mrb[0].mxu0
      %v2783 = vadd.f32 0.0, %v2782
      %v2784 = vpop.f32.mrb[0].mxu0
      %2785 = vmatprep.mubr.bf16.mxu0 0
      %2786 = vmatmul.mubr.bf16.gmra.mrb[0].mxu0 %v2645
      %v2787 = vpop.f32.mrb[0].mxu0
      %v2788 = vadd.f32 0.0, %v2787
      %v2789 = vpop.f32.mrb[0].mxu0
      %v2790 = vpop.f32.mrb[0].mxu0
      %v2791 = vadd.f32 0.0, %v2790
      %v2792 = vpop.f32.mrb[0].mxu0
      %2793 = vmatprep.mubr.bf16.mxu0 0
      %2794 = vmatmul.mubr.bf16.gmra.mrb[0].mxu0 %v2648
      %v2795 = vpop.f32.mrb[0].mxu0
      %v2796 = vadd.f32 0.0, %v2795
      %v2797 = vpop.f32.mrb[0].mxu0
      %v2798 = vpop.f32.mrb[0].mxu0
      %v2799 = vadd.f32 0.0, %v2798
      %v2800 = vpop.f32.mrb[0].mxu0
      %2801 = vmatprep.mubr.bf16.mxu0 0
      %2802 = vmatmul.mubr.bf16.gmra.mrb[0].mxu0 %v2651
      %v2803 = vpop.f32.mrb[0].mxu0
      %v2804 = vadd.f32 0.0, %v2803
      %v2805 = vpop.f32.mrb[0].mxu0
      %v2806 = vpop.f32.mrb[0].mxu0
      %v2807 = vadd.f32 0.0, %v2806
      %v2808 = vpop.f32.mrb[0].mxu0
      %2809 = vmatprep.mubr.bf16.mxu0 0
      %2810 = vmatmul.mubr.bf16.gmra.mrb[0].mxu0 %v2654
      %v2811 = vpop.f32.mrb[0].mxu0
      %v2812 = vadd.f32 0.0, %v2811
      %v2813 = vpop.f32.mrb[0].mxu0
      %v2814 = vpop.f32.mrb[0].mxu0
      %v2815 = vadd.f32 0.0, %v2814
      %v2816 = vpop.f32.mrb[0].mxu0
      %2817 = vmatprep.mubr.bf16.mxu0 0
      %2818 = vmatmul.mubr.bf16.gmra.mrb[0].mxu0 %v2657
      %v2819 = vpop.f32.mrb[0].mxu0
      %v2820 = vadd.f32 0.0, %v2819
      %v2821 = vpop.f32.mrb[0].mxu0
      %v2822 = vpop.f32.mrb[0].mxu0
      %v2823 = vadd.f32 0.0, %v2822
      %v2824 = vpop.f32.mrb[0].mxu0
      %2825 = vmatprep.mubr.bf16.mxu0 0
      %2826 = vmatmul.mubr.bf16.gmra.mrb[0].mxu0 %v2660
      %v2827 = vpop.f32.mrb[0].mxu0
      %v2828 = vadd.f32 0.0, %v2827
      %v2829 = vpop.f32.mrb[0].mxu0
      %v2830 = vpop.f32.mrb[0].mxu0
      %v2831 = vadd.f32 0.0, %v2830
      %v2832 = vpop.f32.mrb[0].mxu0
      %2833 = vmatprep.mubr.bf16.mxu0 0
      %2834 = vmatmul.mubr.bf16.gmra.mrb[0].mxu0 %v2663
      %v2835 = vpop.f32.mrb[0].mxu0
      %v2836 = vadd.f32 0.0, %v2835
      %v2837 = vpop.f32.mrb[0].mxu0
      %v2838 = vpop.f32.mrb[0].mxu0
      %v2839 = vadd.f32 0.0, %v2838
      %v2840 = vpop.f32.mrb[0].mxu0
      %2841 = vdwg.mxu0
      %v2842 = vadd.f32 %v2505, %v2700
      %v2843 = vadd.f32 %v2506, %v2703
      %v2844 = vadd.f32 %v2507, %v2708
      %v2845 = vadd.f32 %v2508, %v2711
      %v2846 = vadd.f32 %v2509, %v2716
      %v2847 = vadd.f32 %v2510, %v2719
      %v2848 = vadd.f32 %v2511, %v2724
      %v2849 = vadd.f32 %v2512, %v2727
      %v2850 = vadd.f32 %v2513, %v2732
      %v2851 = vadd.f32 %v2514, %v2735
      %v2852 = vadd.f32 %v2515, %v2740
      %v2853 = vadd.f32 %v2516, %v2743
      %v2854 = vadd.f32 %v2517, %v2748
      %v2855 = vadd.f32 %v2518, %v2751
      %v2856 = vadd.f32 %v2519, %v2756
      %v2857 = vadd.f32 %v2520, %v2759
      %v2858 = vadd.f32 %v2521, %v2764
      %v2859 = vadd.f32 %v2522, %v2767
      %v2860 = vadd.f32 %v2523, %v2772
      %v2861 = vadd.f32 %v2524, %v2775
      %v2862 = vadd.f32 %v2525, %v2780
      %v2863 = vadd.f32 %v2526, %v2783
      %v2864 = vadd.f32 %v2527, %v2788
      %v2865 = vadd.f32 %v2528, %v2791
      %v2866 = vadd.f32 %v2529, %v2796
      %v2867 = vadd.f32 %v2530, %v2799
      %v2868 = vadd.f32 %v2531, %v2804
      %v2869 = vadd.f32 %v2532, %v2807
      %v2870 = vadd.f32 %v2533, %v2812
      %v2871 = vadd.f32 %v2534, %v2815
      %v2872 = vadd.f32 %v2535, %v2820
      %v2873 = vadd.f32 %v2536, %v2823
      %v2874 = vadd.f32 %v2537, %v2828
      %v2875 = vadd.f32 %v2538, %v2831
      %v2876 = vadd.f32 %v2539, %v2836
      %v2877 = vadd.f32 %v2540, %v2839
      %v2878 = vld [vmem:[%s246 + $0x26] sm:$0xff]
      %v2879 = vld [vmem:[%s246 + $0x2e] sm:$0xff]
      %v2880 = vld [vmem:[%s246 + $0x36] sm:$0xff]
      %v2881 = vld [vmem:[%s246 + $0x3e] sm:$0xff]
      %v2882 = vld [vmem:[%s246 + $0x46] sm:$0xff]
      %v2883 = vld [vmem:[%s246 + $0x4e] sm:$0xff]
      %v2884 = vld [vmem:[%s246 + $0x56] sm:$0xff]
      %v2885 = vld [vmem:[%s246 + $0x5e] sm:$0xff]
      %v2886 = vld [vmem:[%s246 + $0x66] sm:$0xff]
      %v2887 = vld [vmem:[%s246 + $0x6e] sm:$0xff]
      %v2888 = vld [vmem:[%s246 + $0x76] sm:$0xff]
      %v2889 = vld [vmem:[%s246 + $0x7e] sm:$0xff]
      %v2890 = vld [vmem:[%s246 + $0x86] sm:$0xff]
      %v2891 = vld [vmem:[%s246 + $0x8e] sm:$0xff]
      %v2892 = vld [vmem:[%s246 + $0x96] sm:$0xff]
      %v2893 = vld [vmem:[%s246 + $0x9e] sm:$0xff]
      %v2894 = vld [vmem:[%s246 + $0xa6] sm:$0xff]
      %v2895 = vld [vmem:[%s246 + $0xae] sm:$0xff]
      %v2896 = vld [vmem:[%s246 + $0xb6] sm:$0xff]
      %v2897 = vld [vmem:[%s246 + $0xbe] sm:$0xff]
      %v2898 = vld [vmem:[%s246 + $0xc6] sm:$0xff]
      %v2899 = vld [vmem:[%s246 + $0xce] sm:$0xff]
      %v2900 = vld [vmem:[%s246 + $0xd6] sm:$0xff]
      %v2901 = vld [vmem:[%s246 + $0xde] sm:$0xff]
      %v2902 = vld [vmem:[%s246 + $0xe6] sm:$0xff]
      %v2903 = vld [vmem:[%s246 + $0xee] sm:$0xff]
      %v2904 = vld [vmem:[%s246 + $0xf6] sm:$0xff]
      %v2905 = vld [vmem:[%s246 + $0xfe] sm:$0xff]
      %v2906 = vld [vmem:[%s246 + $0x106] sm:$0xff]
      %v2907 = vld [vmem:[%s246 + $0x10e] sm:$0xff]
      %v2908 = vld [vmem:[%s246 + $0x116] sm:$0xff]
      %v2909 = vld [vmem:[%s246 + $0x11e] sm:$0xff]
      %v2910 = vld [vmem:[%s246 + $0x126] sm:$0xff]
      %v2911 = vld [vmem:[%s246 + $0x12e] sm:$0xff]
      %v2912 = vld [vmem:[%s246 + $0x136] sm:$0xff]
      %v2913 = vld [vmem:[%s246 + $0x13e] sm:$0xff]
      %v2914 = vpack.c.bf16 %v2879, %v2878
      %v2915 = vpack.c.bf16 %v2881, %v2880
      %v2916 = vpack.c.bf16 %v2883, %v2882
      %v2917 = vpack.c.bf16 %v2885, %v2884
      %v2918 = vpack.c.bf16 %v2887, %v2886
      %v2919 = vpack.c.bf16 %v2889, %v2888
      %v2920 = vpack.c.bf16 %v2891, %v2890
      %v2921 = vpack.c.bf16 %v2893, %v2892
      %v2922 = vpack.c.bf16 %v2895, %v2894
      %v2923 = vpack.c.bf16 %v2897, %v2896
      %v2924 = vpack.c.bf16 %v2899, %v2898
      %v2925 = vpack.c.bf16 %v2901, %v2900
      %v2926 = vpack.c.bf16 %v2903, %v2902
      %v2927 = vpack.c.bf16 %v2905, %v2904
      %v2928 = vpack.c.bf16 %v2907, %v2906
      %v2929 = vpack.c.bf16 %v2909, %v2908
      %v2930 = vpack.c.bf16 %v2911, %v2910
      %v2931 = vpack.c.bf16 %v2913, %v2912
      %v2932 = vld [vmem:[%s1 + $0x80] sm:$0xf]
      %v2933 = vld [vmem:[%s1 + $0x84] sm:$0xf]
      %v2934 = vld [vmem:[%s1 + $0x88] sm:$0xf]
      %v2935 = vld [vmem:[%s1 + $0x8c] sm:$0xf]
      %v2940 = vunpack.c.l.b16 %v2932
      %v2941 = vunpack.c.l.b16 %v2933
      %v2942 = vunpack.c.l.b16 %v2934
      %v2943 = vunpack.c.l.b16 %v2935
      %v2944 = vpack.c.b16 %v2941, %v2940
      %v2945 = vpack.c.b16 %v2943, %v2942
      %v2949 = vsel %vm381, %v2914, 0
      %v2952 = vsel %vm381, %v2915, 0
      %v2955 = vsel %vm381, %v2916, 0
      %v2958 = vsel %vm381, %v2917, 0
      %v2961 = vsel %vm381, %v2918, 0
      %v2964 = vsel %vm381, %v2919, 0
      %v2967 = vsel %vm381, %v2920, 0
      %v2970 = vsel %vm381, %v2921, 0
      %v2973 = vsel %vm381, %v2922, 0
      %v2976 = vsel %vm381, %v2923, 0
      %v2979 = vsel %vm381, %v2924, 0
      %v2982 = vsel %vm381, %v2925, 0
      %v2985 = vsel %vm381, %v2926, 0
      %v2988 = vsel %vm381, %v2927, 0
      %v2991 = vsel %vm381, %v2928, 0
      %v2994 = vsel %vm381, %v2929, 0
      %v2997 = vsel %vm381, %v2930, 0
      %v3000 = vsel %vm381, %v2931, 0
      %3002 = vmatprep.subr.bf16.mxu0 0
      %3003 = vmatpush1.bf16.msra.mxu0 %v2944
      %3004 = vmatprep.subr.bf16.mxu0 0
      %3005 = vmatpush1.bf16.msra.mxu0 %v2945
      %3006 = vmatprep.subr.bf16.mxu0 0
      %3007 = vmatpush1.bf16.msra.mxu0 0
      %3008 = vmatprep.subr.bf16.mxu0 0
      %3009 = vmatpush1.bf16.msra.mxu0 0
      %3010 = vmatprep.subr.bf16.mxu0 0
      %3011 = vmatpush1.bf16.msra.mxu0 0
      %3012 = vmatprep.subr.bf16.mxu0 0
      %3013 = vmatpush1.bf16.msra.mxu0 0
      %3014 = vmatprep.subr.bf16.mxu0 0
      %3015 = vmatpush1.bf16.msra.mxu0 0
      %3016 = vmatprep.subr.bf16.mxu0 0
      %3017 = vmatpush1.bf16.msra.mxu0 0
      %3018 = vmatprep.subr.bf16.mxu0 0
      %3019 = vmatpush1.bf16.msra.mxu0 0
      %3020 = vmatprep.subr.bf16.mxu0 0
      %3021 = vmatpush1.bf16.msra.mxu0 0
      %3022 = vmatprep.subr.bf16.mxu0 0
      %3023 = vmatpush1.bf16.msra.mxu0 0
      %3024 = vmatprep.subr.bf16.mxu0 0
      %3025 = vmatpush1.bf16.msra.mxu0 0
      %3026 = vmatprep.subr.bf16.mxu0 0
      %3027 = vmatpush1.bf16.msra.mxu0 0
      %3028 = vmatprep.subr.bf16.mxu0 0
      %3029 = vmatpush1.bf16.msra.mxu0 0
      %3030 = vmatprep.subr.bf16.mxu0 0
      %3031 = vmatpush1.bf16.msra.mxu0 0
      %3032 = vmatprep.subr.bf16.mxu0 0
      %3033 = vmatpush1.bf16.msra.mxu0 0
      %3034 = vmatprep.mubr.bf16.mxu0 0
      %3035 = vmatmul.mubr.bf16.gmra.mrb[0].mxu0 %v2949
      %v3036 = vpop.f32.mrb[0].mxu0
      %v3037 = vadd.f32 0.0, %v3036
      %v3038 = vpop.f32.mrb[0].mxu0
      %v3039 = vpop.f32.mrb[0].mxu0
      %v3040 = vadd.f32 0.0, %v3039
      %v3041 = vpop.f32.mrb[0].mxu0
      %3042 = vmatprep.mubr.bf16.mxu0 0
      %3043 = vmatmul.mubr.bf16.gmra.mrb[0].mxu0 %v2952
      %v3044 = vpop.f32.mrb[0].mxu0
      %v3045 = vadd.f32 0.0, %v3044
      %v3046 = vpop.f32.mrb[0].mxu0
      %v3047 = vpop.f32.mrb[0].mxu0
      %v3048 = vadd.f32 0.0, %v3047
      %v3049 = vpop.f32.mrb[0].mxu0
      %3050 = vmatprep.mubr.bf16.mxu0 0
      %3051 = vmatmul.mubr.bf16.gmra.mrb[0].mxu0 %v2955
      %v3052 = vpop.f32.mrb[0].mxu0
      %v3053 = vadd.f32 0.0, %v3052
      %v3054 = vpop.f32.mrb[0].mxu0
      %v3055 = vpop.f32.mrb[0].mxu0
      %v3056 = vadd.f32 0.0, %v3055
      %v3057 = vpop.f32.mrb[0].mxu0
      %3058 = vmatprep.mubr.bf16.mxu0 0
      %3059 = vmatmul.mubr.bf16.gmra.mrb[0].mxu0 %v2958
      %v3060 = vpop.f32.mrb[0].mxu0
      %v3061 = vadd.f32 0.0, %v3060
      %v3062 = vpop.f32.mrb[0].mxu0
      %v3063 = vpop.f32.mrb[0].mxu0
      %v3064 = vadd.f32 0.0, %v3063
      %v3065 = vpop.f32.mrb[0].mxu0
      %3066 = vmatprep.mubr.bf16.mxu0 0
      %3067 = vmatmul.mubr.bf16.gmra.mrb[0].mxu0 %v2961
      %v3068 = vpop.f32.mrb[0].mxu0
      %v3069 = vadd.f32 0.0, %v3068
      %v3070 = vpop.f32.mrb[0].mxu0
      %v3071 = vpop.f32.mrb[0].mxu0
      %v3072 = vadd.f32 0.0, %v3071
      %v3073 = vpop.f32.mrb[0].mxu0
      %3074 = vmatprep.mubr.bf16.mxu0 0
      %3075 = vmatmul.mubr.bf16.gmra.mrb[0].mxu0 %v2964
      %v3076 = vpop.f32.mrb[0].mxu0
      %v3077 = vadd.f32 0.0, %v3076
      %v3078 = vpop.f32.mrb[0].mxu0
      %v3079 = vpop.f32.mrb[0].mxu0
      %v3080 = vadd.f32 0.0, %v3079
      %v3081 = vpop.f32.mrb[0].mxu0
      %3082 = vmatprep.mubr.bf16.mxu0 0
      %3083 = vmatmul.mubr.bf16.gmra.mrb[0].mxu0 %v2967
      %v3084 = vpop.f32.mrb[0].mxu0
      %v3085 = vadd.f32 0.0, %v3084
      %v3086 = vpop.f32.mrb[0].mxu0
      %v3087 = vpop.f32.mrb[0].mxu0
      %v3088 = vadd.f32 0.0, %v3087
      %v3089 = vpop.f32.mrb[0].mxu0
      %3090 = vmatprep.mubr.bf16.mxu0 0
      %3091 = vmatmul.mubr.bf16.gmra.mrb[0].mxu0 %v2970
      %v3092 = vpop.f32.mrb[0].mxu0
      %v3093 = vadd.f32 0.0, %v3092
      %v3094 = vpop.f32.mrb[0].mxu0
      %v3095 = vpop.f32.mrb[0].mxu0
      %v3096 = vadd.f32 0.0, %v3095
      %v3097 = vpop.f32.mrb[0].mxu0
      %3098 = vmatprep.mubr.bf16.mxu0 0
      %3099 = vmatmul.mubr.bf16.gmra.mrb[0].mxu0 %v2973
      %v3100 = vpop.f32.mrb[0].mxu0
      %v3101 = vadd.f32 0.0, %v3100
      %v3102 = vpop.f32.mrb[0].mxu0
      %v3103 = vpop.f32.mrb[0].mxu0
      %v3104 = vadd.f32 0.0, %v3103
      %v3105 = vpop.f32.mrb[0].mxu0
      %3106 = vmatprep.mubr.bf16.mxu0 0
      %3107 = vmatmul.mubr.bf16.gmra.mrb[0].mxu0 %v2976
      %v3108 = vpop.f32.mrb[0].mxu0
      %v3109 = vadd.f32 0.0, %v3108
      %v3110 = vpop.f32.mrb[0].mxu0
      %v3111 = vpop.f32.mrb[0].mxu0
      %v3112 = vadd.f32 0.0, %v3111
      %v3113 = vpop.f32.mrb[0].mxu0
      %3114 = vmatprep.mubr.bf16.mxu0 0
      %3115 = vmatmul.mubr.bf16.gmra.mrb[0].mxu0 %v2979
      %v3116 = vpop.f32.mrb[0].mxu0
      %v3117 = vadd.f32 0.0, %v3116
      %v3118 = vpop.f32.mrb[0].mxu0
      %v3119 = vpop.f32.mrb[0].mxu0
      %v3120 = vadd.f32 0.0, %v3119
      %v3121 = vpop.f32.mrb[0].mxu0
      %3122 = vmatprep.mubr.bf16.mxu0 0
      %3123 = vmatmul.mubr.bf16.gmra.mrb[0].mxu0 %v2982
      %v3124 = vpop.f32.mrb[0].mxu0
      %v3125 = vadd.f32 0.0, %v3124
      %v3126 = vpop.f32.mrb[0].mxu0
      %v3127 = vpop.f32.mrb[0].mxu0
      %v3128 = vadd.f32 0.0, %v3127
      %v3129 = vpop.f32.mrb[0].mxu0
      %3130 = vmatprep.mubr.bf16.mxu0 0
      %3131 = vmatmul.mubr.bf16.gmra.mrb[0].mxu0 %v2985
      %v3132 = vpop.f32.mrb[0].mxu0
      %v3133 = vadd.f32 0.0, %v3132
      %v3134 = vpop.f32.mrb[0].mxu0
      %v3135 = vpop.f32.mrb[0].mxu0
      %v3136 = vadd.f32 0.0, %v3135
      %v3137 = vpop.f32.mrb[0].mxu0
      %3138 = vmatprep.mubr.bf16.mxu0 0
      %3139 = vmatmul.mubr.bf16.gmra.mrb[0].mxu0 %v2988
      %v3140 = vpop.f32.mrb[0].mxu0
      %v3141 = vadd.f32 0.0, %v3140
      %v3142 = vpop.f32.mrb[0].mxu0
      %v3143 = vpop.f32.mrb[0].mxu0
      %v3144 = vadd.f32 0.0, %v3143
      %v3145 = vpop.f32.mrb[0].mxu0
      %3146 = vmatprep.mubr.bf16.mxu0 0
      %3147 = vmatmul.mubr.bf16.gmra.mrb[0].mxu0 %v2991
      %v3148 = vpop.f32.mrb[0].mxu0
      %v3149 = vadd.f32 0.0, %v3148
      %v3150 = vpop.f32.mrb[0].mxu0
      %v3151 = vpop.f32.mrb[0].mxu0
      %v3152 = vadd.f32 0.0, %v3151
      %v3153 = vpop.f32.mrb[0].mxu0
      %3154 = vmatprep.mubr.bf16.mxu0 0
      %3155 = vmatmul.mubr.bf16.gmra.mrb[0].mxu0 %v2994
      %v3156 = vpop.f32.mrb[0].mxu0
      %v3157 = vadd.f32 0.0, %v3156
      %v3158 = vpop.f32.mrb[0].mxu0
      %v3159 = vpop.f32.mrb[0].mxu0
      %v3160 = vadd.f32 0.0, %v3159
      %v3161 = vpop.f32.mrb[0].mxu0
      %3162 = vmatprep.mubr.bf16.mxu0 0
      %3163 = vmatmul.mubr.bf16.gmra.mrb[0].mxu0 %v2997
      %v3164 = vpop.f32.mrb[0].mxu0
      %v3165 = vadd.f32 0.0, %v3164
      %v3166 = vpop.f32.mrb[0].mxu0
      %v3167 = vpop.f32.mrb[0].mxu0
      %v3168 = vadd.f32 0.0, %v3167
      %v3169 = vpop.f32.mrb[0].mxu0
      %3170 = vmatprep.mubr.bf16.mxu0 0
      %3171 = vmatmul.mubr.bf16.gmra.mrb[0].mxu0 %v3000
      %v3172 = vpop.f32.mrb[0].mxu0
      %v3173 = vadd.f32 0.0, %v3172
      %v3174 = vpop.f32.mrb[0].mxu0
      %v3175 = vpop.f32.mrb[0].mxu0
      %v3176 = vadd.f32 0.0, %v3175
      %v3177 = vpop.f32.mrb[0].mxu0
      %3178 = vdwg.mxu0
      %v3179 = vadd.f32 %v2842, %v3037
      %v3180 = vadd.f32 %v2843, %v3040
      %v3181 = vadd.f32 %v2844, %v3045
      %v3182 = vadd.f32 %v2845, %v3048
      %v3183 = vadd.f32 %v2846, %v3053
      %v3184 = vadd.f32 %v2847, %v3056
      %v3185 = vadd.f32 %v2848, %v3061
      %v3186 = vadd.f32 %v2849, %v3064
      %v3187 = vadd.f32 %v2850, %v3069
      %v3188 = vadd.f32 %v2851, %v3072
      %v3189 = vadd.f32 %v2852, %v3077
      %v3190 = vadd.f32 %v2853, %v3080
      %v3191 = vadd.f32 %v2854, %v3085
      %v3192 = vadd.f32 %v2855, %v3088
      %v3193 = vadd.f32 %v2856, %v3093
      %v3194 = vadd.f32 %v2857, %v3096
      %v3195 = vadd.f32 %v2858, %v3101
      %v3196 = vadd.f32 %v2859, %v3104
      %v3197 = vadd.f32 %v2860, %v3109
      %v3198 = vadd.f32 %v2861, %v3112
      %v3199 = vadd.f32 %v2862, %v3117
      %v3200 = vadd.f32 %v2863, %v3120
      %v3201 = vadd.f32 %v2864, %v3125
      %v3202 = vadd.f32 %v2865, %v3128
      %v3203 = vadd.f32 %v2866, %v3133
      %v3204 = vadd.f32 %v2867, %v3136
      %v3205 = vadd.f32 %v2868, %v3141
      %v3206 = vadd.f32 %v2869, %v3144
      %v3207 = vadd.f32 %v2870, %v3149
      %v3208 = vadd.f32 %v2871, %v3152
      %v3209 = vadd.f32 %v2872, %v3157
      %v3210 = vadd.f32 %v2873, %v3160
      %v3211 = vadd.f32 %v2874, %v3165
      %v3212 = vadd.f32 %v2875, %v3168
      %v3213 = vadd.f32 %v2876, %v3173
      %v3214 = vadd.f32 %v2877, %v3176
      %v3215 = vld [vmem:[%s2] sm:$0x1]
      %v3217 = vlaneseq
      %v3218 = vshrl.u32 %v3217, 7
      %v3219 = vsub.s32 0, %v3218
      %v3220 = vrot.slane %v3215, %v3219
      %v3222 = vadd.f32 %v3179, %v3220
      %v3223 = vadd.f32 %v3180, %v3220
      %v3224 = vadd.f32 %v3181, %v3220
      %v3225 = vadd.f32 %v3182, %v3220
      %v3226 = vadd.f32 %v3183, %v3220
      %v3227 = vadd.f32 %v3184, %v3220
      %v3228 = vadd.f32 %v3185, %v3220
      %v3229 = vadd.f32 %v3186, %v3220
      %v3230 = vadd.f32 %v3187, %v3220
      %v3231 = vadd.f32 %v3188, %v3220
      %v3232 = vadd.f32 %v3189, %v3220
      %v3233 = vadd.f32 %v3190, %v3220
      %v3234 = vadd.f32 %v3191, %v3220
      %v3235 = vadd.f32 %v3192, %v3220
      %v3236 = vadd.f32 %v3193, %v3220
      %v3237 = vadd.f32 %v3194, %v3220
      %v3238 = vadd.f32 %v3195, %v3220
      %v3239 = vadd.f32 %v3196, %v3220
      %v3240 = vadd.f32 %v3197, %v3220
      %v3241 = vadd.f32 %v3198, %v3220
      %v3242 = vadd.f32 %v3199, %v3220
      %v3243 = vadd.f32 %v3200, %v3220
      %v3244 = vadd.f32 %v3201, %v3220
      %v3245 = vadd.f32 %v3202, %v3220
      %v3246 = vadd.f32 %v3203, %v3220
      %v3247 = vadd.f32 %v3204, %v3220
      %v3248 = vadd.f32 %v3205, %v3220
      %v3249 = vadd.f32 %v3206, %v3220
      %v3250 = vadd.f32 %v3207, %v3220
      %v3251 = vadd.f32 %v3208, %v3220
      %v3252 = vadd.f32 %v3209, %v3220
      %v3253 = vadd.f32 %v3210, %v3220
      %v3254 = vadd.f32 %v3211, %v3220
      %v3255 = vadd.f32 %v3212, %v3220
      %v3256 = vadd.f32 %v3213, %v3220
      %v3257 = vadd.f32 %v3214, %v3220
      %v3258 = vmax.f32 %v3222, 0.0
      %v3259 = vmax.f32 %v3223, 0.0
      %v3260 = vmax.f32 %v3224, 0.0
      %v3261 = vmax.f32 %v3225, 0.0
      %v3262 = vmax.f32 %v3226, 0.0
      %v3263 = vmax.f32 %v3227, 0.0
      %v3264 = vmax.f32 %v3228, 0.0
      %v3265 = vmax.f32 %v3229, 0.0
      %v3266 = vmax.f32 %v3230, 0.0
      %v3267 = vmax.f32 %v3231, 0.0
      %v3268 = vmax.f32 %v3232, 0.0
      %v3269 = vmax.f32 %v3233, 0.0
      %v3270 = vmax.f32 %v3234, 0.0
      %v3271 = vmax.f32 %v3235, 0.0
      %v3272 = vmax.f32 %v3236, 0.0
      %v3273 = vmax.f32 %v3237, 0.0
      %v3274 = vmax.f32 %v3238, 0.0
      %v3275 = vmax.f32 %v3239, 0.0
      %v3276 = vmax.f32 %v3240, 0.0
      %v3277 = vmax.f32 %v3241, 0.0
      %v3278 = vmax.f32 %v3242, 0.0
      %v3279 = vmax.f32 %v3243, 0.0
      %v3280 = vmax.f32 %v3244, 0.0
      %v3281 = vmax.f32 %v3245, 0.0
      %v3282 = vmax.f32 %v3246, 0.0
      %v3283 = vmax.f32 %v3247, 0.0
      %v3284 = vmax.f32 %v3248, 0.0
      %v3285 = vmax.f32 %v3249, 0.0
      %v3286 = vmax.f32 %v3250, 0.0
      %v3287 = vmax.f32 %v3251, 0.0
      %v3288 = vmax.f32 %v3252, 0.0
      %v3289 = vmax.f32 %v3253, 0.0
      %v3290 = vmax.f32 %v3254, 0.0
      %v3291 = vmax.f32 %v3255, 0.0
      %v3292 = vmax.f32 %v3256, 0.0
      %v3293 = vmax.f32 %v3257, 0.0
      %v3294 = vld [vmem:[%s5] sm:$0xff]
      %v3295 = vld [vmem:[%s5 + $0x8] sm:$0xff]
      %v3296 = vld [vmem:[%s5 + $0x10] sm:$0xff]
      %v3297 = vld [vmem:[%s5 + $0x18] sm:$0xff]
      %v3298 = vld [vmem:[%s5 + $0x20] sm:$0xff]
      %v3299 = vld [vmem:[%s5 + $0x28] sm:$0xff]
      %v3300 = vld [vmem:[%s5 + $0x30] sm:$0xff]
      %v3301 = vld [vmem:[%s5 + $0x38] sm:$0xff]
      %v3302 = vld [vmem:[%s5 + $0x40] sm:$0xff]
      %v3303 = vld [vmem:[%s5 + $0x48] sm:$0xff]
      %v3304 = vld [vmem:[%s5 + $0x50] sm:$0xff]
      %v3305 = vld [vmem:[%s5 + $0x58] sm:$0xff]
      %v3306 = vld [vmem:[%s5 + $0x60] sm:$0xff]
      %v3307 = vld [vmem:[%s5 + $0x68] sm:$0xff]
      %v3308 = vld [vmem:[%s5 + $0x70] sm:$0xff]
      %v3309 = vld [vmem:[%s5 + $0x78] sm:$0xff]
      %v3310 = vld [vmem:[%s5 + $0x80] sm:$0xff]
      %v3311 = vld [vmem:[%s5 + $0x88] sm:$0xff]
      %v3312 = vld [vmem:[%s5 + $0x90] sm:$0xff]
      %v3313 = vld [vmem:[%s5 + $0x98] sm:$0xff]
      %v3314 = vld [vmem:[%s5 + $0xa0] sm:$0xff]
      %v3315 = vld [vmem:[%s5 + $0xa8] sm:$0xff]
      %v3316 = vld [vmem:[%s5 + $0xb0] sm:$0xff]
      %v3317 = vld [vmem:[%s5 + $0xb8] sm:$0xff]
      %v3318 = vld [vmem:[%s5 + $0xc0] sm:$0xff]
      %v3319 = vld [vmem:[%s5 + $0xc8] sm:$0xff]
      %v3320 = vld [vmem:[%s5 + $0xd0] sm:$0xff]
      %v3321 = vld [vmem:[%s5 + $0xd8] sm:$0xff]
      %v3322 = vld [vmem:[%s5 + $0xe0] sm:$0xff]
      %v3323 = vld [vmem:[%s5 + $0xe8] sm:$0xff]
      %v3324 = vld [vmem:[%s5 + $0xf0] sm:$0xff]
      %v3325 = vld [vmem:[%s5 + $0xf8] sm:$0xff]
      %v3326 = vld [vmem:[%s5 + $0x100] sm:$0xff]
      %v3327 = vld [vmem:[%s5 + $0x108] sm:$0xff]
      %v3328 = vld [vmem:[%s5 + $0x110] sm:$0xff]
      %v3329 = vld [vmem:[%s5 + $0x118] sm:$0xff]
      %3331 = vset.pattern.permute.xlu0 0
      %3332 = vperm.xlu0 %3331, %v3294
      %v3333 = vpop.permute.xlu0 %3332
      %3336 = vset.pattern.permute.xlu0 0
      %3337 = vperm.xlu0 %3336, %v3295
      %v3338 = vpop.permute.xlu0 %3337
      %3341 = vset.pattern.permute.xlu0 0
      %3342 = vperm.xlu0 %3341, %v3296
      %v3343 = vpop.permute.xlu0 %3342
      %3346 = vset.pattern.permute.xlu0 0
      %3347 = vperm.xlu0 %3346, %v3297
      %v3348 = vpop.permute.xlu0 %3347
      %3351 = vset.pattern.permute.xlu0 0
      %3352 = vperm.xlu0 %3351, %v3298
      %v3353 = vpop.permute.xlu0 %3352
      %3356 = vset.pattern.permute.xlu0 0
      %3357 = vperm.xlu0 %3356, %v3299
      %v3358 = vpop.permute.xlu0 %3357
      %3361 = vset.pattern.permute.xlu0 0
      %3362 = vperm.xlu0 %3361, %v3300
      %v3363 = vpop.permute.xlu0 %3362
      %3366 = vset.pattern.permute.xlu0 0
      %3367 = vperm.xlu0 %3366, %v3301
      %v3368 = vpop.permute.xlu0 %3367
      %3371 = vset.pattern.permute.xlu0 0
      %3372 = vperm.xlu0 %3371, %v3302
      %v3373 = vpop.permute.xlu0 %3372
      %3376 = vset.pattern.permute.xlu0 0
      %3377 = vperm.xlu0 %3376, %v3303
      %v3378 = vpop.permute.xlu0 %3377
      %3381 = vset.pattern.permute.xlu0 0
      %3382 = vperm.xlu0 %3381, %v3304
      %v3383 = vpop.permute.xlu0 %3382
      %3386 = vset.pattern.permute.xlu0 0
      %3387 = vperm.xlu0 %3386, %v3305
      %v3388 = vpop.permute.xlu0 %3387
      %3391 = vset.pattern.permute.xlu0 0
      %3392 = vperm.xlu0 %3391, %v3306
      %v3393 = vpop.permute.xlu0 %3392
      %3396 = vset.pattern.permute.xlu0 0
      %3397 = vperm.xlu0 %3396, %v3307
      %v3398 = vpop.permute.xlu0 %3397
      %3401 = vset.pattern.permute.xlu0 0
      %3402 = vperm.xlu0 %3401, %v3308
      %v3403 = vpop.permute.xlu0 %3402
      %3406 = vset.pattern.permute.xlu0 0
      %3407 = vperm.xlu0 %3406, %v3309
      %v3408 = vpop.permute.xlu0 %3407
      %3411 = vset.pattern.permute.xlu0 0
      %3412 = vperm.xlu0 %3411, %v3310
      %v3413 = vpop.permute.xlu0 %3412
      %3416 = vset.pattern.permute.xlu0 0
      %3417 = vperm.xlu0 %3416, %v3311
      %v3418 = vpop.permute.xlu0 %3417
      %3421 = vset.pattern.permute.xlu0 0
      %3422 = vperm.xlu0 %3421, %v3312
      %v3423 = vpop.permute.xlu0 %3422
      %3426 = vset.pattern.permute.xlu0 0
      %3427 = vperm.xlu0 %3426, %v3313
      %v3428 = vpop.permute.xlu0 %3427
      %3431 = vset.pattern.permute.xlu0 0
      %3432 = vperm.xlu0 %3431, %v3314
      %v3433 = vpop.permute.xlu0 %3432
      %3436 = vset.pattern.permute.xlu0 0
      %3437 = vperm.xlu0 %3436, %v3315
      %v3438 = vpop.permute.xlu0 %3437
      %3441 = vset.pattern.permute.xlu0 0
      %3442 = vperm.xlu0 %3441, %v3316
      %v3443 = vpop.permute.xlu0 %3442
      %3446 = vset.pattern.permute.xlu0 0
      %3447 = vperm.xlu0 %3446, %v3317
      %v3448 = vpop.permute.xlu0 %3447
      %3451 = vset.pattern.permute.xlu0 0
      %3452 = vperm.xlu0 %3451, %v3318
      %v3453 = vpop.permute.xlu0 %3452
      %3456 = vset.pattern.permute.xlu0 0
      %3457 = vperm.xlu0 %3456, %v3319
      %v3458 = vpop.permute.xlu0 %3457
      %3461 = vset.pattern.permute.xlu0 0
      %3462 = vperm.xlu0 %3461, %v3320
      %v3463 = vpop.permute.xlu0 %3462
      %3466 = vset.pattern.permute.xlu0 0
      %3467 = vperm.xlu0 %3466, %v3321
      %v3468 = vpop.permute.xlu0 %3467
      %3471 = vset.pattern.permute.xlu0 0
      %3472 = vperm.xlu0 %3471, %v3322
      %v3473 = vpop.permute.xlu0 %3472
      %3476 = vset.pattern.permute.xlu0 0
      %3477 = vperm.xlu0 %3476, %v3323
      %v3478 = vpop.permute.xlu0 %3477
      %3481 = vset.pattern.permute.xlu0 0
      %3482 = vperm.xlu0 %3481, %v3324
      %v3483 = vpop.permute.xlu0 %3482
      %3486 = vset.pattern.permute.xlu0 0
      %3487 = vperm.xlu0 %3486, %v3325
      %v3488 = vpop.permute.xlu0 %3487
      %3491 = vset.pattern.permute.xlu0 0
      %3492 = vperm.xlu0 %3491, %v3326
      %v3493 = vpop.permute.xlu0 %3492
      %3496 = vset.pattern.permute.xlu0 0
      %3497 = vperm.xlu0 %3496, %v3327
      %v3498 = vpop.permute.xlu0 %3497
      %3501 = vset.pattern.permute.xlu0 0
      %3502 = vperm.xlu0 %3501, %v3328
      %v3503 = vpop.permute.xlu0 %3502
      %3506 = vset.pattern.permute.xlu0 0
      %3507 = vperm.xlu0 %3506, %v3329
      %v3508 = vpop.permute.xlu0 %3507
      %v3510 = vmul.f32 %v3258, %v3333
      %v3511 = vmul.f32 %v3259, %v3338
      %v3512 = vmul.f32 %v3260, %v3343
      %v3513 = vmul.f32 %v3261, %v3348
      %v3514 = vmul.f32 %v3262, %v3353
      %v3515 = vmul.f32 %v3263, %v3358
      %v3516 = vmul.f32 %v3264, %v3363
      %v3517 = vmul.f32 %v3265, %v3368
      %v3518 = vmul.f32 %v3266, %v3373
      %v3519 = vmul.f32 %v3267, %v3378
      %v3520 = vmul.f32 %v3268, %v3383
      %v3521 = vmul.f32 %v3269, %v3388
      %v3522 = vmul.f32 %v3270, %v3393
      %v3523 = vmul.f32 %v3271, %v3398
      %v3524 = vmul.f32 %v3272, %v3403
      %v3525 = vmul.f32 %v3273, %v3408
      %v3526 = vmul.f32 %v3274, %v3413
      %v3527 = vmul.f32 %v3275, %v3418
      %v3528 = vmul.f32 %v3276, %v3423
      %v3529 = vmul.f32 %v3277, %v3428
      %v3530 = vmul.f32 %v3278, %v3433
      %v3531 = vmul.f32 %v3279, %v3438
      %v3532 = vmul.f32 %v3280, %v3443
      %v3533 = vmul.f32 %v3281, %v3448
      %v3534 = vmul.f32 %v3282, %v3453
      %v3535 = vmul.f32 %v3283, %v3458
      %v3536 = vmul.f32 %v3284, %v3463
      %v3537 = vmul.f32 %v3285, %v3468
      %v3538 = vmul.f32 %v3286, %v3473
      %v3539 = vmul.f32 %v3287, %v3478
      %v3540 = vmul.f32 %v3288, %v3483
      %v3541 = vmul.f32 %v3289, %v3488
      %v3542 = vmul.f32 %v3290, %v3493
      %v3543 = vmul.f32 %v3291, %v3498
      %v3544 = vmul.f32 %v3292, %v3503
      %v3545 = vmul.f32 %v3293, %v3508
      %vm3546 = vcmask 257024
      %3547 = vst.msk [vmem:[#allocation2] sm:$0xf] %vm3546, 0
      %3548 = vst.msk [vmem:[#allocation2 + $0x4] sm:$0xf] %vm3546, 0
      %3549 = vst.msk [vmem:[#allocation2 + $0x8] sm:$0xf] %vm3546, 0
      %3550 = vst.msk [vmem:[#allocation2 + $0xc] sm:$0xf] %vm3546, 0
      %3551 = vst.msk [vmem:[#allocation2 + $0x10] sm:$0xf] %vm3546, 0
      %3552 = vst.msk [vmem:[#allocation2 + $0x14] sm:$0xf] %vm3546, 0
      %3553 = vst.msk [vmem:[#allocation2 + $0x18] sm:$0xf] %vm3546, 0
      %3554 = vst.msk [vmem:[#allocation2 + $0x1c] sm:$0xf] %vm3546, 0
      %3555 = vst.msk [vmem:[#allocation2 + $0x20] sm:$0xf] %vm3546, 0
      %3556 = vst.msk [vmem:[#allocation2 + $0x24] sm:$0xf] %vm3546, 0
      %3557 = vst.msk [vmem:[#allocation2 + $0x28] sm:$0xf] %vm3546, 0
      %3558 = vst.msk [vmem:[#allocation2 + $0x2c] sm:$0xf] %vm3546, 0
      %3559 = vst.msk [vmem:[#allocation2 + $0x30] sm:$0xf] %vm3546, 0
      %3560 = vst.msk [vmem:[#allocation2 + $0x34] sm:$0xf] %vm3546, 0
      %3561 = vst.msk [vmem:[#allocation2 + $0x38] sm:$0xf] %vm3546, 0
      %3562 = vst.msk [vmem:[#allocation2 + $0x3c] sm:$0xf] %vm3546, 0
      %3563 = vst.msk [vmem:[#allocation2 + $0x40] sm:$0xf] %vm3546, 0
      %3564 = vst.msk [vmem:[#allocation2 + $0x44] sm:$0xf] %vm3546, 0
      %3565 = vst.msk [vmem:[#allocation2 + $0x48] sm:$0xf] %vm3546, 0
      %3566 = vst.msk [vmem:[#allocation2 + $0x4c] sm:$0xf] %vm3546, 0
      %3567 = vst.msk [vmem:[#allocation2 + $0x50] sm:$0xf] %vm3546, 0
      %3568 = vst.msk [vmem:[#allocation2 + $0x54] sm:$0xf] %vm3546, 0
      %3569 = vst.msk [vmem:[#allocation2 + $0x58] sm:$0xf] %vm3546, 0
      %3570 = vst.msk [vmem:[#allocation2 + $0x5c] sm:$0xf] %vm3546, 0
      %3571 = vst.msk [vmem:[#allocation2 + $0x60] sm:$0xf] %vm3546, 0
      %3572 = vst.msk [vmem:[#allocation2 + $0x64] sm:$0xf] %vm3546, 0
      %3573 = vst.msk [vmem:[#allocation2 + $0x68] sm:$0xf] %vm3546, 0
      %3574 = vst.msk [vmem:[#allocation2 + $0x6c] sm:$0xf] %vm3546, 0
      %3575 = vst.msk [vmem:[#allocation2 + $0x70] sm:$0xf] %vm3546, 0
      %3576 = vst.msk [vmem:[#allocation2 + $0x74] sm:$0xf] %vm3546, 0
      %3577 = vst.msk [vmem:[#allocation2 + $0x78] sm:$0xf] %vm3546, 0
      %3578 = vst.msk [vmem:[#allocation2 + $0x7c] sm:$0xf] %vm3546, 0
      %3579 = vst.msk [vmem:[#allocation2 + $0x80] sm:$0xf] %vm3546, 0
      %3580 = vst.msk [vmem:[#allocation2 + $0x84] sm:$0xf] %vm3546, 0
      %3581 = vst.msk [vmem:[#allocation2 + $0x88] sm:$0xf] %vm3546, 0
      %3582 = vst.msk [vmem:[#allocation2 + $0x8c] sm:$0xf] %vm3546, 0
      %3583 = vst.msk [vmem:[#allocation2 + $0x90] sm:$0xf] %vm3546, 0
      %3584 = vst.msk [vmem:[#allocation2 + $0x94] sm:$0xf] %vm3546, 0
      %3585 = vst.msk [vmem:[#allocation2 + $0x98] sm:$0xf] %vm3546, 0
      %3586 = vst.msk [vmem:[#allocation2 + $0x9c] sm:$0xf] %vm3546, 0
      %3587 = vst.msk [vmem:[#allocation2 + $0xa0] sm:$0xf] %vm3546, 0
      %v3588 = vpack.c.bf16 %v3511, %v3510
      %v3589 = vpack.c.bf16 %v3513, %v3512
      %v3590 = vpack.c.bf16 %v3515, %v3514
      %v3591 = vpack.c.bf16 %v3517, %v3516
      %v3592 = vpack.c.bf16 %v3519, %v3518
      %v3593 = vpack.c.bf16 %v3521, %v3520
      %v3594 = vpack.c.bf16 %v3523, %v3522
      %v3595 = vpack.c.bf16 %v3525, %v3524
      %v3596 = vpack.c.bf16 %v3527, %v3526
      %v3597 = vpack.c.bf16 %v3529, %v3528
      %v3598 = vpack.c.bf16 %v3531, %v3530
      %v3599 = vpack.c.bf16 %v3533, %v3532
      %v3600 = vpack.c.bf16 %v3535, %v3534
      %v3601 = vpack.c.bf16 %v3537, %v3536
      %v3602 = vpack.c.bf16 %v3539, %v3538
      %v3603 = vpack.c.bf16 %v3541, %v3540
      %v3604 = vpack.c.bf16 %v3543, %v3542
      %v3605 = vpack.c.bf16 %v3545, %v3544
      %v3624 = vunpack.c.l.b16 %v3588
      %v3625 = vunpack.c.h.b16 %v3588
      %v3626 = vunpack.c.l.b16 %v3589
      %v3627 = vunpack.c.h.b16 %v3589
      %v3628 = vunpack.c.l.b16 %v3590
      %v3629 = vunpack.c.h.b16 %v3590
      %v3630 = vunpack.c.l.b16 %v3591
      %v3631 = vunpack.c.h.b16 %v3591
      %v3632 = vunpack.c.l.b16 %v3592
      %v3633 = vunpack.c.h.b16 %v3592
      %v3634 = vunpack.c.l.b16 %v3593
      %v3635 = vunpack.c.h.b16 %v3593
      %v3636 = vunpack.c.l.b16 %v3594
      %v3637 = vunpack.c.h.b16 %v3594
      %v3638 = vunpack.c.l.b16 %v3595
      %v3639 = vunpack.c.h.b16 %v3595
      %v3640 = vunpack.c.l.b16 %v3596
      %v3641 = vunpack.c.h.b16 %v3596
      %v3642 = vunpack.c.l.b16 %v3597
      %v3643 = vunpack.c.h.b16 %v3597
      %v3644 = vunpack.c.l.b16 %v3598
      %v3645 = vunpack.c.h.b16 %v3598
      %v3646 = vunpack.c.l.b16 %v3599
      %v3647 = vunpack.c.h.b16 %v3599
      %v3648 = vunpack.c.l.b16 %v3600
      %v3649 = vunpack.c.h.b16 %v3600
      %v3650 = vunpack.c.l.b16 %v3601
      %v3651 = vunpack.c.h.b16 %v3601
      %v3652 = vunpack.c.l.b16 %v3602
      %v3653 = vunpack.c.h.b16 %v3602
      %v3654 = vunpack.c.l.b16 %v3603
      %v3655 = vunpack.c.h.b16 %v3603
      %v3656 = vunpack.c.l.b16 %v3604
      %v3657 = vunpack.c.h.b16 %v3604
      %v3658 = vunpack.c.l.b16 %v3605
      %v3659 = vunpack.c.h.b16 %v3605
      %v3660 = vpack.c.b16 %v3624, %v3624
      %v3661 = vpack.c.b16 %v3625, %v3625
      %v3662 = vpack.c.b16 %v3626, %v3626
      %v3663 = vpack.c.b16 %v3627, %v3627
      %v3664 = vpack.c.b16 %v3628, %v3628
      %v3665 = vpack.c.b16 %v3629, %v3629
      %v3666 = vpack.c.b16 %v3630, %v3630
      %v3667 = vpack.c.b16 %v3631, %v3631
      %v3668 = vpack.c.b16 %v3632, %v3632
      %v3669 = vpack.c.b16 %v3633, %v3633
      %v3670 = vpack.c.b16 %v3634, %v3634
      %v3671 = vpack.c.b16 %v3635, %v3635
      %v3672 = vpack.c.b16 %v3636, %v3636
      %v3673 = vpack.c.b16 %v3637, %v3637
      %v3674 = vpack.c.b16 %v3638, %v3638
      %v3675 = vpack.c.b16 %v3639, %v3639
      %v3676 = vpack.c.b16 %v3640, %v3640
      %v3677 = vpack.c.b16 %v3641, %v3641
      %v3678 = vpack.c.b16 %v3642, %v3642
      %v3679 = vpack.c.b16 %v3643, %v3643
      %v3680 = vpack.c.b16 %v3644, %v3644
      %v3681 = vpack.c.b16 %v3645, %v3645
      %v3682 = vpack.c.b16 %v3646, %v3646
      %v3683 = vpack.c.b16 %v3647, %v3647
      %v3684 = vpack.c.b16 %v3648, %v3648
      %v3685 = vpack.c.b16 %v3649, %v3649
      %v3686 = vpack.c.b16 %v3650, %v3650
      %v3687 = vpack.c.b16 %v3651, %v3651
      %v3688 = vpack.c.b16 %v3652, %v3652
      %v3689 = vpack.c.b16 %v3653, %v3653
      %v3690 = vpack.c.b16 %v3654, %v3654
      %v3691 = vpack.c.b16 %v3655, %v3655
      %v3692 = vpack.c.b16 %v3656, %v3656
      %v3693 = vpack.c.b16 %v3657, %v3657
      %v3694 = vpack.c.b16 %v3658, %v3658
      %v3695 = vpack.c.b16 %v3659, %v3659
      %vm3696 = vsmask.f32 1280
      %vm3697 = vsmask.f32 5392
      %vm3698 = vmor %vm3696, %vm3697
      %v3700 = vshrl.u32 %v3660, 16
      %v3702 = vrot.slane %v3700, 6
      %v3703 = vshll.u32 %v3660, 16
      %v3705 = vrot.slane %v3703, 7
      %v3706 = vor.u32 %v3702, %v3705
      %v3707 = vrot.slane %v3706, 4
      %v3709 = vshrl.u32 %v3661, 16
      %v3711 = vrot.slane %v3709, 6
      %v3712 = vshll.u32 %v3661, 16
      %v3714 = vrot.slane %v3712, 7
      %v3715 = vor.u32 %v3711, %v3714
      %v3716 = vsel %vm3698, %v3707, %v3715
      %v3717 = vrot.slane %v3715, 4
      %v3719 = vshrl.u32 %v3662, 16
      %v3721 = vrot.slane %v3719, 6
      %v3722 = vshll.u32 %v3662, 16
      %v3724 = vrot.slane %v3722, 7
      %v3725 = vor.u32 %v3721, %v3724
      %v3726 = vsel %vm3698, %v3717, %v3725
      %v3727 = vrot.slane %v3725, 4
      %v3729 = vshrl.u32 %v3663, 16
      %v3731 = vrot.slane %v3729, 6
      %v3732 = vshll.u32 %v3663, 16
      %v3734 = vrot.slane %v3732, 7
      %v3735 = vor.u32 %v3731, %v3734
      %v3736 = vsel %vm3698, %v3727, %v3735
      %v3737 = vrot.slane %v3735, 4
      %v3739 = vshrl.u32 %v3664, 16
      %v3741 = vrot.slane %v3739, 6
      %v3742 = vshll.u32 %v3664, 16
      %v3744 = vrot.slane %v3742, 7
      %v3745 = vor.u32 %v3741, %v3744
      %v3746 = vsel %vm3698, %v3737, %v3745
      %v3747 = vrot.slane %v3745, 4
      %v3749 = vshrl.u32 %v3665, 16
      %v3751 = vrot.slane %v3749, 6
      %v3752 = vshll.u32 %v3665, 16
      %v3754 = vrot.slane %v3752, 7
      %v3755 = vor.u32 %v3751, %v3754
      %v3756 = vsel %vm3698, %v3747, %v3755
      %v3757 = vrot.slane %v3755, 4
      %v3759 = vshrl.u32 %v3666, 16
      %v3761 = vrot.slane %v3759, 6
      %v3762 = vshll.u32 %v3666, 16
      %v3764 = vrot.slane %v3762, 7
      %v3765 = vor.u32 %v3761, %v3764
      %v3766 = vsel %vm3698, %v3757, %v3765
      %v3767 = vrot.slane %v3765, 4
      %v3769 = vshrl.u32 %v3667, 16
      %v3771 = vrot.slane %v3769, 6
      %v3772 = vshll.u32 %v3667, 16
      %v3774 = vrot.slane %v3772, 7
      %v3775 = vor.u32 %v3771, %v3774
      %v3776 = vsel %vm3698, %v3767, %v3775
      %v3777 = vrot.slane %v3775, 4
      %v3779 = vshrl.u32 %v3668, 16
      %v3781 = vrot.slane %v3779, 6
      %v3782 = vshll.u32 %v3668, 16
      %v3784 = vrot.slane %v3782, 7
      %v3785 = vor.u32 %v3781, %v3784
      %v3786 = vsel %vm3698, %v3777, %v3785
      %v3787 = vrot.slane %v3785, 4
      %v3789 = vshrl.u32 %v3669, 16
      %v3791 = vrot.slane %v3789, 6
      %v3792 = vshll.u32 %v3669, 16
      %v3794 = vrot.slane %v3792, 7
      %v3795 = vor.u32 %v3791, %v3794
      %v3796 = vsel %vm3698, %v3787, %v3795
      %v3797 = vrot.slane %v3795, 4
      %v3799 = vshrl.u32 %v3670, 16
      %v3801 = vrot.slane %v3799, 6
      %v3802 = vshll.u32 %v3670, 16
      %v3804 = vrot.slane %v3802, 7
      %v3805 = vor.u32 %v3801, %v3804
      %v3806 = vsel %vm3698, %v3797, %v3805
      %v3807 = vrot.slane %v3805, 4
      %v3809 = vshrl.u32 %v3671, 16
      %v3811 = vrot.slane %v3809, 6
      %v3812 = vshll.u32 %v3671, 16
      %v3814 = vrot.slane %v3812, 7
      %v3815 = vor.u32 %v3811, %v3814
      %v3816 = vsel %vm3698, %v3807, %v3815
      %v3817 = vrot.slane %v3815, 4
      %v3819 = vshrl.u32 %v3672, 16
      %v3821 = vrot.slane %v3819, 6
      %v3822 = vshll.u32 %v3672, 16
      %v3824 = vrot.slane %v3822, 7
      %v3825 = vor.u32 %v3821, %v3824
      %v3826 = vsel %vm3698, %v3817, %v3825
      %v3827 = vrot.slane %v3825, 4
      %v3829 = vshrl.u32 %v3673, 16
      %v3831 = vrot.slane %v3829, 6
      %v3832 = vshll.u32 %v3673, 16
      %v3834 = vrot.slane %v3832, 7
      %v3835 = vor.u32 %v3831, %v3834
      %v3836 = vsel %vm3698, %v3827, %v3835
      %v3837 = vrot.slane %v3835, 4
      %v3839 = vshrl.u32 %v3674, 16
      %v3841 = vrot.slane %v3839, 6
      %v3842 = vshll.u32 %v3674, 16
      %v3844 = vrot.slane %v3842, 7
      %v3845 = vor.u32 %v3841, %v3844
      %v3846 = vsel %vm3698, %v3837, %v3845
      %v3847 = vrot.slane %v3845, 4
      %v3849 = vshrl.u32 %v3675, 16
      %v3851 = vrot.slane %v3849, 6
      %v3852 = vshll.u32 %v3675, 16
      %v3854 = vrot.slane %v3852, 7
      %v3855 = vor.u32 %v3851, %v3854
      %v3856 = vsel %vm3698, %v3847, %v3855
      %v3857 = vrot.slane %v3855, 4
      %v3859 = vshrl.u32 %v3676, 16
      %v3861 = vrot.slane %v3859, 6
      %v3862 = vshll.u32 %v3676, 16
      %v3864 = vrot.slane %v3862, 7
      %v3865 = vor.u32 %v3861, %v3864
      %v3866 = vsel %vm3698, %v3857, %v3865
      %v3867 = vrot.slane %v3865, 4
      %v3869 = vshrl.u32 %v3677, 16
      %v3871 = vrot.slane %v3869, 6
      %v3872 = vshll.u32 %v3677, 16
      %v3874 = vrot.slane %v3872, 7
      %v3875 = vor.u32 %v3871, %v3874
      %v3876 = vsel %vm3698, %v3867, %v3875
      %v3877 = vrot.slane %v3875, 4
      %v3879 = vshrl.u32 %v3678, 16
      %v3881 = vrot.slane %v3879, 6
      %v3882 = vshll.u32 %v3678, 16
      %v3884 = vrot.slane %v3882, 7
      %v3885 = vor.u32 %v3881, %v3884
      %v3886 = vsel %vm3698, %v3877, %v3885
      %v3887 = vrot.slane %v3885, 4
      %v3889 = vshrl.u32 %v3679, 16
      %v3891 = vrot.slane %v3889, 6
      %v3892 = vshll.u32 %v3679, 16
      %v3894 = vrot.slane %v3892, 7
      %v3895 = vor.u32 %v3891, %v3894
      %v3896 = vsel %vm3698, %v3887, %v3895
      %v3897 = vrot.slane %v3895, 4
      %v3899 = vshrl.u32 %v3680, 16
      %v3901 = vrot.slane %v3899, 6
      %v3902 = vshll.u32 %v3680, 16
      %v3904 = vrot.slane %v3902, 7
      %v3905 = vor.u32 %v3901, %v3904
      %v3906 = vsel %vm3698, %v3897, %v3905
      %v3907 = vrot.slane %v3905, 4
      %v3909 = vshrl.u32 %v3681, 16
      %v3911 = vrot.slane %v3909, 6
      %v3912 = vshll.u32 %v3681, 16
      %v3914 = vrot.slane %v3912, 7
      %v3915 = vor.u32 %v3911, %v3914
      %v3916 = vsel %vm3698, %v3907, %v3915
      %v3917 = vrot.slane %v3915, 4
      %v3919 = vshrl.u32 %v3682, 16
      %v3921 = vrot.slane %v3919, 6
      %v3922 = vshll.u32 %v3682, 16
      %v3924 = vrot.slane %v3922, 7
      %v3925 = vor.u32 %v3921, %v3924
      %v3926 = vsel %vm3698, %v3917, %v3925
      %v3927 = vrot.slane %v3925, 4
      %v3929 = vshrl.u32 %v3683, 16
      %v3931 = vrot.slane %v3929, 6
      %v3932 = vshll.u32 %v3683, 16
      %v3934 = vrot.slane %v3932, 7
      %v3935 = vor.u32 %v3931, %v3934
      %v3936 = vsel %vm3698, %v3927, %v3935
      %v3937 = vrot.slane %v3935, 4
      %v3939 = vshrl.u32 %v3684, 16
      %v3941 = vrot.slane %v3939, 6
      %v3942 = vshll.u32 %v3684, 16
      %v3944 = vrot.slane %v3942, 7
      %v3945 = vor.u32 %v3941, %v3944
      %v3946 = vsel %vm3698, %v3937, %v3945
      %v3947 = vrot.slane %v3945, 4
      %v3949 = vshrl.u32 %v3685, 16
      %v3951 = vrot.slane %v3949, 6
      %v3952 = vshll.u32 %v3685, 16
      %v3954 = vrot.slane %v3952, 7
      %v3955 = vor.u32 %v3951, %v3954
      %v3956 = vsel %vm3698, %v3947, %v3955
      %v3957 = vrot.slane %v3955, 4
      %v3959 = vshrl.u32 %v3686, 16
      %v3961 = vrot.slane %v3959, 6
      %v3962 = vshll.u32 %v3686, 16
      %v3964 = vrot.slane %v3962, 7
      %v3965 = vor.u32 %v3961, %v3964
      %v3966 = vsel %vm3698, %v3957, %v3965
      %v3967 = vrot.slane %v3965, 4
      %v3969 = vshrl.u32 %v3687, 16
      %v3971 = vrot.slane %v3969, 6
      %v3972 = vshll.u32 %v3687, 16
      %v3974 = vrot.slane %v3972, 7
      %v3975 = vor.u32 %v3971, %v3974
      %v3976 = vsel %vm3698, %v3967, %v3975
      %v3977 = vrot.slane %v3975, 4
      %v3979 = vshrl.u32 %v3688, 16
      %v3981 = vrot.slane %v3979, 6
      %v3982 = vshll.u32 %v3688, 16
      %v3984 = vrot.slane %v3982, 7
      %v3985 = vor.u32 %v3981, %v3984
      %v3986 = vsel %vm3698, %v3977, %v3985
      %v3987 = vrot.slane %v3985, 4
      %v3989 = vshrl.u32 %v3689, 16
      %v3991 = vrot.slane %v3989, 6
      %v3992 = vshll.u32 %v3689, 16
      %v3994 = vrot.slane %v3992, 7
      %v3995 = vor.u32 %v3991, %v3994
      %v3996 = vsel %vm3698, %v3987, %v3995
      %v3997 = vrot.slane %v3995, 4
      %v3999 = vshrl.u32 %v3690, 16
      %v4001 = vrot.slane %v3999, 6
      %v4002 = vshll.u32 %v3690, 16
      %v4004 = vrot.slane %v4002, 7
      %v4005 = vor.u32 %v4001, %v4004
      %v4006 = vsel %vm3698, %v3997, %v4005
      %v4007 = vrot.slane %v4005, 4
      %v4009 = vshrl.u32 %v3691, 16
      %v4011 = vrot.slane %v4009, 6
      %v4012 = vshll.u32 %v3691, 16
      %v4014 = vrot.slane %v4012, 7
      %v4015 = vor.u32 %v4011, %v4014
      %v4016 = vsel %vm3698, %v4007, %v4015
      %v4017 = vrot.slane %v4015, 4
      %v4019 = vshrl.u32 %v3692, 16
      %v4021 = vrot.slane %v4019, 6
      %v4022 = vshll.u32 %v3692, 16
      %v4024 = vrot.slane %v4022, 7
      %v4025 = vor.u32 %v4021, %v4024
      %v4026 = vsel %vm3698, %v4017, %v4025
      %v4027 = vrot.slane %v4025, 4
      %v4029 = vshrl.u32 %v3693, 16
      %v4031 = vrot.slane %v4029, 6
      %v4032 = vshll.u32 %v3693, 16
      %v4034 = vrot.slane %v4032, 7
      %v4035 = vor.u32 %v4031, %v4034
      %v4036 = vsel %vm3698, %v4027, %v4035
      %v4037 = vrot.slane %v4035, 4
      %v4039 = vshrl.u32 %v3694, 16
      %v4041 = vrot.slane %v4039, 6
      %v4042 = vshll.u32 %v3694, 16
      %v4044 = vrot.slane %v4042, 7
      %v4045 = vor.u32 %v4041, %v4044
      %v4046 = vsel %vm3698, %v4037, %v4045
      %v4047 = vrot.slane %v4045, 4
      %v4049 = vshrl.u32 %v3695, 16
      %v4051 = vrot.slane %v4049, 6
      %v4052 = vshll.u32 %v3695, 16
      %v4054 = vrot.slane %v4052, 7
      %v4055 = vor.u32 %v4051, %v4054
      %v4056 = vsel %vm3698, %v4047, %v4055
      %v4057 = vrot.slane %v4055, 4
      %vm4095 = vcmask 257025
      %vm4096 = vsmask.f32 7942
      %vm4097 = vmand %vm4095, %vm4096
      %v4098 = vld [vmem:[#allocation2 + $0x8] sm:$0xe]
      %v4099 = vsel %vm4097, %v3706, %v4098
      %4100 = vst [vmem:[#allocation2 + $0x8] sm:$0xe] %v4099
      %4101 = vst.msk [vmem:[#allocation2 + $0xc] sm:$0xf] %vm3546, %v3716
      %4102 = vst.msk [vmem:[#allocation2 + $0x10] sm:$0xf] %vm3546, %v3726
      %4103 = vst.msk [vmem:[#allocation2 + $0x14] sm:$0xf] %vm3546, %v3736
      %4104 = vst.msk [vmem:[#allocation2 + $0x18] sm:$0xf] %vm3546, %v3746
      %4105 = vst.msk [vmem:[#allocation2 + $0x1c] sm:$0xf] %vm3546, %v3756
      %4106 = vst.msk [vmem:[#allocation2 + $0x20] sm:$0xf] %vm3546, %v3766
      %4107 = vst.msk [vmem:[#allocation2 + $0x24] sm:$0xf] %vm3546, %v3776
      %4108 = vst.msk [vmem:[#allocation2 + $0x28] sm:$0xf] %vm3546, %v3786
      %4109 = vst.msk [vmem:[#allocation2 + $0x2c] sm:$0xf] %vm3546, %v3796
      %4110 = vst.msk [vmem:[#allocation2 + $0x30] sm:$0xf] %vm3546, %v3806
      %4111 = vst.msk [vmem:[#allocation2 + $0x34] sm:$0xf] %vm3546, %v3816
      %4112 = vst.msk [vmem:[#allocation2 + $0x38] sm:$0xf] %vm3546, %v3826
      %4113 = vst.msk [vmem:[#allocation2 + $0x3c] sm:$0xf] %vm3546, %v3836
      %4114 = vst.msk [vmem:[#allocation2 + $0x40] sm:$0xf] %vm3546, %v3846
      %4115 = vst.msk [vmem:[#allocation2 + $0x44] sm:$0xf] %vm3546, %v3856
      %4116 = vst.msk [vmem:[#allocation2 + $0x48] sm:$0xf] %vm3546, %v3866
      %4117 = vst.msk [vmem:[#allocation2 + $0x4c] sm:$0xf] %vm3546, %v3876
      %4118 = vst.msk [vmem:[#allocation2 + $0x50] sm:$0xf] %vm3546, %v3886
      %4119 = vst.msk [vmem:[#allocation2 + $0x54] sm:$0xf] %vm3546, %v3896
      %4120 = vst.msk [vmem:[#allocation2 + $0x58] sm:$0xf] %vm3546, %v3906
      %4121 = vst.msk [vmem:[#allocation2 + $0x5c] sm:$0xf] %vm3546, %v3916
      %4122 = vst.msk [vmem:[#allocation2 + $0x60] sm:$0xf] %vm3546, %v3926
      %4123 = vst.msk [vmem:[#allocation2 + $0x64] sm:$0xf] %vm3546, %v3936
      %4124 = vst.msk [vmem:[#allocation2 + $0x68] sm:$0xf] %vm3546, %v3946
      %4125 = vst.msk [vmem:[#allocation2 + $0x6c] sm:$0xf] %vm3546, %v3956
      %4126 = vst.msk [vmem:[#allocation2 + $0x70] sm:$0xf] %vm3546, %v3966
      %4127 = vst.msk [vmem:[#allocation2 + $0x74] sm:$0xf] %vm3546, %v3976
      %4128 = vst.msk [vmem:[#allocation2 + $0x78] sm:$0xf] %vm3546, %v3986
      %4129 = vst.msk [vmem:[#allocation2 + $0x7c] sm:$0xf] %vm3546, %v3996
      %4130 = vst.msk [vmem:[#allocation2 + $0x80] sm:$0xf] %vm3546, %v4006
      %4131 = vst.msk [vmem:[#allocation2 + $0x84] sm:$0xf] %vm3546, %v4016
      %4132 = vst.msk [vmem:[#allocation2 + $0x88] sm:$0xf] %vm3546, %v4026
      %4133 = vst.msk [vmem:[#allocation2 + $0x8c] sm:$0xf] %vm3546, %v4036
      %4134 = vst.msk [vmem:[#allocation2 + $0x90] sm:$0xf] %vm3546, %v4046
      %4135 = vst.msk [vmem:[#allocation2 + $0x94] sm:$0xf] %vm3546, %v4056
      %vm4136 = vcmask 254976
      %vm4137 = vmand %vm4136, %vm3696
      %v4138 = vld [vmem:[#allocation2 + $0x98] sm:$0x3]
      %v4139 = vsel %vm4137, %v4057, %v4138
      %4140 = vst [vmem:[#allocation2 + $0x98] sm:$0x3] %v4139
      %v4141 = vld [vmem:[#allocation2] sm:$0xf]
      %v4142 = vld [vmem:[#allocation2 + $0x4] sm:$0xf]
      %v4143 = vld [vmem:[#allocation2 + $0x8] sm:$0xf]
      %v4144 = vld [vmem:[#allocation2 + $0xc] sm:$0xf]
      %v4145 = vld [vmem:[#allocation2 + $0x10] sm:$0xf]
      %v4146 = vld [vmem:[#allocation2 + $0x14] sm:$0xf]
      %v4147 = vld [vmem:[#allocation2 + $0x18] sm:$0xf]
      %v4148 = vld [vmem:[#allocation2 + $0x1c] sm:$0xf]
      %v4149 = vld [vmem:[#allocation2 + $0x20] sm:$0xf]
      %v4150 = vld [vmem:[#allocation2 + $0x24] sm:$0xf]
      %v4151 = vld [vmem:[#allocation2 + $0x28] sm:$0xf]
      %v4152 = vld [vmem:[#allocation2 + $0x2c] sm:$0xf]
      %v4153 = vld [vmem:[#allocation2 + $0x30] sm:$0xf]
      %v4154 = vld [vmem:[#allocation2 + $0x34] sm:$0xf]
      %v4155 = vld [vmem:[#allocation2 + $0x38] sm:$0xf]
      %v4156 = vld [vmem:[#allocation2 + $0x3c] sm:$0xf]
      %v4157 = vld [vmem:[#allocation2 + $0x40] sm:$0xf]
      %v4158 = vld [vmem:[#allocation2 + $0x44] sm:$0xf]
      %v4159 = vld [vmem:[#allocation2 + $0x48] sm:$0xf]
      %v4160 = vld [vmem:[#allocation2 + $0x4c] sm:$0xf]
      %v4161 = vld [vmem:[#allocation2 + $0x50] sm:$0xf]
      %v4162 = vld [vmem:[#allocation2 + $0x54] sm:$0xf]
      %v4163 = vld [vmem:[#allocation2 + $0x58] sm:$0xf]
      %v4164 = vld [vmem:[#allocation2 + $0x5c] sm:$0xf]
      %v4165 = vld [vmem:[#allocation2 + $0x60] sm:$0xf]
      %v4166 = vld [vmem:[#allocation2 + $0x64] sm:$0xf]
      %v4167 = vld [vmem:[#allocation2 + $0x68] sm:$0xf]
      %v4168 = vld [vmem:[#allocation2 + $0x6c] sm:$0xf]
      %v4169 = vld [vmem:[#allocation2 + $0x70] sm:$0xf]
      %v4170 = vld [vmem:[#allocation2 + $0x74] sm:$0xf]
      %v4171 = vld [vmem:[#allocation2 + $0x78] sm:$0xf]
      %v4172 = vld [vmem:[#allocation2 + $0x7c] sm:$0xf]
      %v4173 = vld [vmem:[#allocation2 + $0x80] sm:$0xf]
      %v4174 = vld [vmem:[#allocation2 + $0x84] sm:$0xf]
      %v4175 = vld [vmem:[#allocation2 + $0x88] sm:$0xf]
      %v4176 = vld [vmem:[#allocation2 + $0x8c] sm:$0xf]
      %v4177 = vld [vmem:[%s3] sm:$0xf]
      %v4178 = vld [vmem:[%s3 + $0x4] sm:$0xf]
      %v4179 = vld [vmem:[%s3 + $0x8] sm:$0xf]
      %v4180 = vld [vmem:[%s3 + $0xc] sm:$0xf]
      %v4181 = vld [vmem:[#allocation2 + $0x90] sm:$0x1]
      %v4182 = vld [vmem:[%s3 + $0x10] sm:$0xf]
      %v4183 = vld [vmem:[%s3 + $0x14] sm:$0xf]
      %v4184 = vld [vmem:[%s3 + $0x18] sm:$0xf]
      %v4185 = vld [vmem:[%s3 + $0x1c] sm:$0xf]
      %v4223 = vunpack.c.l.b16 %v4141
      %v4224 = vunpack.c.l.b16 %v4142
      %v4225 = vunpack.c.l.b16 %v4143
      %v4226 = vunpack.c.l.b16 %v4144
      %v4227 = vunpack.c.l.b16 %v4145
      %v4228 = vunpack.c.l.b16 %v4146
      %v4229 = vunpack.c.l.b16 %v4147
      %v4230 = vunpack.c.l.b16 %v4148
      %v4231 = vunpack.c.l.b16 %v4149
      %v4232 = vunpack.c.l.b16 %v4150
      %v4233 = vunpack.c.l.b16 %v4151
      %v4234 = vunpack.c.l.b16 %v4152
      %v4235 = vunpack.c.l.b16 %v4153
      %v4236 = vunpack.c.l.b16 %v4154
      %v4237 = vunpack.c.l.b16 %v4155
      %v4238 = vunpack.c.l.b16 %v4156
      %v4239 = vunpack.c.l.b16 %v4157
      %v4240 = vunpack.c.l.b16 %v4158
      %v4241 = vunpack.c.l.b16 %v4159
      %v4242 = vunpack.c.l.b16 %v4160
      %v4243 = vunpack.c.l.b16 %v4161
      %v4244 = vunpack.c.l.b16 %v4162
      %v4245 = vunpack.c.l.b16 %v4163
      %v4246 = vunpack.c.l.b16 %v4164
      %v4247 = vunpack.c.l.b16 %v4165
      %v4248 = vunpack.c.l.b16 %v4166
      %v4249 = vunpack.c.l.b16 %v4167
      %v4250 = vunpack.c.l.b16 %v4168
      %v4251 = vunpack.c.l.b16 %v4169
      %v4252 = vunpack.c.l.b16 %v4170
      %v4253 = vunpack.c.l.b16 %v4171
      %v4254 = vunpack.c.l.b16 %v4172
      %v4255 = vunpack.c.l.b16 %v4173
      %v4256 = vunpack.c.l.b16 %v4174
      %v4257 = vunpack.c.l.b16 %v4175
      %v4258 = vunpack.c.l.b16 %v4176
      %v4259 = vunpack.c.l.b16 %v4181
      %v4260 = vpack.c.b16 %v4224, %v4223
      %v4261 = vpack.c.b16 %v4226, %v4225
      %v4262 = vpack.c.b16 %v4228, %v4227
      %v4263 = vpack.c.b16 %v4230, %v4229
      %v4264 = vpack.c.b16 %v4232, %v4231
      %v4265 = vpack.c.b16 %v4234, %v4233
      %v4266 = vpack.c.b16 %v4236, %v4235
      %v4267 = vpack.c.b16 %v4238, %v4237
      %v4268 = vpack.c.b16 %v4240, %v4239
      %v4269 = vpack.c.b16 %v4242, %v4241
      %v4270 = vpack.c.b16 %v4244, %v4243
      %v4271 = vpack.c.b16 %v4246, %v4245
      %v4272 = vpack.c.b16 %v4248, %v4247
      %v4273 = vpack.c.b16 %v4250, %v4249
      %v4274 = vpack.c.b16 %v4252, %v4251
      %v4275 = vpack.c.b16 %v4254, %v4253
      %v4276 = vpack.c.b16 %v4256, %v4255
      %v4277 = vpack.c.b16 %v4258, %v4257
      %v4278 = vpack.c.b16 %v4259, %v4259
      %vm4279 = vsmask.f32 7424
      %v4281 = vshrl.u32 %v4260, 16
      %v4283 = vshll.u32 %v4260, 16
      %v4285 = vrot.slane %v4283, 1
      %v4286 = vor.u32 %v4281, %v4285
      %v4288 = vshll.u32 %v4261, 16
      %v4290 = vrot.slane %v4288, 1
      %v4291 = vsel %vm4279, %v4286, %v4290
      %v4292 = vshrl.u32 %v4261, 16
      %v4294 = vor.u32 %v4292, %v4290
      %v4296 = vshll.u32 %v4262, 16
      %v4298 = vrot.slane %v4296, 1
      %v4299 = vsel %vm4279, %v4294, %v4298
      %v4300 = vshrl.u32 %v4262, 16
      %v4302 = vor.u32 %v4300, %v4298
      %v4304 = vshll.u32 %v4263, 16
      %v4306 = vrot.slane %v4304, 1
      %v4307 = vsel %vm4279, %v4302, %v4306
      %v4308 = vshrl.u32 %v4263, 16
      %v4310 = vor.u32 %v4308, %v4306
      %v4312 = vshll.u32 %v4264, 16
      %v4314 = vrot.slane %v4312, 1
      %v4315 = vsel %vm4279, %v4310, %v4314
      %v4316 = vshrl.u32 %v4264, 16
      %v4318 = vor.u32 %v4316, %v4314
      %v4320 = vshll.u32 %v4265, 16
      %v4322 = vrot.slane %v4320, 1
      %v4323 = vsel %vm4279, %v4318, %v4322
      %v4324 = vshrl.u32 %v4265, 16
      %v4326 = vor.u32 %v4324, %v4322
      %v4328 = vshll.u32 %v4266, 16
      %v4330 = vrot.slane %v4328, 1
      %v4331 = vsel %vm4279, %v4326, %v4330
      %v4332 = vshrl.u32 %v4266, 16
      %v4334 = vor.u32 %v4332, %v4330
      %v4336 = vshll.u32 %v4267, 16
      %v4338 = vrot.slane %v4336, 1
      %v4339 = vsel %vm4279, %v4334, %v4338
      %v4340 = vshrl.u32 %v4267, 16
      %v4342 = vor.u32 %v4340, %v4338
      %v4344 = vshll.u32 %v4268, 16
      %v4346 = vrot.slane %v4344, 1
      %v4347 = vsel %vm4279, %v4342, %v4346
      %v4348 = vshrl.u32 %v4268, 16
      %v4350 = vor.u32 %v4348, %v4346
      %v4352 = vshll.u32 %v4269, 16
      %v4354 = vrot.slane %v4352, 1
      %v4355 = vsel %vm4279, %v4350, %v4354
      %v4356 = vshrl.u32 %v4269, 16
      %v4358 = vor.u32 %v4356, %v4354
      %v4360 = vshll.u32 %v4270, 16
      %v4362 = vrot.slane %v4360, 1
      %v4363 = vsel %vm4279, %v4358, %v4362
      %v4364 = vshrl.u32 %v4270, 16
      %v4366 = vor.u32 %v4364, %v4362
      %v4368 = vshll.u32 %v4271, 16
      %v4370 = vrot.slane %v4368, 1
      %v4371 = vsel %vm4279, %v4366, %v4370
      %v4372 = vshrl.u32 %v4271, 16
      %v4374 = vor.u32 %v4372, %v4370
      %v4376 = vshll.u32 %v4272, 16
      %v4378 = vrot.slane %v4376, 1
      %v4379 = vsel %vm4279, %v4374, %v4378
      %v4380 = vshrl.u32 %v4272, 16
      %v4382 = vor.u32 %v4380, %v4378
      %v4384 = vshll.u32 %v4273, 16
      %v4386 = vrot.slane %v4384, 1
      %v4387 = vsel %vm4279, %v4382, %v4386
      %v4388 = vshrl.u32 %v4273, 16
      %v4390 = vor.u32 %v4388, %v4386
      %v4392 = vshll.u32 %v4274, 16
      %v4394 = vrot.slane %v4392, 1
      %v4395 = vsel %vm4279, %v4390, %v4394
      %v4396 = vshrl.u32 %v4274, 16
      %v4398 = vor.u32 %v4396, %v4394
      %v4400 = vshll.u32 %v4275, 16
      %v4402 = vrot.slane %v4400, 1
      %v4403 = vsel %vm4279, %v4398, %v4402
      %v4404 = vshrl.u32 %v4275, 16
      %v4406 = vor.u32 %v4404, %v4402
      %v4408 = vshll.u32 %v4276, 16
      %v4410 = vrot.slane %v4408, 1
      %v4411 = vsel %vm4279, %v4406, %v4410
      %v4412 = vshrl.u32 %v4276, 16
      %v4414 = vor.u32 %v4412, %v4410
      %v4416 = vshll.u32 %v4277, 16
      %v4418 = vrot.slane %v4416, 1
      %v4419 = vsel %vm4279, %v4414, %v4418
      %v4420 = vshrl.u32 %v4277, 16
      %v4422 = vor.u32 %v4420, %v4418
      %v4424 = vshll.u32 %v4278, 16
      %v4426 = vrot.slane %v4424, 1
      %v4427 = vsel %vm4279, %v4422, %v4426
      %v4432 = vunpack.c.l.b16 %v4182
      %v4433 = vunpack.c.l.b16 %v4183
      %v4434 = vunpack.c.l.b16 %v4184
      %v4435 = vunpack.c.l.b16 %v4185
      %v4436 = vpack.c.b16 %v4433, %v4432
      %v4437 = vpack.c.b16 %v4435, %v4434
      %v4441 = vsel %vm381, %v4291, 0
      %v4444 = vsel %vm381, %v4299, 0
      %v4447 = vsel %vm381, %v4307, 0
      %v4450 = vsel %vm381, %v4315, 0
      %v4453 = vsel %vm381, %v4323, 0
      %v4456 = vsel %vm381, %v4331, 0
      %v4459 = vsel %vm381, %v4339, 0
      %v4462 = vsel %vm381, %v4347, 0
      %v4465 = vsel %vm381, %v4355, 0
      %v4468 = vsel %vm381, %v4363, 0
      %v4471 = vsel %vm381, %v4371, 0
      %v4474 = vsel %vm381, %v4379, 0
      %v4477 = vsel %vm381, %v4387, 0
      %v4480 = vsel %vm381, %v4395, 0
      %v4483 = vsel %vm381, %v4403, 0
      %v4486 = vsel %vm381, %v4411, 0
      %v4489 = vsel %vm381, %v4419, 0
      %v4492 = vsel %vm381, %v4427, 0
      %4494 = vmatprep.subr.bf16.mxu0 0
      %4495 = vmatpush1.bf16.msra.mxu0 %v4436
      %4496 = vmatprep.subr.bf16.mxu0 0
      %4497 = vmatpush1.bf16.msra.mxu0 %v4437
      %4498 = vmatprep.subr.bf16.mxu0 0
      %4499 = vmatpush1.bf16.msra.mxu0 0
      %4500 = vmatprep.subr.bf16.mxu0 0
      %4501 = vmatpush1.bf16.msra.mxu0 0
      %4502 = vmatprep.subr.bf16.mxu0 0
      %4503 = vmatpush1.bf16.msra.mxu0 0
      %4504 = vmatprep.subr.bf16.mxu0 0
      %4505 = vmatpush1.bf16.msra.mxu0 0
      %4506 = vmatprep.subr.bf16.mxu0 0
      %4507 = vmatpush1.bf16.msra.mxu0 0
      %4508 = vmatprep.subr.bf16.mxu0 0
      %4509 = vmatpush1.bf16.msra.mxu0 0
      %4510 = vmatprep.subr.bf16.mxu0 0
      %4511 = vmatpush1.bf16.msra.mxu0 0
      %4512 = vmatprep.subr.bf16.mxu0 0
      %4513 = vmatpush1.bf16.msra.mxu0 0
      %4514 = vmatprep.subr.bf16.mxu0 0
      %4515 = vmatpush1.bf16.msra.mxu0 0
      %4516 = vmatprep.subr.bf16.mxu0 0
      %4517 = vmatpush1.bf16.msra.mxu0 0
      %4518 = vmatprep.subr.bf16.mxu0 0
      %4519 = vmatpush1.bf16.msra.mxu0 0
      %4520 = vmatprep.subr.bf16.mxu0 0
      %4521 = vmatpush1.bf16.msra.mxu0 0
      %4522 = vmatprep.subr.bf16.mxu0 0
      %4523 = vmatpush1.bf16.msra.mxu0 0
      %4524 = vmatprep.subr.bf16.mxu0 0
      %4525 = vmatpush1.bf16.msra.mxu0 0
      %4526 = vmatprep.mubr.bf16.mxu0 0
      %4527 = vmatmul.mubr.bf16.gmra.mrb[0].mxu0 %v4441
      %v4528 = vpop.f32.mrb[0].mxu0
      %v4529 = vadd.f32 0.0, %v4528
      %v4530 = vpop.f32.mrb[0].mxu0
      %v4531 = vpop.f32.mrb[0].mxu0
      %v4532 = vadd.f32 0.0, %v4531
      %v4533 = vpop.f32.mrb[0].mxu0
      %4534 = vmatprep.mubr.bf16.mxu0 0
      %4535 = vmatmul.mubr.bf16.gmra.mrb[0].mxu0 %v4444
      %v4536 = vpop.f32.mrb[0].mxu0
      %v4537 = vadd.f32 0.0, %v4536
      %v4538 = vpop.f32.mrb[0].mxu0
      %v4539 = vpop.f32.mrb[0].mxu0
      %v4540 = vadd.f32 0.0, %v4539
      %v4541 = vpop.f32.mrb[0].mxu0
      %4542 = vmatprep.mubr.bf16.mxu0 0
      %4543 = vmatmul.mubr.bf16.gmra.mrb[0].mxu0 %v4447
      %v4544 = vpop.f32.mrb[0].mxu0
      %v4545 = vadd.f32 0.0, %v4544
      %v4546 = vpop.f32.mrb[0].mxu0
      %v4547 = vpop.f32.mrb[0].mxu0
      %v4548 = vadd.f32 0.0, %v4547
      %v4549 = vpop.f32.mrb[0].mxu0
      %4550 = vmatprep.mubr.bf16.mxu0 0
      %4551 = vmatmul.mubr.bf16.gmra.mrb[0].mxu0 %v4450
      %v4552 = vpop.f32.mrb[0].mxu0
      %v4553 = vadd.f32 0.0, %v4552
      %v4554 = vpop.f32.mrb[0].mxu0
      %v4555 = vpop.f32.mrb[0].mxu0
      %v4556 = vadd.f32 0.0, %v4555
      %v4557 = vpop.f32.mrb[0].mxu0
      %4558 = vmatprep.mubr.bf16.mxu0 0
      %4559 = vmatmul.mubr.bf16.gmra.mrb[0].mxu0 %v4453
      %v4560 = vpop.f32.mrb[0].mxu0
      %v4561 = vadd.f32 0.0, %v4560
      %v4562 = vpop.f32.mrb[0].mxu0
      %v4563 = vpop.f32.mrb[0].mxu0
      %v4564 = vadd.f32 0.0, %v4563
      %v4565 = vpop.f32.mrb[0].mxu0
      %4566 = vmatprep.mubr.bf16.mxu0 0
      %4567 = vmatmul.mubr.bf16.gmra.mrb[0].mxu0 %v4456
      %v4568 = vpop.f32.mrb[0].mxu0
      %v4569 = vadd.f32 0.0, %v4568
      %v4570 = vpop.f32.mrb[0].mxu0
      %v4571 = vpop.f32.mrb[0].mxu0
      %v4572 = vadd.f32 0.0, %v4571
      %v4573 = vpop.f32.mrb[0].mxu0
      %4574 = vmatprep.mubr.bf16.mxu0 0
      %4575 = vmatmul.mubr.bf16.gmra.mrb[0].mxu0 %v4459
      %v4576 = vpop.f32.mrb[0].mxu0
      %v4577 = vadd.f32 0.0, %v4576
      %v4578 = vpop.f32.mrb[0].mxu0
      %v4579 = vpop.f32.mrb[0].mxu0
      %v4580 = vadd.f32 0.0, %v4579
      %v4581 = vpop.f32.mrb[0].mxu0
      %4582 = vmatprep.mubr.bf16.mxu0 0
      %4583 = vmatmul.mubr.bf16.gmra.mrb[0].mxu0 %v4462
      %v4584 = vpop.f32.mrb[0].mxu0
      %v4585 = vadd.f32 0.0, %v4584
      %v4586 = vpop.f32.mrb[0].mxu0
      %v4587 = vpop.f32.mrb[0].mxu0
      %v4588 = vadd.f32 0.0, %v4587
      %v4589 = vpop.f32.mrb[0].mxu0
      %4590 = vmatprep.mubr.bf16.mxu0 0
      %4591 = vmatmul.mubr.bf16.gmra.mrb[0].mxu0 %v4465
      %v4592 = vpop.f32.mrb[0].mxu0
      %v4593 = vadd.f32 0.0, %v4592
      %v4594 = vpop.f32.mrb[0].mxu0
      %v4595 = vpop.f32.mrb[0].mxu0
      %v4596 = vadd.f32 0.0, %v4595
      %v4597 = vpop.f32.mrb[0].mxu0
      %4598 = vmatprep.mubr.bf16.mxu0 0
      %4599 = vmatmul.mubr.bf16.gmra.mrb[0].mxu0 %v4468
      %v4600 = vpop.f32.mrb[0].mxu0
      %v4601 = vadd.f32 0.0, %v4600
      %v4602 = vpop.f32.mrb[0].mxu0
      %v4603 = vpop.f32.mrb[0].mxu0
      %v4604 = vadd.f32 0.0, %v4603
      %v4605 = vpop.f32.mrb[0].mxu0
      %4606 = vmatprep.mubr.bf16.mxu0 0
      %4607 = vmatmul.mubr.bf16.gmra.mrb[0].mxu0 %v4471
      %v4608 = vpop.f32.mrb[0].mxu0
      %v4609 = vadd.f32 0.0, %v4608
      %v4610 = vpop.f32.mrb[0].mxu0
      %v4611 = vpop.f32.mrb[0].mxu0
      %v4612 = vadd.f32 0.0, %v4611
      %v4613 = vpop.f32.mrb[0].mxu0
      %4614 = vmatprep.mubr.bf16.mxu0 0
      %4615 = vmatmul.mubr.bf16.gmra.mrb[0].mxu0 %v4474
      %v4616 = vpop.f32.mrb[0].mxu0
      %v4617 = vadd.f32 0.0, %v4616
      %v4618 = vpop.f32.mrb[0].mxu0
      %v4619 = vpop.f32.mrb[0].mxu0
      %v4620 = vadd.f32 0.0, %v4619
      %v4621 = vpop.f32.mrb[0].mxu0
      %4622 = vmatprep.mubr.bf16.mxu0 0
      %4623 = vmatmul.mubr.bf16.gmra.mrb[0].mxu0 %v4477
      %v4624 = vpop.f32.mrb[0].mxu0
      %v4625 = vadd.f32 0.0, %v4624
      %v4626 = vpop.f32.mrb[0].mxu0
      %v4627 = vpop.f32.mrb[0].mxu0
      %v4628 = vadd.f32 0.0, %v4627
      %v4629 = vpop.f32.mrb[0].mxu0
      %4630 = vmatprep.mubr.bf16.mxu0 0
      %4631 = vmatmul.mubr.bf16.gmra.mrb[0].mxu0 %v4480
      %v4632 = vpop.f32.mrb[0].mxu0
      %v4633 = vadd.f32 0.0, %v4632
      %v4634 = vpop.f32.mrb[0].mxu0
      %v4635 = vpop.f32.mrb[0].mxu0
      %v4636 = vadd.f32 0.0, %v4635
      %v4637 = vpop.f32.mrb[0].mxu0
      %4638 = vmatprep.mubr.bf16.mxu0 0
      %4639 = vmatmul.mubr.bf16.gmra.mrb[0].mxu0 %v4483
      %v4640 = vpop.f32.mrb[0].mxu0
      %v4641 = vadd.f32 0.0, %v4640
      %v4642 = vpop.f32.mrb[0].mxu0
      %v4643 = vpop.f32.mrb[0].mxu0
      %v4644 = vadd.f32 0.0, %v4643
      %v4645 = vpop.f32.mrb[0].mxu0
      %4646 = vmatprep.mubr.bf16.mxu0 0
      %4647 = vmatmul.mubr.bf16.gmra.mrb[0].mxu0 %v4486
      %v4648 = vpop.f32.mrb[0].mxu0
      %v4649 = vadd.f32 0.0, %v4648
      %v4650 = vpop.f32.mrb[0].mxu0
      %v4651 = vpop.f32.mrb[0].mxu0
      %v4652 = vadd.f32 0.0, %v4651
      %v4653 = vpop.f32.mrb[0].mxu0
      %4654 = vmatprep.mubr.bf16.mxu0 0
      %4655 = vmatmul.mubr.bf16.gmra.mrb[0].mxu0 %v4489
      %v4656 = vpop.f32.mrb[0].mxu0
      %v4657 = vadd.f32 0.0, %v4656
      %v4658 = vpop.f32.mrb[0].mxu0
      %v4659 = vpop.f32.mrb[0].mxu0
      %v4660 = vadd.f32 0.0, %v4659
      %v4661 = vpop.f32.mrb[0].mxu0
      %4662 = vmatprep.mubr.bf16.mxu0 0
      %4663 = vmatmul.mubr.bf16.gmra.mrb[0].mxu0 %v4492
      %v4664 = vpop.f32.mrb[0].mxu0
      %v4665 = vadd.f32 0.0, %v4664
      %v4666 = vpop.f32.mrb[0].mxu0
      %v4667 = vpop.f32.mrb[0].mxu0
      %v4668 = vadd.f32 0.0, %v4667
      %v4669 = vpop.f32.mrb[0].mxu0
      %4670 = vdwg.mxu0
      %v4675 = vunpack.c.l.b16 %v4177
      %v4676 = vunpack.c.l.b16 %v4178
      %v4677 = vunpack.c.l.b16 %v4179
      %v4678 = vunpack.c.l.b16 %v4180
      %v4679 = vpack.c.b16 %v4676, %v4675
      %v4680 = vpack.c.b16 %v4678, %v4677
      %v4683 = vsel %vm381, %v4260, 0
      %v4685 = vsel %vm381, %v4261, 0
      %v4687 = vsel %vm381, %v4262, 0
      %v4689 = vsel %vm381, %v4263, 0
      %v4691 = vsel %vm381, %v4264, 0
      %v4693 = vsel %vm381, %v4265, 0
      %v4695 = vsel %vm381, %v4266, 0
      %v4697 = vsel %vm381, %v4267, 0
      %v4699 = vsel %vm381, %v4268, 0
      %v4701 = vsel %vm381, %v4269, 0
      %v4703 = vsel %vm381, %v4270, 0
      %v4705 = vsel %vm381, %v4271, 0
      %v4707 = vsel %vm381, %v4272, 0
      %v4709 = vsel %vm381, %v4273, 0
      %v4711 = vsel %vm381, %v4274, 0
      %v4713 = vsel %vm381, %v4275, 0
      %v4715 = vsel %vm381, %v4276, 0
      %v4717 = vsel %vm381, %v4277, 0
      %4719 = vmatprep.subr.bf16.mxu0 0
      %4720 = vmatpush1.bf16.msra.mxu0 %v4679
      %4721 = vmatprep.subr.bf16.mxu0 0
      %4722 = vmatpush1.bf16.msra.mxu0 %v4680
      %4723 = vmatprep.subr.bf16.mxu0 0
      %4724 = vmatpush1.bf16.msra.mxu0 0
      %4725 = vmatprep.subr.bf16.mxu0 0
      %4726 = vmatpush1.bf16.msra.mxu0 0
      %4727 = vmatprep.subr.bf16.mxu0 0
      %4728 = vmatpush1.bf16.msra.mxu0 0
      %4729 = vmatprep.subr.bf16.mxu0 0
      %4730 = vmatpush1.bf16.msra.mxu0 0
      %4731 = vmatprep.subr.bf16.mxu0 0
      %4732 = vmatpush1.bf16.msra.mxu0 0
      %4733 = vmatprep.subr.bf16.mxu0 0
      %4734 = vmatpush1.bf16.msra.mxu0 0
      %4735 = vmatprep.subr.bf16.mxu0 0
      %4736 = vmatpush1.bf16.msra.mxu0 0
      %4737 = vmatprep.subr.bf16.mxu0 0
      %4738 = vmatpush1.bf16.msra.mxu0 0
      %4739 = vmatprep.subr.bf16.mxu0 0
      %4740 = vmatpush1.bf16.msra.mxu0 0
      %4741 = vmatprep.subr.bf16.mxu0 0
      %4742 = vmatpush1.bf16.msra.mxu0 0
      %4743 = vmatprep.subr.bf16.mxu0 0
      %4744 = vmatpush1.bf16.msra.mxu0 0
      %4745 = vmatprep.subr.bf16.mxu0 0
      %4746 = vmatpush1.bf16.msra.mxu0 0
      %4747 = vmatprep.subr.bf16.mxu0 0
      %4748 = vmatpush1.bf16.msra.mxu0 0
      %4749 = vmatprep.subr.bf16.mxu0 0
      %4750 = vmatpush1.bf16.msra.mxu0 0
      %4751 = vmatprep.mubr.bf16.mxu0 0
      %4752 = vmatmul.mubr.bf16.gmra.mrb[0].mxu0 %v4683
      %v4753 = vpop.f32.mrb[0].mxu0
      %v4754 = vadd.f32 %v4529, %v4753
      %v4755 = vpop.f32.mrb[0].mxu0
      %v4756 = vpop.f32.mrb[0].mxu0
      %v4757 = vadd.f32 %v4532, %v4756
      %v4758 = vpop.f32.mrb[0].mxu0
      %4759 = vmatprep.mubr.bf16.mxu0 0
      %4760 = vmatmul.mubr.bf16.gmra.mrb[0].mxu0 %v4685
      %v4761 = vpop.f32.mrb[0].mxu0
      %v4762 = vadd.f32 %v4537, %v4761
      %v4763 = vpop.f32.mrb[0].mxu0
      %v4764 = vpop.f32.mrb[0].mxu0
      %v4765 = vadd.f32 %v4540, %v4764
      %v4766 = vpop.f32.mrb[0].mxu0
      %4767 = vmatprep.mubr.bf16.mxu0 0
      %4768 = vmatmul.mubr.bf16.gmra.mrb[0].mxu0 %v4687
      %v4769 = vpop.f32.mrb[0].mxu0
      %v4770 = vadd.f32 %v4545, %v4769
      %v4771 = vpop.f32.mrb[0].mxu0
      %v4772 = vpop.f32.mrb[0].mxu0
      %v4773 = vadd.f32 %v4548, %v4772
      %v4774 = vpop.f32.mrb[0].mxu0
      %4775 = vmatprep.mubr.bf16.mxu0 0
      %4776 = vmatmul.mubr.bf16.gmra.mrb[0].mxu0 %v4689
      %v4777 = vpop.f32.mrb[0].mxu0
      %v4778 = vadd.f32 %v4553, %v4777
      %v4779 = vpop.f32.mrb[0].mxu0
      %v4780 = vpop.f32.mrb[0].mxu0
      %v4781 = vadd.f32 %v4556, %v4780
      %v4782 = vpop.f32.mrb[0].mxu0
      %4783 = vmatprep.mubr.bf16.mxu0 0
      %4784 = vmatmul.mubr.bf16.gmra.mrb[0].mxu0 %v4691
      %v4785 = vpop.f32.mrb[0].mxu0
      %v4786 = vadd.f32 %v4561, %v4785
      %v4787 = vpop.f32.mrb[0].mxu0
      %v4788 = vpop.f32.mrb[0].mxu0
      %v4789 = vadd.f32 %v4564, %v4788
      %v4790 = vpop.f32.mrb[0].mxu0
      %4791 = vmatprep.mubr.bf16.mxu0 0
      %4792 = vmatmul.mubr.bf16.gmra.mrb[0].mxu0 %v4693
      %v4793 = vpop.f32.mrb[0].mxu0
      %v4794 = vadd.f32 %v4569, %v4793
      %v4795 = vpop.f32.mrb[0].mxu0
      %v4796 = vpop.f32.mrb[0].mxu0
      %v4797 = vadd.f32 %v4572, %v4796
      %v4798 = vpop.f32.mrb[0].mxu0
      %4799 = vmatprep.mubr.bf16.mxu0 0
      %4800 = vmatmul.mubr.bf16.gmra.mrb[0].mxu0 %v4695
      %v4801 = vpop.f32.mrb[0].mxu0
      %v4802 = vadd.f32 %v4577, %v4801
      %v4803 = vpop.f32.mrb[0].mxu0
      %v4804 = vpop.f32.mrb[0].mxu0
      %v4805 = vadd.f32 %v4580, %v4804
      %v4806 = vpop.f32.mrb[0].mxu0
      %4807 = vmatprep.mubr.bf16.mxu0 0
      %4808 = vmatmul.mubr.bf16.gmra.mrb[0].mxu0 %v4697
      %v4809 = vpop.f32.mrb[0].mxu0
      %v4810 = vadd.f32 %v4585, %v4809
      %v4811 = vpop.f32.mrb[0].mxu0
      %v4812 = vpop.f32.mrb[0].mxu0
      %v4813 = vadd.f32 %v4588, %v4812
      %v4814 = vpop.f32.mrb[0].mxu0
      %4815 = vmatprep.mubr.bf16.mxu0 0
      %4816 = vmatmul.mubr.bf16.gmra.mrb[0].mxu0 %v4699
      %v4817 = vpop.f32.mrb[0].mxu0
      %v4818 = vadd.f32 %v4593, %v4817
      %v4819 = vpop.f32.mrb[0].mxu0
      %v4820 = vpop.f32.mrb[0].mxu0
      %v4821 = vadd.f32 %v4596, %v4820
      %v4822 = vpop.f32.mrb[0].mxu0
      %4823 = vmatprep.mubr.bf16.mxu0 0
      %4824 = vmatmul.mubr.bf16.gmra.mrb[0].mxu0 %v4701
      %v4825 = vpop.f32.mrb[0].mxu0
      %v4826 = vadd.f32 %v4601, %v4825
      %v4827 = vpop.f32.mrb[0].mxu0
      %v4828 = vpop.f32.mrb[0].mxu0
      %v4829 = vadd.f32 %v4604, %v4828
      %v4830 = vpop.f32.mrb[0].mxu0
      %4831 = vmatprep.mubr.bf16.mxu0 0
      %4832 = vmatmul.mubr.bf16.gmra.mrb[0].mxu0 %v4703
      %v4833 = vpop.f32.mrb[0].mxu0
      %v4834 = vadd.f32 %v4609, %v4833
      %v4835 = vpop.f32.mrb[0].mxu0
      %v4836 = vpop.f32.mrb[0].mxu0
      %v4837 = vadd.f32 %v4612, %v4836
      %v4838 = vpop.f32.mrb[0].mxu0
      %4839 = vmatprep.mubr.bf16.mxu0 0
      %4840 = vmatmul.mubr.bf16.gmra.mrb[0].mxu0 %v4705
      %v4841 = vpop.f32.mrb[0].mxu0
      %v4842 = vadd.f32 %v4617, %v4841
      %v4843 = vpop.f32.mrb[0].mxu0
      %v4844 = vpop.f32.mrb[0].mxu0
      %v4845 = vadd.f32 %v4620, %v4844
      %v4846 = vpop.f32.mrb[0].mxu0
      %4847 = vmatprep.mubr.bf16.mxu0 0
      %4848 = vmatmul.mubr.bf16.gmra.mrb[0].mxu0 %v4707
      %v4849 = vpop.f32.mrb[0].mxu0
      %v4850 = vadd.f32 %v4625, %v4849
      %v4851 = vpop.f32.mrb[0].mxu0
      %v4852 = vpop.f32.mrb[0].mxu0
      %v4853 = vadd.f32 %v4628, %v4852
      %v4854 = vpop.f32.mrb[0].mxu0
      %4855 = vmatprep.mubr.bf16.mxu0 0
      %4856 = vmatmul.mubr.bf16.gmra.mrb[0].mxu0 %v4709
      %v4857 = vpop.f32.mrb[0].mxu0
      %v4858 = vadd.f32 %v4633, %v4857
      %v4859 = vpop.f32.mrb[0].mxu0
      %v4860 = vpop.f32.mrb[0].mxu0
      %v4861 = vadd.f32 %v4636, %v4860
      %v4862 = vpop.f32.mrb[0].mxu0
      %4863 = vmatprep.mubr.bf16.mxu0 0
      %4864 = vmatmul.mubr.bf16.gmra.mrb[0].mxu0 %v4711
      %v4865 = vpop.f32.mrb[0].mxu0
      %v4866 = vadd.f32 %v4641, %v4865
      %v4867 = vpop.f32.mrb[0].mxu0
      %v4868 = vpop.f32.mrb[0].mxu0
      %v4869 = vadd.f32 %v4644, %v4868
      %v4870 = vpop.f32.mrb[0].mxu0
      %4871 = vmatprep.mubr.bf16.mxu0 0
      %4872 = vmatmul.mubr.bf16.gmra.mrb[0].mxu0 %v4713
      %v4873 = vpop.f32.mrb[0].mxu0
      %v4874 = vadd.f32 %v4649, %v4873
      %v4875 = vpop.f32.mrb[0].mxu0
      %v4876 = vpop.f32.mrb[0].mxu0
      %v4877 = vadd.f32 %v4652, %v4876
      %v4878 = vpop.f32.mrb[0].mxu0
      %4879 = vmatprep.mubr.bf16.mxu0 0
      %4880 = vmatmul.mubr.bf16.gmra.mrb[0].mxu0 %v4715
      %v4881 = vpop.f32.mrb[0].mxu0
      %v4882 = vadd.f32 %v4657, %v4881
      %v4883 = vpop.f32.mrb[0].mxu0
      %v4884 = vpop.f32.mrb[0].mxu0
      %v4885 = vadd.f32 %v4660, %v4884
      %v4886 = vpop.f32.mrb[0].mxu0
      %4887 = vmatprep.mubr.bf16.mxu0 0
      %4888 = vmatmul.mubr.bf16.gmra.mrb[0].mxu0 %v4717
      %v4889 = vpop.f32.mrb[0].mxu0
      %v4890 = vadd.f32 %v4665, %v4889
      %v4891 = vpop.f32.mrb[0].mxu0
      %v4892 = vpop.f32.mrb[0].mxu0
      %v4893 = vadd.f32 %v4668, %v4892
      %v4894 = vpop.f32.mrb[0].mxu0
      %4895 = vdwg.mxu0
      %v4896 = vld [vmem:[#allocation2] sm:$0xe]
      %v4897 = vld [vmem:[%s3 + $0x20] sm:$0xf]
      %v4898 = vld [vmem:[%s3 + $0x24] sm:$0xf]
      %v4899 = vld [vmem:[%s3 + $0x28] sm:$0xf]
      %v4900 = vld [vmem:[%s3 + $0x2c] sm:$0xf]
      %v4902 = vunpack.c.l.b16 %v4896
      %v4903 = vpack.c.b16 %v4224, %v4902
      %vm4904 = vcmask 1046528
      %v4905 = vrot.slane %v4903, 1
      %v4906 = vrot.slane %v4261, 1
      %v4907 = vsel %vm4904, %v4905, %v4906
      %v4908 = vrot.slane %v4262, 1
      %v4909 = vsel %vm4904, %v4906, %v4908
      %v4910 = vrot.slane %v4263, 1
      %v4911 = vsel %vm4904, %v4908, %v4910
      %v4912 = vrot.slane %v4264, 1
      %v4913 = vsel %vm4904, %v4910, %v4912
      %v4914 = vrot.slane %v4265, 1
      %v4915 = vsel %vm4904, %v4912, %v4914
      %v4916 = vrot.slane %v4266, 1
      %v4917 = vsel %vm4904, %v4914, %v4916
      %v4918 = vrot.slane %v4267, 1
      %v4919 = vsel %vm4904, %v4916, %v4918
      %v4920 = vrot.slane %v4268, 1
      %v4921 = vsel %vm4904, %v4918, %v4920
      %v4922 = vrot.slane %v4269, 1
      %v4923 = vsel %vm4904, %v4920, %v4922
      %v4924 = vrot.slane %v4270, 1
      %v4925 = vsel %vm4904, %v4922, %v4924
      %v4926 = vrot.slane %v4271, 1
      %v4927 = vsel %vm4904, %v4924, %v4926
      %v4928 = vrot.slane %v4272, 1
      %v4929 = vsel %vm4904, %v4926, %v4928
      %v4930 = vrot.slane %v4273, 1
      %v4931 = vsel %vm4904, %v4928, %v4930
      %v4932 = vrot.slane %v4274, 1
      %v4933 = vsel %vm4904, %v4930, %v4932
      %v4934 = vrot.slane %v4275, 1
      %v4935 = vsel %vm4904, %v4932, %v4934
      %v4936 = vrot.slane %v4276, 1
      %v4937 = vsel %vm4904, %v4934, %v4936
      %v4938 = vrot.slane %v4277, 1
      %v4939 = vsel %vm4904, %v4936, %v4938
      %v4940 = vrot.slane %v4278, 1
      %v4941 = vsel %vm4904, %v4938, %v4940
      %v4946 = vunpack.c.l.b16 %v4897
      %v4947 = vunpack.c.l.b16 %v4898
      %v4948 = vunpack.c.l.b16 %v4899
      %v4949 = vunpack.c.l.b16 %v4900
      %v4950 = vpack.c.b16 %v4947, %v4946
      %v4951 = vpack.c.b16 %v4949, %v4948
      %v4955 = vsel %vm381, %v4907, 0
      %v4958 = vsel %vm381, %v4909, 0
      %v4961 = vsel %vm381, %v4911, 0
      %v4964 = vsel %vm381, %v4913, 0
      %v4967 = vsel %vm381, %v4915, 0
      %v4970 = vsel %vm381, %v4917, 0
      %v4973 = vsel %vm381, %v4919, 0
      %v4976 = vsel %vm381, %v4921, 0
      %v4979 = vsel %vm381, %v4923, 0
      %v4982 = vsel %vm381, %v4925, 0
      %v4985 = vsel %vm381, %v4927, 0
      %v4988 = vsel %vm381, %v4929, 0
      %v4991 = vsel %vm381, %v4931, 0
      %v4994 = vsel %vm381, %v4933, 0
      %v4997 = vsel %vm381, %v4935, 0
      %v5000 = vsel %vm381, %v4937, 0
      %v5003 = vsel %vm381, %v4939, 0
      %v5006 = vsel %vm381, %v4941, 0
      %5008 = vmatprep.subr.bf16.mxu0 0
      %5009 = vmatpush1.bf16.msra.mxu0 %v4950
      %5010 = vmatprep.subr.bf16.mxu0 0
      %5011 = vmatpush1.bf16.msra.mxu0 %v4951
      %5012 = vmatprep.subr.bf16.mxu0 0
      %5013 = vmatpush1.bf16.msra.mxu0 0
      %5014 = vmatprep.subr.bf16.mxu0 0
      %5015 = vmatpush1.bf16.msra.mxu0 0
      %5016 = vmatprep.subr.bf16.mxu0 0
      %5017 = vmatpush1.bf16.msra.mxu0 0
      %5018 = vmatprep.subr.bf16.mxu0 0
      %5019 = vmatpush1.bf16.msra.mxu0 0
      %5020 = vmatprep.subr.bf16.mxu0 0
      %5021 = vmatpush1.bf16.msra.mxu0 0
      %5022 = vmatprep.subr.bf16.mxu0 0
      %5023 = vmatpush1.bf16.msra.mxu0 0
      %5024 = vmatprep.subr.bf16.mxu0 0
      %5025 = vmatpush1.bf16.msra.mxu0 0
      %5026 = vmatprep.subr.bf16.mxu0 0
      %5027 = vmatpush1.bf16.msra.mxu0 0
      %5028 = vmatprep.subr.bf16.mxu0 0
      %5029 = vmatpush1.bf16.msra.mxu0 0
      %5030 = vmatprep.subr.bf16.mxu0 0
      %5031 = vmatpush1.bf16.msra.mxu0 0
      %5032 = vmatprep.subr.bf16.mxu0 0
      %5033 = vmatpush1.bf16.msra.mxu0 0
      %5034 = vmatprep.subr.bf16.mxu0 0
      %5035 = vmatpush1.bf16.msra.mxu0 0
      %5036 = vmatprep.subr.bf16.mxu0 0
      %5037 = vmatpush1.bf16.msra.mxu0 0
      %5038 = vmatprep.subr.bf16.mxu0 0
      %5039 = vmatpush1.bf16.msra.mxu0 0
      %5040 = vmatprep.mubr.bf16.mxu0 0
      %5041 = vmatmul.mubr.bf16.gmra.mrb[0].mxu0 %v4955
      %v5042 = vpop.f32.mrb[0].mxu0
      %v5043 = vadd.f32 0.0, %v5042
      %v5044 = vpop.f32.mrb[0].mxu0
      %v5045 = vpop.f32.mrb[0].mxu0
      %v5046 = vadd.f32 0.0, %v5045
      %v5047 = vpop.f32.mrb[0].mxu0
      %5048 = vmatprep.mubr.bf16.mxu0 0
      %5049 = vmatmul.mubr.bf16.gmra.mrb[0].mxu0 %v4958
      %v5050 = vpop.f32.mrb[0].mxu0
      %v5051 = vadd.f32 0.0, %v5050
      %v5052 = vpop.f32.mrb[0].mxu0
      %v5053 = vpop.f32.mrb[0].mxu0
      %v5054 = vadd.f32 0.0, %v5053
      %v5055 = vpop.f32.mrb[0].mxu0
      %5056 = vmatprep.mubr.bf16.mxu0 0
      %5057 = vmatmul.mubr.bf16.gmra.mrb[0].mxu0 %v4961
      %v5058 = vpop.f32.mrb[0].mxu0
      %v5059 = vadd.f32 0.0, %v5058
      %v5060 = vpop.f32.mrb[0].mxu0
      %v5061 = vpop.f32.mrb[0].mxu0
      %v5062 = vadd.f32 0.0, %v5061
      %v5063 = vpop.f32.mrb[0].mxu0
      %5064 = vmatprep.mubr.bf16.mxu0 0
      %5065 = vmatmul.mubr.bf16.gmra.mrb[0].mxu0 %v4964
      %v5066 = vpop.f32.mrb[0].mxu0
      %v5067 = vadd.f32 0.0, %v5066
      %v5068 = vpop.f32.mrb[0].mxu0
      %v5069 = vpop.f32.mrb[0].mxu0
      %v5070 = vadd.f32 0.0, %v5069
      %v5071 = vpop.f32.mrb[0].mxu0
      %5072 = vmatprep.mubr.bf16.mxu0 0
      %5073 = vmatmul.mubr.bf16.gmra.mrb[0].mxu0 %v4967
      %v5074 = vpop.f32.mrb[0].mxu0
      %v5075 = vadd.f32 0.0, %v5074
      %v5076 = vpop.f32.mrb[0].mxu0
      %v5077 = vpop.f32.mrb[0].mxu0
      %v5078 = vadd.f32 0.0, %v5077
      %v5079 = vpop.f32.mrb[0].mxu0
      %5080 = vmatprep.mubr.bf16.mxu0 0
      %5081 = vmatmul.mubr.bf16.gmra.mrb[0].mxu0 %v4970
      %v5082 = vpop.f32.mrb[0].mxu0
      %v5083 = vadd.f32 0.0, %v5082
      %v5084 = vpop.f32.mrb[0].mxu0
      %v5085 = vpop.f32.mrb[0].mxu0
      %v5086 = vadd.f32 0.0, %v5085
      %v5087 = vpop.f32.mrb[0].mxu0
      %5088 = vmatprep.mubr.bf16.mxu0 0
      %5089 = vmatmul.mubr.bf16.gmra.mrb[0].mxu0 %v4973
      %v5090 = vpop.f32.mrb[0].mxu0
      %v5091 = vadd.f32 0.0, %v5090
      %v5092 = vpop.f32.mrb[0].mxu0
      %v5093 = vpop.f32.mrb[0].mxu0
      %v5094 = vadd.f32 0.0, %v5093
      %v5095 = vpop.f32.mrb[0].mxu0
      %5096 = vmatprep.mubr.bf16.mxu0 0
      %5097 = vmatmul.mubr.bf16.gmra.mrb[0].mxu0 %v4976
      %v5098 = vpop.f32.mrb[0].mxu0
      %v5099 = vadd.f32 0.0, %v5098
      %v5100 = vpop.f32.mrb[0].mxu0
      %v5101 = vpop.f32.mrb[0].mxu0
      %v5102 = vadd.f32 0.0, %v5101
      %v5103 = vpop.f32.mrb[0].mxu0
      %5104 = vmatprep.mubr.bf16.mxu0 0
      %5105 = vmatmul.mubr.bf16.gmra.mrb[0].mxu0 %v4979
      %v5106 = vpop.f32.mrb[0].mxu0
      %v5107 = vadd.f32 0.0, %v5106
      %v5108 = vpop.f32.mrb[0].mxu0
      %v5109 = vpop.f32.mrb[0].mxu0
      %v5110 = vadd.f32 0.0, %v5109
      %v5111 = vpop.f32.mrb[0].mxu0
      %5112 = vmatprep.mubr.bf16.mxu0 0
      %5113 = vmatmul.mubr.bf16.gmra.mrb[0].mxu0 %v4982
      %v5114 = vpop.f32.mrb[0].mxu0
      %v5115 = vadd.f32 0.0, %v5114
      %v5116 = vpop.f32.mrb[0].mxu0
      %v5117 = vpop.f32.mrb[0].mxu0
      %v5118 = vadd.f32 0.0, %v5117
      %v5119 = vpop.f32.mrb[0].mxu0
      %5120 = vmatprep.mubr.bf16.mxu0 0
      %5121 = vmatmul.mubr.bf16.gmra.mrb[0].mxu0 %v4985
      %v5122 = vpop.f32.mrb[0].mxu0
      %v5123 = vadd.f32 0.0, %v5122
      %v5124 = vpop.f32.mrb[0].mxu0
      %v5125 = vpop.f32.mrb[0].mxu0
      %v5126 = vadd.f32 0.0, %v5125
      %v5127 = vpop.f32.mrb[0].mxu0
      %5128 = vmatprep.mubr.bf16.mxu0 0
      %5129 = vmatmul.mubr.bf16.gmra.mrb[0].mxu0 %v4988
      %v5130 = vpop.f32.mrb[0].mxu0
      %v5131 = vadd.f32 0.0, %v5130
      %v5132 = vpop.f32.mrb[0].mxu0
      %v5133 = vpop.f32.mrb[0].mxu0
      %v5134 = vadd.f32 0.0, %v5133
      %v5135 = vpop.f32.mrb[0].mxu0
      %5136 = vmatprep.mubr.bf16.mxu0 0
      %5137 = vmatmul.mubr.bf16.gmra.mrb[0].mxu0 %v4991
      %v5138 = vpop.f32.mrb[0].mxu0
      %v5139 = vadd.f32 0.0, %v5138
      %v5140 = vpop.f32.mrb[0].mxu0
      %v5141 = vpop.f32.mrb[0].mxu0
      %v5142 = vadd.f32 0.0, %v5141
      %v5143 = vpop.f32.mrb[0].mxu0
      %5144 = vmatprep.mubr.bf16.mxu0 0
      %5145 = vmatmul.mubr.bf16.gmra.mrb[0].mxu0 %v4994
      %v5146 = vpop.f32.mrb[0].mxu0
      %v5147 = vadd.f32 0.0, %v5146
      %v5148 = vpop.f32.mrb[0].mxu0
      %v5149 = vpop.f32.mrb[0].mxu0
      %v5150 = vadd.f32 0.0, %v5149
      %v5151 = vpop.f32.mrb[0].mxu0
      %5152 = vmatprep.mubr.bf16.mxu0 0
      %5153 = vmatmul.mubr.bf16.gmra.mrb[0].mxu0 %v4997
      %v5154 = vpop.f32.mrb[0].mxu0
      %v5155 = vadd.f32 0.0, %v5154
      %v5156 = vpop.f32.mrb[0].mxu0
      %v5157 = vpop.f32.mrb[0].mxu0
      %v5158 = vadd.f32 0.0, %v5157
      %v5159 = vpop.f32.mrb[0].mxu0
      %5160 = vmatprep.mubr.bf16.mxu0 0
      %5161 = vmatmul.mubr.bf16.gmra.mrb[0].mxu0 %v5000
      %v5162 = vpop.f32.mrb[0].mxu0
      %v5163 = vadd.f32 0.0, %v5162
      %v5164 = vpop.f32.mrb[0].mxu0
      %v5165 = vpop.f32.mrb[0].mxu0
      %v5166 = vadd.f32 0.0, %v5165
      %v5167 = vpop.f32.mrb[0].mxu0
      %5168 = vmatprep.mubr.bf16.mxu0 0
      %5169 = vmatmul.mubr.bf16.gmra.mrb[0].mxu0 %v5003
      %v5170 = vpop.f32.mrb[0].mxu0
      %v5171 = vadd.f32 0.0, %v5170
      %v5172 = vpop.f32.mrb[0].mxu0
      %v5173 = vpop.f32.mrb[0].mxu0
      %v5174 = vadd.f32 0.0, %v5173
      %v5175 = vpop.f32.mrb[0].mxu0
      %5176 = vmatprep.mubr.bf16.mxu0 0
      %5177 = vmatmul.mubr.bf16.gmra.mrb[0].mxu0 %v5006
      %v5178 = vpop.f32.mrb[0].mxu0
      %v5179 = vadd.f32 0.0, %v5178
      %v5180 = vpop.f32.mrb[0].mxu0
      %v5181 = vpop.f32.mrb[0].mxu0
      %v5182 = vadd.f32 0.0, %v5181
      %v5183 = vpop.f32.mrb[0].mxu0
      %5184 = vdwg.mxu0
      %v5185 = vadd.f32 %v4754, %v5043
      %v5186 = vadd.f32 %v4757, %v5046
      %v5187 = vadd.f32 %v4762, %v5051
      %v5188 = vadd.f32 %v4765, %v5054
      %v5189 = vadd.f32 %v4770, %v5059
      %v5190 = vadd.f32 %v4773, %v5062
      %v5191 = vadd.f32 %v4778, %v5067
      %v5192 = vadd.f32 %v4781, %v5070
      %v5193 = vadd.f32 %v4786, %v5075
      %v5194 = vadd.f32 %v4789, %v5078
      %v5195 = vadd.f32 %v4794, %v5083
      %v5196 = vadd.f32 %v4797, %v5086
      %v5197 = vadd.f32 %v4802, %v5091
      %v5198 = vadd.f32 %v4805, %v5094
      %v5199 = vadd.f32 %v4810, %v5099
      %v5200 = vadd.f32 %v4813, %v5102
      %v5201 = vadd.f32 %v4818, %v5107
      %v5202 = vadd.f32 %v4821, %v5110
      %v5203 = vadd.f32 %v4826, %v5115
      %v5204 = vadd.f32 %v4829, %v5118
      %v5205 = vadd.f32 %v4834, %v5123
      %v5206 = vadd.f32 %v4837, %v5126
      %v5207 = vadd.f32 %v4842, %v5131
      %v5208 = vadd.f32 %v4845, %v5134
      %v5209 = vadd.f32 %v4850, %v5139
      %v5210 = vadd.f32 %v4853, %v5142
      %v5211 = vadd.f32 %v4858, %v5147
      %v5212 = vadd.f32 %v4861, %v5150
      %v5213 = vadd.f32 %v4866, %v5155
      %v5214 = vadd.f32 %v4869, %v5158
      %v5215 = vadd.f32 %v4874, %v5163
      %v5216 = vadd.f32 %v4877, %v5166
      %v5217 = vadd.f32 %v4882, %v5171
      %v5218 = vadd.f32 %v4885, %v5174
      %v5219 = vadd.f32 %v4890, %v5179
      %v5220 = vadd.f32 %v4893, %v5182
      %v5221 = vld [vmem:[#allocation2 + $0x8] sm:$0xe]
      %v5222 = vld [vmem:[#allocation2 + $0xc] sm:$0xf]
      %v5223 = vld [vmem:[#allocation2 + $0x10] sm:$0xf]
      %v5224 = vld [vmem:[#allocation2 + $0x14] sm:$0xf]
      %v5225 = vld [vmem:[#allocation2 + $0x18] sm:$0xf]
      %v5226 = vld [vmem:[#allocation2 + $0x1c] sm:$0xf]
      %v5227 = vld [vmem:[#allocation2 + $0x20] sm:$0xf]
      %v5228 = vld [vmem:[#allocation2 + $0x24] sm:$0xf]
      %v5229 = vld [vmem:[#allocation2 + $0x28] sm:$0xf]
      %v5230 = vld [vmem:[#allocation2 + $0x2c] sm:$0xf]
      %v5231 = vld [vmem:[#allocation2 + $0x30] sm:$0xf]
      %v5232 = vld [vmem:[#allocation2 + $0x34] sm:$0xf]
      %v5233 = vld [vmem:[#allocation2 + $0x38] sm:$0xf]
      %v5234 = vld [vmem:[#allocation2 + $0x3c] sm:$0xf]
      %v5235 = vld [vmem:[#allocation2 + $0x40] sm:$0xf]
      %v5236 = vld [vmem:[#allocation2 + $0x44] sm:$0xf]
      %v5237 = vld [vmem:[#allocation2 + $0x48] sm:$0xf]
      %v5238 = vld [vmem:[#allocation2 + $0x4c] sm:$0xf]
      %v5239 = vld [vmem:[#allocation2 + $0x50] sm:$0xf]
      %v5240 = vld [vmem:[#allocation2 + $0x54] sm:$0xf]
      %v5241 = vld [vmem:[#allocation2 + $0x58] sm:$0xf]
      %v5242 = vld [vmem:[#allocation2 + $0x5c] sm:$0xf]
      %v5243 = vld [vmem:[#allocation2 + $0x60] sm:$0xf]
      %v5244 = vld [vmem:[#allocation2 + $0x64] sm:$0xf]
      %v5245 = vld [vmem:[#allocation2 + $0x68] sm:$0xf]
      %v5246 = vld [vmem:[#allocation2 + $0x6c] sm:$0xf]
      %v5247 = vld [vmem:[#allocation2 + $0x70] sm:$0xf]
      %v5248 = vld [vmem:[#allocation2 + $0x74] sm:$0xf]
      %v5249 = vld [vmem:[#allocation2 + $0x78] sm:$0xf]
      %v5250 = vld [vmem:[#allocation2 + $0x7c] sm:$0xf]
      %v5251 = vld [vmem:[#allocation2 + $0x80] sm:$0xf]
      %v5252 = vld [vmem:[#allocation2 + $0x84] sm:$0xf]
      %v5253 = vld [vmem:[#allocation2 + $0x88] sm:$0xf]
      %v5254 = vld [vmem:[#allocation2 + $0x8c] sm:$0xf]
      %v5255 = vld [vmem:[#allocation2 + $0x90] sm:$0xf]
      %v5256 = vld [vmem:[#allocation2 + $0x94] sm:$0xf]
      %v5257 = vld [vmem:[#allocation2 + $0x98] sm:$0x1]
      %v5258 = vld [vmem:[%s3 + $0x30] sm:$0xf]
      %v5259 = vld [vmem:[%s3 + $0x34] sm:$0xf]
      %v5260 = vld [vmem:[%s3 + $0x38] sm:$0xf]
      %v5261 = vld [vmem:[%s3 + $0x3c] sm:$0xf]
      %v5299 = vunpack.c.l.b16 %v5221
      %v5300 = vunpack.c.l.b16 %v5222
      %v5301 = vunpack.c.l.b16 %v5223
      %v5302 = vunpack.c.l.b16 %v5224
      %v5303 = vunpack.c.l.b16 %v5225
      %v5304 = vunpack.c.l.b16 %v5226
      %v5305 = vunpack.c.l.b16 %v5227
      %v5306 = vunpack.c.l.b16 %v5228
      %v5307 = vunpack.c.l.b16 %v5229
      %v5308 = vunpack.c.l.b16 %v5230
      %v5309 = vunpack.c.l.b16 %v5231
      %v5310 = vunpack.c.l.b16 %v5232
      %v5311 = vunpack.c.l.b16 %v5233
      %v5312 = vunpack.c.l.b16 %v5234
      %v5313 = vunpack.c.l.b16 %v5235
      %v5314 = vunpack.c.l.b16 %v5236
      %v5315 = vunpack.c.l.b16 %v5237
      %v5316 = vunpack.c.l.b16 %v5238
      %v5317 = vunpack.c.l.b16 %v5239
      %v5318 = vunpack.c.l.b16 %v5240
      %v5319 = vunpack.c.l.b16 %v5241
      %v5320 = vunpack.c.l.b16 %v5242
      %v5321 = vunpack.c.l.b16 %v5243
      %v5322 = vunpack.c.l.b16 %v5244
      %v5323 = vunpack.c.l.b16 %v5245
      %v5324 = vunpack.c.l.b16 %v5246
      %v5325 = vunpack.c.l.b16 %v5247
      %v5326 = vunpack.c.l.b16 %v5248
      %v5327 = vunpack.c.l.b16 %v5249
      %v5328 = vunpack.c.l.b16 %v5250
      %v5329 = vunpack.c.l.b16 %v5251
      %v5330 = vunpack.c.l.b16 %v5252
      %v5331 = vunpack.c.l.b16 %v5253
      %v5332 = vunpack.c.l.b16 %v5254
      %v5333 = vunpack.c.l.b16 %v5255
      %v5334 = vunpack.c.l.b16 %v5256
      %v5335 = vunpack.c.l.b16 %v5257
      %v5336 = vpack.c.b16 %v5300, %v5299
      %v5337 = vpack.c.b16 %v5302, %v5301
      %v5338 = vpack.c.b16 %v5304, %v5303
      %v5339 = vpack.c.b16 %v5306, %v5305
      %v5340 = vpack.c.b16 %v5308, %v5307
      %v5341 = vpack.c.b16 %v5310, %v5309
      %v5342 = vpack.c.b16 %v5312, %v5311
      %v5343 = vpack.c.b16 %v5314, %v5313
      %v5344 = vpack.c.b16 %v5316, %v5315
      %v5345 = vpack.c.b16 %v5318, %v5317
      %v5346 = vpack.c.b16 %v5320, %v5319
      %v5347 = vpack.c.b16 %v5322, %v5321
      %v5348 = vpack.c.b16 %v5324, %v5323
      %v5349 = vpack.c.b16 %v5326, %v5325
      %v5350 = vpack.c.b16 %v5328, %v5327
      %v5351 = vpack.c.b16 %v5330, %v5329
      %v5352 = vpack.c.b16 %v5332, %v5331
      %v5353 = vpack.c.b16 %v5334, %v5333
      %v5354 = vpack.c.b16 %v5335, %v5335
      %v5355 = vrot.slane %v5336, 1
      %v5356 = vrot.slane %v5337, 1
      %v5357 = vsel %vm4904, %v5355, %v5356
      %v5358 = vrot.slane %v5338, 1
      %v5359 = vsel %vm4904, %v5356, %v5358
      %v5360 = vrot.slane %v5339, 1
      %v5361 = vsel %vm4904, %v5358, %v5360
      %v5362 = vrot.slane %v5340, 1
      %v5363 = vsel %vm4904, %v5360, %v5362
      %v5364 = vrot.slane %v5341, 1
      %v5365 = vsel %vm4904, %v5362, %v5364
      %v5366 = vrot.slane %v5342, 1
      %v5367 = vsel %vm4904, %v5364, %v5366
      %v5368 = vrot.slane %v5343, 1
      %v5369 = vsel %vm4904, %v5366, %v5368
      %v5370 = vrot.slane %v5344, 1
      %v5371 = vsel %vm4904, %v5368, %v5370
      %v5372 = vrot.slane %v5345, 1
      %v5373 = vsel %vm4904, %v5370, %v5372
      %v5374 = vrot.slane %v5346, 1
      %v5375 = vsel %vm4904, %v5372, %v5374
      %v5376 = vrot.slane %v5347, 1
      %v5377 = vsel %vm4904, %v5374, %v5376
      %v5378 = vrot.slane %v5348, 1
      %v5379 = vsel %vm4904, %v5376, %v5378
      %v5380 = vrot.slane %v5349, 1
      %v5381 = vsel %vm4904, %v5378, %v5380
      %v5382 = vrot.slane %v5350, 1
      %v5383 = vsel %vm4904, %v5380, %v5382
      %v5384 = vrot.slane %v5351, 1
      %v5385 = vsel %vm4904, %v5382, %v5384
      %v5386 = vrot.slane %v5352, 1
      %v5387 = vsel %vm4904, %v5384, %v5386
      %v5388 = vrot.slane %v5353, 1
      %v5389 = vsel %vm4904, %v5386, %v5388
      %v5390 = vrot.slane %v5354, 1
      %v5391 = vsel %vm4904, %v5388, %v5390
      %v5396 = vunpack.c.l.b16 %v5258
      %v5397 = vunpack.c.l.b16 %v5259
      %v5398 = vunpack.c.l.b16 %v5260
      %v5399 = vunpack.c.l.b16 %v5261
      %v5400 = vpack.c.b16 %v5397, %v5396
      %v5401 = vpack.c.b16 %v5399, %v5398
      %v5405 = vsel %vm381, %v5357, 0
      %v5408 = vsel %vm381, %v5359, 0
      %v5411 = vsel %vm381, %v5361, 0
      %v5414 = vsel %vm381, %v5363, 0
      %v5417 = vsel %vm381, %v5365, 0
      %v5420 = vsel %vm381, %v5367, 0
      %v5423 = vsel %vm381, %v5369, 0
      %v5426 = vsel %vm381, %v5371, 0
      %v5429 = vsel %vm381, %v5373, 0
      %v5432 = vsel %vm381, %v5375, 0
      %v5435 = vsel %vm381, %v5377, 0
      %v5438 = vsel %vm381, %v5379, 0
      %v5441 = vsel %vm381, %v5381, 0
      %v5444 = vsel %vm381, %v5383, 0
      %v5447 = vsel %vm381, %v5385, 0
      %v5450 = vsel %vm381, %v5387, 0
      %v5453 = vsel %vm381, %v5389, 0
      %v5456 = vsel %vm381, %v5391, 0
      %5458 = vmatprep.subr.bf16.mxu0 0
      %5459 = vmatpush1.bf16.msra.mxu0 %v5400
      %5460 = vmatprep.subr.bf16.mxu0 0
      %5461 = vmatpush1.bf16.msra.mxu0 %v5401
      %5462 = vmatprep.subr.bf16.mxu0 0
      %5463 = vmatpush1.bf16.msra.mxu0 0
      %5464 = vmatprep.subr.bf16.mxu0 0
      %5465 = vmatpush1.bf16.msra.mxu0 0
      %5466 = vmatprep.subr.bf16.mxu0 0
      %5467 = vmatpush1.bf16.msra.mxu0 0
      %5468 = vmatprep.subr.bf16.mxu0 0
      %5469 = vmatpush1.bf16.msra.mxu0 0
      %5470 = vmatprep.subr.bf16.mxu0 0
      %5471 = vmatpush1.bf16.msra.mxu0 0
      %5472 = vmatprep.subr.bf16.mxu0 0
      %5473 = vmatpush1.bf16.msra.mxu0 0
      %5474 = vmatprep.subr.bf16.mxu0 0
      %5475 = vmatpush1.bf16.msra.mxu0 0
      %5476 = vmatprep.subr.bf16.mxu0 0
      %5477 = vmatpush1.bf16.msra.mxu0 0
      %5478 = vmatprep.subr.bf16.mxu0 0
      %5479 = vmatpush1.bf16.msra.mxu0 0
      %5480 = vmatprep.subr.bf16.mxu0 0
      %5481 = vmatpush1.bf16.msra.mxu0 0
      %5482 = vmatprep.subr.bf16.mxu0 0
      %5483 = vmatpush1.bf16.msra.mxu0 0
      %5484 = vmatprep.subr.bf16.mxu0 0
      %5485 = vmatpush1.bf16.msra.mxu0 0
      %5486 = vmatprep.subr.bf16.mxu0 0
      %5487 = vmatpush1.bf16.msra.mxu0 0
      %5488 = vmatprep.subr.bf16.mxu0 0
      %5489 = vmatpush1.bf16.msra.mxu0 0
      %5490 = vmatprep.mubr.bf16.mxu0 0
      %5491 = vmatmul.mubr.bf16.gmra.mrb[0].mxu0 %v5405
      %v5492 = vpop.f32.mrb[0].mxu0
      %v5493 = vadd.f32 0.0, %v5492
      %v5494 = vpop.f32.mrb[0].mxu0
      %v5495 = vpop.f32.mrb[0].mxu0
      %v5496 = vadd.f32 0.0, %v5495
      %v5497 = vpop.f32.mrb[0].mxu0
      %5498 = vmatprep.mubr.bf16.mxu0 0
      %5499 = vmatmul.mubr.bf16.gmra.mrb[0].mxu0 %v5408
      %v5500 = vpop.f32.mrb[0].mxu0
      %v5501 = vadd.f32 0.0, %v5500
      %v5502 = vpop.f32.mrb[0].mxu0
      %v5503 = vpop.f32.mrb[0].mxu0
      %v5504 = vadd.f32 0.0, %v5503
      %v5505 = vpop.f32.mrb[0].mxu0
      %5506 = vmatprep.mubr.bf16.mxu0 0
      %5507 = vmatmul.mubr.bf16.gmra.mrb[0].mxu0 %v5411
      %v5508 = vpop.f32.mrb[0].mxu0
      %v5509 = vadd.f32 0.0, %v5508
      %v5510 = vpop.f32.mrb[0].mxu0
      %v5511 = vpop.f32.mrb[0].mxu0
      %v5512 = vadd.f32 0.0, %v5511
      %v5513 = vpop.f32.mrb[0].mxu0
      %5514 = vmatprep.mubr.bf16.mxu0 0
      %5515 = vmatmul.mubr.bf16.gmra.mrb[0].mxu0 %v5414
      %v5516 = vpop.f32.mrb[0].mxu0
      %v5517 = vadd.f32 0.0, %v5516
      %v5518 = vpop.f32.mrb[0].mxu0
      %v5519 = vpop.f32.mrb[0].mxu0
      %v5520 = vadd.f32 0.0, %v5519
      %v5521 = vpop.f32.mrb[0].mxu0
      %5522 = vmatprep.mubr.bf16.mxu0 0
      %5523 = vmatmul.mubr.bf16.gmra.mrb[0].mxu0 %v5417
      %v5524 = vpop.f32.mrb[0].mxu0
      %v5525 = vadd.f32 0.0, %v5524
      %v5526 = vpop.f32.mrb[0].mxu0
      %v5527 = vpop.f32.mrb[0].mxu0
      %v5528 = vadd.f32 0.0, %v5527
      %v5529 = vpop.f32.mrb[0].mxu0
      %5530 = vmatprep.mubr.bf16.mxu0 0
      %5531 = vmatmul.mubr.bf16.gmra.mrb[0].mxu0 %v5420
      %v5532 = vpop.f32.mrb[0].mxu0
      %v5533 = vadd.f32 0.0, %v5532
      %v5534 = vpop.f32.mrb[0].mxu0
      %v5535 = vpop.f32.mrb[0].mxu0
      %v5536 = vadd.f32 0.0, %v5535
      %v5537 = vpop.f32.mrb[0].mxu0
      %5538 = vmatprep.mubr.bf16.mxu0 0
      %5539 = vmatmul.mubr.bf16.gmra.mrb[0].mxu0 %v5423
      %v5540 = vpop.f32.mrb[0].mxu0
      %v5541 = vadd.f32 0.0, %v5540
      %v5542 = vpop.f32.mrb[0].mxu0
      %v5543 = vpop.f32.mrb[0].mxu0
      %v5544 = vadd.f32 0.0, %v5543
      %v5545 = vpop.f32.mrb[0].mxu0
      %5546 = vmatprep.mubr.bf16.mxu0 0
      %5547 = vmatmul.mubr.bf16.gmra.mrb[0].mxu0 %v5426
      %v5548 = vpop.f32.mrb[0].mxu0
      %v5549 = vadd.f32 0.0, %v5548
      %v5550 = vpop.f32.mrb[0].mxu0
      %v5551 = vpop.f32.mrb[0].mxu0
      %v5552 = vadd.f32 0.0, %v5551
      %v5553 = vpop.f32.mrb[0].mxu0
      %5554 = vmatprep.mubr.bf16.mxu0 0
      %5555 = vmatmul.mubr.bf16.gmra.mrb[0].mxu0 %v5429
      %v5556 = vpop.f32.mrb[0].mxu0
      %v5557 = vadd.f32 0.0, %v5556
      %v5558 = vpop.f32.mrb[0].mxu0
      %v5559 = vpop.f32.mrb[0].mxu0
      %v5560 = vadd.f32 0.0, %v5559
      %v5561 = vpop.f32.mrb[0].mxu0
      %5562 = vmatprep.mubr.bf16.mxu0 0
      %5563 = vmatmul.mubr.bf16.gmra.mrb[0].mxu0 %v5432
      %v5564 = vpop.f32.mrb[0].mxu0
      %v5565 = vadd.f32 0.0, %v5564
      %v5566 = vpop.f32.mrb[0].mxu0
      %v5567 = vpop.f32.mrb[0].mxu0
      %v5568 = vadd.f32 0.0, %v5567
      %v5569 = vpop.f32.mrb[0].mxu0
      %5570 = vmatprep.mubr.bf16.mxu0 0
      %5571 = vmatmul.mubr.bf16.gmra.mrb[0].mxu0 %v5435
      %v5572 = vpop.f32.mrb[0].mxu0
      %v5573 = vadd.f32 0.0, %v5572
      %v5574 = vpop.f32.mrb[0].mxu0
      %v5575 = vpop.f32.mrb[0].mxu0
      %v5576 = vadd.f32 0.0, %v5575
      %v5577 = vpop.f32.mrb[0].mxu0
      %5578 = vmatprep.mubr.bf16.mxu0 0
      %5579 = vmatmul.mubr.bf16.gmra.mrb[0].mxu0 %v5438
      %v5580 = vpop.f32.mrb[0].mxu0
      %v5581 = vadd.f32 0.0, %v5580
      %v5582 = vpop.f32.mrb[0].mxu0
      %v5583 = vpop.f32.mrb[0].mxu0
      %v5584 = vadd.f32 0.0, %v5583
      %v5585 = vpop.f32.mrb[0].mxu0
      %5586 = vmatprep.mubr.bf16.mxu0 0
      %5587 = vmatmul.mubr.bf16.gmra.mrb[0].mxu0 %v5441
      %v5588 = vpop.f32.mrb[0].mxu0
      %v5589 = vadd.f32 0.0, %v5588
      %v5590 = vpop.f32.mrb[0].mxu0
      %v5591 = vpop.f32.mrb[0].mxu0
      %v5592 = vadd.f32 0.0, %v5591
      %v5593 = vpop.f32.mrb[0].mxu0
      %5594 = vmatprep.mubr.bf16.mxu0 0
      %5595 = vmatmul.mubr.bf16.gmra.mrb[0].mxu0 %v5444
      %v5596 = vpop.f32.mrb[0].mxu0
      %v5597 = vadd.f32 0.0, %v5596
      %v5598 = vpop.f32.mrb[0].mxu0
      %v5599 = vpop.f32.mrb[0].mxu0
      %v5600 = vadd.f32 0.0, %v5599
      %v5601 = vpop.f32.mrb[0].mxu0
      %5602 = vmatprep.mubr.bf16.mxu0 0
      %5603 = vmatmul.mubr.bf16.gmra.mrb[0].mxu0 %v5447
      %v5604 = vpop.f32.mrb[0].mxu0
      %v5605 = vadd.f32 0.0, %v5604
      %v5606 = vpop.f32.mrb[0].mxu0
      %v5607 = vpop.f32.mrb[0].mxu0
      %v5608 = vadd.f32 0.0, %v5607
      %v5609 = vpop.f32.mrb[0].mxu0
      %5610 = vmatprep.mubr.bf16.mxu0 0
      %5611 = vmatmul.mubr.bf16.gmra.mrb[0].mxu0 %v5450
      %v5612 = vpop.f32.mrb[0].mxu0
      %v5613 = vadd.f32 0.0, %v5612
      %v5614 = vpop.f32.mrb[0].mxu0
      %v5615 = vpop.f32.mrb[0].mxu0
      %v5616 = vadd.f32 0.0, %v5615
      %v5617 = vpop.f32.mrb[0].mxu0
      %5618 = vmatprep.mubr.bf16.mxu0 0
      %5619 = vmatmul.mubr.bf16.gmra.mrb[0].mxu0 %v5453
      %v5620 = vpop.f32.mrb[0].mxu0
      %v5621 = vadd.f32 0.0, %v5620
      %v5622 = vpop.f32.mrb[0].mxu0
      %v5623 = vpop.f32.mrb[0].mxu0
      %v5624 = vadd.f32 0.0, %v5623
      %v5625 = vpop.f32.mrb[0].mxu0
      %5626 = vmatprep.mubr.bf16.mxu0 0
      %5627 = vmatmul.mubr.bf16.gmra.mrb[0].mxu0 %v5456
      %v5628 = vpop.f32.mrb[0].mxu0
      %v5629 = vadd.f32 0.0, %v5628
      %v5630 = vpop.f32.mrb[0].mxu0
      %v5631 = vpop.f32.mrb[0].mxu0
      %v5632 = vadd.f32 0.0, %v5631
      %v5633 = vpop.f32.mrb[0].mxu0
      %5634 = vdwg.mxu0
      %v5635 = vadd.f32 %v5185, %v5493
      %v5636 = vadd.f32 %v5186, %v5496
      %v5637 = vadd.f32 %v5187, %v5501
      %v5638 = vadd.f32 %v5188, %v5504
      %v5639 = vadd.f32 %v5189, %v5509
      %v5640 = vadd.f32 %v5190, %v5512
      %v5641 = vadd.f32 %v5191, %v5517
      %v5642 = vadd.f32 %v5192, %v5520
      %v5643 = vadd.f32 %v5193, %v5525
      %v5644 = vadd.f32 %v5194, %v5528
      %v5645 = vadd.f32 %v5195, %v5533
      %v5646 = vadd.f32 %v5196, %v5536
      %v5647 = vadd.f32 %v5197, %v5541
      %v5648 = vadd.f32 %v5198, %v5544
      %v5649 = vadd.f32 %v5199, %v5549
      %v5650 = vadd.f32 %v5200, %v5552
      %v5651 = vadd.f32 %v5201, %v5557
      %v5652 = vadd.f32 %v5202, %v5560
      %v5653 = vadd.f32 %v5203, %v5565
      %v5654 = vadd.f32 %v5204, %v5568
      %v5655 = vadd.f32 %v5205, %v5573
      %v5656 = vadd.f32 %v5206, %v5576
      %v5657 = vadd.f32 %v5207, %v5581
      %v5658 = vadd.f32 %v5208, %v5584
      %v5659 = vadd.f32 %v5209, %v5589
      %v5660 = vadd.f32 %v5210, %v5592
      %v5661 = vadd.f32 %v5211, %v5597
      %v5662 = vadd.f32 %v5212, %v5600
      %v5663 = vadd.f32 %v5213, %v5605
      %v5664 = vadd.f32 %v5214, %v5608
      %v5665 = vadd.f32 %v5215, %v5613
      %v5666 = vadd.f32 %v5216, %v5616
      %v5667 = vadd.f32 %v5217, %v5621
      %v5668 = vadd.f32 %v5218, %v5624
      %v5669 = vadd.f32 %v5219, %v5629
      %v5670 = vadd.f32 %v5220, %v5632
      %v5671 = vld [vmem:[#allocation2 + $0x98] sm:$0x3]
      %v5672 = vld [vmem:[%s3 + $0x40] sm:$0xf]
      %v5673 = vld [vmem:[%s3 + $0x44] sm:$0xf]
      %v5674 = vld [vmem:[%s3 + $0x48] sm:$0xf]
      %v5675 = vld [vmem:[%s3 + $0x4c] sm:$0xf]
      %v5677 = vunpack.c.l.b16 %v5671
      %v5678 = vpack.c.b16 %v5677, %v5677
      %vm5679 = vsmask.f32 6400
      %v5681 = vshrl.u32 %v5336, 16
      %v5683 = vrot.slane %v5681, 1
      %v5684 = vshll.u32 %v5336, 16
      %v5686 = vrot.slane %v5684, 2
      %v5687 = vor.u32 %v5683, %v5686
      %v5689 = vshrl.u32 %v5337, 16
      %v5691 = vrot.slane %v5689, 1
      %v5692 = vshll.u32 %v5337, 16
      %v5694 = vrot.slane %v5692, 2
      %v5695 = vor.u32 %v5691, %v5694
      %v5696 = vsel %vm5679, %v5687, %v5695
      %v5698 = vshrl.u32 %v5338, 16
      %v5700 = vrot.slane %v5698, 1
      %v5701 = vshll.u32 %v5338, 16
      %v5703 = vrot.slane %v5701, 2
      %v5704 = vor.u32 %v5700, %v5703
      %v5705 = vsel %vm5679, %v5695, %v5704
      %v5707 = vshrl.u32 %v5339, 16
      %v5709 = vrot.slane %v5707, 1
      %v5710 = vshll.u32 %v5339, 16
      %v5712 = vrot.slane %v5710, 2
      %v5713 = vor.u32 %v5709, %v5712
      %v5714 = vsel %vm5679, %v5704, %v5713
      %v5716 = vshrl.u32 %v5340, 16
      %v5718 = vrot.slane %v5716, 1
      %v5719 = vshll.u32 %v5340, 16
      %v5721 = vrot.slane %v5719, 2
      %v5722 = vor.u32 %v5718, %v5721
      %v5723 = vsel %vm5679, %v5713, %v5722
      %v5725 = vshrl.u32 %v5341, 16
      %v5727 = vrot.slane %v5725, 1
      %v5728 = vshll.u32 %v5341, 16
      %v5730 = vrot.slane %v5728, 2
      %v5731 = vor.u32 %v5727, %v5730
      %v5732 = vsel %vm5679, %v5722, %v5731
      %v5734 = vshrl.u32 %v5342, 16
      %v5736 = vrot.slane %v5734, 1
      %v5737 = vshll.u32 %v5342, 16
      %v5739 = vrot.slane %v5737, 2
      %v5740 = vor.u32 %v5736, %v5739
      %v5741 = vsel %vm5679, %v5731, %v5740
      %v5743 = vshrl.u32 %v5343, 16
      %v5745 = vrot.slane %v5743, 1
      %v5746 = vshll.u32 %v5343, 16
      %v5748 = vrot.slane %v5746, 2
      %v5749 = vor.u32 %v5745, %v5748
      %v5750 = vsel %vm5679, %v5740, %v5749
      %v5752 = vshrl.u32 %v5344, 16
      %v5754 = vrot.slane %v5752, 1
      %v5755 = vshll.u32 %v5344, 16
      %v5757 = vrot.slane %v5755, 2
      %v5758 = vor.u32 %v5754, %v5757
      %v5759 = vsel %vm5679, %v5749, %v5758
      %v5761 = vshrl.u32 %v5345, 16
      %v5763 = vrot.slane %v5761, 1
      %v5764 = vshll.u32 %v5345, 16
      %v5766 = vrot.slane %v5764, 2
      %v5767 = vor.u32 %v5763, %v5766
      %v5768 = vsel %vm5679, %v5758, %v5767
      %v5770 = vshrl.u32 %v5346, 16
      %v5772 = vrot.slane %v5770, 1
      %v5773 = vshll.u32 %v5346, 16
      %v5775 = vrot.slane %v5773, 2
      %v5776 = vor.u32 %v5772, %v5775
      %v5777 = vsel %vm5679, %v5767, %v5776
      %v5779 = vshrl.u32 %v5347, 16
      %v5781 = vrot.slane %v5779, 1
      %v5782 = vshll.u32 %v5347, 16
      %v5784 = vrot.slane %v5782, 2
      %v5785 = vor.u32 %v5781, %v5784
      %v5786 = vsel %vm5679, %v5776, %v5785
      %v5788 = vshrl.u32 %v5348, 16
      %v5790 = vrot.slane %v5788, 1
      %v5791 = vshll.u32 %v5348, 16
      %v5793 = vrot.slane %v5791, 2
      %v5794 = vor.u32 %v5790, %v5793
      %v5795 = vsel %vm5679, %v5785, %v5794
      %v5797 = vshrl.u32 %v5349, 16
      %v5799 = vrot.slane %v5797, 1
      %v5800 = vshll.u32 %v5349, 16
      %v5802 = vrot.slane %v5800, 2
      %v5803 = vor.u32 %v5799, %v5802
      %v5804 = vsel %vm5679, %v5794, %v5803
      %v5806 = vshrl.u32 %v5350, 16
      %v5808 = vrot.slane %v5806, 1
      %v5809 = vshll.u32 %v5350, 16
      %v5811 = vrot.slane %v5809, 2
      %v5812 = vor.u32 %v5808, %v5811
      %v5813 = vsel %vm5679, %v5803, %v5812
      %v5815 = vshrl.u32 %v5351, 16
      %v5817 = vrot.slane %v5815, 1
      %v5818 = vshll.u32 %v5351, 16
      %v5820 = vrot.slane %v5818, 2
      %v5821 = vor.u32 %v5817, %v5820
      %v5822 = vsel %vm5679, %v5812, %v5821
      %v5824 = vshrl.u32 %v5352, 16
      %v5826 = vrot.slane %v5824, 1
      %v5827 = vshll.u32 %v5352, 16
      %v5829 = vrot.slane %v5827, 2
      %v5830 = vor.u32 %v5826, %v5829
      %v5831 = vsel %vm5679, %v5821, %v5830
      %v5833 = vshrl.u32 %v5353, 16
      %v5835 = vrot.slane %v5833, 1
      %v5836 = vshll.u32 %v5353, 16
      %v5838 = vrot.slane %v5836, 2
      %v5839 = vor.u32 %v5835, %v5838
      %v5840 = vsel %vm5679, %v5830, %v5839
      %v5842 = vshrl.u32 %v5678, 16
      %v5844 = vrot.slane %v5842, 1
      %v5845 = vshll.u32 %v5678, 16
      %v5847 = vrot.slane %v5845, 2
      %v5848 = vor.u32 %v5844, %v5847
      %v5849 = vsel %vm5679, %v5839, %v5848
      %v5854 = vunpack.c.l.b16 %v5672
      %v5855 = vunpack.c.l.b16 %v5673
      %v5856 = vunpack.c.l.b16 %v5674
      %v5857 = vunpack.c.l.b16 %v5675
      %v5858 = vpack.c.b16 %v5855, %v5854
      %v5859 = vpack.c.b16 %v5857, %v5856
      %v5863 = vsel %vm381, %v5696, 0
      %v5866 = vsel %vm381, %v5705, 0
      %v5869 = vsel %vm381, %v5714, 0
      %v5872 = vsel %vm381, %v5723, 0
      %v5875 = vsel %vm381, %v5732, 0
      %v5878 = vsel %vm381, %v5741, 0
      %v5881 = vsel %vm381, %v5750, 0
      %v5884 = vsel %vm381, %v5759, 0
      %v5887 = vsel %vm381, %v5768, 0
      %v5890 = vsel %vm381, %v5777, 0
      %v5893 = vsel %vm381, %v5786, 0
      %v5896 = vsel %vm381, %v5795, 0
      %v5899 = vsel %vm381, %v5804, 0
      %v5902 = vsel %vm381, %v5813, 0
      %v5905 = vsel %vm381, %v5822, 0
      %v5908 = vsel %vm381, %v5831, 0
      %v5911 = vsel %vm381, %v5840, 0
      %v5914 = vsel %vm381, %v5849, 0
      %5916 = vmatprep.subr.bf16.mxu0 0
      %5917 = vmatpush1.bf16.msra.mxu0 %v5858
      %5918 = vmatprep.subr.bf16.mxu0 0
      %5919 = vmatpush1.bf16.msra.mxu0 %v5859
      %5920 = vmatprep.subr.bf16.mxu0 0
      %5921 = vmatpush1.bf16.msra.mxu0 0
      %5922 = vmatprep.subr.bf16.mxu0 0
      %5923 = vmatpush1.bf16.msra.mxu0 0
      %5924 = vmatprep.subr.bf16.mxu0 0
      %5925 = vmatpush1.bf16.msra.mxu0 0
      %5926 = vmatprep.subr.bf16.mxu0 0
      %5927 = vmatpush1.bf16.msra.mxu0 0
      %5928 = vmatprep.subr.bf16.mxu0 0
      %5929 = vmatpush1.bf16.msra.mxu0 0
      %5930 = vmatprep.subr.bf16.mxu0 0
      %5931 = vmatpush1.bf16.msra.mxu0 0
      %5932 = vmatprep.subr.bf16.mxu0 0
      %5933 = vmatpush1.bf16.msra.mxu0 0
      %5934 = vmatprep.subr.bf16.mxu0 0
      %5935 = vmatpush1.bf16.msra.mxu0 0
      %5936 = vmatprep.subr.bf16.mxu0 0
      %5937 = vmatpush1.bf16.msra.mxu0 0
      %5938 = vmatprep.subr.bf16.mxu0 0
      %5939 = vmatpush1.bf16.msra.mxu0 0
      %5940 = vmatprep.subr.bf16.mxu0 0
      %5941 = vmatpush1.bf16.msra.mxu0 0
      %5942 = vmatprep.subr.bf16.mxu0 0
      %5943 = vmatpush1.bf16.msra.mxu0 0
      %5944 = vmatprep.subr.bf16.mxu0 0
      %5945 = vmatpush1.bf16.msra.mxu0 0
      %5946 = vmatprep.subr.bf16.mxu0 0
      %5947 = vmatpush1.bf16.msra.mxu0 0
      %5948 = vmatprep.mubr.bf16.mxu0 0
      %5949 = vmatmul.mubr.bf16.gmra.mrb[0].mxu0 %v5863
      %v5950 = vpop.f32.mrb[0].mxu0
      %v5951 = vadd.f32 0.0, %v5950
      %v5952 = vpop.f32.mrb[0].mxu0
      %v5953 = vpop.f32.mrb[0].mxu0
      %v5954 = vadd.f32 0.0, %v5953
      %v5955 = vpop.f32.mrb[0].mxu0
      %5956 = vmatprep.mubr.bf16.mxu0 0
      %5957 = vmatmul.mubr.bf16.gmra.mrb[0].mxu0 %v5866
      %v5958 = vpop.f32.mrb[0].mxu0
      %v5959 = vadd.f32 0.0, %v5958
      %v5960 = vpop.f32.mrb[0].mxu0
      %v5961 = vpop.f32.mrb[0].mxu0
      %v5962 = vadd.f32 0.0, %v5961
      %v5963 = vpop.f32.mrb[0].mxu0
      %5964 = vmatprep.mubr.bf16.mxu0 0
      %5965 = vmatmul.mubr.bf16.gmra.mrb[0].mxu0 %v5869
      %v5966 = vpop.f32.mrb[0].mxu0
      %v5967 = vadd.f32 0.0, %v5966
      %v5968 = vpop.f32.mrb[0].mxu0
      %v5969 = vpop.f32.mrb[0].mxu0
      %v5970 = vadd.f32 0.0, %v5969
      %v5971 = vpop.f32.mrb[0].mxu0
      %5972 = vmatprep.mubr.bf16.mxu0 0
      %5973 = vmatmul.mubr.bf16.gmra.mrb[0].mxu0 %v5872
      %v5974 = vpop.f32.mrb[0].mxu0
      %v5975 = vadd.f32 0.0, %v5974
      %v5976 = vpop.f32.mrb[0].mxu0
      %v5977 = vpop.f32.mrb[0].mxu0
      %v5978 = vadd.f32 0.0, %v5977
      %v5979 = vpop.f32.mrb[0].mxu0
      %5980 = vmatprep.mubr.bf16.mxu0 0
      %5981 = vmatmul.mubr.bf16.gmra.mrb[0].mxu0 %v5875
      %v5982 = vpop.f32.mrb[0].mxu0
      %v5983 = vadd.f32 0.0, %v5982
      %v5984 = vpop.f32.mrb[0].mxu0
      %v5985 = vpop.f32.mrb[0].mxu0
      %v5986 = vadd.f32 0.0, %v5985
      %v5987 = vpop.f32.mrb[0].mxu0
      %5988 = vmatprep.mubr.bf16.mxu0 0
      %5989 = vmatmul.mubr.bf16.gmra.mrb[0].mxu0 %v5878
      %v5990 = vpop.f32.mrb[0].mxu0
      %v5991 = vadd.f32 0.0, %v5990
      %v5992 = vpop.f32.mrb[0].mxu0
      %v5993 = vpop.f32.mrb[0].mxu0
      %v5994 = vadd.f32 0.0, %v5993
      %v5995 = vpop.f32.mrb[0].mxu0
      %5996 = vmatprep.mubr.bf16.mxu0 0
      %5997 = vmatmul.mubr.bf16.gmra.mrb[0].mxu0 %v5881
      %v5998 = vpop.f32.mrb[0].mxu0
      %v5999 = vadd.f32 0.0, %v5998
      %v6000 = vpop.f32.mrb[0].mxu0
      %v6001 = vpop.f32.mrb[0].mxu0
      %v6002 = vadd.f32 0.0, %v6001
      %v6003 = vpop.f32.mrb[0].mxu0
      %6004 = vmatprep.mubr.bf16.mxu0 0
      %6005 = vmatmul.mubr.bf16.gmra.mrb[0].mxu0 %v5884
      %v6006 = vpop.f32.mrb[0].mxu0
      %v6007 = vadd.f32 0.0, %v6006
      %v6008 = vpop.f32.mrb[0].mxu0
      %v6009 = vpop.f32.mrb[0].mxu0
      %v6010 = vadd.f32 0.0, %v6009
      %v6011 = vpop.f32.mrb[0].mxu0
      %6012 = vmatprep.mubr.bf16.mxu0 0
      %6013 = vmatmul.mubr.bf16.gmra.mrb[0].mxu0 %v5887
      %v6014 = vpop.f32.mrb[0].mxu0
      %v6015 = vadd.f32 0.0, %v6014
      %v6016 = vpop.f32.mrb[0].mxu0
      %v6017 = vpop.f32.mrb[0].mxu0
      %v6018 = vadd.f32 0.0, %v6017
      %v6019 = vpop.f32.mrb[0].mxu0
      %6020 = vmatprep.mubr.bf16.mxu0 0
      %6021 = vmatmul.mubr.bf16.gmra.mrb[0].mxu0 %v5890
      %v6022 = vpop.f32.mrb[0].mxu0
      %v6023 = vadd.f32 0.0, %v6022
      %v6024 = vpop.f32.mrb[0].mxu0
      %v6025 = vpop.f32.mrb[0].mxu0
      %v6026 = vadd.f32 0.0, %v6025
      %v6027 = vpop.f32.mrb[0].mxu0
      %6028 = vmatprep.mubr.bf16.mxu0 0
      %6029 = vmatmul.mubr.bf16.gmra.mrb[0].mxu0 %v5893
      %v6030 = vpop.f32.mrb[0].mxu0
      %v6031 = vadd.f32 0.0, %v6030
      %v6032 = vpop.f32.mrb[0].mxu0
      %v6033 = vpop.f32.mrb[0].mxu0
      %v6034 = vadd.f32 0.0, %v6033
      %v6035 = vpop.f32.mrb[0].mxu0
      %6036 = vmatprep.mubr.bf16.mxu0 0
      %6037 = vmatmul.mubr.bf16.gmra.mrb[0].mxu0 %v5896
      %v6038 = vpop.f32.mrb[0].mxu0
      %v6039 = vadd.f32 0.0, %v6038
      %v6040 = vpop.f32.mrb[0].mxu0
      %v6041 = vpop.f32.mrb[0].mxu0
      %v6042 = vadd.f32 0.0, %v6041
      %v6043 = vpop.f32.mrb[0].mxu0
      %6044 = vmatprep.mubr.bf16.mxu0 0
      %6045 = vmatmul.mubr.bf16.gmra.mrb[0].mxu0 %v5899
      %v6046 = vpop.f32.mrb[0].mxu0
      %v6047 = vadd.f32 0.0, %v6046
      %v6048 = vpop.f32.mrb[0].mxu0
      %v6049 = vpop.f32.mrb[0].mxu0
      %v6050 = vadd.f32 0.0, %v6049
      %v6051 = vpop.f32.mrb[0].mxu0
      %6052 = vmatprep.mubr.bf16.mxu0 0
      %6053 = vmatmul.mubr.bf16.gmra.mrb[0].mxu0 %v5902
      %v6054 = vpop.f32.mrb[0].mxu0
      %v6055 = vadd.f32 0.0, %v6054
      %v6056 = vpop.f32.mrb[0].mxu0
      %v6057 = vpop.f32.mrb[0].mxu0
      %v6058 = vadd.f32 0.0, %v6057
      %v6059 = vpop.f32.mrb[0].mxu0
      %6060 = vmatprep.mubr.bf16.mxu0 0
      %6061 = vmatmul.mubr.bf16.gmra.mrb[0].mxu0 %v5905
      %v6062 = vpop.f32.mrb[0].mxu0
      %v6063 = vadd.f32 0.0, %v6062
      %v6064 = vpop.f32.mrb[0].mxu0
      %v6065 = vpop.f32.mrb[0].mxu0
      %v6066 = vadd.f32 0.0, %v6065
      %v6067 = vpop.f32.mrb[0].mxu0
      %6068 = vmatprep.mubr.bf16.mxu0 0
      %6069 = vmatmul.mubr.bf16.gmra.mrb[0].mxu0 %v5908
      %v6070 = vpop.f32.mrb[0].mxu0
      %v6071 = vadd.f32 0.0, %v6070
      %v6072 = vpop.f32.mrb[0].mxu0
      %v6073 = vpop.f32.mrb[0].mxu0
      %v6074 = vadd.f32 0.0, %v6073
      %v6075 = vpop.f32.mrb[0].mxu0
      %6076 = vmatprep.mubr.bf16.mxu0 0
      %6077 = vmatmul.mubr.bf16.gmra.mrb[0].mxu0 %v5911
      %v6078 = vpop.f32.mrb[0].mxu0
      %v6079 = vadd.f32 0.0, %v6078
      %v6080 = vpop.f32.mrb[0].mxu0
      %v6081 = vpop.f32.mrb[0].mxu0
      %v6082 = vadd.f32 0.0, %v6081
      %v6083 = vpop.f32.mrb[0].mxu0
      %6084 = vmatprep.mubr.bf16.mxu0 0
      %6085 = vmatmul.mubr.bf16.gmra.mrb[0].mxu0 %v5914
      %v6086 = vpop.f32.mrb[0].mxu0
      %v6087 = vadd.f32 0.0, %v6086
      %v6088 = vpop.f32.mrb[0].mxu0
      %v6089 = vpop.f32.mrb[0].mxu0
      %v6090 = vadd.f32 0.0, %v6089
      %v6091 = vpop.f32.mrb[0].mxu0
      %6092 = vdwg.mxu0
      %v6093 = vadd.f32 %v5635, %v5951
      %v6094 = vadd.f32 %v5636, %v5954
      %v6095 = vadd.f32 %v5637, %v5959
      %v6096 = vadd.f32 %v5638, %v5962
      %v6097 = vadd.f32 %v5639, %v5967
      %v6098 = vadd.f32 %v5640, %v5970
      %v6099 = vadd.f32 %v5641, %v5975
      %v6100 = vadd.f32 %v5642, %v5978
      %v6101 = vadd.f32 %v5643, %v5983
      %v6102 = vadd.f32 %v5644, %v5986
      %v6103 = vadd.f32 %v5645, %v5991
      %v6104 = vadd.f32 %v5646, %v5994
      %v6105 = vadd.f32 %v5647, %v5999
      %v6106 = vadd.f32 %v5648, %v6002
      %v6107 = vadd.f32 %v5649, %v6007
      %v6108 = vadd.f32 %v5650, %v6010
      %v6109 = vadd.f32 %v5651, %v6015
      %v6110 = vadd.f32 %v5652, %v6018
      %v6111 = vadd.f32 %v5653, %v6023
      %v6112 = vadd.f32 %v5654, %v6026
      %v6113 = vadd.f32 %v5655, %v6031
      %v6114 = vadd.f32 %v5656, %v6034
      %v6115 = vadd.f32 %v5657, %v6039
      %v6116 = vadd.f32 %v5658, %v6042
      %v6117 = vadd.f32 %v5659, %v6047
      %v6118 = vadd.f32 %v5660, %v6050
      %v6119 = vadd.f32 %v5661, %v6055
      %v6120 = vadd.f32 %v5662, %v6058
      %v6121 = vadd.f32 %v5663, %v6063
      %v6122 = vadd.f32 %v5664, %v6066
      %v6123 = vadd.f32 %v5665, %v6071
      %v6124 = vadd.f32 %v5666, %v6074
      %v6125 = vadd.f32 %v5667, %v6079
      %v6126 = vadd.f32 %v5668, %v6082
      %v6127 = vadd.f32 %v5669, %v6087
      %v6128 = vadd.f32 %v5670, %v6090
      %v6129 = vld [vmem:[#allocation2 + $0x8] sm:$0xc]
      %v6130 = vld [vmem:[%s3 + $0x50] sm:$0xf]
      %v6131 = vld [vmem:[%s3 + $0x54] sm:$0xf]
      %v6132 = vld [vmem:[%s3 + $0x58] sm:$0xf]
      %v6133 = vld [vmem:[%s3 + $0x5c] sm:$0xf]
      %v6135 = vunpack.c.l.b16 %v6129
      %v6136 = vpack.c.b16 %v5300, %v6135
      %vm6137 = vcmask 1045504
      %v6138 = vrot.slane %v6136, 2
      %v6139 = vrot.slane %v5337, 2
      %v6140 = vsel %vm6137, %v6138, %v6139
      %v6141 = vrot.slane %v5338, 2
      %v6142 = vsel %vm6137, %v6139, %v6141
      %v6143 = vrot.slane %v5339, 2
      %v6144 = vsel %vm6137, %v6141, %v6143
      %v6145 = vrot.slane %v5340, 2
      %v6146 = vsel %vm6137, %v6143, %v6145
      %v6147 = vrot.slane %v5341, 2
      %v6148 = vsel %vm6137, %v6145, %v6147
      %v6149 = vrot.slane %v5342, 2
      %v6150 = vsel %vm6137, %v6147, %v6149
      %v6151 = vrot.slane %v5343, 2
      %v6152 = vsel %vm6137, %v6149, %v6151
      %v6153 = vrot.slane %v5344, 2
      %v6154 = vsel %vm6137, %v6151, %v6153
      %v6155 = vrot.slane %v5345, 2
      %v6156 = vsel %vm6137, %v6153, %v6155
      %v6157 = vrot.slane %v5346, 2
      %v6158 = vsel %vm6137, %v6155, %v6157
      %v6159 = vrot.slane %v5347, 2
      %v6160 = vsel %vm6137, %v6157, %v6159
      %v6161 = vrot.slane %v5348, 2
      %v6162 = vsel %vm6137, %v6159, %v6161
      %v6163 = vrot.slane %v5349, 2
      %v6164 = vsel %vm6137, %v6161, %v6163
      %v6165 = vrot.slane %v5350, 2
      %v6166 = vsel %vm6137, %v6163, %v6165
      %v6167 = vrot.slane %v5351, 2
      %v6168 = vsel %vm6137, %v6165, %v6167
      %v6169 = vrot.slane %v5352, 2
      %v6170 = vsel %vm6137, %v6167, %v6169
      %v6171 = vrot.slane %v5353, 2
      %v6172 = vsel %vm6137, %v6169, %v6171
      %v6173 = vrot.slane %v5678, 2
      %v6174 = vsel %vm6137, %v6171, %v6173
      %v6179 = vunpack.c.l.b16 %v6130
      %v6180 = vunpack.c.l.b16 %v6131
      %v6181 = vunpack.c.l.b16 %v6132
      %v6182 = vunpack.c.l.b16 %v6133
      %v6183 = vpack.c.b16 %v6180, %v6179
      %v6184 = vpack.c.b16 %v6182, %v6181
      %v6188 = vsel %vm381, %v6140, 0
      %v6191 = vsel %vm381, %v6142, 0
      %v6194 = vsel %vm381, %v6144, 0
      %v6197 = vsel %vm381, %v6146, 0
      %v6200 = vsel %vm381, %v6148, 0
      %v6203 = vsel %vm381, %v6150, 0
      %v6206 = vsel %vm381, %v6152, 0
      %v6209 = vsel %vm381, %v6154, 0
      %v6212 = vsel %vm381, %v6156, 0
      %v6215 = vsel %vm381, %v6158, 0
      %v6218 = vsel %vm381, %v6160, 0
      %v6221 = vsel %vm381, %v6162, 0
      %v6224 = vsel %vm381, %v6164, 0
      %v6227 = vsel %vm381, %v6166, 0
      %v6230 = vsel %vm381, %v6168, 0
      %v6233 = vsel %vm381, %v6170, 0
      %v6236 = vsel %vm381, %v6172, 0
      %v6239 = vsel %vm381, %v6174, 0
      %6241 = vmatprep.subr.bf16.mxu0 0
      %6242 = vmatpush1.bf16.msra.mxu0 %v6183
      %6243 = vmatprep.subr.bf16.mxu0 0
      %6244 = vmatpush1.bf16.msra.mxu0 %v6184
      %6245 = vmatprep.subr.bf16.mxu0 0
      %6246 = vmatpush1.bf16.msra.mxu0 0
      %6247 = vmatprep.subr.bf16.mxu0 0
      %6248 = vmatpush1.bf16.msra.mxu0 0
      %6249 = vmatprep.subr.bf16.mxu0 0
      %6250 = vmatpush1.bf16.msra.mxu0 0
      %6251 = vmatprep.subr.bf16.mxu0 0
      %6252 = vmatpush1.bf16.msra.mxu0 0
      %6253 = vmatprep.subr.bf16.mxu0 0
      %6254 = vmatpush1.bf16.msra.mxu0 0
      %6255 = vmatprep.subr.bf16.mxu0 0
      %6256 = vmatpush1.bf16.msra.mxu0 0
      %6257 = vmatprep.subr.bf16.mxu0 0
      %6258 = vmatpush1.bf16.msra.mxu0 0
      %6259 = vmatprep.subr.bf16.mxu0 0
      %6260 = vmatpush1.bf16.msra.mxu0 0
      %6261 = vmatprep.subr.bf16.mxu0 0
      %6262 = vmatpush1.bf16.msra.mxu0 0
      %6263 = vmatprep.subr.bf16.mxu0 0
      %6264 = vmatpush1.bf16.msra.mxu0 0
      %6265 = vmatprep.subr.bf16.mxu0 0
      %6266 = vmatpush1.bf16.msra.mxu0 0
      %6267 = vmatprep.subr.bf16.mxu0 0
      %6268 = vmatpush1.bf16.msra.mxu0 0
      %6269 = vmatprep.subr.bf16.mxu0 0
      %6270 = vmatpush1.bf16.msra.mxu0 0
      %6271 = vmatprep.subr.bf16.mxu0 0
      %6272 = vmatpush1.bf16.msra.mxu0 0
      %6273 = vmatprep.mubr.bf16.mxu0 0
      %6274 = vmatmul.mubr.bf16.gmra.mrb[0].mxu0 %v6188
      %v6275 = vpop.f32.mrb[0].mxu0
      %v6276 = vadd.f32 0.0, %v6275
      %v6277 = vpop.f32.mrb[0].mxu0
      %v6278 = vpop.f32.mrb[0].mxu0
      %v6279 = vadd.f32 0.0, %v6278
      %v6280 = vpop.f32.mrb[0].mxu0
      %6281 = vmatprep.mubr.bf16.mxu0 0
      %6282 = vmatmul.mubr.bf16.gmra.mrb[0].mxu0 %v6191
      %v6283 = vpop.f32.mrb[0].mxu0
      %v6284 = vadd.f32 0.0, %v6283
      %v6285 = vpop.f32.mrb[0].mxu0
      %v6286 = vpop.f32.mrb[0].mxu0
      %v6287 = vadd.f32 0.0, %v6286
      %v6288 = vpop.f32.mrb[0].mxu0
      %6289 = vmatprep.mubr.bf16.mxu0 0
      %6290 = vmatmul.mubr.bf16.gmra.mrb[0].mxu0 %v6194
      %v6291 = vpop.f32.mrb[0].mxu0
      %v6292 = vadd.f32 0.0, %v6291
      %v6293 = vpop.f32.mrb[0].mxu0
      %v6294 = vpop.f32.mrb[0].mxu0
      %v6295 = vadd.f32 0.0, %v6294
      %v6296 = vpop.f32.mrb[0].mxu0
      %6297 = vmatprep.mubr.bf16.mxu0 0
      %6298 = vmatmul.mubr.bf16.gmra.mrb[0].mxu0 %v6197
      %v6299 = vpop.f32.mrb[0].mxu0
      %v6300 = vadd.f32 0.0, %v6299
      %v6301 = vpop.f32.mrb[0].mxu0
      %v6302 = vpop.f32.mrb[0].mxu0
      %v6303 = vadd.f32 0.0, %v6302
      %v6304 = vpop.f32.mrb[0].mxu0
      %6305 = vmatprep.mubr.bf16.mxu0 0
      %6306 = vmatmul.mubr.bf16.gmra.mrb[0].mxu0 %v6200
      %v6307 = vpop.f32.mrb[0].mxu0
      %v6308 = vadd.f32 0.0, %v6307
      %v6309 = vpop.f32.mrb[0].mxu0
      %v6310 = vpop.f32.mrb[0].mxu0
      %v6311 = vadd.f32 0.0, %v6310
      %v6312 = vpop.f32.mrb[0].mxu0
      %6313 = vmatprep.mubr.bf16.mxu0 0
      %6314 = vmatmul.mubr.bf16.gmra.mrb[0].mxu0 %v6203
      %v6315 = vpop.f32.mrb[0].mxu0
      %v6316 = vadd.f32 0.0, %v6315
      %v6317 = vpop.f32.mrb[0].mxu0
      %v6318 = vpop.f32.mrb[0].mxu0
      %v6319 = vadd.f32 0.0, %v6318
      %v6320 = vpop.f32.mrb[0].mxu0
      %6321 = vmatprep.mubr.bf16.mxu0 0
      %6322 = vmatmul.mubr.bf16.gmra.mrb[0].mxu0 %v6206
      %v6323 = vpop.f32.mrb[0].mxu0
      %v6324 = vadd.f32 0.0, %v6323
      %v6325 = vpop.f32.mrb[0].mxu0
      %v6326 = vpop.f32.mrb[0].mxu0
      %v6327 = vadd.f32 0.0, %v6326
      %v6328 = vpop.f32.mrb[0].mxu0
      %6329 = vmatprep.mubr.bf16.mxu0 0
      %6330 = vmatmul.mubr.bf16.gmra.mrb[0].mxu0 %v6209
      %v6331 = vpop.f32.mrb[0].mxu0
      %v6332 = vadd.f32 0.0, %v6331
      %v6333 = vpop.f32.mrb[0].mxu0
      %v6334 = vpop.f32.mrb[0].mxu0
      %v6335 = vadd.f32 0.0, %v6334
      %v6336 = vpop.f32.mrb[0].mxu0
      %6337 = vmatprep.mubr.bf16.mxu0 0
      %6338 = vmatmul.mubr.bf16.gmra.mrb[0].mxu0 %v6212
      %v6339 = vpop.f32.mrb[0].mxu0
      %v6340 = vadd.f32 0.0, %v6339
      %v6341 = vpop.f32.mrb[0].mxu0
      %v6342 = vpop.f32.mrb[0].mxu0
      %v6343 = vadd.f32 0.0, %v6342
      %v6344 = vpop.f32.mrb[0].mxu0
      %6345 = vmatprep.mubr.bf16.mxu0 0
      %6346 = vmatmul.mubr.bf16.gmra.mrb[0].mxu0 %v6215
      %v6347 = vpop.f32.mrb[0].mxu0
      %v6348 = vadd.f32 0.0, %v6347
      %v6349 = vpop.f32.mrb[0].mxu0
      %v6350 = vpop.f32.mrb[0].mxu0
      %v6351 = vadd.f32 0.0, %v6350
      %v6352 = vpop.f32.mrb[0].mxu0
      %6353 = vmatprep.mubr.bf16.mxu0 0
      %6354 = vmatmul.mubr.bf16.gmra.mrb[0].mxu0 %v6218
      %v6355 = vpop.f32.mrb[0].mxu0
      %v6356 = vadd.f32 0.0, %v6355
      %v6357 = vpop.f32.mrb[0].mxu0
      %v6358 = vpop.f32.mrb[0].mxu0
      %v6359 = vadd.f32 0.0, %v6358
      %v6360 = vpop.f32.mrb[0].mxu0
      %6361 = vmatprep.mubr.bf16.mxu0 0
      %6362 = vmatmul.mubr.bf16.gmra.mrb[0].mxu0 %v6221
      %v6363 = vpop.f32.mrb[0].mxu0
      %v6364 = vadd.f32 0.0, %v6363
      %v6365 = vpop.f32.mrb[0].mxu0
      %v6366 = vpop.f32.mrb[0].mxu0
      %v6367 = vadd.f32 0.0, %v6366
      %v6368 = vpop.f32.mrb[0].mxu0
      %6369 = vmatprep.mubr.bf16.mxu0 0
      %6370 = vmatmul.mubr.bf16.gmra.mrb[0].mxu0 %v6224
      %v6371 = vpop.f32.mrb[0].mxu0
      %v6372 = vadd.f32 0.0, %v6371
      %v6373 = vpop.f32.mrb[0].mxu0
      %v6374 = vpop.f32.mrb[0].mxu0
      %v6375 = vadd.f32 0.0, %v6374
      %v6376 = vpop.f32.mrb[0].mxu0
      %6377 = vmatprep.mubr.bf16.mxu0 0
      %6378 = vmatmul.mubr.bf16.gmra.mrb[0].mxu0 %v6227
      %v6379 = vpop.f32.mrb[0].mxu0
      %v6380 = vadd.f32 0.0, %v6379
      %v6381 = vpop.f32.mrb[0].mxu0
      %v6382 = vpop.f32.mrb[0].mxu0
      %v6383 = vadd.f32 0.0, %v6382
      %v6384 = vpop.f32.mrb[0].mxu0
      %6385 = vmatprep.mubr.bf16.mxu0 0
      %6386 = vmatmul.mubr.bf16.gmra.mrb[0].mxu0 %v6230
      %v6387 = vpop.f32.mrb[0].mxu0
      %v6388 = vadd.f32 0.0, %v6387
      %v6389 = vpop.f32.mrb[0].mxu0
      %v6390 = vpop.f32.mrb[0].mxu0
      %v6391 = vadd.f32 0.0, %v6390
      %v6392 = vpop.f32.mrb[0].mxu0
      %6393 = vmatprep.mubr.bf16.mxu0 0
      %6394 = vmatmul.mubr.bf16.gmra.mrb[0].mxu0 %v6233
      %v6395 = vpop.f32.mrb[0].mxu0
      %v6396 = vadd.f32 0.0, %v6395
      %v6397 = vpop.f32.mrb[0].mxu0
      %v6398 = vpop.f32.mrb[0].mxu0
      %v6399 = vadd.f32 0.0, %v6398
      %v6400 = vpop.f32.mrb[0].mxu0
      %6401 = vmatprep.mubr.bf16.mxu0 0
      %6402 = vmatmul.mubr.bf16.gmra.mrb[0].mxu0 %v6236
      %v6403 = vpop.f32.mrb[0].mxu0
      %v6404 = vadd.f32 0.0, %v6403
      %v6405 = vpop.f32.mrb[0].mxu0
      %v6406 = vpop.f32.mrb[0].mxu0
      %v6407 = vadd.f32 0.0, %v6406
      %v6408 = vpop.f32.mrb[0].mxu0
      %6409 = vmatprep.mubr.bf16.mxu0 0
      %6410 = vmatmul.mubr.bf16.gmra.mrb[0].mxu0 %v6239
      %v6411 = vpop.f32.mrb[0].mxu0
      %v6412 = vadd.f32 0.0, %v6411
      %v6413 = vpop.f32.mrb[0].mxu0
      %v6414 = vpop.f32.mrb[0].mxu0
      %v6415 = vadd.f32 0.0, %v6414
      %v6416 = vpop.f32.mrb[0].mxu0
      %6417 = vdwg.mxu0
      %v6418 = vadd.f32 %v6093, %v6276
      %v6419 = vadd.f32 %v6094, %v6279
      %v6420 = vadd.f32 %v6095, %v6284
      %v6421 = vadd.f32 %v6096, %v6287
      %v6422 = vadd.f32 %v6097, %v6292
      %v6423 = vadd.f32 %v6098, %v6295
      %v6424 = vadd.f32 %v6099, %v6300
      %v6425 = vadd.f32 %v6100, %v6303
      %v6426 = vadd.f32 %v6101, %v6308
      %v6427 = vadd.f32 %v6102, %v6311
      %v6428 = vadd.f32 %v6103, %v6316
      %v6429 = vadd.f32 %v6104, %v6319
      %v6430 = vadd.f32 %v6105, %v6324
      %v6431 = vadd.f32 %v6106, %v6327
      %v6432 = vadd.f32 %v6107, %v6332
      %v6433 = vadd.f32 %v6108, %v6335
      %v6434 = vadd.f32 %v6109, %v6340
      %v6435 = vadd.f32 %v6110, %v6343
      %v6436 = vadd.f32 %v6111, %v6348
      %v6437 = vadd.f32 %v6112, %v6351
      %v6438 = vadd.f32 %v6113, %v6356
      %v6439 = vadd.f32 %v6114, %v6359
      %v6440 = vadd.f32 %v6115, %v6364
      %v6441 = vadd.f32 %v6116, %v6367
      %v6442 = vadd.f32 %v6117, %v6372
      %v6443 = vadd.f32 %v6118, %v6375
      %v6444 = vadd.f32 %v6119, %v6380
      %v6445 = vadd.f32 %v6120, %v6383
      %v6446 = vadd.f32 %v6121, %v6388
      %v6447 = vadd.f32 %v6122, %v6391
      %v6448 = vadd.f32 %v6123, %v6396
      %v6449 = vadd.f32 %v6124, %v6399
      %v6450 = vadd.f32 %v6125, %v6404
      %v6451 = vadd.f32 %v6126, %v6407
      %v6452 = vadd.f32 %v6127, %v6412
      %v6453 = vadd.f32 %v6128, %v6415
      %v6454 = vld [vmem:[#allocation2 + $0x10] sm:$0xc]
      %v6455 = vld [vmem:[#allocation2 + $0x14] sm:$0xf]
      %v6456 = vld [vmem:[#allocation2 + $0x18] sm:$0xf]
      %v6457 = vld [vmem:[#allocation2 + $0x1c] sm:$0xf]
      %v6458 = vld [vmem:[#allocation2 + $0x20] sm:$0xf]
      %v6459 = vld [vmem:[#allocation2 + $0x24] sm:$0xf]
      %v6460 = vld [vmem:[#allocation2 + $0x28] sm:$0xf]
      %v6461 = vld [vmem:[#allocation2 + $0x2c] sm:$0xf]
      %v6462 = vld [vmem:[#allocation2 + $0x30] sm:$0xf]
      %v6463 = vld [vmem:[#allocation2 + $0x34] sm:$0xf]
      %v6464 = vld [vmem:[#allocation2 + $0x38] sm:$0xf]
      %v6465 = vld [vmem:[#allocation2 + $0x3c] sm:$0xf]
      %v6466 = vld [vmem:[#allocation2 + $0x40] sm:$0xf]
      %v6467 = vld [vmem:[#allocation2 + $0x44] sm:$0xf]
      %v6468 = vld [vmem:[#allocation2 + $0x48] sm:$0xf]
      %v6469 = vld [vmem:[#allocation2 + $0x4c] sm:$0xf]
      %v6470 = vld [vmem:[#allocation2 + $0x50] sm:$0xf]
      %v6471 = vld [vmem:[#allocation2 + $0x54] sm:$0xf]
      %v6472 = vld [vmem:[#allocation2 + $0x58] sm:$0xf]
      %v6473 = vld [vmem:[#allocation2 + $0x5c] sm:$0xf]
      %v6474 = vld [vmem:[#allocation2 + $0x60] sm:$0xf]
      %v6475 = vld [vmem:[#allocation2 + $0x64] sm:$0xf]
      %v6476 = vld [vmem:[#allocation2 + $0x68] sm:$0xf]
      %v6477 = vld [vmem:[#allocation2 + $0x6c] sm:$0xf]
      %v6478 = vld [vmem:[#allocation2 + $0x70] sm:$0xf]
      %v6479 = vld [vmem:[#allocation2 + $0x74] sm:$0xf]
      %v6480 = vld [vmem:[#allocation2 + $0x78] sm:$0xf]
      %v6481 = vld [vmem:[#allocation2 + $0x7c] sm:$0xf]
      %v6482 = vld [vmem:[#allocation2 + $0x80] sm:$0xf]
      %v6483 = vld [vmem:[#allocation2 + $0x84] sm:$0xf]
      %v6484 = vld [vmem:[#allocation2 + $0x88] sm:$0xf]
      %v6485 = vld [vmem:[#allocation2 + $0x8c] sm:$0xf]
      %v6486 = vld [vmem:[#allocation2 + $0x90] sm:$0xf]
      %v6487 = vld [vmem:[#allocation2 + $0x94] sm:$0xf]
      %v6488 = vld [vmem:[#allocation2 + $0x98] sm:$0xf]
      %v6489 = vld [vmem:[#allocation2 + $0x9c] sm:$0xf]
      %v6490 = vld [vmem:[#allocation2 + $0xa0] sm:$0x3]
      %v6491 = vld [vmem:[%s3 + $0x60] sm:$0xf]
      %v6492 = vld [vmem:[%s3 + $0x64] sm:$0xf]
      %v6493 = vld [vmem:[%s3 + $0x68] sm:$0xf]
      %v6494 = vld [vmem:[%s3 + $0x6c] sm:$0xf]
      %v6532 = vunpack.c.l.b16 %v6454
      %v6533 = vunpack.c.l.b16 %v6455
      %v6534 = vunpack.c.l.b16 %v6456
      %v6535 = vunpack.c.l.b16 %v6457
      %v6536 = vunpack.c.l.b16 %v6458
      %v6537 = vunpack.c.l.b16 %v6459
      %v6538 = vunpack.c.l.b16 %v6460
      %v6539 = vunpack.c.l.b16 %v6461
      %v6540 = vunpack.c.l.b16 %v6462
      %v6541 = vunpack.c.l.b16 %v6463
      %v6542 = vunpack.c.l.b16 %v6464
      %v6543 = vunpack.c.l.b16 %v6465
      %v6544 = vunpack.c.l.b16 %v6466
      %v6545 = vunpack.c.l.b16 %v6467
      %v6546 = vunpack.c.l.b16 %v6468
      %v6547 = vunpack.c.l.b16 %v6469
      %v6548 = vunpack.c.l.b16 %v6470
      %v6549 = vunpack.c.l.b16 %v6471
      %v6550 = vunpack.c.l.b16 %v6472
      %v6551 = vunpack.c.l.b16 %v6473
      %v6552 = vunpack.c.l.b16 %v6474
      %v6553 = vunpack.c.l.b16 %v6475
      %v6554 = vunpack.c.l.b16 %v6476
      %v6555 = vunpack.c.l.b16 %v6477
      %v6556 = vunpack.c.l.b16 %v6478
      %v6557 = vunpack.c.l.b16 %v6479
      %v6558 = vunpack.c.l.b16 %v6480
      %v6559 = vunpack.c.l.b16 %v6481
      %v6560 = vunpack.c.l.b16 %v6482
      %v6561 = vunpack.c.l.b16 %v6483
      %v6562 = vunpack.c.l.b16 %v6484
      %v6563 = vunpack.c.l.b16 %v6485
      %v6564 = vunpack.c.l.b16 %v6486
      %v6565 = vunpack.c.l.b16 %v6487
      %v6566 = vunpack.c.l.b16 %v6488
      %v6567 = vunpack.c.l.b16 %v6489
      %v6568 = vunpack.c.l.b16 %v6490
      %v6569 = vpack.c.b16 %v6533, %v6532
      %v6570 = vpack.c.b16 %v6535, %v6534
      %v6571 = vpack.c.b16 %v6537, %v6536
      %v6572 = vpack.c.b16 %v6539, %v6538
      %v6573 = vpack.c.b16 %v6541, %v6540
      %v6574 = vpack.c.b16 %v6543, %v6542
      %v6575 = vpack.c.b16 %v6545, %v6544
      %v6576 = vpack.c.b16 %v6547, %v6546
      %v6577 = vpack.c.b16 %v6549, %v6548
      %v6578 = vpack.c.b16 %v6551, %v6550
      %v6579 = vpack.c.b16 %v6553, %v6552
      %v6580 = vpack.c.b16 %v6555, %v6554
      %v6581 = vpack.c.b16 %v6557, %v6556
      %v6582 = vpack.c.b16 %v6559, %v6558
      %v6583 = vpack.c.b16 %v6561, %v6560
      %v6584 = vpack.c.b16 %v6563, %v6562
      %v6585 = vpack.c.b16 %v6565, %v6564
      %v6586 = vpack.c.b16 %v6567, %v6566
      %v6587 = vpack.c.b16 %v6568, %v6568
      %v6588 = vrot.slane %v6569, 2
      %v6589 = vrot.slane %v6570, 2
      %v6590 = vsel %vm6137, %v6588, %v6589
      %v6591 = vrot.slane %v6571, 2
      %v6592 = vsel %vm6137, %v6589, %v6591
      %v6593 = vrot.slane %v6572, 2
      %v6594 = vsel %vm6137, %v6591, %v6593
      %v6595 = vrot.slane %v6573, 2
      %v6596 = vsel %vm6137, %v6593, %v6595
      %v6597 = vrot.slane %v6574, 2
      %v6598 = vsel %vm6137, %v6595, %v6597
      %v6599 = vrot.slane %v6575, 2
      %v6600 = vsel %vm6137, %v6597, %v6599
      %v6601 = vrot.slane %v6576, 2
      %v6602 = vsel %vm6137, %v6599, %v6601
      %v6603 = vrot.slane %v6577, 2
      %v6604 = vsel %vm6137, %v6601, %v6603
      %v6605 = vrot.slane %v6578, 2
      %v6606 = vsel %vm6137, %v6603, %v6605
      %v6607 = vrot.slane %v6579, 2
      %v6608 = vsel %vm6137, %v6605, %v6607
      %v6609 = vrot.slane %v6580, 2
      %v6610 = vsel %vm6137, %v6607, %v6609
      %v6611 = vrot.slane %v6581, 2
      %v6612 = vsel %vm6137, %v6609, %v6611
      %v6613 = vrot.slane %v6582, 2
      %v6614 = vsel %vm6137, %v6611, %v6613
      %v6615 = vrot.slane %v6583, 2
      %v6616 = vsel %vm6137, %v6613, %v6615
      %v6617 = vrot.slane %v6584, 2
      %v6618 = vsel %vm6137, %v6615, %v6617
      %v6619 = vrot.slane %v6585, 2
      %v6620 = vsel %vm6137, %v6617, %v6619
      %v6621 = vrot.slane %v6586, 2
      %v6622 = vsel %vm6137, %v6619, %v6621
      %v6623 = vrot.slane %v6587, 2
      %v6624 = vsel %vm6137, %v6621, %v6623
      %v6629 = vunpack.c.l.b16 %v6491
      %v6630 = vunpack.c.l.b16 %v6492
      %v6631 = vunpack.c.l.b16 %v6493
      %v6632 = vunpack.c.l.b16 %v6494
      %v6633 = vpack.c.b16 %v6630, %v6629
      %v6634 = vpack.c.b16 %v6632, %v6631
      %v6638 = vsel %vm381, %v6590, 0
      %v6641 = vsel %vm381, %v6592, 0
      %v6644 = vsel %vm381, %v6594, 0
      %v6647 = vsel %vm381, %v6596, 0
      %v6650 = vsel %vm381, %v6598, 0
      %v6653 = vsel %vm381, %v6600, 0
      %v6656 = vsel %vm381, %v6602, 0
      %v6659 = vsel %vm381, %v6604, 0
      %v6662 = vsel %vm381, %v6606, 0
      %v6665 = vsel %vm381, %v6608, 0
      %v6668 = vsel %vm381, %v6610, 0
      %v6671 = vsel %vm381, %v6612, 0
      %v6674 = vsel %vm381, %v6614, 0
      %v6677 = vsel %vm381, %v6616, 0
      %v6680 = vsel %vm381, %v6618, 0
      %v6683 = vsel %vm381, %v6620, 0
      %v6686 = vsel %vm381, %v6622, 0
      %v6689 = vsel %vm381, %v6624, 0
      %6691 = vmatprep.subr.bf16.mxu0 0
      %6692 = vmatpush1.bf16.msra.mxu0 %v6633
      %6693 = vmatprep.subr.bf16.mxu0 0
      %6694 = vmatpush1.bf16.msra.mxu0 %v6634
      %6695 = vmatprep.subr.bf16.mxu0 0
      %6696 = vmatpush1.bf16.msra.mxu0 0
      %6697 = vmatprep.subr.bf16.mxu0 0
      %6698 = vmatpush1.bf16.msra.mxu0 0
      %6699 = vmatprep.subr.bf16.mxu0 0
      %6700 = vmatpush1.bf16.msra.mxu0 0
      %6701 = vmatprep.subr.bf16.mxu0 0
      %6702 = vmatpush1.bf16.msra.mxu0 0
      %6703 = vmatprep.subr.bf16.mxu0 0
      %6704 = vmatpush1.bf16.msra.mxu0 0
      %6705 = vmatprep.subr.bf16.mxu0 0
      %6706 = vmatpush1.bf16.msra.mxu0 0
      %6707 = vmatprep.subr.bf16.mxu0 0
      %6708 = vmatpush1.bf16.msra.mxu0 0
      %6709 = vmatprep.subr.bf16.mxu0 0
      %6710 = vmatpush1.bf16.msra.mxu0 0
      %6711 = vmatprep.subr.bf16.mxu0 0
      %6712 = vmatpush1.bf16.msra.mxu0 0
      %6713 = vmatprep.subr.bf16.mxu0 0
      %6714 = vmatpush1.bf16.msra.mxu0 0
      %6715 = vmatprep.subr.bf16.mxu0 0
      %6716 = vmatpush1.bf16.msra.mxu0 0
      %6717 = vmatprep.subr.bf16.mxu0 0
      %6718 = vmatpush1.bf16.msra.mxu0 0
      %6719 = vmatprep.subr.bf16.mxu0 0
      %6720 = vmatpush1.bf16.msra.mxu0 0
      %6721 = vmatprep.subr.bf16.mxu0 0
      %6722 = vmatpush1.bf16.msra.mxu0 0
      %6723 = vmatprep.mubr.bf16.mxu0 0
      %6724 = vmatmul.mubr.bf16.gmra.mrb[0].mxu0 %v6638
      %v6725 = vpop.f32.mrb[0].mxu0
      %v6726 = vadd.f32 0.0, %v6725
      %v6727 = vpop.f32.mrb[0].mxu0
      %v6728 = vpop.f32.mrb[0].mxu0
      %v6729 = vadd.f32 0.0, %v6728
      %v6730 = vpop.f32.mrb[0].mxu0
      %6731 = vmatprep.mubr.bf16.mxu0 0
      %6732 = vmatmul.mubr.bf16.gmra.mrb[0].mxu0 %v6641
      %v6733 = vpop.f32.mrb[0].mxu0
      %v6734 = vadd.f32 0.0, %v6733
      %v6735 = vpop.f32.mrb[0].mxu0
      %v6736 = vpop.f32.mrb[0].mxu0
      %v6737 = vadd.f32 0.0, %v6736
      %v6738 = vpop.f32.mrb[0].mxu0
      %6739 = vmatprep.mubr.bf16.mxu0 0
      %6740 = vmatmul.mubr.bf16.gmra.mrb[0].mxu0 %v6644
      %v6741 = vpop.f32.mrb[0].mxu0
      %v6742 = vadd.f32 0.0, %v6741
      %v6743 = vpop.f32.mrb[0].mxu0
      %v6744 = vpop.f32.mrb[0].mxu0
      %v6745 = vadd.f32 0.0, %v6744
      %v6746 = vpop.f32.mrb[0].mxu0
      %6747 = vmatprep.mubr.bf16.mxu0 0
      %6748 = vmatmul.mubr.bf16.gmra.mrb[0].mxu0 %v6647
      %v6749 = vpop.f32.mrb[0].mxu0
      %v6750 = vadd.f32 0.0, %v6749
      %v6751 = vpop.f32.mrb[0].mxu0
      %v6752 = vpop.f32.mrb[0].mxu0
      %v6753 = vadd.f32 0.0, %v6752
      %v6754 = vpop.f32.mrb[0].mxu0
      %6755 = vmatprep.mubr.bf16.mxu0 0
      %6756 = vmatmul.mubr.bf16.gmra.mrb[0].mxu0 %v6650
      %v6757 = vpop.f32.mrb[0].mxu0
      %v6758 = vadd.f32 0.0, %v6757
      %v6759 = vpop.f32.mrb[0].mxu0
      %v6760 = vpop.f32.mrb[0].mxu0
      %v6761 = vadd.f32 0.0, %v6760
      %v6762 = vpop.f32.mrb[0].mxu0
      %6763 = vmatprep.mubr.bf16.mxu0 0
      %6764 = vmatmul.mubr.bf16.gmra.mrb[0].mxu0 %v6653
      %v6765 = vpop.f32.mrb[0].mxu0
      %v6766 = vadd.f32 0.0, %v6765
      %v6767 = vpop.f32.mrb[0].mxu0
      %v6768 = vpop.f32.mrb[0].mxu0
      %v6769 = vadd.f32 0.0, %v6768
      %v6770 = vpop.f32.mrb[0].mxu0
      %6771 = vmatprep.mubr.bf16.mxu0 0
      %6772 = vmatmul.mubr.bf16.gmra.mrb[0].mxu0 %v6656
      %v6773 = vpop.f32.mrb[0].mxu0
      %v6774 = vadd.f32 0.0, %v6773
      %v6775 = vpop.f32.mrb[0].mxu0
      %v6776 = vpop.f32.mrb[0].mxu0
      %v6777 = vadd.f32 0.0, %v6776
      %v6778 = vpop.f32.mrb[0].mxu0
      %6779 = vmatprep.mubr.bf16.mxu0 0
      %6780 = vmatmul.mubr.bf16.gmra.mrb[0].mxu0 %v6659
      %v6781 = vpop.f32.mrb[0].mxu0
      %v6782 = vadd.f32 0.0, %v6781
      %v6783 = vpop.f32.mrb[0].mxu0
      %v6784 = vpop.f32.mrb[0].mxu0
      %v6785 = vadd.f32 0.0, %v6784
      %v6786 = vpop.f32.mrb[0].mxu0
      %6787 = vmatprep.mubr.bf16.mxu0 0
      %6788 = vmatmul.mubr.bf16.gmra.mrb[0].mxu0 %v6662
      %v6789 = vpop.f32.mrb[0].mxu0
      %v6790 = vadd.f32 0.0, %v6789
      %v6791 = vpop.f32.mrb[0].mxu0
      %v6792 = vpop.f32.mrb[0].mxu0
      %v6793 = vadd.f32 0.0, %v6792
      %v6794 = vpop.f32.mrb[0].mxu0
      %6795 = vmatprep.mubr.bf16.mxu0 0
      %6796 = vmatmul.mubr.bf16.gmra.mrb[0].mxu0 %v6665
      %v6797 = vpop.f32.mrb[0].mxu0
      %v6798 = vadd.f32 0.0, %v6797
      %v6799 = vpop.f32.mrb[0].mxu0
      %v6800 = vpop.f32.mrb[0].mxu0
      %v6801 = vadd.f32 0.0, %v6800
      %v6802 = vpop.f32.mrb[0].mxu0
      %6803 = vmatprep.mubr.bf16.mxu0 0
      %6804 = vmatmul.mubr.bf16.gmra.mrb[0].mxu0 %v6668
      %v6805 = vpop.f32.mrb[0].mxu0
      %v6806 = vadd.f32 0.0, %v6805
      %v6807 = vpop.f32.mrb[0].mxu0
      %v6808 = vpop.f32.mrb[0].mxu0
      %v6809 = vadd.f32 0.0, %v6808
      %v6810 = vpop.f32.mrb[0].mxu0
      %6811 = vmatprep.mubr.bf16.mxu0 0
      %6812 = vmatmul.mubr.bf16.gmra.mrb[0].mxu0 %v6671
      %v6813 = vpop.f32.mrb[0].mxu0
      %v6814 = vadd.f32 0.0, %v6813
      %v6815 = vpop.f32.mrb[0].mxu0
      %v6816 = vpop.f32.mrb[0].mxu0
      %v6817 = vadd.f32 0.0, %v6816
      %v6818 = vpop.f32.mrb[0].mxu0
      %6819 = vmatprep.mubr.bf16.mxu0 0
      %6820 = vmatmul.mubr.bf16.gmra.mrb[0].mxu0 %v6674
      %v6821 = vpop.f32.mrb[0].mxu0
      %v6822 = vadd.f32 0.0, %v6821
      %v6823 = vpop.f32.mrb[0].mxu0
      %v6824 = vpop.f32.mrb[0].mxu0
      %v6825 = vadd.f32 0.0, %v6824
      %v6826 = vpop.f32.mrb[0].mxu0
      %6827 = vmatprep.mubr.bf16.mxu0 0
      %6828 = vmatmul.mubr.bf16.gmra.mrb[0].mxu0 %v6677
      %v6829 = vpop.f32.mrb[0].mxu0
      %v6830 = vadd.f32 0.0, %v6829
      %v6831 = vpop.f32.mrb[0].mxu0
      %v6832 = vpop.f32.mrb[0].mxu0
      %v6833 = vadd.f32 0.0, %v6832
      %v6834 = vpop.f32.mrb[0].mxu0
      %6835 = vmatprep.mubr.bf16.mxu0 0
      %6836 = vmatmul.mubr.bf16.gmra.mrb[0].mxu0 %v6680
      %v6837 = vpop.f32.mrb[0].mxu0
      %v6838 = vadd.f32 0.0, %v6837
      %v6839 = vpop.f32.mrb[0].mxu0
      %v6840 = vpop.f32.mrb[0].mxu0
      %v6841 = vadd.f32 0.0, %v6840
      %v6842 = vpop.f32.mrb[0].mxu0
      %6843 = vmatprep.mubr.bf16.mxu0 0
      %6844 = vmatmul.mubr.bf16.gmra.mrb[0].mxu0 %v6683
      %v6845 = vpop.f32.mrb[0].mxu0
      %v6846 = vadd.f32 0.0, %v6845
      %v6847 = vpop.f32.mrb[0].mxu0
      %v6848 = vpop.f32.mrb[0].mxu0
      %v6849 = vadd.f32 0.0, %v6848
      %v6850 = vpop.f32.mrb[0].mxu0
      %6851 = vmatprep.mubr.bf16.mxu0 0
      %6852 = vmatmul.mubr.bf16.gmra.mrb[0].mxu0 %v6686
      %v6853 = vpop.f32.mrb[0].mxu0
      %v6854 = vadd.f32 0.0, %v6853
      %v6855 = vpop.f32.mrb[0].mxu0
      %v6856 = vpop.f32.mrb[0].mxu0
      %v6857 = vadd.f32 0.0, %v6856
      %v6858 = vpop.f32.mrb[0].mxu0
      %6859 = vmatprep.mubr.bf16.mxu0 0
      %6860 = vmatmul.mubr.bf16.gmra.mrb[0].mxu0 %v6689
      %v6861 = vpop.f32.mrb[0].mxu0
      %v6862 = vadd.f32 0.0, %v6861
      %v6863 = vpop.f32.mrb[0].mxu0
      %v6864 = vpop.f32.mrb[0].mxu0
      %v6865 = vadd.f32 0.0, %v6864
      %v6866 = vpop.f32.mrb[0].mxu0
      %6867 = vdwg.mxu0
      %v6868 = vadd.f32 %v6418, %v6726
      %v6869 = vadd.f32 %v6419, %v6729
      %v6870 = vadd.f32 %v6420, %v6734
      %v6871 = vadd.f32 %v6421, %v6737
      %v6872 = vadd.f32 %v6422, %v6742
      %v6873 = vadd.f32 %v6423, %v6745
      %v6874 = vadd.f32 %v6424, %v6750
      %v6875 = vadd.f32 %v6425, %v6753
      %v6876 = vadd.f32 %v6426, %v6758
      %v6877 = vadd.f32 %v6427, %v6761
      %v6878 = vadd.f32 %v6428, %v6766
      %v6879 = vadd.f32 %v6429, %v6769
      %v6880 = vadd.f32 %v6430, %v6774
      %v6881 = vadd.f32 %v6431, %v6777
      %v6882 = vadd.f32 %v6432, %v6782
      %v6883 = vadd.f32 %v6433, %v6785
      %v6884 = vadd.f32 %v6434, %v6790
      %v6885 = vadd.f32 %v6435, %v6793
      %v6886 = vadd.f32 %v6436, %v6798
      %v6887 = vadd.f32 %v6437, %v6801
      %v6888 = vadd.f32 %v6438, %v6806
      %v6889 = vadd.f32 %v6439, %v6809
      %v6890 = vadd.f32 %v6440, %v6814
      %v6891 = vadd.f32 %v6441, %v6817
      %v6892 = vadd.f32 %v6442, %v6822
      %v6893 = vadd.f32 %v6443, %v6825
      %v6894 = vadd.f32 %v6444, %v6830
      %v6895 = vadd.f32 %v6445, %v6833
      %v6896 = vadd.f32 %v6446, %v6838
      %v6897 = vadd.f32 %v6447, %v6841
      %v6898 = vadd.f32 %v6448, %v6846
      %v6899 = vadd.f32 %v6449, %v6849
      %v6900 = vadd.f32 %v6450, %v6854
      %v6901 = vadd.f32 %v6451, %v6857
      %v6902 = vadd.f32 %v6452, %v6862
      %v6903 = vadd.f32 %v6453, %v6865
      %v6904 = vld [vmem:[#allocation2 + $0xa0] sm:$0x7]
      %v6905 = vld [vmem:[%s3 + $0x70] sm:$0xf]
      %v6906 = vld [vmem:[%s3 + $0x74] sm:$0xf]
      %v6907 = vld [vmem:[%s3 + $0x78] sm:$0xf]
      %v6908 = vld [vmem:[%s3 + $0x7c] sm:$0xf]
      %v6910 = vunpack.c.l.b16 %v6904
      %v6911 = vpack.c.b16 %v6910, %v6910
      %vm6912 = vsmask.f32 5376
      %v6914 = vshrl.u32 %v6569, 16
      %v6916 = vrot.slane %v6914, 2
      %v6917 = vshll.u32 %v6569, 16
      %v6919 = vrot.slane %v6917, 3
      %v6920 = vor.u32 %v6916, %v6919
      %v6922 = vshrl.u32 %v6570, 16
      %v6924 = vrot.slane %v6922, 2
      %v6925 = vshll.u32 %v6570, 16
      %v6927 = vrot.slane %v6925, 3
      %v6928 = vor.u32 %v6924, %v6927
      %v6929 = vsel %vm6912, %v6920, %v6928
      %v6931 = vshrl.u32 %v6571, 16
      %v6933 = vrot.slane %v6931, 2
      %v6934 = vshll.u32 %v6571, 16
      %v6936 = vrot.slane %v6934, 3
      %v6937 = vor.u32 %v6933, %v6936
      %v6938 = vsel %vm6912, %v6928, %v6937
      %v6940 = vshrl.u32 %v6572, 16
      %v6942 = vrot.slane %v6940, 2
      %v6943 = vshll.u32 %v6572, 16
      %v6945 = vrot.slane %v6943, 3
      %v6946 = vor.u32 %v6942, %v6945
      %v6947 = vsel %vm6912, %v6937, %v6946
      %v6949 = vshrl.u32 %v6573, 16
      %v6951 = vrot.slane %v6949, 2
      %v6952 = vshll.u32 %v6573, 16
      %v6954 = vrot.slane %v6952, 3
      %v6955 = vor.u32 %v6951, %v6954
      %v6956 = vsel %vm6912, %v6946, %v6955
      %v6958 = vshrl.u32 %v6574, 16
      %v6960 = vrot.slane %v6958, 2
      %v6961 = vshll.u32 %v6574, 16
      %v6963 = vrot.slane %v6961, 3
      %v6964 = vor.u32 %v6960, %v6963
      %v6965 = vsel %vm6912, %v6955, %v6964
      %v6967 = vshrl.u32 %v6575, 16
      %v6969 = vrot.slane %v6967, 2
      %v6970 = vshll.u32 %v6575, 16
      %v6972 = vrot.slane %v6970, 3
      %v6973 = vor.u32 %v6969, %v6972
      %v6974 = vsel %vm6912, %v6964, %v6973
      %v6976 = vshrl.u32 %v6576, 16
      %v6978 = vrot.slane %v6976, 2
      %v6979 = vshll.u32 %v6576, 16
      %v6981 = vrot.slane %v6979, 3
      %v6982 = vor.u32 %v6978, %v6981
      %v6983 = vsel %vm6912, %v6973, %v6982
      %v6985 = vshrl.u32 %v6577, 16
      %v6987 = vrot.slane %v6985, 2
      %v6988 = vshll.u32 %v6577, 16
      %v6990 = vrot.slane %v6988, 3
      %v6991 = vor.u32 %v6987, %v6990
      %v6992 = vsel %vm6912, %v6982, %v6991
      %v6994 = vshrl.u32 %v6578, 16
      %v6996 = vrot.slane %v6994, 2
      %v6997 = vshll.u32 %v6578, 16
      %v6999 = vrot.slane %v6997, 3
      %v7000 = vor.u32 %v6996, %v6999
      %v7001 = vsel %vm6912, %v6991, %v7000
      %v7003 = vshrl.u32 %v6579, 16
      %v7005 = vrot.slane %v7003, 2
      %v7006 = vshll.u32 %v6579, 16
      %v7008 = vrot.slane %v7006, 3
      %v7009 = vor.u32 %v7005, %v7008
      %v7010 = vsel %vm6912, %v7000, %v7009
      %v7012 = vshrl.u32 %v6580, 16
      %v7014 = vrot.slane %v7012, 2
      %v7015 = vshll.u32 %v6580, 16
      %v7017 = vrot.slane %v7015, 3
      %v7018 = vor.u32 %v7014, %v7017
      %v7019 = vsel %vm6912, %v7009, %v7018
      %v7021 = vshrl.u32 %v6581, 16
      %v7023 = vrot.slane %v7021, 2
      %v7024 = vshll.u32 %v6581, 16
      %v7026 = vrot.slane %v7024, 3
      %v7027 = vor.u32 %v7023, %v7026
      %v7028 = vsel %vm6912, %v7018, %v7027
      %v7030 = vshrl.u32 %v6582, 16
      %v7032 = vrot.slane %v7030, 2
      %v7033 = vshll.u32 %v6582, 16
      %v7035 = vrot.slane %v7033, 3
      %v7036 = vor.u32 %v7032, %v7035
      %v7037 = vsel %vm6912, %v7027, %v7036
      %v7039 = vshrl.u32 %v6583, 16
      %v7041 = vrot.slane %v7039, 2
      %v7042 = vshll.u32 %v6583, 16
      %v7044 = vrot.slane %v7042, 3
      %v7045 = vor.u32 %v7041, %v7044
      %v7046 = vsel %vm6912, %v7036, %v7045
      %v7048 = vshrl.u32 %v6584, 16
      %v7050 = vrot.slane %v7048, 2
      %v7051 = vshll.u32 %v6584, 16
      %v7053 = vrot.slane %v7051, 3
      %v7054 = vor.u32 %v7050, %v7053
      %v7055 = vsel %vm6912, %v7045, %v7054
      %v7057 = vshrl.u32 %v6585, 16
      %v7059 = vrot.slane %v7057, 2
      %v7060 = vshll.u32 %v6585, 16
      %v7062 = vrot.slane %v7060, 3
      %v7063 = vor.u32 %v7059, %v7062
      %v7064 = vsel %vm6912, %v7054, %v7063
      %v7066 = vshrl.u32 %v6586, 16
      %v7068 = vrot.slane %v7066, 2
      %v7069 = vshll.u32 %v6586, 16
      %v7071 = vrot.slane %v7069, 3
      %v7072 = vor.u32 %v7068, %v7071
      %v7073 = vsel %vm6912, %v7063, %v7072
      %v7075 = vshrl.u32 %v6911, 16
      %v7077 = vrot.slane %v7075, 2
      %v7078 = vshll.u32 %v6911, 16
      %v7080 = vrot.slane %v7078, 3
      %v7081 = vor.u32 %v7077, %v7080
      %v7082 = vsel %vm6912, %v7072, %v7081
      %v7087 = vunpack.c.l.b16 %v6905
      %v7088 = vunpack.c.l.b16 %v6906
      %v7089 = vunpack.c.l.b16 %v6907
      %v7090 = vunpack.c.l.b16 %v6908
      %v7091 = vpack.c.b16 %v7088, %v7087
      %v7092 = vpack.c.b16 %v7090, %v7089
      %v7096 = vsel %vm381, %v6929, 0
      %v7099 = vsel %vm381, %v6938, 0
      %v7102 = vsel %vm381, %v6947, 0
      %v7105 = vsel %vm381, %v6956, 0
      %v7108 = vsel %vm381, %v6965, 0
      %v7111 = vsel %vm381, %v6974, 0
      %v7114 = vsel %vm381, %v6983, 0
      %v7117 = vsel %vm381, %v6992, 0
      %v7120 = vsel %vm381, %v7001, 0
      %v7123 = vsel %vm381, %v7010, 0
      %v7126 = vsel %vm381, %v7019, 0
      %v7129 = vsel %vm381, %v7028, 0
      %v7132 = vsel %vm381, %v7037, 0
      %v7135 = vsel %vm381, %v7046, 0
      %v7138 = vsel %vm381, %v7055, 0
      %v7141 = vsel %vm381, %v7064, 0
      %v7144 = vsel %vm381, %v7073, 0
      %v7147 = vsel %vm381, %v7082, 0
      %7149 = vmatprep.subr.bf16.mxu0 0
      %7150 = vmatpush1.bf16.msra.mxu0 %v7091
      %7151 = vmatprep.subr.bf16.mxu0 0
      %7152 = vmatpush1.bf16.msra.mxu0 %v7092
      %7153 = vmatprep.subr.bf16.mxu0 0
      %7154 = vmatpush1.bf16.msra.mxu0 0
      %7155 = vmatprep.subr.bf16.mxu0 0
      %7156 = vmatpush1.bf16.msra.mxu0 0
      %7157 = vmatprep.subr.bf16.mxu0 0
      %7158 = vmatpush1.bf16.msra.mxu0 0
      %7159 = vmatprep.subr.bf16.mxu0 0
      %7160 = vmatpush1.bf16.msra.mxu0 0
      %7161 = vmatprep.subr.bf16.mxu0 0
      %7162 = vmatpush1.bf16.msra.mxu0 0
      %7163 = vmatprep.subr.bf16.mxu0 0
      %7164 = vmatpush1.bf16.msra.mxu0 0
      %7165 = vmatprep.subr.bf16.mxu0 0
      %7166 = vmatpush1.bf16.msra.mxu0 0
      %7167 = vmatprep.subr.bf16.mxu0 0
      %7168 = vmatpush1.bf16.msra.mxu0 0
      %7169 = vmatprep.subr.bf16.mxu0 0
      %7170 = vmatpush1.bf16.msra.mxu0 0
      %7171 = vmatprep.subr.bf16.mxu0 0
      %7172 = vmatpush1.bf16.msra.mxu0 0
      %7173 = vmatprep.subr.bf16.mxu0 0
      %7174 = vmatpush1.bf16.msra.mxu0 0
      %7175 = vmatprep.subr.bf16.mxu0 0
      %7176 = vmatpush1.bf16.msra.mxu0 0
      %7177 = vmatprep.subr.bf16.mxu0 0
      %7178 = vmatpush1.bf16.msra.mxu0 0
      %7179 = vmatprep.subr.bf16.mxu0 0
      %7180 = vmatpush1.bf16.msra.mxu0 0
      %7181 = vmatprep.mubr.bf16.mxu0 0
      %7182 = vmatmul.mubr.bf16.gmra.mrb[0].mxu0 %v7096
      %v7183 = vpop.f32.mrb[0].mxu0
      %v7184 = vadd.f32 0.0, %v7183
      %v7185 = vpop.f32.mrb[0].mxu0
      %v7186 = vpop.f32.mrb[0].mxu0
      %v7187 = vadd.f32 0.0, %v7186
      %v7188 = vpop.f32.mrb[0].mxu0
      %7189 = vmatprep.mubr.bf16.mxu0 0
      %7190 = vmatmul.mubr.bf16.gmra.mrb[0].mxu0 %v7099
      %v7191 = vpop.f32.mrb[0].mxu0
      %v7192 = vadd.f32 0.0, %v7191
      %v7193 = vpop.f32.mrb[0].mxu0
      %v7194 = vpop.f32.mrb[0].mxu0
      %v7195 = vadd.f32 0.0, %v7194
      %v7196 = vpop.f32.mrb[0].mxu0
      %7197 = vmatprep.mubr.bf16.mxu0 0
      %7198 = vmatmul.mubr.bf16.gmra.mrb[0].mxu0 %v7102
      %v7199 = vpop.f32.mrb[0].mxu0
      %v7200 = vadd.f32 0.0, %v7199
      %v7201 = vpop.f32.mrb[0].mxu0
      %v7202 = vpop.f32.mrb[0].mxu0
      %v7203 = vadd.f32 0.0, %v7202
      %v7204 = vpop.f32.mrb[0].mxu0
      %7205 = vmatprep.mubr.bf16.mxu0 0
      %7206 = vmatmul.mubr.bf16.gmra.mrb[0].mxu0 %v7105
      %v7207 = vpop.f32.mrb[0].mxu0
      %v7208 = vadd.f32 0.0, %v7207
      %v7209 = vpop.f32.mrb[0].mxu0
      %v7210 = vpop.f32.mrb[0].mxu0
      %v7211 = vadd.f32 0.0, %v7210
      %v7212 = vpop.f32.mrb[0].mxu0
      %7213 = vmatprep.mubr.bf16.mxu0 0
      %7214 = vmatmul.mubr.bf16.gmra.mrb[0].mxu0 %v7108
      %v7215 = vpop.f32.mrb[0].mxu0
      %v7216 = vadd.f32 0.0, %v7215
      %v7217 = vpop.f32.mrb[0].mxu0
      %v7218 = vpop.f32.mrb[0].mxu0
      %v7219 = vadd.f32 0.0, %v7218
      %v7220 = vpop.f32.mrb[0].mxu0
      %7221 = vmatprep.mubr.bf16.mxu0 0
      %7222 = vmatmul.mubr.bf16.gmra.mrb[0].mxu0 %v7111
      %v7223 = vpop.f32.mrb[0].mxu0
      %v7224 = vadd.f32 0.0, %v7223
      %v7225 = vpop.f32.mrb[0].mxu0
      %v7226 = vpop.f32.mrb[0].mxu0
      %v7227 = vadd.f32 0.0, %v7226
      %v7228 = vpop.f32.mrb[0].mxu0
      %7229 = vmatprep.mubr.bf16.mxu0 0
      %7230 = vmatmul.mubr.bf16.gmra.mrb[0].mxu0 %v7114
      %v7231 = vpop.f32.mrb[0].mxu0
      %v7232 = vadd.f32 0.0, %v7231
      %v7233 = vpop.f32.mrb[0].mxu0
      %v7234 = vpop.f32.mrb[0].mxu0
      %v7235 = vadd.f32 0.0, %v7234
      %v7236 = vpop.f32.mrb[0].mxu0
      %7237 = vmatprep.mubr.bf16.mxu0 0
      %7238 = vmatmul.mubr.bf16.gmra.mrb[0].mxu0 %v7117
      %v7239 = vpop.f32.mrb[0].mxu0
      %v7240 = vadd.f32 0.0, %v7239
      %v7241 = vpop.f32.mrb[0].mxu0
      %v7242 = vpop.f32.mrb[0].mxu0
      %v7243 = vadd.f32 0.0, %v7242
      %v7244 = vpop.f32.mrb[0].mxu0
      %7245 = vmatprep.mubr.bf16.mxu0 0
      %7246 = vmatmul.mubr.bf16.gmra.mrb[0].mxu0 %v7120
      %v7247 = vpop.f32.mrb[0].mxu0
      %v7248 = vadd.f32 0.0, %v7247
      %v7249 = vpop.f32.mrb[0].mxu0
      %v7250 = vpop.f32.mrb[0].mxu0
      %v7251 = vadd.f32 0.0, %v7250
      %v7252 = vpop.f32.mrb[0].mxu0
      %7253 = vmatprep.mubr.bf16.mxu0 0
      %7254 = vmatmul.mubr.bf16.gmra.mrb[0].mxu0 %v7123
      %v7255 = vpop.f32.mrb[0].mxu0
      %v7256 = vadd.f32 0.0, %v7255
      %v7257 = vpop.f32.mrb[0].mxu0
      %v7258 = vpop.f32.mrb[0].mxu0
      %v7259 = vadd.f32 0.0, %v7258
      %v7260 = vpop.f32.mrb[0].mxu0
      %7261 = vmatprep.mubr.bf16.mxu0 0
      %7262 = vmatmul.mubr.bf16.gmra.mrb[0].mxu0 %v7126
      %v7263 = vpop.f32.mrb[0].mxu0
      %v7264 = vadd.f32 0.0, %v7263
      %v7265 = vpop.f32.mrb[0].mxu0
      %v7266 = vpop.f32.mrb[0].mxu0
      %v7267 = vadd.f32 0.0, %v7266
      %v7268 = vpop.f32.mrb[0].mxu0
      %7269 = vmatprep.mubr.bf16.mxu0 0
      %7270 = vmatmul.mubr.bf16.gmra.mrb[0].mxu0 %v7129
      %v7271 = vpop.f32.mrb[0].mxu0
      %v7272 = vadd.f32 0.0, %v7271
      %v7273 = vpop.f32.mrb[0].mxu0
      %v7274 = vpop.f32.mrb[0].mxu0
      %v7275 = vadd.f32 0.0, %v7274
      %v7276 = vpop.f32.mrb[0].mxu0
      %7277 = vmatprep.mubr.bf16.mxu0 0
      %7278 = vmatmul.mubr.bf16.gmra.mrb[0].mxu0 %v7132
      %v7279 = vpop.f32.mrb[0].mxu0
      %v7280 = vadd.f32 0.0, %v7279
      %v7281 = vpop.f32.mrb[0].mxu0
      %v7282 = vpop.f32.mrb[0].mxu0
      %v7283 = vadd.f32 0.0, %v7282
      %v7284 = vpop.f32.mrb[0].mxu0
      %7285 = vmatprep.mubr.bf16.mxu0 0
      %7286 = vmatmul.mubr.bf16.gmra.mrb[0].mxu0 %v7135
      %v7287 = vpop.f32.mrb[0].mxu0
      %v7288 = vadd.f32 0.0, %v7287
      %v7289 = vpop.f32.mrb[0].mxu0
      %v7290 = vpop.f32.mrb[0].mxu0
      %v7291 = vadd.f32 0.0, %v7290
      %v7292 = vpop.f32.mrb[0].mxu0
      %7293 = vmatprep.mubr.bf16.mxu0 0
      %7294 = vmatmul.mubr.bf16.gmra.mrb[0].mxu0 %v7138
      %v7295 = vpop.f32.mrb[0].mxu0
      %v7296 = vadd.f32 0.0, %v7295
      %v7297 = vpop.f32.mrb[0].mxu0
      %v7298 = vpop.f32.mrb[0].mxu0
      %v7299 = vadd.f32 0.0, %v7298
      %v7300 = vpop.f32.mrb[0].mxu0
      %7301 = vmatprep.mubr.bf16.mxu0 0
      %7302 = vmatmul.mubr.bf16.gmra.mrb[0].mxu0 %v7141
      %v7303 = vpop.f32.mrb[0].mxu0
      %v7304 = vadd.f32 0.0, %v7303
      %v7305 = vpop.f32.mrb[0].mxu0
      %v7306 = vpop.f32.mrb[0].mxu0
      %v7307 = vadd.f32 0.0, %v7306
      %v7308 = vpop.f32.mrb[0].mxu0
      %7309 = vmatprep.mubr.bf16.mxu0 0
      %7310 = vmatmul.mubr.bf16.gmra.mrb[0].mxu0 %v7144
      %v7311 = vpop.f32.mrb[0].mxu0
      %v7312 = vadd.f32 0.0, %v7311
      %v7313 = vpop.f32.mrb[0].mxu0
      %v7314 = vpop.f32.mrb[0].mxu0
      %v7315 = vadd.f32 0.0, %v7314
      %v7316 = vpop.f32.mrb[0].mxu0
      %7317 = vmatprep.mubr.bf16.mxu0 0
      %7318 = vmatmul.mubr.bf16.gmra.mrb[0].mxu0 %v7147
      %v7319 = vpop.f32.mrb[0].mxu0
      %v7320 = vadd.f32 0.0, %v7319
      %v7321 = vpop.f32.mrb[0].mxu0
      %v7322 = vpop.f32.mrb[0].mxu0
      %v7323 = vadd.f32 0.0, %v7322
      %v7324 = vpop.f32.mrb[0].mxu0
      %7325 = vdwg.mxu0
      %v7326 = vadd.f32 %v6868, %v7184
      %v7327 = vadd.f32 %v6869, %v7187
      %v7328 = vadd.f32 %v6870, %v7192
      %v7329 = vadd.f32 %v6871, %v7195
      %v7330 = vadd.f32 %v6872, %v7200
      %v7331 = vadd.f32 %v6873, %v7203
      %v7332 = vadd.f32 %v6874, %v7208
      %v7333 = vadd.f32 %v6875, %v7211
      %v7334 = vadd.f32 %v6876, %v7216
      %v7335 = vadd.f32 %v6877, %v7219
      %v7336 = vadd.f32 %v6878, %v7224
      %v7337 = vadd.f32 %v6879, %v7227
      %v7338 = vadd.f32 %v6880, %v7232
      %v7339 = vadd.f32 %v6881, %v7235
      %v7340 = vadd.f32 %v6882, %v7240
      %v7341 = vadd.f32 %v6883, %v7243
      %v7342 = vadd.f32 %v6884, %v7248
      %v7343 = vadd.f32 %v6885, %v7251
      %v7344 = vadd.f32 %v6886, %v7256
      %v7345 = vadd.f32 %v6887, %v7259
      %v7346 = vadd.f32 %v6888, %v7264
      %v7347 = vadd.f32 %v6889, %v7267
      %v7348 = vadd.f32 %v6890, %v7272
      %v7349 = vadd.f32 %v6891, %v7275
      %v7350 = vadd.f32 %v6892, %v7280
      %v7351 = vadd.f32 %v6893, %v7283
      %v7352 = vadd.f32 %v6894, %v7288
      %v7353 = vadd.f32 %v6895, %v7291
      %v7354 = vadd.f32 %v6896, %v7296
      %v7355 = vadd.f32 %v6897, %v7299
      %v7356 = vadd.f32 %v6898, %v7304
      %v7357 = vadd.f32 %v6899, %v7307
      %v7358 = vadd.f32 %v6900, %v7312
      %v7359 = vadd.f32 %v6901, %v7315
      %v7360 = vadd.f32 %v6902, %v7320
      %v7361 = vadd.f32 %v6903, %v7323
      %v7362 = vld [vmem:[#allocation2 + $0x10] sm:$0x8]
      %v7363 = vld [vmem:[%s3 + $0x80] sm:$0xf]
      %v7364 = vld [vmem:[%s3 + $0x84] sm:$0xf]
      %v7365 = vld [vmem:[%s3 + $0x88] sm:$0xf]
      %v7366 = vld [vmem:[%s3 + $0x8c] sm:$0xf]
      %v7368 = vunpack.c.l.b16 %v7362
      %v7369 = vpack.c.b16 %v6533, %v7368
      %vm7370 = vcmask 1044480
      %v7371 = vrot.slane %v7369, 3
      %v7372 = vrot.slane %v6570, 3
      %v7373 = vsel %vm7370, %v7371, %v7372
      %v7374 = vrot.slane %v6571, 3
      %v7375 = vsel %vm7370, %v7372, %v7374
      %v7376 = vrot.slane %v6572, 3
      %v7377 = vsel %vm7370, %v7374, %v7376
      %v7378 = vrot.slane %v6573, 3
      %v7379 = vsel %vm7370, %v7376, %v7378
      %v7380 = vrot.slane %v6574, 3
      %v7381 = vsel %vm7370, %v7378, %v7380
      %v7382 = vrot.slane %v6575, 3
      %v7383 = vsel %vm7370, %v7380, %v7382
      %v7384 = vrot.slane %v6576, 3
      %v7385 = vsel %vm7370, %v7382, %v7384
      %v7386 = vrot.slane %v6577, 3
      %v7387 = vsel %vm7370, %v7384, %v7386
      %v7388 = vrot.slane %v6578, 3
      %v7389 = vsel %vm7370, %v7386, %v7388
      %v7390 = vrot.slane %v6579, 3
      %v7391 = vsel %vm7370, %v7388, %v7390
      %v7392 = vrot.slane %v6580, 3
      %v7393 = vsel %vm7370, %v7390, %v7392
      %v7394 = vrot.slane %v6581, 3
      %v7395 = vsel %vm7370, %v7392, %v7394
      %v7396 = vrot.slane %v6582, 3
      %v7397 = vsel %vm7370, %v7394, %v7396
      %v7398 = vrot.slane %v6583, 3
      %v7399 = vsel %vm7370, %v7396, %v7398
      %v7400 = vrot.slane %v6584, 3
      %v7401 = vsel %vm7370, %v7398, %v7400
      %v7402 = vrot.slane %v6585, 3
      %v7403 = vsel %vm7370, %v7400, %v7402
      %v7404 = vrot.slane %v6586, 3
      %v7405 = vsel %vm7370, %v7402, %v7404
      %v7406 = vrot.slane %v6911, 3
      %v7407 = vsel %vm7370, %v7404, %v7406
      %v7412 = vunpack.c.l.b16 %v7363
      %v7413 = vunpack.c.l.b16 %v7364
      %v7414 = vunpack.c.l.b16 %v7365
      %v7415 = vunpack.c.l.b16 %v7366
      %v7416 = vpack.c.b16 %v7413, %v7412
      %v7417 = vpack.c.b16 %v7415, %v7414
      %v7421 = vsel %vm381, %v7373, 0
      %v7424 = vsel %vm381, %v7375, 0
      %v7427 = vsel %vm381, %v7377, 0
      %v7430 = vsel %vm381, %v7379, 0
      %v7433 = vsel %vm381, %v7381, 0
      %v7436 = vsel %vm381, %v7383, 0
      %v7439 = vsel %vm381, %v7385, 0
      %v7442 = vsel %vm381, %v7387, 0
      %v7445 = vsel %vm381, %v7389, 0
      %v7448 = vsel %vm381, %v7391, 0
      %v7451 = vsel %vm381, %v7393, 0
      %v7454 = vsel %vm381, %v7395, 0
      %v7457 = vsel %vm381, %v7397, 0
      %v7460 = vsel %vm381, %v7399, 0
      %v7463 = vsel %vm381, %v7401, 0
      %v7466 = vsel %vm381, %v7403, 0
      %v7469 = vsel %vm381, %v7405, 0
      %v7472 = vsel %vm381, %v7407, 0
      %7474 = vmatprep.subr.bf16.mxu0 0
      %7475 = vmatpush1.bf16.msra.mxu0 %v7416
      %7476 = vmatprep.subr.bf16.mxu0 0
      %7477 = vmatpush1.bf16.msra.mxu0 %v7417
      %7478 = vmatprep.subr.bf16.mxu0 0
      %7479 = vmatpush1.bf16.msra.mxu0 0
      %7480 = vmatprep.subr.bf16.mxu0 0
      %7481 = vmatpush1.bf16.msra.mxu0 0
      %7482 = vmatprep.subr.bf16.mxu0 0
      %7483 = vmatpush1.bf16.msra.mxu0 0
      %7484 = vmatprep.subr.bf16.mxu0 0
      %7485 = vmatpush1.bf16.msra.mxu0 0
      %7486 = vmatprep.subr.bf16.mxu0 0
      %7487 = vmatpush1.bf16.msra.mxu0 0
      %7488 = vmatprep.subr.bf16.mxu0 0
      %7489 = vmatpush1.bf16.msra.mxu0 0
      %7490 = vmatprep.subr.bf16.mxu0 0
      %7491 = vmatpush1.bf16.msra.mxu0 0
      %7492 = vmatprep.subr.bf16.mxu0 0
      %7493 = vmatpush1.bf16.msra.mxu0 0
      %7494 = vmatprep.subr.bf16.mxu0 0
      %7495 = vmatpush1.bf16.msra.mxu0 0
      %7496 = vmatprep.subr.bf16.mxu0 0
      %7497 = vmatpush1.bf16.msra.mxu0 0
      %7498 = vmatprep.subr.bf16.mxu0 0
      %7499 = vmatpush1.bf16.msra.mxu0 0
      %7500 = vmatprep.subr.bf16.mxu0 0
      %7501 = vmatpush1.bf16.msra.mxu0 0
      %7502 = vmatprep.subr.bf16.mxu0 0
      %7503 = vmatpush1.bf16.msra.mxu0 0
      %7504 = vmatprep.subr.bf16.mxu0 0
      %7505 = vmatpush1.bf16.msra.mxu0 0
      %7506 = vmatprep.mubr.bf16.mxu0 0
      %7507 = vmatmul.mubr.bf16.gmra.mrb[0].mxu0 %v7421
      %v7508 = vpop.f32.mrb[0].mxu0
      %v7509 = vadd.f32 0.0, %v7508
      %v7510 = vpop.f32.mrb[0].mxu0
      %v7511 = vpop.f32.mrb[0].mxu0
      %v7512 = vadd.f32 0.0, %v7511
      %v7513 = vpop.f32.mrb[0].mxu0
      %7514 = vmatprep.mubr.bf16.mxu0 0
      %7515 = vmatmul.mubr.bf16.gmra.mrb[0].mxu0 %v7424
      %v7516 = vpop.f32.mrb[0].mxu0
      %v7517 = vadd.f32 0.0, %v7516
      %v7518 = vpop.f32.mrb[0].mxu0
      %v7519 = vpop.f32.mrb[0].mxu0
      %v7520 = vadd.f32 0.0, %v7519
      %v7521 = vpop.f32.mrb[0].mxu0
      %7522 = vmatprep.mubr.bf16.mxu0 0
      %7523 = vmatmul.mubr.bf16.gmra.mrb[0].mxu0 %v7427
      %v7524 = vpop.f32.mrb[0].mxu0
      %v7525 = vadd.f32 0.0, %v7524
      %v7526 = vpop.f32.mrb[0].mxu0
      %v7527 = vpop.f32.mrb[0].mxu0
      %v7528 = vadd.f32 0.0, %v7527
      %v7529 = vpop.f32.mrb[0].mxu0
      %7530 = vmatprep.mubr.bf16.mxu0 0
      %7531 = vmatmul.mubr.bf16.gmra.mrb[0].mxu0 %v7430
      %v7532 = vpop.f32.mrb[0].mxu0
      %v7533 = vadd.f32 0.0, %v7532
      %v7534 = vpop.f32.mrb[0].mxu0
      %v7535 = vpop.f32.mrb[0].mxu0
      %v7536 = vadd.f32 0.0, %v7535
      %v7537 = vpop.f32.mrb[0].mxu0
      %7538 = vmatprep.mubr.bf16.mxu0 0
      %7539 = vmatmul.mubr.bf16.gmra.mrb[0].mxu0 %v7433
      %v7540 = vpop.f32.mrb[0].mxu0
      %v7541 = vadd.f32 0.0, %v7540
      %v7542 = vpop.f32.mrb[0].mxu0
      %v7543 = vpop.f32.mrb[0].mxu0
      %v7544 = vadd.f32 0.0, %v7543
      %v7545 = vpop.f32.mrb[0].mxu0
      %7546 = vmatprep.mubr.bf16.mxu0 0
      %7547 = vmatmul.mubr.bf16.gmra.mrb[0].mxu0 %v7436
      %v7548 = vpop.f32.mrb[0].mxu0
      %v7549 = vadd.f32 0.0, %v7548
      %v7550 = vpop.f32.mrb[0].mxu0
      %v7551 = vpop.f32.mrb[0].mxu0
      %v7552 = vadd.f32 0.0, %v7551
      %v7553 = vpop.f32.mrb[0].mxu0
      %7554 = vmatprep.mubr.bf16.mxu0 0
      %7555 = vmatmul.mubr.bf16.gmra.mrb[0].mxu0 %v7439
      %v7556 = vpop.f32.mrb[0].mxu0
      %v7557 = vadd.f32 0.0, %v7556
      %v7558 = vpop.f32.mrb[0].mxu0
      %v7559 = vpop.f32.mrb[0].mxu0
      %v7560 = vadd.f32 0.0, %v7559
      %v7561 = vpop.f32.mrb[0].mxu0
      %7562 = vmatprep.mubr.bf16.mxu0 0
      %7563 = vmatmul.mubr.bf16.gmra.mrb[0].mxu0 %v7442
      %v7564 = vpop.f32.mrb[0].mxu0
      %v7565 = vadd.f32 0.0, %v7564
      %v7566 = vpop.f32.mrb[0].mxu0
      %v7567 = vpop.f32.mrb[0].mxu0
      %v7568 = vadd.f32 0.0, %v7567
      %v7569 = vpop.f32.mrb[0].mxu0
      %7570 = vmatprep.mubr.bf16.mxu0 0
      %7571 = vmatmul.mubr.bf16.gmra.mrb[0].mxu0 %v7445
      %v7572 = vpop.f32.mrb[0].mxu0
      %v7573 = vadd.f32 0.0, %v7572
      %v7574 = vpop.f32.mrb[0].mxu0
      %v7575 = vpop.f32.mrb[0].mxu0
      %v7576 = vadd.f32 0.0, %v7575
      %v7577 = vpop.f32.mrb[0].mxu0
      %7578 = vmatprep.mubr.bf16.mxu0 0
      %7579 = vmatmul.mubr.bf16.gmra.mrb[0].mxu0 %v7448
      %v7580 = vpop.f32.mrb[0].mxu0
      %v7581 = vadd.f32 0.0, %v7580
      %v7582 = vpop.f32.mrb[0].mxu0
      %v7583 = vpop.f32.mrb[0].mxu0
      %v7584 = vadd.f32 0.0, %v7583
      %v7585 = vpop.f32.mrb[0].mxu0
      %7586 = vmatprep.mubr.bf16.mxu0 0
      %7587 = vmatmul.mubr.bf16.gmra.mrb[0].mxu0 %v7451
      %v7588 = vpop.f32.mrb[0].mxu0
      %v7589 = vadd.f32 0.0, %v7588
      %v7590 = vpop.f32.mrb[0].mxu0
      %v7591 = vpop.f32.mrb[0].mxu0
      %v7592 = vadd.f32 0.0, %v7591
      %v7593 = vpop.f32.mrb[0].mxu0
      %7594 = vmatprep.mubr.bf16.mxu0 0
      %7595 = vmatmul.mubr.bf16.gmra.mrb[0].mxu0 %v7454
      %v7596 = vpop.f32.mrb[0].mxu0
      %v7597 = vadd.f32 0.0, %v7596
      %v7598 = vpop.f32.mrb[0].mxu0
      %v7599 = vpop.f32.mrb[0].mxu0
      %v7600 = vadd.f32 0.0, %v7599
      %v7601 = vpop.f32.mrb[0].mxu0
      %7602 = vmatprep.mubr.bf16.mxu0 0
      %7603 = vmatmul.mubr.bf16.gmra.mrb[0].mxu0 %v7457
      %v7604 = vpop.f32.mrb[0].mxu0
      %v7605 = vadd.f32 0.0, %v7604
      %v7606 = vpop.f32.mrb[0].mxu0
      %v7607 = vpop.f32.mrb[0].mxu0
      %v7608 = vadd.f32 0.0, %v7607
      %v7609 = vpop.f32.mrb[0].mxu0
      %7610 = vmatprep.mubr.bf16.mxu0 0
      %7611 = vmatmul.mubr.bf16.gmra.mrb[0].mxu0 %v7460
      %v7612 = vpop.f32.mrb[0].mxu0
      %v7613 = vadd.f32 0.0, %v7612
      %v7614 = vpop.f32.mrb[0].mxu0
      %v7615 = vpop.f32.mrb[0].mxu0
      %v7616 = vadd.f32 0.0, %v7615
      %v7617 = vpop.f32.mrb[0].mxu0
      %7618 = vmatprep.mubr.bf16.mxu0 0
      %7619 = vmatmul.mubr.bf16.gmra.mrb[0].mxu0 %v7463
      %v7620 = vpop.f32.mrb[0].mxu0
      %v7621 = vadd.f32 0.0, %v7620
      %v7622 = vpop.f32.mrb[0].mxu0
      %v7623 = vpop.f32.mrb[0].mxu0
      %v7624 = vadd.f32 0.0, %v7623
      %v7625 = vpop.f32.mrb[0].mxu0
      %7626 = vmatprep.mubr.bf16.mxu0 0
      %7627 = vmatmul.mubr.bf16.gmra.mrb[0].mxu0 %v7466
      %v7628 = vpop.f32.mrb[0].mxu0
      %v7629 = vadd.f32 0.0, %v7628
      %v7630 = vpop.f32.mrb[0].mxu0
      %v7631 = vpop.f32.mrb[0].mxu0
      %v7632 = vadd.f32 0.0, %v7631
      %v7633 = vpop.f32.mrb[0].mxu0
      %7634 = vmatprep.mubr.bf16.mxu0 0
      %7635 = vmatmul.mubr.bf16.gmra.mrb[0].mxu0 %v7469
      %v7636 = vpop.f32.mrb[0].mxu0
      %v7637 = vadd.f32 0.0, %v7636
      %v7638 = vpop.f32.mrb[0].mxu0
      %v7639 = vpop.f32.mrb[0].mxu0
      %v7640 = vadd.f32 0.0, %v7639
      %v7641 = vpop.f32.mrb[0].mxu0
      %7642 = vmatprep.mubr.bf16.mxu0 0
      %7643 = vmatmul.mubr.bf16.gmra.mrb[0].mxu0 %v7472
      %v7644 = vpop.f32.mrb[0].mxu0
      %v7645 = vadd.f32 0.0, %v7644
      %v7646 = vpop.f32.mrb[0].mxu0
      %v7647 = vpop.f32.mrb[0].mxu0
      %v7648 = vadd.f32 0.0, %v7647
      %v7649 = vpop.f32.mrb[0].mxu0
      %7650 = vdwg.mxu0
      %v7651 = vadd.f32 %v7326, %v7509
      %v7652 = vadd.f32 %v7327, %v7512
      %v7653 = vadd.f32 %v7328, %v7517
      %v7654 = vadd.f32 %v7329, %v7520
      %v7655 = vadd.f32 %v7330, %v7525
      %v7656 = vadd.f32 %v7331, %v7528
      %v7657 = vadd.f32 %v7332, %v7533
      %v7658 = vadd.f32 %v7333, %v7536
      %v7659 = vadd.f32 %v7334, %v7541
      %v7660 = vadd.f32 %v7335, %v7544
      %v7661 = vadd.f32 %v7336, %v7549
      %v7662 = vadd.f32 %v7337, %v7552
      %v7663 = vadd.f32 %v7338, %v7557
      %v7664 = vadd.f32 %v7339, %v7560
      %v7665 = vadd.f32 %v7340, %v7565
      %v7666 = vadd.f32 %v7341, %v7568
      %v7667 = vadd.f32 %v7342, %v7573
      %v7668 = vadd.f32 %v7343, %v7576
      %v7669 = vadd.f32 %v7344, %v7581
      %v7670 = vadd.f32 %v7345, %v7584
      %v7671 = vadd.f32 %v7346, %v7589
      %v7672 = vadd.f32 %v7347, %v7592
      %v7673 = vadd.f32 %v7348, %v7597
      %v7674 = vadd.f32 %v7349, %v7600
      %v7675 = vadd.f32 %v7350, %v7605
      %v7676 = vadd.f32 %v7351, %v7608
      %v7677 = vadd.f32 %v7352, %v7613
      %v7678 = vadd.f32 %v7353, %v7616
      %v7679 = vadd.f32 %v7354, %v7621
      %v7680 = vadd.f32 %v7355, %v7624
      %v7681 = vadd.f32 %v7356, %v7629
      %v7682 = vadd.f32 %v7357, %v7632
      %v7683 = vadd.f32 %v7358, %v7637
      %v7684 = vadd.f32 %v7359, %v7640
      %v7685 = vadd.f32 %v7360, %v7645
      %v7686 = vadd.f32 %v7361, %v7648
      %v7687 = vld [vmem:[%s246 + $0x13] sm:$0xff]
      %v7688 = vld [vmem:[%s246 + $0x1b] sm:$0xff]
      %v7689 = vld [vmem:[%s246 + $0x23] sm:$0xff]
      %v7690 = vld [vmem:[%s246 + $0x2b] sm:$0xff]
      %v7691 = vld [vmem:[%s246 + $0x33] sm:$0xff]
      %v7692 = vld [vmem:[%s246 + $0x3b] sm:$0xff]
      %v7693 = vld [vmem:[%s246 + $0x43] sm:$0xff]
      %v7694 = vld [vmem:[%s246 + $0x4b] sm:$0xff]
      %v7695 = vld [vmem:[%s246 + $0x53] sm:$0xff]
      %v7696 = vld [vmem:[%s246 + $0x5b] sm:$0xff]
      %v7697 = vld [vmem:[%s246 + $0x63] sm:$0xff]
      %v7698 = vld [vmem:[%s246 + $0x6b] sm:$0xff]
      %v7699 = vld [vmem:[%s246 + $0x73] sm:$0xff]
      %v7700 = vld [vmem:[%s246 + $0x7b] sm:$0xff]
      %v7701 = vld [vmem:[%s246 + $0x83] sm:$0xff]
      %v7702 = vld [vmem:[%s246 + $0x8b] sm:$0xff]
      %v7703 = vld [vmem:[%s246 + $0x93] sm:$0xff]
      %v7704 = vld [vmem:[%s246 + $0x9b] sm:$0xff]
      %v7705 = vld [vmem:[%s246 + $0xa3] sm:$0xff]
      %v7706 = vld [vmem:[%s246 + $0xab] sm:$0xff]
      %v7707 = vld [vmem:[%s246 + $0xb3] sm:$0xff]
      %v7708 = vld [vmem:[%s246 + $0xbb] sm:$0xff]
      %v7709 = vld [vmem:[%s246 + $0xc3] sm:$0xff]
      %v7710 = vld [vmem:[%s246 + $0xcb] sm:$0xff]
      %v7711 = vld [vmem:[%s246 + $0xd3] sm:$0xff]
      %v7712 = vld [vmem:[%s246 + $0xdb] sm:$0xff]
      %v7713 = vld [vmem:[%s246 + $0xe3] sm:$0xff]
      %v7714 = vld [vmem:[%s246 + $0xeb] sm:$0xff]
      %v7715 = vld [vmem:[%s246 + $0xf3] sm:$0xff]
      %v7716 = vld [vmem:[%s246 + $0xfb] sm:$0xff]
      %v7717 = vld [vmem:[%s246 + $0x103] sm:$0xff]
      %v7718 = vld [vmem:[%s246 + $0x10b] sm:$0xff]
      %v7719 = vld [vmem:[%s246 + $0x113] sm:$0xff]
      %v7720 = vld [vmem:[%s246 + $0x11b] sm:$0xff]
      %v7721 = vld [vmem:[%s246 + $0x123] sm:$0xff]
      %v7722 = vld [vmem:[%s246 + $0x12b] sm:$0xff]
      %v7723 = vld [vmem:[%s4] sm:$0x1]
      %v7725 = vlaneseq
      %v7726 = vshrl.u32 %v7725, 7
      %v7727 = vsub.s32 0, %v7726
      %v7728 = vrot.slane %v7723, %v7727
      %v7730 = vadd.f32 %v7651, %v7728
      %v7731 = vadd.f32 %v7652, %v7728
      %v7732 = vadd.f32 %v7653, %v7728
      %v7733 = vadd.f32 %v7654, %v7728
      %v7734 = vadd.f32 %v7655, %v7728
      %v7735 = vadd.f32 %v7656, %v7728
      %v7736 = vadd.f32 %v7657, %v7728
      %v7737 = vadd.f32 %v7658, %v7728
      %v7738 = vadd.f32 %v7659, %v7728
      %v7739 = vadd.f32 %v7660, %v7728
      %v7740 = vadd.f32 %v7661, %v7728
      %v7741 = vadd.f32 %v7662, %v7728
      %v7742 = vadd.f32 %v7663, %v7728
      %v7743 = vadd.f32 %v7664, %v7728
      %v7744 = vadd.f32 %v7665, %v7728
      %v7745 = vadd.f32 %v7666, %v7728
      %v7746 = vadd.f32 %v7667, %v7728
      %v7747 = vadd.f32 %v7668, %v7728
      %v7748 = vadd.f32 %v7669, %v7728
      %v7749 = vadd.f32 %v7670, %v7728
      %v7750 = vadd.f32 %v7671, %v7728
      %v7751 = vadd.f32 %v7672, %v7728
      %v7752 = vadd.f32 %v7673, %v7728
      %v7753 = vadd.f32 %v7674, %v7728
      %v7754 = vadd.f32 %v7675, %v7728
      %v7755 = vadd.f32 %v7676, %v7728
      %v7756 = vadd.f32 %v7677, %v7728
      %v7757 = vadd.f32 %v7678, %v7728
      %v7758 = vadd.f32 %v7679, %v7728
      %v7759 = vadd.f32 %v7680, %v7728
      %v7760 = vadd.f32 %v7681, %v7728
      %v7761 = vadd.f32 %v7682, %v7728
      %v7762 = vadd.f32 %v7683, %v7728
      %v7763 = vadd.f32 %v7684, %v7728
      %v7764 = vadd.f32 %v7685, %v7728
      %v7765 = vadd.f32 %v7686, %v7728
      %v7766 = vadd.f32 %v7730, %v7687
      %v7767 = vadd.f32 %v7731, %v7688
      %v7768 = vadd.f32 %v7732, %v7689
      %v7769 = vadd.f32 %v7733, %v7690
      %v7770 = vadd.f32 %v7734, %v7691
      %v7771 = vadd.f32 %v7735, %v7692
      %v7772 = vadd.f32 %v7736, %v7693
      %v7773 = vadd.f32 %v7737, %v7694
      %v7774 = vadd.f32 %v7738, %v7695
      %v7775 = vadd.f32 %v7739, %v7696
      %v7776 = vadd.f32 %v7740, %v7697
      %v7777 = vadd.f32 %v7741, %v7698
      %v7778 = vadd.f32 %v7742, %v7699
      %v7779 = vadd.f32 %v7743, %v7700
      %v7780 = vadd.f32 %v7744, %v7701
      %v7781 = vadd.f32 %v7745, %v7702
      %v7782 = vadd.f32 %v7746, %v7703
      %v7783 = vadd.f32 %v7747, %v7704
      %v7784 = vadd.f32 %v7748, %v7705
      %v7785 = vadd.f32 %v7749, %v7706
      %v7786 = vadd.f32 %v7750, %v7707
      %v7787 = vadd.f32 %v7751, %v7708
      %v7788 = vadd.f32 %v7752, %v7709
      %v7789 = vadd.f32 %v7753, %v7710
      %v7790 = vadd.f32 %v7754, %v7711
      %v7791 = vadd.f32 %v7755, %v7712
      %v7792 = vadd.f32 %v7756, %v7713
      %v7793 = vadd.f32 %v7757, %v7714
      %v7794 = vadd.f32 %v7758, %v7715
      %v7795 = vadd.f32 %v7759, %v7716
      %v7796 = vadd.f32 %v7760, %v7717
      %v7797 = vadd.f32 %v7761, %v7718
      %v7798 = vadd.f32 %v7762, %v7719
      %v7799 = vadd.f32 %v7763, %v7720
      %v7800 = vadd.f32 %v7764, %v7721
      %v7801 = vadd.f32 %v7765, %v7722
      %v7802 = vmax.f32 %v7766, 0.0
      %v7803 = vmax.f32 %v7767, 0.0
      %v7804 = vmax.f32 %v7768, 0.0
      %v7805 = vmax.f32 %v7769, 0.0
      %v7806 = vmax.f32 %v7770, 0.0
      %v7807 = vmax.f32 %v7771, 0.0
      %v7808 = vmax.f32 %v7772, 0.0
      %v7809 = vmax.f32 %v7773, 0.0
      %v7810 = vmax.f32 %v7774, 0.0
      %v7811 = vmax.f32 %v7775, 0.0
      %v7812 = vmax.f32 %v7776, 0.0
      %v7813 = vmax.f32 %v7777, 0.0
      %v7814 = vmax.f32 %v7778, 0.0
      %v7815 = vmax.f32 %v7779, 0.0
      %v7816 = vmax.f32 %v7780, 0.0
      %v7817 = vmax.f32 %v7781, 0.0
      %v7818 = vmax.f32 %v7782, 0.0
      %v7819 = vmax.f32 %v7783, 0.0
      %v7820 = vmax.f32 %v7784, 0.0
      %v7821 = vmax.f32 %v7785, 0.0
      %v7822 = vmax.f32 %v7786, 0.0
      %v7823 = vmax.f32 %v7787, 0.0
      %v7824 = vmax.f32 %v7788, 0.0
      %v7825 = vmax.f32 %v7789, 0.0
      %v7826 = vmax.f32 %v7790, 0.0
      %v7827 = vmax.f32 %v7791, 0.0
      %v7828 = vmax.f32 %v7792, 0.0
      %v7829 = vmax.f32 %v7793, 0.0
      %v7830 = vmax.f32 %v7794, 0.0
      %v7831 = vmax.f32 %v7795, 0.0
      %v7832 = vmax.f32 %v7796, 0.0
      %v7833 = vmax.f32 %v7797, 0.0
      %v7834 = vmax.f32 %v7798, 0.0
      %v7835 = vmax.f32 %v7799, 0.0
      %v7836 = vmax.f32 %v7800, 0.0
      %v7837 = vmax.f32 %v7801, 0.0
      %7838 = vst.msk [vmem:[%s251] sm:$0xff] %vm381, %v7802
      %7839 = vst.msk [vmem:[%s251 + $0x8] sm:$0xff] %vm381, %v7803
      %7840 = vst.msk [vmem:[%s251 + $0x10] sm:$0xff] %vm381, %v7804
      %7841 = vst.msk [vmem:[%s251 + $0x18] sm:$0xff] %vm381, %v7805
      %7842 = vst.msk [vmem:[%s251 + $0x20] sm:$0xff] %vm381, %v7806
      %7843 = vst.msk [vmem:[%s251 + $0x28] sm:$0xff] %vm381, %v7807
      %7844 = vst.msk [vmem:[%s251 + $0x30] sm:$0xff] %vm381, %v7808
      %7845 = vst.msk [vmem:[%s251 + $0x38] sm:$0xff] %vm381, %v7809
      %7846 = vst.msk [vmem:[%s251 + $0x40] sm:$0xff] %vm381, %v7810
      %7847 = vst.msk [vmem:[%s251 + $0x48] sm:$0xff] %vm381, %v7811
      %7848 = vst.msk [vmem:[%s251 + $0x50] sm:$0xff] %vm381, %v7812
      %7849 = vst.msk [vmem:[%s251 + $0x58] sm:$0xff] %vm381, %v7813
      %7850 = vst.msk [vmem:[%s251 + $0x60] sm:$0xff] %vm381, %v7814
      %7851 = vst.msk [vmem:[%s251 + $0x68] sm:$0xff] %vm381, %v7815
      %7852 = vst.msk [vmem:[%s251 + $0x70] sm:$0xff] %vm381, %v7816
      %7853 = vst.msk [vmem:[%s251 + $0x78] sm:$0xff] %vm381, %v7817
      %7854 = vst.msk [vmem:[%s251 + $0x80] sm:$0xff] %vm381, %v7818
      %7855 = vst.msk [vmem:[%s251 + $0x88] sm:$0xff] %vm381, %v7819
      %7856 = vst.msk [vmem:[%s251 + $0x90] sm:$0xff] %vm381, %v7820
      %7857 = vst.msk [vmem:[%s251 + $0x98] sm:$0xff] %vm381, %v7821
      %7858 = vst.msk [vmem:[%s251 + $0xa0] sm:$0xff] %vm381, %v7822
      %7859 = vst.msk [vmem:[%s251 + $0xa8] sm:$0xff] %vm381, %v7823
      %7860 = vst.msk [vmem:[%s251 + $0xb0] sm:$0xff] %vm381, %v7824
      %7861 = vst.msk [vmem:[%s251 + $0xb8] sm:$0xff] %vm381, %v7825
      %7862 = vst.msk [vmem:[%s251 + $0xc0] sm:$0xff] %vm381, %v7826
      %7863 = vst.msk [vmem:[%s251 + $0xc8] sm:$0xff] %vm381, %v7827
      %7864 = vst.msk [vmem:[%s251 + $0xd0] sm:$0xff] %vm381, %v7828
      %7865 = vst.msk [vmem:[%s251 + $0xd8] sm:$0xff] %vm381, %v7829
      %7866 = vst.msk [vmem:[%s251 + $0xe0] sm:$0xff] %vm381, %v7830
      %7867 = vst.msk [vmem:[%s251 + $0xe8] sm:$0xff] %vm381, %v7831
      %7868 = vst.msk [vmem:[%s251 + $0xf0] sm:$0xff] %vm381, %v7832
      %7869 = vst.msk [vmem:[%s251 + $0xf8] sm:$0xff] %vm381, %v7833
      %7870 = vst.msk [vmem:[%s251 + $0x100] sm:$0xff] %vm381, %v7834
      %7871 = vst.msk [vmem:[%s251 + $0x108] sm:$0xff] %vm381, %v7835
      %7872 = vst.msk [vmem:[%s251 + $0x110] sm:$0xff] %vm381, %v7836
      %7873 = vst.msk [vmem:[%s251 + $0x118] sm:$0xff] %vm381, %v7837
      %p7874 = scmp.lt.s32.totalorder %s17, 1
      %s7875 = scalar_select %p7874, %s17, 1
      %s7876 = smul.addr %s7875, 36
      %s7877 = smul.addr %s7876, 8
      %s7878 = scalar_lea.vmem %s6, %s7877
      // Predicated region
      $region45: #{basic_block_forward.1} parent=43 // pred_check
        %p7879 = pneg %p166
      $region46: #{basic_block_forward.1} parent=43 // pred_check_branch
        %7881 = sbr.rel (%p7879) target = $region48
      $region47: #{basic_block_forward.1} parent=43 // pred_region
        _
      $region48: #{basic_block_forward.1} parent=43 // pred_fallthru
        _
    $region44: #{basic_block_forward.1} parent=5 // pred_fallthru
      _
    %p7882 = scmp.le.s32.totalorder 2, %s12
    // Predicated region
    $region49: #{basic_block_forward.1} parent=5 // pred_check
      %p7883 = pneg %p7882
    $region50: #{basic_block_forward.1} parent=5 // pred_check_branch
      %7885 = sbr.rel (%p7883) target = $region52
    $region51: #{basic_block_forward.1} parent=5 // pred_region
      %s7886 = ssub.s32 %s12, 2
      // Predicated region
      $region53: #{basic_block_forward.1} parent=51 // pred_check
        %p7887 = pneg %p172
      $region54: #{basic_block_forward.1} parent=51 // pred_check_branch
        %7889 = sbr.rel (%p7887) target = $region56
      $region55: #{basic_block_forward.1} parent=51 // pred_region
        %p7890 = scmp.lt.s32.totalorder %s18, 1
        %s7891 = scalar_select %p7890, %s18, 1
        %s7892 = smul.addr %s7891, 36
        %s7893 = smul.addr %s7892, 8
        %s7894 = scalar_lea.vmem %s6, %s7893
      $region56: #{basic_block_forward.1} parent=51 // pred_fallthru
        _
    $region52: #{basic_block_forward.1} parent=5 // pred_fallthru
      _
  $region6: #{basic_block_forward.1} parent=0 // loop_footer
    %s16 = sadd.s32 1, %s12
  $region7: #{basic_block_forward.1} parent=0 // loop_footer_branch
    %11 = sbr.rel target = $region3
  $region8: #{basic_block_forward.1} parent=0 // loop_exit
    _

</llo_original>
